<compile_context>
chip_gen: v6e
topology: v6e:2x2x1
jax: 0.10.0
libtpu: 0.0.40
codegen_flags: <defaults>
</compile_context>

<pallas_src>
import functools

import jax
import jax.numpy as jnp
from jax.experimental import pallas as pl
from jax.experimental.pallas import tpu as pltpu

INPUT_SIZE = 3953
H1 = 1000
LATENT = 100

_VMEM_LIMIT = 32 * 1024 * 1024


def _pad_to(n, m):
    return ((n + m - 1) // m) * m


def _pad2(a, rows, cols):
    return jnp.pad(a, ((0, rows - a.shape[0]), (0, cols - a.shape[1])))


def _pad1(a, n):
    return jnp.pad(a, (0, n - a.shape[0]))


# ----------------------------------------------------------------------------
# Fused linear (+ bias + activation): y = act(x @ W + b)
# Grid iterates over the N (output-column) axis; full-K operands per step.
# ----------------------------------------------------------------------------
def _linear_kernel(x_ref, w_ref, b_ref, o_ref, *, act):
    y = jnp.dot(
        x_ref[...].astype(jnp.bfloat16),
        w_ref[...],
        preferred_element_type=jnp.float32,
    ) + b_ref[...]
    if act == "relu":
        y = jnp.maximum(y, 0.0)
    elif act == "sigmoid":
        y = jax.nn.sigmoid(y)
    o_ref[...] = y


def pallas_linear(x, w, b, act="none", tn=512):
    """x: (Bp, Kp) f32, w: (Kp, Np) bf16, b: (1, Np) f32.  Dims pre-padded."""
    Bp, Kp = x.shape
    Kw, Np = w.shape
    assert Kw == Kp
    assert b.shape == (1, Np)
    tn = min(tn, Np)
    assert Np % tn == 0

    return pl.pallas_call(
        functools.partial(_linear_kernel, act=act),
        out_shape=jax.ShapeDtypeStruct((Bp, Np), jnp.float32),
        grid_spec=pltpu.PrefetchScalarGridSpec(
            num_scalar_prefetch=0,
            grid=(Np // tn,),
            in_specs=[
                pl.BlockSpec((Bp, Kp), lambda j: (0, 0)),  # activation resident
                pl.BlockSpec((Kp, tn), lambda j: (0, j)),  # stream weight tiles
                pl.BlockSpec((1, tn), lambda j: (0, j)),
            ],
            out_specs=pl.BlockSpec((Bp, tn), lambda j: (0, j)),
        ),
        compiler_params=pltpu.CompilerParams(
            dimension_semantics=("parallel",),
            vmem_limit_bytes=_VMEM_LIMIT,
        ),
    )(x, w, b)


# ----------------------------------------------------------------------------
# Fused latent head: [mu | logvar] = h @ W_cat + b_cat,
#                    z = eps * exp(0.5*logvar) + mu
# Single invocation (everything fits in one block).
# ----------------------------------------------------------------------------
def _latent_kernel(h_ref, w_ref, b_ref, eps_ref, mu_ref, logvar_ref, z_ref, *, lp):
    y = jnp.dot(
        h_ref[...].astype(jnp.bfloat16),
        w_ref[...],
        preferred_element_type=jnp.float32,
    ) + b_ref[...]
    mu = y[:, :lp]
    logvar = y[:, lp:]
    mu_ref[...] = mu
    logvar_ref[...] = logvar
    z_ref[...] = eps_ref[...] * jnp.exp(0.5 * logvar) + mu


def pallas_latent(h, w_cat, b_cat, eps):
    """h: (Bp, Kp) f32, w_cat: (Kp, 2*Lp) bf16, b_cat: (1, 2*Lp) f32,
    eps: (Bp, Lp) f32 -> (mu, logvar, z) each (Bp, Lp) f32."""
    Bp, _ = h.shape
    Np = w_cat.shape[1]
    lp = Np // 2
    out_shape = (
        jax.ShapeDtypeStruct((Bp, lp), jnp.float32),
        jax.ShapeDtypeStruct((Bp, lp), jnp.float32),
        jax.ShapeDtypeStruct((Bp, lp), jnp.float32),
    )
    return pl.pallas_call(
        functools.partial(_latent_kernel, lp=lp),
        out_shape=out_shape,
        compiler_params=pltpu.CompilerParams(vmem_limit_bytes=_VMEM_LIMIT),
    )(h, w_cat, b_cat, eps)


# ----------------------------------------------------------------------------
# Parameter init (PyTorch-like uniform(-1/sqrt(fan_in), +1/sqrt(fan_in))).
# Weights stored as (in_features, out_features)  (transpose of nn.Linear).
# ----------------------------------------------------------------------------
def init_params(key):
    dims = [
        ("fc1", INPUT_SIZE, H1),
        ("fc21", H1, LATENT),
        ("fc22", H1, LATENT),
        ("fc3", LATENT, H1),
        ("fc4", H1, INPUT_SIZE),
    ]
    params = {}
    for name, fan_in, fan_out in dims:
        key, kw, kb = jax.random.split(key, 3)
        bound = 1.0 / jnp.sqrt(fan_in)
        params[name] = {
            "w": jax.random.uniform(kw, (fan_in, fan_out), jnp.float32, -bound, bound),
            "b": jax.random.uniform(kb, (fan_out,), jnp.float32, -bound, bound),
        }
    return params


def prepare_params(params):
    """Pad + cast weights once, off the hot path. Returns kernel-ready params."""
    IN_P = _pad_to(INPUT_SIZE, 512)  # 4096 (divides by tn=512)
    H1_P = _pad_to(H1, 128)          # 1024
    L_P = _pad_to(LATENT, 128)       # 128

    w21 = _pad2(params["fc21"]["w"], H1_P, L_P)
    w22 = _pad2(params["fc22"]["w"], H1_P, L_P)
    b21 = _pad1(params["fc21"]["b"], L_P)
    b22 = _pad1(params["fc22"]["b"], L_P)

    return {
        "fc1_w": _pad2(params["fc1"]["w"], IN_P, H1_P).astype(jnp.bfloat16),
        "fc1_b": _pad1(params["fc1"]["b"], H1_P).reshape(1, H1_P),
        "fc2x_w": jnp.concatenate([w21, w22], axis=1).astype(jnp.bfloat16),
        "fc2x_b": jnp.concatenate([b21, b22], axis=0).reshape(1, 2 * L_P),
        "fc3_w": _pad2(params["fc3"]["w"], L_P, H1_P).astype(jnp.bfloat16),
        "fc3_b": _pad1(params["fc3"]["b"], H1_P).reshape(1, H1_P),
        "fc4_w": _pad2(params["fc4"]["w"], H1_P, IN_P).astype(jnp.bfloat16),
        "fc4_b": _pad1(params["fc4"]["b"], IN_P).reshape(1, IN_P),
    }


# ----------------------------------------------------------------------------
# Full VAE forward (matches the torch module's semantics; eps made explicit).
# ----------------------------------------------------------------------------
def vae_forward(p, x, eps):
    x = x.reshape(-1, INPUT_SIZE).astype(jnp.float32)
    B = x.shape[0]
    Bp = _pad_to(B, 8)

    IN_P = p["fc1_w"].shape[0]
    L_P = p["fc3_w"].shape[0]

    xp = _pad2(x, Bp, IN_P)
    eps_p = _pad2(eps.astype(jnp.float32), Bp, L_P)

    # encode + reparameterize (fc21/fc22 fused, reparam in epilogue)
    h1 = pallas_linear(xp, p["fc1_w"], p["fc1_b"], act="relu", tn=512)
    mu_p, logvar_p, z_p = pallas_latent(h1, p["fc2x_w"], p["fc2x_b"], eps_p)

    # decode
    h3 = pallas_linear(z_p, p["fc3_w"], p["fc3_b"], act="relu", tn=512)
    recon_p = pallas_linear(h3, p["fc4_w"], p["fc4_b"], act="sigmoid", tn=512)

    recon = recon_p[:B, :INPUT_SIZE]
    mu = mu_p[:B, :LATENT]
    logvar = logvar_p[:B, :LATENT]
    return recon, mu, logvar


# ----------------------------------------------------------------------------
# Pure-JAX reference using the SAME prepared (padded bf16) params, for a
# kernel-correctness check independent of the bf16 cast.
# ----------------------------------------------------------------------------
def vae_forward_ref(p, x, eps):
    x = x.reshape(-1, INPUT_SIZE).astype(jnp.float32)
    IN_P = p["fc1_w"].shape[0]
    L_P = p["fc3_w"].shape[0]
    xp = jnp.pad(x, ((0, 0), (0, IN_P - INPUT_SIZE)))
    eps_p = jnp.pad(eps.astype(jnp.float32), ((0, 0), (0, L_P - LATENT)))

    def lin(a, w, b):
        return jnp.dot(a.astype(jnp.bfloat16), w,
                       preferred_element_type=jnp.float32) + b

    h1 = jnp.maximum(lin(xp, p["fc1_w"], p["fc1_b"]), 0.0)
    y = lin(h1, p["fc2x_w"], p["fc2x_b"])
    lp = p["fc2x_w"].shape[1] // 2
    mu = y[:, :lp]
    logvar = y[:, lp:]
    z = eps_p * jnp.exp(0.5 * logvar) + mu
    h3 = jnp.maximum(lin(z, p["fc3_w"], p["fc3_b"]), 0.0)
    recon = jax.nn.sigmoid(lin(h3, p["fc4_w"], p["fc4_b"]))
    return recon[:, :INPUT_SIZE], mu[:, :LATENT], logvar[:, :LATENT]


if __name__ == "__main__":
    key = jax.random.PRNGKey(0)
    k_param, k_x, k_eps = jax.random.split(key, 3)

    params = init_params(k_param)
    prepped = prepare_params(params)  # pad + bf16-cast ONCE, off the hot path

    B = 2
    x = jax.random.uniform(k_x, (B, INPUT_SIZE), jnp.float32)  # ratings-like input
    # eps is torch's randn_like from reparameterize -- made explicit & deterministic
    eps = jax.random.normal(k_eps, (B, LATENT), jnp.float32)

    recon, mu, logvar = jax.jit(vae_forward)(prepped, x, eps)
    jax.block_until_ready((recon, mu, logvar))

    assert recon.shape == (B, INPUT_SIZE)
    assert mu.shape == (B, LATENT)
    assert logvar.shape == (B, LATENT)
    assert bool(jnp.all(jnp.isfinite(recon)))
    assert bool(jnp.all((recon >= 0.0) & (recon <= 1.0)))

    # Correctness vs pure-JAX reference on identical (padded, bf16) params.
    r_ref, mu_ref, lv_ref = jax.jit(vae_forward_ref)(prepped, x, eps)
    assert bool(jnp.allclose(recon, r_ref, atol=1e-2, rtol=1e-2))
    assert bool(jnp.allclose(mu, mu_ref, atol=1e-2, rtol=1e-2))
    assert bool(jnp.allclose(logvar, lv_ref, atol=1e-2, rtol=1e-2))

    print("KERNEL_OK")
</pallas_src>

<mosaic_0001>
module attributes {stable_mosaic.version = 11 : i64} {
  func.func @_linear_kernel(%arg0: i32, %arg1: memref<8x4096xf32, #tpu.memory_space<vmem>>, %arg2: memref<4096x512xbf16, #tpu.memory_space<vmem>>, %arg3: memref<1x512xf32, #tpu.memory_space<vmem>>, %arg4: memref<8x512xf32, #tpu.memory_space<vmem>>) attributes {dimension_semantics = [#tpu.dimension_semantics<parallel>], iteration_bounds = array<i64: 2>, scalar_prefetch = 0 : i64, scratch_operands = 0 : i64, tpu.core_type = #tpu.core_type<tc>, window_params = [{pipeline_mode = #tpu.pipeline_mode<synchronous>, transform_indices = @transform_0, window_bounds = array<i64: 8, 4096>}, {transform_indices = @transform_1, window_bounds = array<i64: 4096, 512>}, {transform_indices = @transform_2, window_bounds = array<i64: 1, 512>}, {transform_indices = @transform_3, window_bounds = array<i64: 8, 512>}]} {
    %c0 = arith.constant 0 : index
    %c0_0 = arith.constant 0 : index
    %0 = vector.load %arg1[%c0, %c0_0] : memref<8x4096xf32, #tpu.memory_space<vmem>>, vector<8x4096xf32>
    %1 = arith.truncf %0 : vector<8x4096xf32> to vector<8x4096xbf16>
    %c0_1 = arith.constant 0 : index
    %c0_2 = arith.constant 0 : index
    %2 = vector.load %arg2[%c0_1, %c0_2] : memref<4096x512xbf16, #tpu.memory_space<vmem>>, vector<4096x512xbf16>
    %cst = arith.constant dense<0.000000e+00> : vector<8x512xf32>
    %3 = tpu.matmul %1, %2, %cst {dimension_numbers = #tpu.dot_dimension_numbers<[1], [0], [0], [1], [0, 0, 1, 1], [], []>} : vector<8x4096xbf16>, vector<4096x512xbf16>, vector<8x512xf32> -> vector<8x512xf32>
    %c0_3 = arith.constant 0 : index
    %c0_4 = arith.constant 0 : index
    %4 = vector.load %arg3[%c0_3, %c0_4] : memref<1x512xf32, #tpu.memory_space<vmem>>, vector<1x512xf32>
    %5 = vector.broadcast %4 : vector<1x512xf32> to vector<8x512xf32>
    %6 = arith.addf %3, %5 : vector<8x512xf32>
    %cst_5 = arith.constant 0.000000e+00 : f32
    %7 = vector.broadcast %cst_5 : f32 to vector<8x512xf32>
    %8 = arith.maximumf %6, %7 : vector<8x512xf32>
    %c0_6 = arith.constant 0 : index
    %c0_7 = arith.constant 0 : index
    %9 = vector.load %arg4[%c0_6, %c0_7] : memref<8x512xf32, #tpu.memory_space<vmem>>, vector<8x512xf32>
    tpu.vector_store %arg4[%c0_6, %c0_7], %8 {strides = array<i32>} : memref<8x512xf32, #tpu.memory_space<vmem>>, vector<8x512xf32>,
    return
  }
  func.func @transform_0(%arg0: i32) -> (i32, i32) {
    %c0_i32 = arith.constant 0 : i32
    %c0_i32_0 = arith.constant 0 : i32
    %c0_i32_1 = arith.constant 0 : i32
    return %c0_i32, %c0_i32_0 : i32, i32
  }
  func.func @transform_1(%arg0: i32) -> (i32, i32) {
    %c0_i32 = arith.constant 0 : i32
    %c0_i32_0 = arith.constant 0 : i32
    return %c0_i32, %arg0 : i32, i32
  }
  func.func @transform_2(%arg0: i32) -> (i32, i32) {
    %c0_i32 = arith.constant 0 : i32
    %c0_i32_0 = arith.constant 0 : i32
    return %c0_i32, %arg0 : i32, i32
  }
  func.func @transform_3(%arg0: i32) -> (i32, i32) {
    %c0_i32 = arith.constant 0 : i32
    %c0_i32_0 = arith.constant 0 : i32
    return %c0_i32, %arg0 : i32, i32
  }
}

module attributes {stable_mosaic.version = 11 : i64} {
  func.func @_latent_kernel(%arg0: memref<8x1024xf32, #tpu.memory_space<vmem>>, %arg1: memref<1024x256xbf16, #tpu.memory_space<vmem>>, %arg2: memref<1x256xf32, #tpu.memory_space<vmem>>, %arg3: memref<8x128xf32, #tpu.memory_space<vmem>>, %arg4: memref<8x128xf32, #tpu.memory_space<vmem>>, %arg5: memref<8x128xf32, #tpu.memory_space<vmem>>, %arg6: memref<8x128xf32, #tpu.memory_space<vmem>>) attributes {dimension_semantics = [], scalar_prefetch = 0 : i64, scratch_operands = 0 : i64, tpu.core_type = #tpu.core_type<tc>} {
    %c0 = arith.constant 0 : index
    %c0_0 = arith.constant 0 : index
    %0 = vector.load %arg0[%c0, %c0_0] : memref<8x1024xf32, #tpu.memory_space<vmem>>, vector<8x1024xf32>
    %1 = arith.truncf %0 : vector<8x1024xf32> to vector<8x1024xbf16>
    %c0_1 = arith.constant 0 : index
    %c0_2 = arith.constant 0 : index
    %2 = vector.load %arg1[%c0_1, %c0_2] : memref<1024x256xbf16, #tpu.memory_space<vmem>>, vector<1024x256xbf16>
    %cst = arith.constant dense<0.000000e+00> : vector<8x256xf32>
    %3 = tpu.matmul %1, %2, %cst {dimension_numbers = #tpu.dot_dimension_numbers<[1], [0], [0], [1], [0, 0, 1, 1], [], []>} : vector<8x1024xbf16>, vector<1024x256xbf16>, vector<8x256xf32> -> vector<8x256xf32>
    %c0_3 = arith.constant 0 : index
    %c0_4 = arith.constant 0 : index
    %4 = vector.load %arg2[%c0_3, %c0_4] : memref<1x256xf32, #tpu.memory_space<vmem>>, vector<1x256xf32>
    %5 = vector.broadcast %4 : vector<1x256xf32> to vector<8x256xf32>
    %6 = arith.addf %3, %5 : vector<8x256xf32>
    %7 = vector.extract_strided_slice %6 {offsets = [0, 0], sizes = [8, 128], strides = [1, 1]} : vector<8x256xf32> to vector<8x128xf32>
    %8 = vector.extract_strided_slice %6 {offsets = [0, 128], sizes = [8, 128], strides = [1, 1]} : vector<8x256xf32> to vector<8x128xf32>
    %c0_5 = arith.constant 0 : index
    %c0_6 = arith.constant 0 : index
    %9 = vector.load %arg4[%c0_5, %c0_6] : memref<8x128xf32, #tpu.memory_space<vmem>>, vector<8x128xf32>
    tpu.vector_store %arg4[%c0_5, %c0_6], %7 {strides = array<i32>} : memref<8x128xf32, #tpu.memory_space<vmem>>, vector<8x128xf32>,
    %c0_7 = arith.constant 0 : index
    %c0_8 = arith.constant 0 : index
    %10 = vector.load %arg5[%c0_7, %c0_8] : memref<8x128xf32, #tpu.memory_space<vmem>>, vector<8x128xf32>
    tpu.vector_store %arg5[%c0_7, %c0_8], %8 {strides = array<i32>} : memref<8x128xf32, #tpu.memory_space<vmem>>, vector<8x128xf32>,
    %c0_9 = arith.constant 0 : index
    %c0_10 = arith.constant 0 : index
    %11 = vector.load %arg3[%c0_9, %c0_10] : memref<8x128xf32, #tpu.memory_space<vmem>>, vector<8x128xf32>
    %cst_11 = arith.constant 5.000000e-01 : f32
    %12 = vector.broadcast %cst_11 : f32 to vector<8x128xf32>
    %13 = arith.mulf %12, %8 : vector<8x128xf32>
    %14 = math.exp %13 : vector<8x128xf32>
    %15 = arith.mulf %11, %14 : vector<8x128xf32>
    %16 = arith.addf %15, %7 : vector<8x128xf32>
    %c0_12 = arith.constant 0 : index
    %c0_13 = arith.constant 0 : index
    %17 = vector.load %arg6[%c0_12, %c0_13] : memref<8x128xf32, #tpu.memory_space<vmem>>, vector<8x128xf32>
    tpu.vector_store %arg6[%c0_12, %c0_13], %16 {strides = array<i32>} : memref<8x128xf32, #tpu.memory_space<vmem>>, vector<8x128xf32>,
    return
  }
}

module attributes {stable_mosaic.version = 11 : i64} {
  func.func @_linear_kernel(%arg0: i32, %arg1: memref<8x128xf32, #tpu.memory_space<vmem>>, %arg2: memref<128x512xbf16, #tpu.memory_space<vmem>>, %arg3: memref<1x512xf32, #tpu.memory_space<vmem>>, %arg4: memref<8x512xf32, #tpu.memory_space<vmem>>) attributes {dimension_semantics = [#tpu.dimension_semantics<parallel>], iteration_bounds = array<i64: 2>, scalar_prefetch = 0 : i64, scratch_operands = 0 : i64, tpu.core_type = #tpu.core_type<tc>, window_params = [{pipeline_mode = #tpu.pipeline_mode<synchronous>, transform_indices = @transform_0, window_bounds = array<i64: 8, 128>}, {transform_indices = @transform_1, window_bounds = array<i64: 128, 512>}, {transform_indices = @transform_2, window_bounds = array<i64: 1, 512>}, {transform_indices = @transform_3, window_bounds = array<i64: 8, 512>}]} {
    %c0 = arith.constant 0 : index
    %c0_0 = arith.constant 0 : index
    %0 = vector.load %arg1[%c0, %c0_0] : memref<8x128xf32, #tpu.memory_space<vmem>>, vector<8x128xf32>
    %1 = arith.truncf %0 : vector<8x128xf32> to vector<8x128xbf16>
    %c0_1 = arith.constant 0 : index
    %c0_2 = arith.constant 0 : index
    %2 = vector.load %arg2[%c0_1, %c0_2] : memref<128x512xbf16, #tpu.memory_space<vmem>>, vector<128x512xbf16>
    %cst = arith.constant dense<0.000000e+00> : vector<8x512xf32>
    %3 = tpu.matmul %1, %2, %cst {dimension_numbers = #tpu.dot_dimension_numbers<[1], [0], [0], [1], [0, 0, 1, 1], [], []>} : vector<8x128xbf16>, vector<128x512xbf16>, vector<8x512xf32> -> vector<8x512xf32>
    %c0_3 = arith.constant 0 : index
    %c0_4 = arith.constant 0 : index
    %4 = vector.load %arg3[%c0_3, %c0_4] : memref<1x512xf32, #tpu.memory_space<vmem>>, vector<1x512xf32>
    %5 = vector.broadcast %4 : vector<1x512xf32> to vector<8x512xf32>
    %6 = arith.addf %3, %5 : vector<8x512xf32>
    %cst_5 = arith.constant 0.000000e+00 : f32
    %7 = vector.broadcast %cst_5 : f32 to vector<8x512xf32>
    %8 = arith.maximumf %6, %7 : vector<8x512xf32>
    %c0_6 = arith.constant 0 : index
    %c0_7 = arith.constant 0 : index
    %9 = vector.load %arg4[%c0_6, %c0_7] : memref<8x512xf32, #tpu.memory_space<vmem>>, vector<8x512xf32>
    tpu.vector_store %arg4[%c0_6, %c0_7], %8 {strides = array<i32>} : memref<8x512xf32, #tpu.memory_space<vmem>>, vector<8x512xf32>,
    return
  }
  func.func @transform_0(%arg0: i32) -> (i32, i32) {
    %c0_i32 = arith.constant 0 : i32
    %c0_i32_0 = arith.constant 0 : i32
    %c0_i32_1 = arith.constant 0 : i32
    return %c0_i32, %c0_i32_0 : i32, i32
  }
  func.func @transform_1(%arg0: i32) -> (i32, i32) {
    %c0_i32 = arith.constant 0 : i32
    %c0_i32_0 = arith.constant 0 : i32
    return %c0_i32, %arg0 : i32, i32
  }
  func.func @transform_2(%arg0: i32) -> (i32, i32) {
    %c0_i32 = arith.constant 0 : i32
    %c0_i32_0 = arith.constant 0 : i32
    return %c0_i32, %arg0 : i32, i32
  }
  func.func @transform_3(%arg0: i32) -> (i32, i32) {
    %c0_i32 = arith.constant 0 : i32
    %c0_i32_0 = arith.constant 0 : i32
    return %c0_i32, %arg0 : i32, i32
  }
}

module attributes {stable_mosaic.version = 11 : i64} {
  func.func @_linear_kernel(%arg0: i32, %arg1: memref<8x1024xf32, #tpu.memory_space<vmem>>, %arg2: memref<1024x512xbf16, #tpu.memory_space<vmem>>, %arg3: memref<1x512xf32, #tpu.memory_space<vmem>>, %arg4: memref<8x512xf32, #tpu.memory_space<vmem>>) attributes {dimension_semantics = [#tpu.dimension_semantics<parallel>], iteration_bounds = array<i64: 8>, scalar_prefetch = 0 : i64, scratch_operands = 0 : i64, tpu.core_type = #tpu.core_type<tc>, window_params = [{pipeline_mode = #tpu.pipeline_mode<synchronous>, transform_indices = @transform_0, window_bounds = array<i64: 8, 1024>}, {transform_indices = @transform_1, window_bounds = array<i64: 1024, 512>}, {transform_indices = @transform_2, window_bounds = array<i64: 1, 512>}, {transform_indices = @transform_3, window_bounds = array<i64: 8, 512>}]} {
    %c0 = arith.constant 0 : index
    %c0_0 = arith.constant 0 : index
    %0 = vector.load %arg1[%c0, %c0_0] : memref<8x1024xf32, #tpu.memory_space<vmem>>, vector<8x1024xf32>
    %1 = arith.truncf %0 : vector<8x1024xf32> to vector<8x1024xbf16>
    %c0_1 = arith.constant 0 : index
    %c0_2 = arith.constant 0 : index
    %2 = vector.load %arg2[%c0_1, %c0_2] : memref<1024x512xbf16, #tpu.memory_space<vmem>>, vector<1024x512xbf16>
    %cst = arith.constant dense<0.000000e+00> : vector<8x512xf32>
    %3 = tpu.matmul %1, %2, %cst {dimension_numbers = #tpu.dot_dimension_numbers<[1], [0], [0], [1], [0, 0, 1, 1], [], []>} : vector<8x1024xbf16>, vector<1024x512xbf16>, vector<8x512xf32> -> vector<8x512xf32>
    %c0_3 = arith.constant 0 : index
    %c0_4 = arith.constant 0 : index
    %4 = vector.load %arg3[%c0_3, %c0_4] : memref<1x512xf32, #tpu.memory_space<vmem>>, vector<1x512xf32>
    %5 = vector.broadcast %4 : vector<1x512xf32> to vector<8x512xf32>
    %6 = arith.addf %3, %5 : vector<8x512xf32>
    %7 = arith.negf %6 : vector<8x512xf32>
    %8 = math.exp %7 : vector<8x512xf32>
    %cst_5 = arith.constant 1.000000e+00 : f32
    %9 = vector.broadcast %cst_5 : f32 to vector<8x512xf32>
    %10 = arith.addf %9, %8 : vector<8x512xf32>
    %11 = arith.divf %9, %10 : vector<8x512xf32>
    %c0_6 = arith.constant 0 : index
    %c0_7 = arith.constant 0 : index
    %12 = vector.load %arg4[%c0_6, %c0_7] : memref<8x512xf32, #tpu.memory_space<vmem>>, vector<8x512xf32>
    tpu.vector_store %arg4[%c0_6, %c0_7], %11 {strides = array<i32>} : memref<8x512xf32, #tpu.memory_space<vmem>>, vector<8x512xf32>,
    return
  }
  func.func @transform_0(%arg0: i32) -> (i32, i32) {
    %c0_i32 = arith.constant 0 : i32
    %c0_i32_0 = arith.constant 0 : i32
    %c0_i32_1 = arith.constant 0 : i32
    return %c0_i32, %c0_i32_0 : i32, i32
  }
  func.func @transform_1(%arg0: i32) -> (i32, i32) {
    %c0_i32 = arith.constant 0 : i32
    %c0_i32_0 = arith.constant 0 : i32
    return %c0_i32, %arg0 : i32, i32
  }
  func.func @transform_2(%arg0: i32) -> (i32, i32) {
    %c0_i32 = arith.constant 0 : i32
    %c0_i32_0 = arith.constant 0 : i32
    return %c0_i32, %arg0 : i32, i32
  }
  func.func @transform_3(%arg0: i32) -> (i32, i32) {
    %c0_i32 = arith.constant 0 : i32
    %c0_i32_0 = arith.constant 0 : i32
    return %c0_i32, %arg0 : i32, i32
  }
}

</mosaic_0001>

<llo_original>
// kernel: vae_forward.6
$region0: #{vae_forward.6}
  #allocation0 [shape = 'u32[]', space=smem, size = 0x4, offset = 0x4, fixed_abs, tag = 'smem constant byte address 0x4 - core index']
  #allocation1 [shape = 'u32[144,128]{1,0:T(1,128)}', space=vmem, size = 0x12000, scoped, tag = 'internal scratch']
  %s0 = inlined_call_operand.vmem [shape: f32[8,128], index: 0, kind: input, shape index: {}]
  %s1 = inlined_call_operand.vmem [shape: bf16[128,1024], index: 1, kind: input, shape index: {}]
  %s2 = inlined_call_operand.vmem [shape: f32[1,1024], index: 2, kind: input, shape index: {}]
  %s3 = inlined_call_operand.vmem [shape: f32[8,1024], index: 3, kind: output, shape index: {}]
  %s4 = sld [smem:[#allocation0]]
  $region68: #{vae_forward.6} parent=0
    _
  %s6 = ssub.s32 1, %s4
  %s7 = scalar_select 0, %s6, %s4
  $region1: #{vae_forward.6} parent=0
    #allocation2 [shape = 'u8[262144]{0}', space=vmem, size = 0x40000, scoped, tag = 'input window, operand 1']
    loop: start=0, step=1, limit=4
    $region2: #{vae_forward.6} parent=1 // loop_pre_header
      _
    $region3: #{vae_forward.6} parent=1 // loop_header
      %s9 = sphi 0, %s13
      %p10 = scmp.ge.s32.totalorder %s9, 4
      %s17 = sphi 0, %s17
      %s19 = sphi 0, %s17
      %s20 = sphi 0, %s19
      %s34 = sphi 0, %s20
      %s40 = sphi 0, %s42
      %s43 = sphi 0, %s40
      %s44 = sphi 0, %s43
      %s60 = sphi 0, %s44
      %s66 = sphi 0, %s68
      %s69 = sphi 0, %s66
      %s70 = sphi 0, %s69
      %s86 = sphi 0, %s70
      %s92 = sphi 0, %s94
      %s95 = sphi 0, %s92
      %s96 = sphi 0, %s95
      %s112 = sphi 0, %s96
    $region4: #{vae_forward.6} parent=1 // loop_header_branch
      %12 = sbr.rel (%p10) target = $region8
    $region5: #{vae_forward.6} parent=1 // loop_body
      %s14 = ssub.s32 %s9, 1
      %s15 = ssub.s32 %s9, 2
      %s16 = sadd.s32 %s9, 1
      %s18 = sadd.s32 %s17, 1
      %p21 = scmp.eq.s32.totalorder %s9, 1
      %p22 = scmp.ne.s32.totalorder %s17, %s19
      %p23 = scmp.eq.s32.totalorder %s9, 0
      %p24 = por %p22, %p23
      %p25 = scmp.ne.s32.totalorder %s17, %s19
      %p26 = scmp.eq.s32.totalorder %s14, 1
      %p27 = por %p25, %p26
      %p28 = scmp.ne.s32.totalorder %s19, %s20
      %p29 = scmp.eq.s32.totalorder %s14, 0
      %p30 = por %p28, %p29
      %p31 = scmp.ne.s32.totalorder %s19, %s20
      %p32 = scmp.eq.s32.totalorder %s15, 1
      %p33 = por %p31, %p32
      %p35 = scmp.ne.s32.totalorder %s20, %s34
      %p36 = scmp.eq.s32.totalorder %s15, 0
      %p37 = por %p35, %p36
      %s38 = ssub.s32 %s9, %s16
      %p39 = scmp.eq.s32.totalorder %s38, 0
      %s41 = sadd.s32 %s40, 1
      %s42 = scalar_select %p39, %s40, %s41
      %p45 = pneg %p39
      %p46 = scmp.eq.s32.totalorder %s9, 1
      %p47 = por %p45, %p46
      %p48 = scmp.ne.s32.totalorder %s40, %s43
      %p49 = scmp.eq.s32.totalorder %s9, 0
      %p50 = por %p48, %p49
      %p51 = scmp.ne.s32.totalorder %s40, %s43
      %p52 = scmp.eq.s32.totalorder %s14, 1
      %p53 = por %p51, %p52
      %p54 = scmp.ne.s32.totalorder %s43, %s44
      %p55 = scmp.eq.s32.totalorder %s14, 0
      %p56 = por %p54, %p55
      %p57 = scmp.ne.s32.totalorder %s43, %s44
      %p58 = scmp.eq.s32.totalorder %s15, 1
      %p59 = por %p57, %p58
      %p61 = scmp.ne.s32.totalorder %s44, %s60
      %p62 = scmp.eq.s32.totalorder %s15, 0
      %p63 = por %p61, %p62
      %s64 = ssub.s32 %s9, %s16
      %p65 = scmp.eq.s32.totalorder %s64, 0
      %s67 = sadd.s32 %s66, 1
      %s68 = scalar_select %p65, %s66, %s67
      %p71 = pneg %p65
      %p72 = scmp.eq.s32.totalorder %s9, 1
      %p73 = por %p71, %p72
      %p74 = scmp.ne.s32.totalorder %s66, %s69
      %p75 = scmp.eq.s32.totalorder %s9, 0
      %p76 = por %p74, %p75
      %p77 = scmp.ne.s32.totalorder %s66, %s69
      %p78 = scmp.eq.s32.totalorder %s14, 1
      %p79 = por %p77, %p78
      %p80 = scmp.ne.s32.totalorder %s69, %s70
      %p81 = scmp.eq.s32.totalorder %s14, 0
      %p82 = por %p80, %p81
      %p83 = scmp.ne.s32.totalorder %s69, %s70
      %p84 = scmp.eq.s32.totalorder %s15, 1
      %p85 = por %p83, %p84
      %p87 = scmp.ne.s32.totalorder %s70, %s86
      %p88 = scmp.eq.s32.totalorder %s15, 0
      %p89 = por %p87, %p88
      %s90 = ssub.s32 %s9, %s16
      %p91 = scmp.eq.s32.totalorder %s90, 0
      %s93 = sadd.s32 %s92, 1
      %s94 = scalar_select %p91, %s92, %s93
      %p97 = pneg %p91
      %p98 = scmp.eq.s32.totalorder %s9, 1
      %p99 = por %p97, %p98
      %p100 = scmp.ne.s32.totalorder %s92, %s95
      %p101 = scmp.eq.s32.totalorder %s9, 0
      %p102 = por %p100, %p101
      %p103 = scmp.ne.s32.totalorder %s92, %s95
      %p104 = scmp.eq.s32.totalorder %s14, 1
      %p105 = por %p103, %p104
      %p106 = scmp.ne.s32.totalorder %s95, %s96
      %p107 = scmp.eq.s32.totalorder %s14, 0
      %p108 = por %p106, %p107
      %p109 = scmp.ne.s32.totalorder %s95, %s96
      %p110 = scmp.eq.s32.totalorder %s15, 1
      %p111 = por %p109, %p110
      %p113 = scmp.ne.s32.totalorder %s96, %s112
      %p114 = scmp.eq.s32.totalorder %s15, 0
      %p115 = por %p113, %p114
      %p116 = scmp.le.s32.totalorder 1, %s9
      %p117 = scmp.lt.s32.totalorder %s9, 3
      %p118 = pnand %p116, %p117
      %p119 = pneg %p118
      // Predicated region
      $region9: #{vae_forward.6} parent=5 // pred_check
        _
      $region10: #{vae_forward.6} parent=5 // pred_check_branch
        %121 = sbr.rel (%p118) target = $region12
      $region11: #{vae_forward.6} parent=5 // pred_region
        %s122 = ssub.s32 %s9, 1
        // Predicated region
        $region13: #{vae_forward.6} parent=11 // pred_check
          %p123 = pneg %p30
        $region14: #{vae_forward.6} parent=11 // pred_check_branch
          %125 = sbr.rel (%p123) target = $region16
        $region15: #{vae_forward.6} parent=11 // pred_region
          _
        $region16: #{vae_forward.6} parent=11 // pred_fallthru
          _
      $region12: #{vae_forward.6} parent=5 // pred_fallthru
        _
      %p126 = scmp.lt.s32.totalorder %s9, 2
      // Predicated region
      $region17: #{vae_forward.6} parent=5 // pred_check
        %p127 = pneg %p126
      $region18: #{vae_forward.6} parent=5 // pred_check_branch
        %129 = sbr.rel (%p127) target = $region20
      $region19: #{vae_forward.6} parent=5 // pred_region
        // Predicated region
        $region21: #{vae_forward.6} parent=19 // pred_check
          %p130 = pneg %p50
        $region22: #{vae_forward.6} parent=19 // pred_check_branch
          %132 = sbr.rel (%p130) target = $region24
        $region23: #{vae_forward.6} parent=19 // pred_region
          %s133 = sand.u32 %s40, 1
          %s134 = sand.u32 %s40, 1
          %s135 = smul.addr %s134, 256
          %s136 = scalar_lea.vmem [#allocation2], %s135
          %s137 = smul.u32 4, %s9
          %s138 = smul.addr %s137, 4
          %s139 = scalar_lea.vmem %s1, %s138
          // Predicated region
          $region25: #{vae_forward.6} parent=23 // pred_check
            _
          $region26: #{vae_forward.6} parent=23 // pred_check_branch
            %141 = sbr.rel (0) target = $region28
          $region27: #{vae_forward.6} parent=23 // pred_region
            // Predicated region
            $region29: #{vae_forward.6} parent=27 // pred_check
              _
            $region30: #{vae_forward.6} parent=27 // pred_check_branch
              %143 = sbr.rel (0) target = $region32
            $region31: #{vae_forward.6} parent=27 // pred_region
              loop: start=0, step=1, limit=1
              $region33: #{vae_forward.6} parent=31 // loop_pre_header
                _
              $region34: #{vae_forward.6} parent=31 // loop_header
                %s145 = sphi 0, %s149
                %p146 = scmp.ge.s32.totalorder %s145, 1
                %s150 = sphi %s139, %s139
                %s151 = sphi %s136, %s136
              $region35: #{vae_forward.6} parent=31 // loop_header_branch
                %148 = sbr.rel (%p146) target = $region39
              $region36: #{vae_forward.6} parent=31 // loop_body
                %v152 = vld [vmem:[%s150] sm:$0xff]
                %153 = vst [vmem:[%s151] sm:$0xff] %v152
                %v154 = vld [vmem:[%s150 + $0x8] sm:$0xff]
                %155 = vst [vmem:[%s151 + $0x8] sm:$0xff] %v154
                %v156 = vld [vmem:[%s150 + $0x20] sm:$0xff]
                %157 = vst [vmem:[%s151 + $0x10] sm:$0xff] %v156
                %v158 = vld [vmem:[%s150 + $0x28] sm:$0xff]
                %159 = vst [vmem:[%s151 + $0x18] sm:$0xff] %v158
                %v160 = vld [vmem:[%s150 + $0x40] sm:$0xff]
                %161 = vst [vmem:[%s151 + $0x20] sm:$0xff] %v160
                %v162 = vld [vmem:[%s150 + $0x48] sm:$0xff]
                %163 = vst [vmem:[%s151 + $0x28] sm:$0xff] %v162
                %v164 = vld [vmem:[%s150 + $0x60] sm:$0xff]
                %165 = vst [vmem:[%s151 + $0x30] sm:$0xff] %v164
                %v166 = vld [vmem:[%s150 + $0x68] sm:$0xff]
                %167 = vst [vmem:[%s151 + $0x38] sm:$0xff] %v166
                %v168 = vld [vmem:[%s150 + $0x80] sm:$0xff]
                %169 = vst [vmem:[%s151 + $0x40] sm:$0xff] %v168
                %v170 = vld [vmem:[%s150 + $0x88] sm:$0xff]
                %171 = vst [vmem:[%s151 + $0x48] sm:$0xff] %v170
                %v172 = vld [vmem:[%s150 + $0xa0] sm:$0xff]
                %173 = vst [vmem:[%s151 + $0x50] sm:$0xff] %v172
                %v174 = vld [vmem:[%s150 + $0xa8] sm:$0xff]
                %175 = vst [vmem:[%s151 + $0x58] sm:$0xff] %v174
                %v176 = vld [vmem:[%s150 + $0xc0] sm:$0xff]
                %177 = vst [vmem:[%s151 + $0x60] sm:$0xff] %v176
                %v178 = vld [vmem:[%s150 + $0xc8] sm:$0xff]
                %179 = vst [vmem:[%s151 + $0x68] sm:$0xff] %v178
                %v180 = vld [vmem:[%s150 + $0xe0] sm:$0xff]
                %181 = vst [vmem:[%s151 + $0x70] sm:$0xff] %v180
                %v182 = vld [vmem:[%s150 + $0xe8] sm:$0xff]
                %183 = vst [vmem:[%s151 + $0x78] sm:$0xff] %v182
                %v184 = vld [vmem:[%s150 + $0x100] sm:$0xff]
                %185 = vst [vmem:[%s151 + $0x80] sm:$0xff] %v184
                %v186 = vld [vmem:[%s150 + $0x108] sm:$0xff]
                %187 = vst [vmem:[%s151 + $0x88] sm:$0xff] %v186
                %v188 = vld [vmem:[%s150 + $0x120] sm:$0xff]
                %189 = vst [vmem:[%s151 + $0x90] sm:$0xff] %v188
                %v190 = vld [vmem:[%s150 + $0x128] sm:$0xff]
                %191 = vst [vmem:[%s151 + $0x98] sm:$0xff] %v190
                %v192 = vld [vmem:[%s150 + $0x140] sm:$0xff]
                %193 = vst [vmem:[%s151 + $0xa0] sm:$0xff] %v192
                %v194 = vld [vmem:[%s150 + $0x148] sm:$0xff]
                %195 = vst [vmem:[%s151 + $0xa8] sm:$0xff] %v194
                %v196 = vld [vmem:[%s150 + $0x160] sm:$0xff]
                %197 = vst [vmem:[%s151 + $0xb0] sm:$0xff] %v196
                %v198 = vld [vmem:[%s150 + $0x168] sm:$0xff]
                %199 = vst [vmem:[%s151 + $0xb8] sm:$0xff] %v198
                %v200 = vld [vmem:[%s150 + $0x180] sm:$0xff]
                %201 = vst [vmem:[%s151 + $0xc0] sm:$0xff] %v200
                %v202 = vld [vmem:[%s150 + $0x188] sm:$0xff]
                %203 = vst [vmem:[%s151 + $0xc8] sm:$0xff] %v202
                %v204 = vld [vmem:[%s150 + $0x1a0] sm:$0xff]
                %205 = vst [vmem:[%s151 + $0xd0] sm:$0xff] %v204
                %v206 = vld [vmem:[%s150 + $0x1a8] sm:$0xff]
                %207 = vst [vmem:[%s151 + $0xd8] sm:$0xff] %v206
                %v208 = vld [vmem:[%s150 + $0x1c0] sm:$0xff]
                %209 = vst [vmem:[%s151 + $0xe0] sm:$0xff] %v208
                %v210 = vld [vmem:[%s150 + $0x1c8] sm:$0xff]
                %211 = vst [vmem:[%s151 + $0xe8] sm:$0xff] %v210
                %v212 = vld [vmem:[%s150 + $0x1e0] sm:$0xff]
                %213 = vst [vmem:[%s151 + $0xf0] sm:$0xff] %v212
                %v214 = vld [vmem:[%s150 + $0x1e8] sm:$0xff]
                %215 = vst [vmem:[%s151 + $0xf8] sm:$0xff] %v214
              $region37: #{vae_forward.6} parent=31 // loop_footer
                %s149 = sadd.s32 1, %s145
              $region38: #{vae_forward.6} parent=31 // loop_footer_branch
                %144 = sbr.rel target = $region34
              $region39: #{vae_forward.6} parent=31 // loop_exit
                _
            $region32: #{vae_forward.6} parent=27 // pred_fallthru
              _
            // Predicated region
            $region40: #{vae_forward.6} parent=27 // pred_check
              _
            $region41: #{vae_forward.6} parent=27 // pred_check_branch
              %217 = sbr.rel target = $region43
            $region42: #{vae_forward.6} parent=27 // pred_region
              _
            $region43: #{vae_forward.6} parent=27 // pred_fallthru
              _
          $region28: #{vae_forward.6} parent=23 // pred_fallthru
            _
          %218 = vnop
        $region24: #{vae_forward.6} parent=19 // pred_fallthru
          _
        // Predicated region
        $region44: #{vae_forward.6} parent=19 // pred_check
          %p219 = pneg %p76
        $region45: #{vae_forward.6} parent=19 // pred_check_branch
          %221 = sbr.rel (%p219) target = $region47
        $region46: #{vae_forward.6} parent=19 // pred_region
          %s222 = smul.u32 4, %s9
          %p223 = scmp.lt.s32.totalorder %s222, 7
          %s224 = scalar_select %p223, %s222, 7
          %s225 = scalar_lea.vmem %s2, %s224
          %s226 = smul.u32 4, %s9
        $region47: #{vae_forward.6} parent=19 // pred_fallthru
          _
      $region20: #{vae_forward.6} parent=5 // pred_fallthru
        _
      %p227 = scmp.le.s32.totalorder 1, %s9
      %p228 = scmp.lt.s32.totalorder %s9, 3
      %p229 = pnand %p227, %p228
      %p230 = pneg %p229
      // Predicated region
      $region48: #{vae_forward.6} parent=5 // pred_check
        _
      $region49: #{vae_forward.6} parent=5 // pred_check_branch
        %232 = sbr.rel (%p229) target = $region51
      $region50: #{vae_forward.6} parent=5 // pred_region
        %s233 = ssub.s32 %s9, 1
        %s234 = sand.u32 %s43, 1
        %s235 = sand.u32 %s43, 1
        %s236 = smul.addr %s235, 256
        %s237 = scalar_lea.vmem [#allocation2], %s236
        // Predicated region
        $region52: #{vae_forward.6} parent=50 // pred_check
          %p238 = pneg %p56
        $region53: #{vae_forward.6} parent=50 // pred_check_branch
          %240 = sbr.rel (%p238) target = $region55
        $region54: #{vae_forward.6} parent=50 // pred_region
          _
        $region55: #{vae_forward.6} parent=50 // pred_fallthru
          _
        %p241 = pneg %p30
        %p242 = pneg %p27
        %s243 = sand.u32 %s43, 1
        %s244 = sand.u32 %s43, 1
        %s245 = smul.addr %s244, 256
        %s246 = scalar_lea.vmem [#allocation2], %s245
        %p247 = pneg %p56
        %p248 = pneg %p53
        %s249 = smul.u32 4, %s14
        %p250 = scmp.lt.s32.totalorder %s249, 7
        %s251 = scalar_select %p250, %s249, 7
        %s252 = scalar_lea.vmem %s2, %s251
        %p253 = pneg %p82
        %p254 = pneg %p79
        %p255 = pneg %p108
        %p256 = pneg %p105
        %s257 = smul.u32 4, %s14
        %p258 = scmp.lt.s32.totalorder %s257, 7
        %s259 = scalar_select %p258, %s257, 7
        %s260 = smul.addr %s259, 8
        %s261 = scalar_lea.vmem %s3, %s260
        %s262 = smul.u32 4, %s14
        %s263 = smul.u32 4, %s14
        %p264 = scmp.lt.s32.totalorder %s263, 7
        %s265 = scalar_select %p264, %s263, 7
        %s266 = scalar_lea.vmem %s2, %s265
        %s267 = smul.u32 4, %s14
        %s268 = smul.u32 4, %s14
        %p269 = scmp.lt.s32.totalorder %s268, 7
        %s270 = scalar_select %p269, %s268, 7
        %s271 = smul.addr %s270, 8
        %s272 = scalar_lea.vmem %s3, %s271
        %s273 = smul.u32 4, %s14
        %v275 = vld [vmem:[%s0] sm:$0xff]
        %v276 = vpack.c.bf16 %v275, %v275
        %v277 = vld [vmem:[%s237] sm:$0xff]
        %v278 = vld [vmem:[%s237 + $0x8] sm:$0xff]
        %v279 = vld [vmem:[%s237 + $0x10] sm:$0xff]
        %v280 = vld [vmem:[%s237 + $0x18] sm:$0xff]
        %v281 = vld [vmem:[%s237 + $0x20] sm:$0xff]
        %v282 = vld [vmem:[%s237 + $0x28] sm:$0xff]
        %v283 = vld [vmem:[%s237 + $0x30] sm:$0xff]
        %v284 = vld [vmem:[%s237 + $0x38] sm:$0xff]
        %v285 = vld [vmem:[%s237 + $0x40] sm:$0xff]
        %v286 = vld [vmem:[%s237 + $0x48] sm:$0xff]
        %v287 = vld [vmem:[%s237 + $0x50] sm:$0xff]
        %v288 = vld [vmem:[%s237 + $0x58] sm:$0xff]
        %v289 = vld [vmem:[%s237 + $0x60] sm:$0xff]
        %v290 = vld [vmem:[%s237 + $0x68] sm:$0xff]
        %v291 = vld [vmem:[%s237 + $0x70] sm:$0xff]
        %v292 = vld [vmem:[%s237 + $0x78] sm:$0xff]
        %v293 = vld [vmem:[%s237 + $0x80] sm:$0xff]
        %v294 = vld [vmem:[%s237 + $0x88] sm:$0xff]
        %v295 = vld [vmem:[%s237 + $0x90] sm:$0xff]
        %v296 = vld [vmem:[%s237 + $0x98] sm:$0xff]
        %v297 = vld [vmem:[%s237 + $0xa0] sm:$0xff]
        %v298 = vld [vmem:[%s237 + $0xa8] sm:$0xff]
        %v299 = vld [vmem:[%s237 + $0xb0] sm:$0xff]
        %v300 = vld [vmem:[%s237 + $0xb8] sm:$0xff]
        %v301 = vld [vmem:[%s237 + $0xc0] sm:$0xff]
        %v302 = vld [vmem:[%s237 + $0xc8] sm:$0xff]
        %v303 = vld [vmem:[%s237 + $0xd0] sm:$0xff]
        %v304 = vld [vmem:[%s237 + $0xd8] sm:$0xff]
        %v305 = vld [vmem:[%s237 + $0xe0] sm:$0xff]
        %v306 = vld [vmem:[%s237 + $0xe8] sm:$0xff]
        %v307 = vld [vmem:[%s237 + $0xf0] sm:$0xff]
        %v308 = vld [vmem:[%s237 + $0xf8] sm:$0xff]
        %v309 = vld [vmem:[%s266] sm:$0xf]
        %v311 = vlaneseq
        %v312 = vshrl.u32 %v311, 7
        %v313 = vsub.s32 0, %v312
        %v314 = vrot.slane %v309, %v313
        %v315 = vlaneseq
        %v316 = vshrl.u32 %v315, 7
        %v317 = vsub.s32 1, %v316
        %v318 = vrot.slane %v309, %v317
        %v319 = vlaneseq
        %v320 = vshrl.u32 %v319, 7
        %v321 = vsub.s32 2, %v320
        %v322 = vrot.slane %v309, %v321
        %v323 = vlaneseq
        %v324 = vshrl.u32 %v323, 7
        %v325 = vsub.s32 3, %v324
        %v326 = vrot.slane %v309, %v325
        %v363 = vunpack.c.l.b16 %v277
        %v364 = vunpack.c.h.b16 %v277
        %v365 = vunpack.c.l.b16 %v278
        %v366 = vunpack.c.h.b16 %v278
        %v367 = vunpack.c.l.b16 %v279
        %v368 = vunpack.c.h.b16 %v279
        %v369 = vunpack.c.l.b16 %v280
        %v370 = vunpack.c.h.b16 %v280
        %v371 = vunpack.c.l.b16 %v281
        %v372 = vunpack.c.h.b16 %v281
        %v373 = vunpack.c.l.b16 %v282
        %v374 = vunpack.c.h.b16 %v282
        %v375 = vunpack.c.l.b16 %v283
        %v376 = vunpack.c.h.b16 %v283
        %v377 = vunpack.c.l.b16 %v284
        %v378 = vunpack.c.h.b16 %v284
        %v379 = vunpack.c.l.b16 %v285
        %v380 = vunpack.c.h.b16 %v285
        %v381 = vunpack.c.l.b16 %v286
        %v382 = vunpack.c.h.b16 %v286
        %v383 = vunpack.c.l.b16 %v287
        %v384 = vunpack.c.h.b16 %v287
        %v385 = vunpack.c.l.b16 %v288
        %v386 = vunpack.c.h.b16 %v288
        %v387 = vunpack.c.l.b16 %v289
        %v388 = vunpack.c.h.b16 %v289
        %v389 = vunpack.c.l.b16 %v290
        %v390 = vunpack.c.h.b16 %v290
        %v391 = vunpack.c.l.b16 %v291
        %v392 = vunpack.c.h.b16 %v291
        %v393 = vunpack.c.l.b16 %v292
        %v394 = vunpack.c.h.b16 %v292
        %v395 = vunpack.c.l.b16 %v293
        %v396 = vunpack.c.h.b16 %v293
        %v397 = vunpack.c.l.b16 %v294
        %v398 = vunpack.c.h.b16 %v294
        %v399 = vunpack.c.l.b16 %v295
        %v400 = vunpack.c.h.b16 %v295
        %v401 = vunpack.c.l.b16 %v296
        %v402 = vunpack.c.h.b16 %v296
        %v403 = vunpack.c.l.b16 %v297
        %v404 = vunpack.c.h.b16 %v297
        %v405 = vunpack.c.l.b16 %v298
        %v406 = vunpack.c.h.b16 %v298
        %v407 = vunpack.c.l.b16 %v299
        %v408 = vunpack.c.h.b16 %v299
        %v409 = vunpack.c.l.b16 %v300
        %v410 = vunpack.c.h.b16 %v300
        %v411 = vunpack.c.l.b16 %v301
        %v412 = vunpack.c.h.b16 %v301
        %v413 = vunpack.c.l.b16 %v302
        %v414 = vunpack.c.h.b16 %v302
        %v415 = vunpack.c.l.b16 %v303
        %v416 = vunpack.c.h.b16 %v303
        %v417 = vunpack.c.l.b16 %v304
        %v418 = vunpack.c.h.b16 %v304
        %v419 = vunpack.c.l.b16 %v305
        %v420 = vunpack.c.h.b16 %v305
        %v421 = vunpack.c.l.b16 %v306
        %v422 = vunpack.c.h.b16 %v306
        %v423 = vunpack.c.l.b16 %v307
        %v424 = vunpack.c.h.b16 %v307
        %v425 = vunpack.c.l.b16 %v308
        %v426 = vunpack.c.h.b16 %v308
        %v427 = vpack.c.b16 %v367, %v363
        %v428 = vpack.c.b16 %v368, %v364
        %v429 = vpack.c.b16 %v369, %v365
        %v430 = vpack.c.b16 %v370, %v366
        %v431 = vpack.c.b16 %v375, %v371
        %v432 = vpack.c.b16 %v376, %v372
        %v433 = vpack.c.b16 %v377, %v373
        %v434 = vpack.c.b16 %v378, %v374
        %v435 = vpack.c.b16 %v383, %v379
        %v436 = vpack.c.b16 %v384, %v380
        %v437 = vpack.c.b16 %v385, %v381
        %v438 = vpack.c.b16 %v386, %v382
        %v439 = vpack.c.b16 %v391, %v387
        %v440 = vpack.c.b16 %v392, %v388
        %v441 = vpack.c.b16 %v393, %v389
        %v442 = vpack.c.b16 %v394, %v390
        %v443 = vpack.c.b16 %v399, %v395
        %v444 = vpack.c.b16 %v400, %v396
        %v445 = vpack.c.b16 %v401, %v397
        %v446 = vpack.c.b16 %v402, %v398
        %v447 = vpack.c.b16 %v407, %v403
        %v448 = vpack.c.b16 %v408, %v404
        %v449 = vpack.c.b16 %v409, %v405
        %v450 = vpack.c.b16 %v410, %v406
        %v451 = vpack.c.b16 %v415, %v411
        %v452 = vpack.c.b16 %v416, %v412
        %v453 = vpack.c.b16 %v417, %v413
        %v454 = vpack.c.b16 %v418, %v414
        %v455 = vpack.c.b16 %v423, %v419
        %v456 = vpack.c.b16 %v424, %v420
        %v457 = vpack.c.b16 %v425, %v421
        %v458 = vpack.c.b16 %v426, %v422
        %491 = vmatprep.subr.bf16.mxu0 %v456
        %492 = vmatpush1.bf16.msra.mxu0 %v455
        %493 = vmatprep.subr.bf16.mxu0 %v452
        %494 = vmatpush1.bf16.msra.mxu0 %v451
        %495 = vmatprep.subr.bf16.mxu0 %v448
        %496 = vmatpush1.bf16.msra.mxu0 %v447
        %497 = vmatprep.subr.bf16.mxu0 %v444
        %498 = vmatpush1.bf16.msra.mxu0 %v443
        %499 = vmatprep.subr.bf16.mxu0 %v440
        %500 = vmatpush1.bf16.msra.mxu0 %v439
        %501 = vmatprep.subr.bf16.mxu0 %v436
        %502 = vmatpush1.bf16.msra.mxu0 %v435
        %503 = vmatprep.subr.bf16.mxu0 %v432
        %504 = vmatpush1.bf16.msra.mxu0 %v431
        %505 = vmatprep.subr.bf16.mxu0 %v428
        %506 = vmatpush1.bf16.msra.mxu0 %v427
        %507 = vmatprep.subr.bf16.mxu0 0
        %508 = vmatpush2.bf16.msra.mxu0 0
        %509 = vmatprep.subr.bf16.mxu0 0
        %510 = vmatpush2.bf16.msra.mxu0 0
        %511 = vmatprep.subr.bf16.mxu0 0
        %512 = vmatpush2.bf16.msra.mxu0 0
        %513 = vmatprep.subr.bf16.mxu0 0
        %514 = vmatpush2.bf16.msra.mxu0 0
        %515 = vmatprep.subr.bf16.mxu0 0
        %516 = vmatpush2.bf16.msra.mxu0 0
        %517 = vmatprep.subr.bf16.mxu0 0
        %518 = vmatpush2.bf16.msra.mxu0 0
        %519 = vmatprep.subr.bf16.mxu0 0
        %520 = vmatpush2.bf16.msra.mxu0 0
        %521 = vmatprep.subr.bf16.mxu0 0
        %522 = vmatpush2.bf16.msra.mxu0 0
        %523 = vmatprep.mubr.bf16.mxu0 0
        %524 = vmatmul.mubr.bf16.gmra.mxu0 %v276
        %v525 = vpop.f32.mrf.mxu0
        %v526 = vadd.f32 %v314, %v525
        %v527 = vpop.f32.mrf.mxu0
        %v528 = vadd.f32 %v318, %v527
        %v529 = vpop.f32.mrf.mxu0
        %v530 = vpop.f32.mrf.mxu0
        %531 = vdwg.mxu0
        %532 = vmatprep.subr.bf16.mxu0 %v458
        %533 = vmatpush1.bf16.msra.mxu0 %v457
        %534 = vmatprep.subr.bf16.mxu0 %v454
        %535 = vmatpush1.bf16.msra.mxu0 %v453
        %536 = vmatprep.subr.bf16.mxu0 %v450
        %537 = vmatpush1.bf16.msra.mxu0 %v449
        %538 = vmatprep.subr.bf16.mxu0 %v446
        %539 = vmatpush1.bf16.msra.mxu0 %v445
        %540 = vmatprep.subr.bf16.mxu0 %v442
        %541 = vmatpush1.bf16.msra.mxu0 %v441
        %542 = vmatprep.subr.bf16.mxu0 %v438
        %543 = vmatpush1.bf16.msra.mxu0 %v437
        %544 = vmatprep.subr.bf16.mxu0 %v434
        %545 = vmatpush1.bf16.msra.mxu0 %v433
        %546 = vmatprep.subr.bf16.mxu0 %v430
        %547 = vmatpush1.bf16.msra.mxu0 %v429
        %548 = vmatprep.subr.bf16.mxu0 0
        %549 = vmatpush2.bf16.msra.mxu0 0
        %550 = vmatprep.subr.bf16.mxu0 0
        %551 = vmatpush2.bf16.msra.mxu0 0
        %552 = vmatprep.subr.bf16.mxu0 0
        %553 = vmatpush2.bf16.msra.mxu0 0
        %554 = vmatprep.subr.bf16.mxu0 0
        %555 = vmatpush2.bf16.msra.mxu0 0
        %556 = vmatprep.subr.bf16.mxu0 0
        %557 = vmatpush2.bf16.msra.mxu0 0
        %558 = vmatprep.subr.bf16.mxu0 0
        %559 = vmatpush2.bf16.msra.mxu0 0
        %560 = vmatprep.subr.bf16.mxu0 0
        %561 = vmatpush2.bf16.msra.mxu0 0
        %562 = vmatprep.subr.bf16.mxu0 0
        %563 = vmatpush2.bf16.msra.mxu0 0
        %564 = vmatprep.mubr.bf16.mxu0 0
        %565 = vmatmul.mubr.bf16.gmra.mxu0 %v276
        %v566 = vpop.f32.mrf.mxu0
        %v567 = vadd.f32 %v322, %v566
        %v568 = vpop.f32.mrf.mxu0
        %v569 = vadd.f32 %v326, %v568
        %v570 = vpop.f32.mrf.mxu0
        %v571 = vpop.f32.mrf.mxu0
        %572 = vdwg.mxu0
        %v573 = vmax.f32 %v526, 0.0
        %v574 = vmax.f32 %v528, 0.0
        %v575 = vmax.f32 %v567, 0.0
        %v576 = vmax.f32 %v569, 0.0
        %577 = vst [vmem:[%s272] sm:$0xff] %v573
        %578 = vst [vmem:[%s272 + $0x8] sm:$0xff] %v574
        %579 = vst [vmem:[%s272 + $0x10] sm:$0xff] %v575
        %580 = vst [vmem:[%s272 + $0x18] sm:$0xff] %v576
        %s581 = smul.u32 4, %s14
        %p582 = scmp.lt.s32.totalorder %s581, 7
        %s583 = scalar_select %p582, %s581, 7
        %s584 = smul.addr %s583, 8
        %s585 = scalar_lea.vmem %s3, %s584
        // Predicated region
        $region56: #{vae_forward.6} parent=50 // pred_check
          %p586 = pneg %p105
        $region57: #{vae_forward.6} parent=50 // pred_check_branch
          %588 = sbr.rel (%p586) target = $region59
        $region58: #{vae_forward.6} parent=50 // pred_region
          %s589 = smul.u32 4, %s14
        $region59: #{vae_forward.6} parent=50 // pred_fallthru
          _
      $region51: #{vae_forward.6} parent=5 // pred_fallthru
        _
      %p590 = scmp.le.s32.totalorder 2, %s9
      // Predicated region
      $region60: #{vae_forward.6} parent=5 // pred_check
        %p591 = pneg %p590
      $region61: #{vae_forward.6} parent=5 // pred_check_branch
        %593 = sbr.rel (%p591) target = $region63
      $region62: #{vae_forward.6} parent=5 // pred_region
        %s594 = ssub.s32 %s9, 2
        // Predicated region
        $region64: #{vae_forward.6} parent=62 // pred_check
          %p595 = pneg %p111
        $region65: #{vae_forward.6} parent=62 // pred_check_branch
          %597 = sbr.rel (%p595) target = $region67
        $region66: #{vae_forward.6} parent=62 // pred_region
          %s598 = smul.u32 4, %s15
          %p599 = scmp.lt.s32.totalorder %s598, 7
          %s600 = scalar_select %p599, %s598, 7
          %s601 = smul.addr %s600, 8
          %s602 = scalar_lea.vmem %s3, %s601
        $region67: #{vae_forward.6} parent=62 // pred_fallthru
          _
      $region63: #{vae_forward.6} parent=5 // pred_fallthru
        _
    $region6: #{vae_forward.6} parent=1 // loop_footer
      %s13 = sadd.s32 1, %s9
    $region7: #{vae_forward.6} parent=1 // loop_footer_branch
      %8 = sbr.rel target = $region3
    $region8: #{vae_forward.6} parent=1 // loop_exit
      _

// kernel: vae_forward.5
$region0: #{vae_forward.5}
  #allocation0 [shape = 'u32[]', space=smem, size = 0x4, offset = 0x4, fixed_abs, tag = 'smem constant byte address 0x4 - core index']
  #allocation1 [shape = 'u32[144,128]{1,0:T(1,128)}', space=vmem, size = 0x12000, scoped, tag = 'internal scratch']
  %s0 = inlined_call_operand.vmem [shape: f32[8,1024], index: 0, kind: input, shape index: {}]
  %s1 = inlined_call_operand.hbm [shape: bf16[1024,256], index: 1, kind: input, shape index: {}]
  %s2 = inlined_call_operand.vmem [shape: f32[1,256], index: 2, kind: input, shape index: {}]
  %s3 = inlined_call_operand.vmem [shape: f32[8,128], index: 3, kind: input, shape index: {}]
  %s4 = inlined_call_operand.vmem [shape: f32[8,128], index: 4, kind: output, shape index: {0}]
  %s5 = inlined_call_operand.vmem [shape: f32[8,128], index: 5, kind: output, shape index: {1}]
  %s6 = inlined_call_operand.vmem [shape: f32[8,128], index: 6, kind: output, shape index: {2}]
  %7 = xla_tuple %s4, %s5, %s6
  %s8 = sld [smem:[#allocation0]]
  $region46: #{vae_forward.5} parent=0
    _
  %s10 = ssub.s32 1, %s8
  %s11 = scalar_select 0, %s10, %s8
  $region1: #{vae_forward.5} parent=0
    #allocation2 [shape = 'u8[524288]{0}', space=vmem, size = 0x80000, scoped, tag = 'input window, operand 1, single buffered']
    #allocation3 [shape = 's32[1]{0}', space=sflag, size = 0x4, scoped, tag = 'scoped memory for vae_forward.5']
    %12 = vsyncpa [#allocation3], 0
    // Predicated region
    $region2: #{vae_forward.5} parent=1 // pred_check
      _
    $region3: #{vae_forward.5} parent=1 // pred_check_branch
      %14 = sbr.rel (0) target = $region5
    $region4: #{vae_forward.5} parent=1 // pred_region
      _
    $region5: #{vae_forward.5} parent=1 // pred_fallthru
      _
    // Predicated region
    $region6: #{vae_forward.5} parent=1 // pred_check
      _
    $region7: #{vae_forward.5} parent=1 // pred_check_branch
      %16 = sbr.rel (0) target = $region9
    $region8: #{vae_forward.5} parent=1 // pred_region
      %s18 = ssub.s32 16384, 16384
      %19 = vsyncadd [#allocation3], %s18
      %s20 = sshll.u32 [#allocation2], 4
      %s21 = int_to_ptr.vmem [resolvable:$true] %s20
      %26 = dma.hbm_to_vmem [thread:$0]  %s1, 16384, %s21, [#allocation3], 128, 128, 8
    $region9: #{vae_forward.5} parent=1 // pred_fallthru
      _
    // Predicated region
    $region10: #{vae_forward.5} parent=1 // pred_check
      _
    $region11: #{vae_forward.5} parent=1 // pred_check_branch
      %28 = sbr.rel (0) target = $region13
    $region12: #{vae_forward.5} parent=1 // pred_region
      _
    $region13: #{vae_forward.5} parent=1 // pred_fallthru
      _
    // Predicated region
    $region14: #{vae_forward.5} parent=1 // pred_check
      _
    $region15: #{vae_forward.5} parent=1 // pred_check_branch
      %30 = sbr.rel (0) target = $region17
    $region16: #{vae_forward.5} parent=1 // pred_region
      _
    $region17: #{vae_forward.5} parent=1 // pred_fallthru
      _
    // Predicated region
    $region18: #{vae_forward.5} parent=1 // pred_check
      _
    $region19: #{vae_forward.5} parent=1 // pred_check_branch
      %32 = sbr.rel (0) target = $region21
    $region20: #{vae_forward.5} parent=1 // pred_region
      %33 = dma.done [#allocation3], 16384
    $region21: #{vae_forward.5} parent=1 // pred_fallthru
      _
    %v34 = vld [vmem:[%s0] sm:$0xff]
    %v35 = vld [vmem:[%s0 + $0x8] sm:$0xff]
    %v36 = vld [vmem:[%s0 + $0x10] sm:$0xff]
    %v37 = vld [vmem:[%s0 + $0x18] sm:$0xff]
    %v38 = vld [vmem:[%s0 + $0x20] sm:$0xff]
    %v39 = vld [vmem:[%s0 + $0x28] sm:$0xff]
    %v40 = vld [vmem:[%s0 + $0x30] sm:$0xff]
    %v41 = vld [vmem:[%s0 + $0x38] sm:$0xff]
    %v42 = vpack.c.bf16 %v34, %v34
    %v43 = vpack.c.bf16 %v35, %v35
    %v44 = vpack.c.bf16 %v36, %v36
    %v45 = vpack.c.bf16 %v37, %v37
    %v46 = vpack.c.bf16 %v38, %v38
    %v47 = vpack.c.bf16 %v39, %v39
    %v48 = vpack.c.bf16 %v40, %v40
    %v49 = vpack.c.bf16 %v41, %v41
    %v50 = vld [vmem:[#allocation2] sm:$0xff]
    %v51 = vld [vmem:[#allocation2 + $0x8] sm:$0xff]
    %v52 = vld [vmem:[#allocation2 + $0x10] sm:$0xff]
    %v53 = vld [vmem:[#allocation2 + $0x18] sm:$0xff]
    %v54 = vld [vmem:[#allocation2 + $0x20] sm:$0xff]
    %v55 = vld [vmem:[#allocation2 + $0x28] sm:$0xff]
    %v56 = vld [vmem:[#allocation2 + $0x30] sm:$0xff]
    %v57 = vld [vmem:[#allocation2 + $0x38] sm:$0xff]
    %v58 = vld [vmem:[#allocation2 + $0x40] sm:$0xff]
    %v59 = vld [vmem:[#allocation2 + $0x48] sm:$0xff]
    %v60 = vld [vmem:[#allocation2 + $0x50] sm:$0xff]
    %v61 = vld [vmem:[#allocation2 + $0x58] sm:$0xff]
    %v62 = vld [vmem:[#allocation2 + $0x60] sm:$0xff]
    %v63 = vld [vmem:[#allocation2 + $0x68] sm:$0xff]
    %v64 = vld [vmem:[#allocation2 + $0x70] sm:$0xff]
    %v65 = vld [vmem:[#allocation2 + $0x78] sm:$0xff]
    %v66 = vld [vmem:[#allocation2 + $0x80] sm:$0xff]
    %v67 = vld [vmem:[#allocation2 + $0x88] sm:$0xff]
    %v68 = vld [vmem:[#allocation2 + $0x90] sm:$0xff]
    %v69 = vld [vmem:[#allocation2 + $0x98] sm:$0xff]
    %v70 = vld [vmem:[#allocation2 + $0xa0] sm:$0xff]
    %v71 = vld [vmem:[#allocation2 + $0xa8] sm:$0xff]
    %v72 = vld [vmem:[#allocation2 + $0xb0] sm:$0xff]
    %v73 = vld [vmem:[#allocation2 + $0xb8] sm:$0xff]
    %v74 = vld [vmem:[#allocation2 + $0xc0] sm:$0xff]
    %v75 = vld [vmem:[#allocation2 + $0xc8] sm:$0xff]
    %v76 = vld [vmem:[#allocation2 + $0xd0] sm:$0xff]
    %v77 = vld [vmem:[#allocation2 + $0xd8] sm:$0xff]
    %v78 = vld [vmem:[#allocation2 + $0xe0] sm:$0xff]
    %v79 = vld [vmem:[#allocation2 + $0xe8] sm:$0xff]
    %v80 = vld [vmem:[#allocation2 + $0xf0] sm:$0xff]
    %v81 = vld [vmem:[#allocation2 + $0xf8] sm:$0xff]
    %v82 = vld [vmem:[#allocation2 + $0x100] sm:$0xff]
    %v83 = vld [vmem:[#allocation2 + $0x108] sm:$0xff]
    %v84 = vld [vmem:[#allocation2 + $0x110] sm:$0xff]
    %v85 = vld [vmem:[#allocation2 + $0x118] sm:$0xff]
    %v86 = vld [vmem:[#allocation2 + $0x120] sm:$0xff]
    %v87 = vld [vmem:[#allocation2 + $0x128] sm:$0xff]
    %v88 = vld [vmem:[#allocation2 + $0x130] sm:$0xff]
    %v89 = vld [vmem:[#allocation2 + $0x138] sm:$0xff]
    %v90 = vld [vmem:[#allocation2 + $0x140] sm:$0xff]
    %v91 = vld [vmem:[#allocation2 + $0x148] sm:$0xff]
    %v92 = vld [vmem:[#allocation2 + $0x150] sm:$0xff]
    %v93 = vld [vmem:[#allocation2 + $0x158] sm:$0xff]
    %v94 = vld [vmem:[#allocation2 + $0x160] sm:$0xff]
    %v95 = vld [vmem:[#allocation2 + $0x168] sm:$0xff]
    %v96 = vld [vmem:[#allocation2 + $0x170] sm:$0xff]
    %v97 = vld [vmem:[#allocation2 + $0x178] sm:$0xff]
    %v98 = vld [vmem:[#allocation2 + $0x180] sm:$0xff]
    %v99 = vld [vmem:[#allocation2 + $0x188] sm:$0xff]
    %v100 = vld [vmem:[#allocation2 + $0x190] sm:$0xff]
    %v101 = vld [vmem:[#allocation2 + $0x198] sm:$0xff]
    %v102 = vld [vmem:[#allocation2 + $0x1a0] sm:$0xff]
    %v103 = vld [vmem:[#allocation2 + $0x1a8] sm:$0xff]
    %v104 = vld [vmem:[#allocation2 + $0x1b0] sm:$0xff]
    %v105 = vld [vmem:[#allocation2 + $0x1b8] sm:$0xff]
    %v106 = vld [vmem:[#allocation2 + $0x1c0] sm:$0xff]
    %v107 = vld [vmem:[#allocation2 + $0x1c8] sm:$0xff]
    %v108 = vld [vmem:[#allocation2 + $0x1d0] sm:$0xff]
    %v109 = vld [vmem:[#allocation2 + $0x1d8] sm:$0xff]
    %v110 = vld [vmem:[#allocation2 + $0x1e0] sm:$0xff]
    %v111 = vld [vmem:[#allocation2 + $0x1e8] sm:$0xff]
    %v112 = vld [vmem:[#allocation2 + $0x1f0] sm:$0xff]
    %v113 = vld [vmem:[#allocation2 + $0x1f8] sm:$0xff]
    %v114 = vld [vmem:[#allocation2 + $0x200] sm:$0xff]
    %v115 = vld [vmem:[#allocation2 + $0x208] sm:$0xff]
    %v116 = vld [vmem:[#allocation2 + $0x210] sm:$0xff]
    %v117 = vld [vmem:[#allocation2 + $0x218] sm:$0xff]
    %v118 = vld [vmem:[#allocation2 + $0x220] sm:$0xff]
    %v119 = vld [vmem:[#allocation2 + $0x228] sm:$0xff]
    %v120 = vld [vmem:[#allocation2 + $0x230] sm:$0xff]
    %v121 = vld [vmem:[#allocation2 + $0x238] sm:$0xff]
    %v122 = vld [vmem:[#allocation2 + $0x240] sm:$0xff]
    %v123 = vld [vmem:[#allocation2 + $0x248] sm:$0xff]
    %v124 = vld [vmem:[#allocation2 + $0x250] sm:$0xff]
    %v125 = vld [vmem:[#allocation2 + $0x258] sm:$0xff]
    %v126 = vld [vmem:[#allocation2 + $0x260] sm:$0xff]
    %v127 = vld [vmem:[#allocation2 + $0x268] sm:$0xff]
    %v128 = vld [vmem:[#allocation2 + $0x270] sm:$0xff]
    %v129 = vld [vmem:[#allocation2 + $0x278] sm:$0xff]
    %v130 = vld [vmem:[#allocation2 + $0x280] sm:$0xff]
    %v131 = vld [vmem:[#allocation2 + $0x288] sm:$0xff]
    %v132 = vld [vmem:[#allocation2 + $0x290] sm:$0xff]
    %v133 = vld [vmem:[#allocation2 + $0x298] sm:$0xff]
    %v134 = vld [vmem:[#allocation2 + $0x2a0] sm:$0xff]
    %v135 = vld [vmem:[#allocation2 + $0x2a8] sm:$0xff]
    %v136 = vld [vmem:[#allocation2 + $0x2b0] sm:$0xff]
    %v137 = vld [vmem:[#allocation2 + $0x2b8] sm:$0xff]
    %v138 = vld [vmem:[#allocation2 + $0x2c0] sm:$0xff]
    %v139 = vld [vmem:[#allocation2 + $0x2c8] sm:$0xff]
    %v140 = vld [vmem:[#allocation2 + $0x2d0] sm:$0xff]
    %v141 = vld [vmem:[#allocation2 + $0x2d8] sm:$0xff]
    %v142 = vld [vmem:[#allocation2 + $0x2e0] sm:$0xff]
    %v143 = vld [vmem:[#allocation2 + $0x2e8] sm:$0xff]
    %v144 = vld [vmem:[#allocation2 + $0x2f0] sm:$0xff]
    %v145 = vld [vmem:[#allocation2 + $0x2f8] sm:$0xff]
    %v146 = vld [vmem:[#allocation2 + $0x300] sm:$0xff]
    %v147 = vld [vmem:[#allocation2 + $0x308] sm:$0xff]
    %v148 = vld [vmem:[#allocation2 + $0x310] sm:$0xff]
    %v149 = vld [vmem:[#allocation2 + $0x318] sm:$0xff]
    %v150 = vld [vmem:[#allocation2 + $0x320] sm:$0xff]
    %v151 = vld [vmem:[#allocation2 + $0x328] sm:$0xff]
    %v152 = vld [vmem:[#allocation2 + $0x330] sm:$0xff]
    %v153 = vld [vmem:[#allocation2 + $0x338] sm:$0xff]
    %v154 = vld [vmem:[#allocation2 + $0x340] sm:$0xff]
    %v155 = vld [vmem:[#allocation2 + $0x348] sm:$0xff]
    %v156 = vld [vmem:[#allocation2 + $0x350] sm:$0xff]
    %v157 = vld [vmem:[#allocation2 + $0x358] sm:$0xff]
    %v158 = vld [vmem:[#allocation2 + $0x360] sm:$0xff]
    %v159 = vld [vmem:[#allocation2 + $0x368] sm:$0xff]
    %v160 = vld [vmem:[#allocation2 + $0x370] sm:$0xff]
    %v161 = vld [vmem:[#allocation2 + $0x378] sm:$0xff]
    %v162 = vld [vmem:[#allocation2 + $0x380] sm:$0xff]
    %v163 = vld [vmem:[#allocation2 + $0x388] sm:$0xff]
    %v164 = vld [vmem:[#allocation2 + $0x390] sm:$0xff]
    %v165 = vld [vmem:[#allocation2 + $0x398] sm:$0xff]
    %v166 = vld [vmem:[#allocation2 + $0x3a0] sm:$0xff]
    %v167 = vld [vmem:[#allocation2 + $0x3a8] sm:$0xff]
    %v168 = vld [vmem:[#allocation2 + $0x3b0] sm:$0xff]
    %v169 = vld [vmem:[#allocation2 + $0x3b8] sm:$0xff]
    %v170 = vld [vmem:[#allocation2 + $0x3c0] sm:$0xff]
    %v171 = vld [vmem:[#allocation2 + $0x3c8] sm:$0xff]
    %v172 = vld [vmem:[#allocation2 + $0x3d0] sm:$0xff]
    %v173 = vld [vmem:[#allocation2 + $0x3d8] sm:$0xff]
    %v174 = vld [vmem:[#allocation2 + $0x3e0] sm:$0xff]
    %v175 = vld [vmem:[#allocation2 + $0x3e8] sm:$0xff]
    %v176 = vld [vmem:[#allocation2 + $0x3f0] sm:$0xff]
    %v177 = vld [vmem:[#allocation2 + $0x3f8] sm:$0xff]
    %v178 = vld [vmem:[%s2] sm:$0x3]
    %v180 = vlaneseq
    %v181 = vshrl.u32 %v180, 7
    %v182 = vsub.s32 0, %v181
    %v183 = vrot.slane %v178, %v182
    %v184 = vlaneseq
    %v185 = vshrl.u32 %v184, 7
    %v186 = vsub.s32 1, %v185
    %v187 = vrot.slane %v178, %v186
    %v318 = vunpack.c.l.b16 %v50
    %v319 = vunpack.c.h.b16 %v50
    %v320 = vunpack.c.l.b16 %v51
    %v321 = vunpack.c.h.b16 %v51
    %v322 = vunpack.c.l.b16 %v52
    %v323 = vunpack.c.h.b16 %v52
    %v324 = vunpack.c.l.b16 %v53
    %v325 = vunpack.c.h.b16 %v53
    %v326 = vunpack.c.l.b16 %v54
    %v327 = vunpack.c.h.b16 %v54
    %v328 = vunpack.c.l.b16 %v55
    %v329 = vunpack.c.h.b16 %v55
    %v330 = vunpack.c.l.b16 %v56
    %v331 = vunpack.c.h.b16 %v56
    %v332 = vunpack.c.l.b16 %v57
    %v333 = vunpack.c.h.b16 %v57
    %v334 = vunpack.c.l.b16 %v58
    %v335 = vunpack.c.h.b16 %v58
    %v336 = vunpack.c.l.b16 %v59
    %v337 = vunpack.c.h.b16 %v59
    %v338 = vunpack.c.l.b16 %v60
    %v339 = vunpack.c.h.b16 %v60
    %v340 = vunpack.c.l.b16 %v61
    %v341 = vunpack.c.h.b16 %v61
    %v342 = vunpack.c.l.b16 %v62
    %v343 = vunpack.c.h.b16 %v62
    %v344 = vunpack.c.l.b16 %v63
    %v345 = vunpack.c.h.b16 %v63
    %v346 = vunpack.c.l.b16 %v64
    %v347 = vunpack.c.h.b16 %v64
    %v348 = vunpack.c.l.b16 %v65
    %v349 = vunpack.c.h.b16 %v65
    %v350 = vunpack.c.l.b16 %v66
    %v351 = vunpack.c.h.b16 %v66
    %v352 = vunpack.c.l.b16 %v67
    %v353 = vunpack.c.h.b16 %v67
    %v354 = vunpack.c.l.b16 %v68
    %v355 = vunpack.c.h.b16 %v68
    %v356 = vunpack.c.l.b16 %v69
    %v357 = vunpack.c.h.b16 %v69
    %v358 = vunpack.c.l.b16 %v70
    %v359 = vunpack.c.h.b16 %v70
    %v360 = vunpack.c.l.b16 %v71
    %v361 = vunpack.c.h.b16 %v71
    %v362 = vunpack.c.l.b16 %v72
    %v363 = vunpack.c.h.b16 %v72
    %v364 = vunpack.c.l.b16 %v73
    %v365 = vunpack.c.h.b16 %v73
    %v366 = vunpack.c.l.b16 %v74
    %v367 = vunpack.c.h.b16 %v74
    %v368 = vunpack.c.l.b16 %v75
    %v369 = vunpack.c.h.b16 %v75
    %v370 = vunpack.c.l.b16 %v76
    %v371 = vunpack.c.h.b16 %v76
    %v372 = vunpack.c.l.b16 %v77
    %v373 = vunpack.c.h.b16 %v77
    %v374 = vunpack.c.l.b16 %v78
    %v375 = vunpack.c.h.b16 %v78
    %v376 = vunpack.c.l.b16 %v79
    %v377 = vunpack.c.h.b16 %v79
    %v378 = vunpack.c.l.b16 %v80
    %v379 = vunpack.c.h.b16 %v80
    %v380 = vunpack.c.l.b16 %v81
    %v381 = vunpack.c.h.b16 %v81
    %v382 = vunpack.c.l.b16 %v82
    %v383 = vunpack.c.h.b16 %v82
    %v384 = vunpack.c.l.b16 %v83
    %v385 = vunpack.c.h.b16 %v83
    %v386 = vunpack.c.l.b16 %v84
    %v387 = vunpack.c.h.b16 %v84
    %v388 = vunpack.c.l.b16 %v85
    %v389 = vunpack.c.h.b16 %v85
    %v390 = vunpack.c.l.b16 %v86
    %v391 = vunpack.c.h.b16 %v86
    %v392 = vunpack.c.l.b16 %v87
    %v393 = vunpack.c.h.b16 %v87
    %v394 = vunpack.c.l.b16 %v88
    %v395 = vunpack.c.h.b16 %v88
    %v396 = vunpack.c.l.b16 %v89
    %v397 = vunpack.c.h.b16 %v89
    %v398 = vunpack.c.l.b16 %v90
    %v399 = vunpack.c.h.b16 %v90
    %v400 = vunpack.c.l.b16 %v91
    %v401 = vunpack.c.h.b16 %v91
    %v402 = vunpack.c.l.b16 %v92
    %v403 = vunpack.c.h.b16 %v92
    %v404 = vunpack.c.l.b16 %v93
    %v405 = vunpack.c.h.b16 %v93
    %v406 = vunpack.c.l.b16 %v94
    %v407 = vunpack.c.h.b16 %v94
    %v408 = vunpack.c.l.b16 %v95
    %v409 = vunpack.c.h.b16 %v95
    %v410 = vunpack.c.l.b16 %v96
    %v411 = vunpack.c.h.b16 %v96
    %v412 = vunpack.c.l.b16 %v97
    %v413 = vunpack.c.h.b16 %v97
    %v414 = vunpack.c.l.b16 %v98
    %v415 = vunpack.c.h.b16 %v98
    %v416 = vunpack.c.l.b16 %v99
    %v417 = vunpack.c.h.b16 %v99
    %v418 = vunpack.c.l.b16 %v100
    %v419 = vunpack.c.h.b16 %v100
    %v420 = vunpack.c.l.b16 %v101
    %v421 = vunpack.c.h.b16 %v101
    %v422 = vunpack.c.l.b16 %v102
    %v423 = vunpack.c.h.b16 %v102
    %v424 = vunpack.c.l.b16 %v103
    %v425 = vunpack.c.h.b16 %v103
    %v426 = vunpack.c.l.b16 %v104
    %v427 = vunpack.c.h.b16 %v104
    %v428 = vunpack.c.l.b16 %v105
    %v429 = vunpack.c.h.b16 %v105
    %v430 = vunpack.c.l.b16 %v106
    %v431 = vunpack.c.h.b16 %v106
    %v432 = vunpack.c.l.b16 %v107
    %v433 = vunpack.c.h.b16 %v107
    %v434 = vunpack.c.l.b16 %v108
    %v435 = vunpack.c.h.b16 %v108
    %v436 = vunpack.c.l.b16 %v109
    %v437 = vunpack.c.h.b16 %v109
    %v438 = vunpack.c.l.b16 %v110
    %v439 = vunpack.c.h.b16 %v110
    %v440 = vunpack.c.l.b16 %v111
    %v441 = vunpack.c.h.b16 %v111
    %v442 = vunpack.c.l.b16 %v112
    %v443 = vunpack.c.h.b16 %v112
    %v444 = vunpack.c.l.b16 %v113
    %v445 = vunpack.c.h.b16 %v113
    %v446 = vunpack.c.l.b16 %v114
    %v447 = vunpack.c.h.b16 %v114
    %v448 = vunpack.c.l.b16 %v115
    %v449 = vunpack.c.h.b16 %v115
    %v450 = vunpack.c.l.b16 %v116
    %v451 = vunpack.c.h.b16 %v116
    %v452 = vunpack.c.l.b16 %v117
    %v453 = vunpack.c.h.b16 %v117
    %v454 = vunpack.c.l.b16 %v118
    %v455 = vunpack.c.h.b16 %v118
    %v456 = vunpack.c.l.b16 %v119
    %v457 = vunpack.c.h.b16 %v119
    %v458 = vunpack.c.l.b16 %v120
    %v459 = vunpack.c.h.b16 %v120
    %v460 = vunpack.c.l.b16 %v121
    %v461 = vunpack.c.h.b16 %v121
    %v462 = vunpack.c.l.b16 %v122
    %v463 = vunpack.c.h.b16 %v122
    %v464 = vunpack.c.l.b16 %v123
    %v465 = vunpack.c.h.b16 %v123
    %v466 = vunpack.c.l.b16 %v124
    %v467 = vunpack.c.h.b16 %v124
    %v468 = vunpack.c.l.b16 %v125
    %v469 = vunpack.c.h.b16 %v125
    %v470 = vunpack.c.l.b16 %v126
    %v471 = vunpack.c.h.b16 %v126
    %v472 = vunpack.c.l.b16 %v127
    %v473 = vunpack.c.h.b16 %v127
    %v474 = vunpack.c.l.b16 %v128
    %v475 = vunpack.c.h.b16 %v128
    %v476 = vunpack.c.l.b16 %v129
    %v477 = vunpack.c.h.b16 %v129
    %v478 = vunpack.c.l.b16 %v130
    %v479 = vunpack.c.h.b16 %v130
    %v480 = vunpack.c.l.b16 %v131
    %v481 = vunpack.c.h.b16 %v131
    %v482 = vunpack.c.l.b16 %v132
    %v483 = vunpack.c.h.b16 %v132
    %v484 = vunpack.c.l.b16 %v133
    %v485 = vunpack.c.h.b16 %v133
    %v486 = vunpack.c.l.b16 %v134
    %v487 = vunpack.c.h.b16 %v134
    %v488 = vunpack.c.l.b16 %v135
    %v489 = vunpack.c.h.b16 %v135
    %v490 = vunpack.c.l.b16 %v136
    %v491 = vunpack.c.h.b16 %v136
    %v492 = vunpack.c.l.b16 %v137
    %v493 = vunpack.c.h.b16 %v137
    %v494 = vunpack.c.l.b16 %v138
    %v495 = vunpack.c.h.b16 %v138
    %v496 = vunpack.c.l.b16 %v139
    %v497 = vunpack.c.h.b16 %v139
    %v498 = vunpack.c.l.b16 %v140
    %v499 = vunpack.c.h.b16 %v140
    %v500 = vunpack.c.l.b16 %v141
    %v501 = vunpack.c.h.b16 %v141
    %v502 = vunpack.c.l.b16 %v142
    %v503 = vunpack.c.h.b16 %v142
    %v504 = vunpack.c.l.b16 %v143
    %v505 = vunpack.c.h.b16 %v143
    %v506 = vunpack.c.l.b16 %v144
    %v507 = vunpack.c.h.b16 %v144
    %v508 = vunpack.c.l.b16 %v145
    %v509 = vunpack.c.h.b16 %v145
    %v510 = vunpack.c.l.b16 %v146
    %v511 = vunpack.c.h.b16 %v146
    %v512 = vunpack.c.l.b16 %v147
    %v513 = vunpack.c.h.b16 %v147
    %v514 = vunpack.c.l.b16 %v148
    %v515 = vunpack.c.h.b16 %v148
    %v516 = vunpack.c.l.b16 %v149
    %v517 = vunpack.c.h.b16 %v149
    %v518 = vunpack.c.l.b16 %v150
    %v519 = vunpack.c.h.b16 %v150
    %v520 = vunpack.c.l.b16 %v151
    %v521 = vunpack.c.h.b16 %v151
    %v522 = vunpack.c.l.b16 %v152
    %v523 = vunpack.c.h.b16 %v152
    %v524 = vunpack.c.l.b16 %v153
    %v525 = vunpack.c.h.b16 %v153
    %v526 = vunpack.c.l.b16 %v154
    %v527 = vunpack.c.h.b16 %v154
    %v528 = vunpack.c.l.b16 %v155
    %v529 = vunpack.c.h.b16 %v155
    %v530 = vunpack.c.l.b16 %v156
    %v531 = vunpack.c.h.b16 %v156
    %v532 = vunpack.c.l.b16 %v157
    %v533 = vunpack.c.h.b16 %v157
    %v534 = vunpack.c.l.b16 %v158
    %v535 = vunpack.c.h.b16 %v158
    %v536 = vunpack.c.l.b16 %v159
    %v537 = vunpack.c.h.b16 %v159
    %v538 = vunpack.c.l.b16 %v160
    %v539 = vunpack.c.h.b16 %v160
    %v540 = vunpack.c.l.b16 %v161
    %v541 = vunpack.c.h.b16 %v161
    %v542 = vunpack.c.l.b16 %v162
    %v543 = vunpack.c.h.b16 %v162
    %v544 = vunpack.c.l.b16 %v163
    %v545 = vunpack.c.h.b16 %v163
    %v546 = vunpack.c.l.b16 %v164
    %v547 = vunpack.c.h.b16 %v164
    %v548 = vunpack.c.l.b16 %v165
    %v549 = vunpack.c.h.b16 %v165
    %v550 = vunpack.c.l.b16 %v166
    %v551 = vunpack.c.h.b16 %v166
    %v552 = vunpack.c.l.b16 %v167
    %v553 = vunpack.c.h.b16 %v167
    %v554 = vunpack.c.l.b16 %v168
    %v555 = vunpack.c.h.b16 %v168
    %v556 = vunpack.c.l.b16 %v169
    %v557 = vunpack.c.h.b16 %v169
    %v558 = vunpack.c.l.b16 %v170
    %v559 = vunpack.c.h.b16 %v170
    %v560 = vunpack.c.l.b16 %v171
    %v561 = vunpack.c.h.b16 %v171
    %v562 = vunpack.c.l.b16 %v172
    %v563 = vunpack.c.h.b16 %v172
    %v564 = vunpack.c.l.b16 %v173
    %v565 = vunpack.c.h.b16 %v173
    %v566 = vunpack.c.l.b16 %v174
    %v567 = vunpack.c.h.b16 %v174
    %v568 = vunpack.c.l.b16 %v175
    %v569 = vunpack.c.h.b16 %v175
    %v570 = vunpack.c.l.b16 %v176
    %v571 = vunpack.c.h.b16 %v176
    %v572 = vunpack.c.l.b16 %v177
    %v573 = vunpack.c.h.b16 %v177
    %v574 = vpack.c.b16 %v320, %v318
    %v575 = vpack.c.b16 %v321, %v319
    %v576 = vpack.c.b16 %v324, %v322
    %v577 = vpack.c.b16 %v325, %v323
    %v578 = vpack.c.b16 %v328, %v326
    %v579 = vpack.c.b16 %v329, %v327
    %v580 = vpack.c.b16 %v332, %v330
    %v581 = vpack.c.b16 %v333, %v331
    %v582 = vpack.c.b16 %v336, %v334
    %v583 = vpack.c.b16 %v337, %v335
    %v584 = vpack.c.b16 %v340, %v338
    %v585 = vpack.c.b16 %v341, %v339
    %v586 = vpack.c.b16 %v344, %v342
    %v587 = vpack.c.b16 %v345, %v343
    %v588 = vpack.c.b16 %v348, %v346
    %v589 = vpack.c.b16 %v349, %v347
    %v590 = vpack.c.b16 %v352, %v350
    %v591 = vpack.c.b16 %v353, %v351
    %v592 = vpack.c.b16 %v356, %v354
    %v593 = vpack.c.b16 %v357, %v355
    %v594 = vpack.c.b16 %v360, %v358
    %v595 = vpack.c.b16 %v361, %v359
    %v596 = vpack.c.b16 %v364, %v362
    %v597 = vpack.c.b16 %v365, %v363
    %v598 = vpack.c.b16 %v368, %v366
    %v599 = vpack.c.b16 %v369, %v367
    %v600 = vpack.c.b16 %v372, %v370
    %v601 = vpack.c.b16 %v373, %v371
    %v602 = vpack.c.b16 %v376, %v374
    %v603 = vpack.c.b16 %v377, %v375
    %v604 = vpack.c.b16 %v380, %v378
    %v605 = vpack.c.b16 %v381, %v379
    %v606 = vpack.c.b16 %v384, %v382
    %v607 = vpack.c.b16 %v385, %v383
    %v608 = vpack.c.b16 %v388, %v386
    %v609 = vpack.c.b16 %v389, %v387
    %v610 = vpack.c.b16 %v392, %v390
    %v611 = vpack.c.b16 %v393, %v391
    %v612 = vpack.c.b16 %v396, %v394
    %v613 = vpack.c.b16 %v397, %v395
    %v614 = vpack.c.b16 %v400, %v398
    %v615 = vpack.c.b16 %v401, %v399
    %v616 = vpack.c.b16 %v404, %v402
    %v617 = vpack.c.b16 %v405, %v403
    %v618 = vpack.c.b16 %v408, %v406
    %v619 = vpack.c.b16 %v409, %v407
    %v620 = vpack.c.b16 %v412, %v410
    %v621 = vpack.c.b16 %v413, %v411
    %v622 = vpack.c.b16 %v416, %v414
    %v623 = vpack.c.b16 %v417, %v415
    %v624 = vpack.c.b16 %v420, %v418
    %v625 = vpack.c.b16 %v421, %v419
    %v626 = vpack.c.b16 %v424, %v422
    %v627 = vpack.c.b16 %v425, %v423
    %v628 = vpack.c.b16 %v428, %v426
    %v629 = vpack.c.b16 %v429, %v427
    %v630 = vpack.c.b16 %v432, %v430
    %v631 = vpack.c.b16 %v433, %v431
    %v632 = vpack.c.b16 %v436, %v434
    %v633 = vpack.c.b16 %v437, %v435
    %v634 = vpack.c.b16 %v440, %v438
    %v635 = vpack.c.b16 %v441, %v439
    %v636 = vpack.c.b16 %v444, %v442
    %v637 = vpack.c.b16 %v445, %v443
    %v638 = vpack.c.b16 %v448, %v446
    %v639 = vpack.c.b16 %v449, %v447
    %v640 = vpack.c.b16 %v452, %v450
    %v641 = vpack.c.b16 %v453, %v451
    %v642 = vpack.c.b16 %v456, %v454
    %v643 = vpack.c.b16 %v457, %v455
    %v644 = vpack.c.b16 %v460, %v458
    %v645 = vpack.c.b16 %v461, %v459
    %v646 = vpack.c.b16 %v464, %v462
    %v647 = vpack.c.b16 %v465, %v463
    %v648 = vpack.c.b16 %v468, %v466
    %v649 = vpack.c.b16 %v469, %v467
    %v650 = vpack.c.b16 %v472, %v470
    %v651 = vpack.c.b16 %v473, %v471
    %v652 = vpack.c.b16 %v476, %v474
    %v653 = vpack.c.b16 %v477, %v475
    %v654 = vpack.c.b16 %v480, %v478
    %v655 = vpack.c.b16 %v481, %v479
    %v656 = vpack.c.b16 %v484, %v482
    %v657 = vpack.c.b16 %v485, %v483
    %v658 = vpack.c.b16 %v488, %v486
    %v659 = vpack.c.b16 %v489, %v487
    %v660 = vpack.c.b16 %v492, %v490
    %v661 = vpack.c.b16 %v493, %v491
    %v662 = vpack.c.b16 %v496, %v494
    %v663 = vpack.c.b16 %v497, %v495
    %v664 = vpack.c.b16 %v500, %v498
    %v665 = vpack.c.b16 %v501, %v499
    %v666 = vpack.c.b16 %v504, %v502
    %v667 = vpack.c.b16 %v505, %v503
    %v668 = vpack.c.b16 %v508, %v506
    %v669 = vpack.c.b16 %v509, %v507
    %v670 = vpack.c.b16 %v512, %v510
    %v671 = vpack.c.b16 %v513, %v511
    %v672 = vpack.c.b16 %v516, %v514
    %v673 = vpack.c.b16 %v517, %v515
    %v674 = vpack.c.b16 %v520, %v518
    %v675 = vpack.c.b16 %v521, %v519
    %v676 = vpack.c.b16 %v524, %v522
    %v677 = vpack.c.b16 %v525, %v523
    %v678 = vpack.c.b16 %v528, %v526
    %v679 = vpack.c.b16 %v529, %v527
    %v680 = vpack.c.b16 %v532, %v530
    %v681 = vpack.c.b16 %v533, %v531
    %v682 = vpack.c.b16 %v536, %v534
    %v683 = vpack.c.b16 %v537, %v535
    %v684 = vpack.c.b16 %v540, %v538
    %v685 = vpack.c.b16 %v541, %v539
    %v686 = vpack.c.b16 %v544, %v542
    %v687 = vpack.c.b16 %v545, %v543
    %v688 = vpack.c.b16 %v548, %v546
    %v689 = vpack.c.b16 %v549, %v547
    %v690 = vpack.c.b16 %v552, %v550
    %v691 = vpack.c.b16 %v553, %v551
    %v692 = vpack.c.b16 %v556, %v554
    %v693 = vpack.c.b16 %v557, %v555
    %v694 = vpack.c.b16 %v560, %v558
    %v695 = vpack.c.b16 %v561, %v559
    %v696 = vpack.c.b16 %v564, %v562
    %v697 = vpack.c.b16 %v565, %v563
    %v698 = vpack.c.b16 %v568, %v566
    %v699 = vpack.c.b16 %v569, %v567
    %v700 = vpack.c.b16 %v572, %v570
    %v701 = vpack.c.b16 %v573, %v571
    %830 = vmatprep.subr.bf16.mxu0 %v589
    %831 = vmatpush1.bf16.msra.mxu0 %v588
    %832 = vmatprep.subr.bf16.mxu0 %v587
    %833 = vmatpush1.bf16.msra.mxu0 %v586
    %834 = vmatprep.subr.bf16.mxu0 %v585
    %835 = vmatpush1.bf16.msra.mxu0 %v584
    %836 = vmatprep.subr.bf16.mxu0 %v583
    %837 = vmatpush1.bf16.msra.mxu0 %v582
    %838 = vmatprep.subr.bf16.mxu0 %v581
    %839 = vmatpush1.bf16.msra.mxu0 %v580
    %840 = vmatprep.subr.bf16.mxu0 %v579
    %841 = vmatpush1.bf16.msra.mxu0 %v578
    %842 = vmatprep.subr.bf16.mxu0 %v577
    %843 = vmatpush1.bf16.msra.mxu0 %v576
    %844 = vmatprep.subr.bf16.mxu0 %v575
    %845 = vmatpush1.bf16.msra.mxu0 %v574
    %846 = vmatprep.subr.bf16.mxu0 %v605
    %847 = vmatpush2.bf16.msra.mxu0 %v604
    %848 = vmatprep.subr.bf16.mxu0 %v603
    %849 = vmatpush2.bf16.msra.mxu0 %v602
    %850 = vmatprep.subr.bf16.mxu0 %v601
    %851 = vmatpush2.bf16.msra.mxu0 %v600
    %852 = vmatprep.subr.bf16.mxu0 %v599
    %853 = vmatpush2.bf16.msra.mxu0 %v598
    %854 = vmatprep.subr.bf16.mxu0 %v597
    %855 = vmatpush2.bf16.msra.mxu0 %v596
    %856 = vmatprep.subr.bf16.mxu0 %v595
    %857 = vmatpush2.bf16.msra.mxu0 %v594
    %858 = vmatprep.subr.bf16.mxu0 %v593
    %859 = vmatpush2.bf16.msra.mxu0 %v592
    %860 = vmatprep.subr.bf16.mxu0 %v591
    %861 = vmatpush2.bf16.msra.mxu0 %v590
    %862 = vmatprep.mubr.bf16.mxu0 %v43
    %863 = vmatmul.mubr.bf16.gmra.mxu0 %v42
    %v864 = vpop.f32.mrf.mxu0
    %v865 = vadd.f32 %v183, %v864
    %v866 = vpop.f32.mrf.mxu0
    %v867 = vadd.f32 %v187, %v866
    %v868 = vpop.f32.mrf.mxu0
    %v869 = vpop.f32.mrf.mxu0
    %870 = vdwg.mxu0
    %871 = vmatprep.subr.bf16.mxu0 %v621
    %872 = vmatpush1.bf16.msra.mxu0 %v620
    %873 = vmatprep.subr.bf16.mxu0 %v619
    %874 = vmatpush1.bf16.msra.mxu0 %v618
    %875 = vmatprep.subr.bf16.mxu0 %v617
    %876 = vmatpush1.bf16.msra.mxu0 %v616
    %877 = vmatprep.subr.bf16.mxu0 %v615
    %878 = vmatpush1.bf16.msra.mxu0 %v614
    %879 = vmatprep.subr.bf16.mxu0 %v613
    %880 = vmatpush1.bf16.msra.mxu0 %v612
    %881 = vmatprep.subr.bf16.mxu0 %v611
    %882 = vmatpush1.bf16.msra.mxu0 %v610
    %883 = vmatprep.subr.bf16.mxu0 %v609
    %884 = vmatpush1.bf16.msra.mxu0 %v608
    %885 = vmatprep.subr.bf16.mxu0 %v607
    %886 = vmatpush1.bf16.msra.mxu0 %v606
    %887 = vmatprep.subr.bf16.mxu0 %v637
    %888 = vmatpush2.bf16.msra.mxu0 %v636
    %889 = vmatprep.subr.bf16.mxu0 %v635
    %890 = vmatpush2.bf16.msra.mxu0 %v634
    %891 = vmatprep.subr.bf16.mxu0 %v633
    %892 = vmatpush2.bf16.msra.mxu0 %v632
    %893 = vmatprep.subr.bf16.mxu0 %v631
    %894 = vmatpush2.bf16.msra.mxu0 %v630
    %895 = vmatprep.subr.bf16.mxu0 %v629
    %896 = vmatpush2.bf16.msra.mxu0 %v628
    %897 = vmatprep.subr.bf16.mxu0 %v627
    %898 = vmatpush2.bf16.msra.mxu0 %v626
    %899 = vmatprep.subr.bf16.mxu0 %v625
    %900 = vmatpush2.bf16.msra.mxu0 %v624
    %901 = vmatprep.subr.bf16.mxu0 %v623
    %902 = vmatpush2.bf16.msra.mxu0 %v622
    %903 = vmatprep.mubr.bf16.mxu0 %v45
    %904 = vmatmul.mubr.bf16.gmra.mxu0 %v44
    %v905 = vpop.f32.mrf.mxu0
    %v906 = vadd.f32 %v865, %v905
    %v907 = vpop.f32.mrf.mxu0
    %v908 = vadd.f32 %v867, %v907
    %v909 = vpop.f32.mrf.mxu0
    %v910 = vpop.f32.mrf.mxu0
    %911 = vdwg.mxu0
    %912 = vmatprep.subr.bf16.mxu0 %v653
    %913 = vmatpush1.bf16.msra.mxu0 %v652
    %914 = vmatprep.subr.bf16.mxu0 %v651
    %915 = vmatpush1.bf16.msra.mxu0 %v650
    %916 = vmatprep.subr.bf16.mxu0 %v649
    %917 = vmatpush1.bf16.msra.mxu0 %v648
    %918 = vmatprep.subr.bf16.mxu0 %v647
    %919 = vmatpush1.bf16.msra.mxu0 %v646
    %920 = vmatprep.subr.bf16.mxu0 %v645
    %921 = vmatpush1.bf16.msra.mxu0 %v644
    %922 = vmatprep.subr.bf16.mxu0 %v643
    %923 = vmatpush1.bf16.msra.mxu0 %v642
    %924 = vmatprep.subr.bf16.mxu0 %v641
    %925 = vmatpush1.bf16.msra.mxu0 %v640
    %926 = vmatprep.subr.bf16.mxu0 %v639
    %927 = vmatpush1.bf16.msra.mxu0 %v638
    %928 = vmatprep.subr.bf16.mxu0 %v669
    %929 = vmatpush2.bf16.msra.mxu0 %v668
    %930 = vmatprep.subr.bf16.mxu0 %v667
    %931 = vmatpush2.bf16.msra.mxu0 %v666
    %932 = vmatprep.subr.bf16.mxu0 %v665
    %933 = vmatpush2.bf16.msra.mxu0 %v664
    %934 = vmatprep.subr.bf16.mxu0 %v663
    %935 = vmatpush2.bf16.msra.mxu0 %v662
    %936 = vmatprep.subr.bf16.mxu0 %v661
    %937 = vmatpush2.bf16.msra.mxu0 %v660
    %938 = vmatprep.subr.bf16.mxu0 %v659
    %939 = vmatpush2.bf16.msra.mxu0 %v658
    %940 = vmatprep.subr.bf16.mxu0 %v657
    %941 = vmatpush2.bf16.msra.mxu0 %v656
    %942 = vmatprep.subr.bf16.mxu0 %v655
    %943 = vmatpush2.bf16.msra.mxu0 %v654
    %944 = vmatprep.mubr.bf16.mxu0 %v47
    %945 = vmatmul.mubr.bf16.gmra.mxu0 %v46
    %v946 = vpop.f32.mrf.mxu0
    %v947 = vadd.f32 %v906, %v946
    %v948 = vpop.f32.mrf.mxu0
    %v949 = vadd.f32 %v908, %v948
    %v950 = vpop.f32.mrf.mxu0
    %v951 = vpop.f32.mrf.mxu0
    %952 = vdwg.mxu0
    %953 = vmatprep.subr.bf16.mxu0 %v685
    %954 = vmatpush1.bf16.msra.mxu0 %v684
    %955 = vmatprep.subr.bf16.mxu0 %v683
    %956 = vmatpush1.bf16.msra.mxu0 %v682
    %957 = vmatprep.subr.bf16.mxu0 %v681
    %958 = vmatpush1.bf16.msra.mxu0 %v680
    %959 = vmatprep.subr.bf16.mxu0 %v679
    %960 = vmatpush1.bf16.msra.mxu0 %v678
    %961 = vmatprep.subr.bf16.mxu0 %v677
    %962 = vmatpush1.bf16.msra.mxu0 %v676
    %963 = vmatprep.subr.bf16.mxu0 %v675
    %964 = vmatpush1.bf16.msra.mxu0 %v674
    %965 = vmatprep.subr.bf16.mxu0 %v673
    %966 = vmatpush1.bf16.msra.mxu0 %v672
    %967 = vmatprep.subr.bf16.mxu0 %v671
    %968 = vmatpush1.bf16.msra.mxu0 %v670
    %969 = vmatprep.subr.bf16.mxu0 %v701
    %970 = vmatpush2.bf16.msra.mxu0 %v700
    %971 = vmatprep.subr.bf16.mxu0 %v699
    %972 = vmatpush2.bf16.msra.mxu0 %v698
    %973 = vmatprep.subr.bf16.mxu0 %v697
    %974 = vmatpush2.bf16.msra.mxu0 %v696
    %975 = vmatprep.subr.bf16.mxu0 %v695
    %976 = vmatpush2.bf16.msra.mxu0 %v694
    %977 = vmatprep.subr.bf16.mxu0 %v693
    %978 = vmatpush2.bf16.msra.mxu0 %v692
    %979 = vmatprep.subr.bf16.mxu0 %v691
    %980 = vmatpush2.bf16.msra.mxu0 %v690
    %981 = vmatprep.subr.bf16.mxu0 %v689
    %982 = vmatpush2.bf16.msra.mxu0 %v688
    %983 = vmatprep.subr.bf16.mxu0 %v687
    %984 = vmatpush2.bf16.msra.mxu0 %v686
    %985 = vmatprep.mubr.bf16.mxu0 %v49
    %986 = vmatmul.mubr.bf16.gmra.mxu0 %v48
    %v987 = vpop.f32.mrf.mxu0
    %v988 = vadd.f32 %v947, %v987
    %v989 = vpop.f32.mrf.mxu0
    %v990 = vadd.f32 %v949, %v989
    %v991 = vpop.f32.mrf.mxu0
    %v992 = vpop.f32.mrf.mxu0
    %993 = vdwg.mxu0
    %994 = vst [vmem:[%s4] sm:$0xff] %v988
    %995 = vst [vmem:[%s5] sm:$0xff] %v990
    %v996 = vld [vmem:[%s3] sm:$0xff]
    %v997 = vmul.f32 %v990, 0.5
    %v998 = vmul.f32 %v997, 1.442695
    %v999 = vpow.pop %v998
    %v1000 = vmul.f32 %v996, %v999
    %v1001 = vadd.f32 %v1000, %v988
    %1002 = vst [vmem:[%s6] sm:$0xff] %v1001
    // Predicated region
    $region22: #{vae_forward.5} parent=1 // pred_check
      _
    $region23: #{vae_forward.5} parent=1 // pred_check_branch
      %1004 = sbr.rel (0) target = $region25
    $region24: #{vae_forward.5} parent=1 // pred_region
      _
    $region25: #{vae_forward.5} parent=1 // pred_fallthru
      _
    // Predicated region
    $region26: #{vae_forward.5} parent=1 // pred_check
      _
    $region27: #{vae_forward.5} parent=1 // pred_check_branch
      %1006 = sbr.rel (0) target = $region29
    $region28: #{vae_forward.5} parent=1 // pred_region
      _
    $region29: #{vae_forward.5} parent=1 // pred_fallthru
      _
    // Predicated region
    $region30: #{vae_forward.5} parent=1 // pred_check
      _
    $region31: #{vae_forward.5} parent=1 // pred_check_branch
      %1008 = sbr.rel (0) target = $region33
    $region32: #{vae_forward.5} parent=1 // pred_region
      _
    $region33: #{vae_forward.5} parent=1 // pred_fallthru
      _
    // Predicated region
    $region34: #{vae_forward.5} parent=1 // pred_check
      _
    $region35: #{vae_forward.5} parent=1 // pred_check_branch
      %1010 = sbr.rel (0) target = $region37
    $region36: #{vae_forward.5} parent=1 // pred_region
      _
    $region37: #{vae_forward.5} parent=1 // pred_fallthru
      _
    // Predicated region
    $region38: #{vae_forward.5} parent=1 // pred_check
      _
    $region39: #{vae_forward.5} parent=1 // pred_check_branch
      %1012 = sbr.rel (0) target = $region41
    $region40: #{vae_forward.5} parent=1 // pred_region
      _
    $region41: #{vae_forward.5} parent=1 // pred_fallthru
      _
    // Predicated region
    $region42: #{vae_forward.5} parent=1 // pred_check
      _
    $region43: #{vae_forward.5} parent=1 // pred_check_branch
      %1014 = sbr.rel (0) target = $region45
    $region44: #{vae_forward.5} parent=1 // pred_region
      _
    $region45: #{vae_forward.5} parent=1 // pred_fallthru
      _
    %1015 = vsyncpa [#allocation3], 1

// kernel: vae_forward.7
$region0: #{vae_forward.7}
  #allocation0 [shape = 'u32[]', space=smem, size = 0x4, offset = 0x4, fixed_abs, tag = 'smem constant byte address 0x4 - core index']
  #allocation1 [shape = 'u32[144,128]{1,0:T(1,128)}', space=vmem, size = 0x12000, scoped, tag = 'internal scratch']
  %s0 = inlined_call_operand.vmem [shape: f32[8,1024], index: 0, kind: input, shape index: {}]
  %s1 = inlined_call_operand.vmem [shape: bf16[1024,4096], index: 1, kind: input, shape index: {}]
  %s2 = inlined_call_operand.vmem [shape: f32[1,4096], index: 2, kind: input, shape index: {}]
  %s3 = inlined_call_operand.vmem [shape: f32[8,4096], index: 3, kind: output, shape index: {}]
  %s4 = sld [smem:[#allocation0]]
  $region68: #{vae_forward.7} parent=0
    _
  %s6 = ssub.s32 1, %s4
  %s7 = scalar_select 0, %s6, %s4
  $region1: #{vae_forward.7} parent=0
    #allocation2 [shape = 'u8[2097152]{0}', space=vmem, size = 0x200000, scoped, tag = 'input window, operand 1']
    loop: start=0, step=1, limit=10
    $region2: #{vae_forward.7} parent=1 // loop_pre_header
      _
    $region3: #{vae_forward.7} parent=1 // loop_header
      %s9 = sphi 0, %s13
      %p10 = scmp.ge.s32.totalorder %s9, 10
      %s17 = sphi 0, %s17
      %s19 = sphi 0, %s17
      %s20 = sphi 0, %s19
      %s34 = sphi 0, %s20
      %s40 = sphi 0, %s42
      %s43 = sphi 0, %s40
      %s44 = sphi 0, %s43
      %s60 = sphi 0, %s44
      %s66 = sphi 0, %s68
      %s69 = sphi 0, %s66
      %s70 = sphi 0, %s69
      %s86 = sphi 0, %s70
      %s92 = sphi 0, %s94
      %s95 = sphi 0, %s92
      %s96 = sphi 0, %s95
      %s112 = sphi 0, %s96
    $region4: #{vae_forward.7} parent=1 // loop_header_branch
      %12 = sbr.rel (%p10) target = $region8
    $region5: #{vae_forward.7} parent=1 // loop_body
      %s14 = ssub.s32 %s9, 1
      %s15 = ssub.s32 %s9, 2
      %s16 = sadd.s32 %s9, 1
      %s18 = sadd.s32 %s17, 1
      %p21 = scmp.eq.s32.totalorder %s9, 7
      %p22 = scmp.ne.s32.totalorder %s17, %s19
      %p23 = scmp.eq.s32.totalorder %s9, 0
      %p24 = por %p22, %p23
      %p25 = scmp.ne.s32.totalorder %s17, %s19
      %p26 = scmp.eq.s32.totalorder %s14, 7
      %p27 = por %p25, %p26
      %p28 = scmp.ne.s32.totalorder %s19, %s20
      %p29 = scmp.eq.s32.totalorder %s14, 0
      %p30 = por %p28, %p29
      %p31 = scmp.ne.s32.totalorder %s19, %s20
      %p32 = scmp.eq.s32.totalorder %s15, 7
      %p33 = por %p31, %p32
      %p35 = scmp.ne.s32.totalorder %s20, %s34
      %p36 = scmp.eq.s32.totalorder %s15, 0
      %p37 = por %p35, %p36
      %s38 = ssub.s32 %s9, %s16
      %p39 = scmp.eq.s32.totalorder %s38, 0
      %s41 = sadd.s32 %s40, 1
      %s42 = scalar_select %p39, %s40, %s41
      %p45 = pneg %p39
      %p46 = scmp.eq.s32.totalorder %s9, 7
      %p47 = por %p45, %p46
      %p48 = scmp.ne.s32.totalorder %s40, %s43
      %p49 = scmp.eq.s32.totalorder %s9, 0
      %p50 = por %p48, %p49
      %p51 = scmp.ne.s32.totalorder %s40, %s43
      %p52 = scmp.eq.s32.totalorder %s14, 7
      %p53 = por %p51, %p52
      %p54 = scmp.ne.s32.totalorder %s43, %s44
      %p55 = scmp.eq.s32.totalorder %s14, 0
      %p56 = por %p54, %p55
      %p57 = scmp.ne.s32.totalorder %s43, %s44
      %p58 = scmp.eq.s32.totalorder %s15, 7
      %p59 = por %p57, %p58
      %p61 = scmp.ne.s32.totalorder %s44, %s60
      %p62 = scmp.eq.s32.totalorder %s15, 0
      %p63 = por %p61, %p62
      %s64 = ssub.s32 %s9, %s16
      %p65 = scmp.eq.s32.totalorder %s64, 0
      %s67 = sadd.s32 %s66, 1
      %s68 = scalar_select %p65, %s66, %s67
      %p71 = pneg %p65
      %p72 = scmp.eq.s32.totalorder %s9, 7
      %p73 = por %p71, %p72
      %p74 = scmp.ne.s32.totalorder %s66, %s69
      %p75 = scmp.eq.s32.totalorder %s9, 0
      %p76 = por %p74, %p75
      %p77 = scmp.ne.s32.totalorder %s66, %s69
      %p78 = scmp.eq.s32.totalorder %s14, 7
      %p79 = por %p77, %p78
      %p80 = scmp.ne.s32.totalorder %s69, %s70
      %p81 = scmp.eq.s32.totalorder %s14, 0
      %p82 = por %p80, %p81
      %p83 = scmp.ne.s32.totalorder %s69, %s70
      %p84 = scmp.eq.s32.totalorder %s15, 7
      %p85 = por %p83, %p84
      %p87 = scmp.ne.s32.totalorder %s70, %s86
      %p88 = scmp.eq.s32.totalorder %s15, 0
      %p89 = por %p87, %p88
      %s90 = ssub.s32 %s9, %s16
      %p91 = scmp.eq.s32.totalorder %s90, 0
      %s93 = sadd.s32 %s92, 1
      %s94 = scalar_select %p91, %s92, %s93
      %p97 = pneg %p91
      %p98 = scmp.eq.s32.totalorder %s9, 7
      %p99 = por %p97, %p98
      %p100 = scmp.ne.s32.totalorder %s92, %s95
      %p101 = scmp.eq.s32.totalorder %s9, 0
      %p102 = por %p100, %p101
      %p103 = scmp.ne.s32.totalorder %s92, %s95
      %p104 = scmp.eq.s32.totalorder %s14, 7
      %p105 = por %p103, %p104
      %p106 = scmp.ne.s32.totalorder %s95, %s96
      %p107 = scmp.eq.s32.totalorder %s14, 0
      %p108 = por %p106, %p107
      %p109 = scmp.ne.s32.totalorder %s95, %s96
      %p110 = scmp.eq.s32.totalorder %s15, 7
      %p111 = por %p109, %p110
      %p113 = scmp.ne.s32.totalorder %s96, %s112
      %p114 = scmp.eq.s32.totalorder %s15, 0
      %p115 = por %p113, %p114
      %p116 = scmp.le.s32.totalorder 1, %s9
      %p117 = scmp.lt.s32.totalorder %s9, 9
      %p118 = pnand %p116, %p117
      %p119 = pneg %p118
      // Predicated region
      $region9: #{vae_forward.7} parent=5 // pred_check
        _
      $region10: #{vae_forward.7} parent=5 // pred_check_branch
        %121 = sbr.rel (%p118) target = $region12
      $region11: #{vae_forward.7} parent=5 // pred_region
        %s122 = ssub.s32 %s9, 1
        // Predicated region
        $region13: #{vae_forward.7} parent=11 // pred_check
          %p123 = pneg %p30
        $region14: #{vae_forward.7} parent=11 // pred_check_branch
          %125 = sbr.rel (%p123) target = $region16
        $region15: #{vae_forward.7} parent=11 // pred_region
          _
        $region16: #{vae_forward.7} parent=11 // pred_fallthru
          _
      $region12: #{vae_forward.7} parent=5 // pred_fallthru
        _
      %p126 = scmp.lt.s32.totalorder %s9, 8
      // Predicated region
      $region17: #{vae_forward.7} parent=5 // pred_check
        %p127 = pneg %p126
      $region18: #{vae_forward.7} parent=5 // pred_check_branch
        %129 = sbr.rel (%p127) target = $region20
      $region19: #{vae_forward.7} parent=5 // pred_region
        // Predicated region
        $region21: #{vae_forward.7} parent=19 // pred_check
          %p130 = pneg %p50
        $region22: #{vae_forward.7} parent=19 // pred_check_branch
          %132 = sbr.rel (%p130) target = $region24
        $region23: #{vae_forward.7} parent=19 // pred_region
          %s133 = sand.u32 %s40, 1
          %s134 = sand.u32 %s40, 1
          %s135 = smul.addr %s134, 2048
          %s136 = scalar_lea.vmem [#allocation2], %s135
          %s137 = smul.u32 4, %s9
          %s138 = smul.addr %s137, 4
          %s139 = scalar_lea.vmem %s1, %s138
          // Predicated region
          $region25: #{vae_forward.7} parent=23 // pred_check
            _
          $region26: #{vae_forward.7} parent=23 // pred_check_branch
            %141 = sbr.rel (0) target = $region28
          $region27: #{vae_forward.7} parent=23 // pred_region
            // Predicated region
            $region29: #{vae_forward.7} parent=27 // pred_check
              _
            $region30: #{vae_forward.7} parent=27 // pred_check_branch
              %143 = sbr.rel (0) target = $region32
            $region31: #{vae_forward.7} parent=27 // pred_region
              loop: start=0, step=1, limit=1
              $region33: #{vae_forward.7} parent=31 // loop_pre_header
                _
              $region34: #{vae_forward.7} parent=31 // loop_header
                %s145 = sphi 0, %s149
                %p146 = scmp.ge.s32.totalorder %s145, 1
                %s150 = sphi %s139, %s139
                %s151 = sphi %s136, %s136
              $region35: #{vae_forward.7} parent=31 // loop_header_branch
                %148 = sbr.rel (%p146) target = $region39
              $region36: #{vae_forward.7} parent=31 // loop_body
                %v152 = vld [vmem:[%s150] sm:$0xff]
                %153 = vst [vmem:[%s151] sm:$0xff] %v152
                %v154 = vld [vmem:[%s150 + $0x8] sm:$0xff]
                %155 = vst [vmem:[%s151 + $0x8] sm:$0xff] %v154
                %v156 = vld [vmem:[%s150 + $0x80] sm:$0xff]
                %157 = vst [vmem:[%s151 + $0x10] sm:$0xff] %v156
                %v158 = vld [vmem:[%s150 + $0x88] sm:$0xff]
                %159 = vst [vmem:[%s151 + $0x18] sm:$0xff] %v158
                %v160 = vld [vmem:[%s150 + $0x100] sm:$0xff]
                %161 = vst [vmem:[%s151 + $0x20] sm:$0xff] %v160
                %v162 = vld [vmem:[%s150 + $0x108] sm:$0xff]
                %163 = vst [vmem:[%s151 + $0x28] sm:$0xff] %v162
                %v164 = vld [vmem:[%s150 + $0x180] sm:$0xff]
                %165 = vst [vmem:[%s151 + $0x30] sm:$0xff] %v164
                %v166 = vld [vmem:[%s150 + $0x188] sm:$0xff]
                %167 = vst [vmem:[%s151 + $0x38] sm:$0xff] %v166
                %v168 = vld [vmem:[%s150 + $0x200] sm:$0xff]
                %169 = vst [vmem:[%s151 + $0x40] sm:$0xff] %v168
                %v170 = vld [vmem:[%s150 + $0x208] sm:$0xff]
                %171 = vst [vmem:[%s151 + $0x48] sm:$0xff] %v170
                %v172 = vld [vmem:[%s150 + $0x280] sm:$0xff]
                %173 = vst [vmem:[%s151 + $0x50] sm:$0xff] %v172
                %v174 = vld [vmem:[%s150 + $0x288] sm:$0xff]
                %175 = vst [vmem:[%s151 + $0x58] sm:$0xff] %v174
                %v176 = vld [vmem:[%s150 + $0x300] sm:$0xff]
                %177 = vst [vmem:[%s151 + $0x60] sm:$0xff] %v176
                %v178 = vld [vmem:[%s150 + $0x308] sm:$0xff]
                %179 = vst [vmem:[%s151 + $0x68] sm:$0xff] %v178
                %v180 = vld [vmem:[%s150 + $0x380] sm:$0xff]
                %181 = vst [vmem:[%s151 + $0x70] sm:$0xff] %v180
                %v182 = vld [vmem:[%s150 + $0x388] sm:$0xff]
                %183 = vst [vmem:[%s151 + $0x78] sm:$0xff] %v182
                %v184 = vld [vmem:[%s150 + $0x400] sm:$0xff]
                %185 = vst [vmem:[%s151 + $0x80] sm:$0xff] %v184
                %v186 = vld [vmem:[%s150 + $0x408] sm:$0xff]
                %187 = vst [vmem:[%s151 + $0x88] sm:$0xff] %v186
                %v188 = vld [vmem:[%s150 + $0x480] sm:$0xff]
                %189 = vst [vmem:[%s151 + $0x90] sm:$0xff] %v188
                %v190 = vld [vmem:[%s150 + $0x488] sm:$0xff]
                %191 = vst [vmem:[%s151 + $0x98] sm:$0xff] %v190
                %v192 = vld [vmem:[%s150 + $0x500] sm:$0xff]
                %193 = vst [vmem:[%s151 + $0xa0] sm:$0xff] %v192
                %v194 = vld [vmem:[%s150 + $0x508] sm:$0xff]
                %195 = vst [vmem:[%s151 + $0xa8] sm:$0xff] %v194
                %v196 = vld [vmem:[%s150 + $0x580] sm:$0xff]
                %197 = vst [vmem:[%s151 + $0xb0] sm:$0xff] %v196
                %v198 = vld [vmem:[%s150 + $0x588] sm:$0xff]
                %199 = vst [vmem:[%s151 + $0xb8] sm:$0xff] %v198
                %v200 = vld [vmem:[%s150 + $0x600] sm:$0xff]
                %201 = vst [vmem:[%s151 + $0xc0] sm:$0xff] %v200
                %v202 = vld [vmem:[%s150 + $0x608] sm:$0xff]
                %203 = vst [vmem:[%s151 + $0xc8] sm:$0xff] %v202
                %v204 = vld [vmem:[%s150 + $0x680] sm:$0xff]
                %205 = vst [vmem:[%s151 + $0xd0] sm:$0xff] %v204
                %v206 = vld [vmem:[%s150 + $0x688] sm:$0xff]
                %207 = vst [vmem:[%s151 + $0xd8] sm:$0xff] %v206
                %v208 = vld [vmem:[%s150 + $0x700] sm:$0xff]
                %209 = vst [vmem:[%s151 + $0xe0] sm:$0xff] %v208
                %v210 = vld [vmem:[%s150 + $0x708] sm:$0xff]
                %211 = vst [vmem:[%s151 + $0xe8] sm:$0xff] %v210
                %v212 = vld [vmem:[%s150 + $0x780] sm:$0xff]
                %213 = vst [vmem:[%s151 + $0xf0] sm:$0xff] %v212
                %v214 = vld [vmem:[%s150 + $0x788] sm:$0xff]
                %215 = vst [vmem:[%s151 + $0xf8] sm:$0xff] %v214
                %v216 = vld [vmem:[%s150 + $0x800] sm:$0xff]
                %217 = vst [vmem:[%s151 + $0x100] sm:$0xff] %v216
                %v218 = vld [vmem:[%s150 + $0x808] sm:$0xff]
                %219 = vst [vmem:[%s151 + $0x108] sm:$0xff] %v218
                %v220 = vld [vmem:[%s150 + $0x880] sm:$0xff]
                %221 = vst [vmem:[%s151 + $0x110] sm:$0xff] %v220
                %v222 = vld [vmem:[%s150 + $0x888] sm:$0xff]
                %223 = vst [vmem:[%s151 + $0x118] sm:$0xff] %v222
                %v224 = vld [vmem:[%s150 + $0x900] sm:$0xff]
                %225 = vst [vmem:[%s151 + $0x120] sm:$0xff] %v224
                %v226 = vld [vmem:[%s150 + $0x908] sm:$0xff]
                %227 = vst [vmem:[%s151 + $0x128] sm:$0xff] %v226
                %v228 = vld [vmem:[%s150 + $0x980] sm:$0xff]
                %229 = vst [vmem:[%s151 + $0x130] sm:$0xff] %v228
                %v230 = vld [vmem:[%s150 + $0x988] sm:$0xff]
                %231 = vst [vmem:[%s151 + $0x138] sm:$0xff] %v230
                %v232 = vld [vmem:[%s150 + $0xa00] sm:$0xff]
                %233 = vst [vmem:[%s151 + $0x140] sm:$0xff] %v232
                %v234 = vld [vmem:[%s150 + $0xa08] sm:$0xff]
                %235 = vst [vmem:[%s151 + $0x148] sm:$0xff] %v234
                %v236 = vld [vmem:[%s150 + $0xa80] sm:$0xff]
                %237 = vst [vmem:[%s151 + $0x150] sm:$0xff] %v236
                %v238 = vld [vmem:[%s150 + $0xa88] sm:$0xff]
                %239 = vst [vmem:[%s151 + $0x158] sm:$0xff] %v238
                %v240 = vld [vmem:[%s150 + $0xb00] sm:$0xff]
                %241 = vst [vmem:[%s151 + $0x160] sm:$0xff] %v240
                %v242 = vld [vmem:[%s150 + $0xb08] sm:$0xff]
                %243 = vst [vmem:[%s151 + $0x168] sm:$0xff] %v242
                %v244 = vld [vmem:[%s150 + $0xb80] sm:$0xff]
                %245 = vst [vmem:[%s151 + $0x170] sm:$0xff] %v244
                %v246 = vld [vmem:[%s150 + $0xb88] sm:$0xff]
                %247 = vst [vmem:[%s151 + $0x178] sm:$0xff] %v246
                %v248 = vld [vmem:[%s150 + $0xc00] sm:$0xff]
                %249 = vst [vmem:[%s151 + $0x180] sm:$0xff] %v248
                %v250 = vld [vmem:[%s150 + $0xc08] sm:$0xff]
                %251 = vst [vmem:[%s151 + $0x188] sm:$0xff] %v250
                %v252 = vld [vmem:[%s150 + $0xc80] sm:$0xff]
                %253 = vst [vmem:[%s151 + $0x190] sm:$0xff] %v252
                %v254 = vld [vmem:[%s150 + $0xc88] sm:$0xff]
                %255 = vst [vmem:[%s151 + $0x198] sm:$0xff] %v254
                %v256 = vld [vmem:[%s150 + $0xd00] sm:$0xff]
                %257 = vst [vmem:[%s151 + $0x1a0] sm:$0xff] %v256
                %v258 = vld [vmem:[%s150 + $0xd08] sm:$0xff]
                %259 = vst [vmem:[%s151 + $0x1a8] sm:$0xff] %v258
                %v260 = vld [vmem:[%s150 + $0xd80] sm:$0xff]
                %261 = vst [vmem:[%s151 + $0x1b0] sm:$0xff] %v260
                %v262 = vld [vmem:[%s150 + $0xd88] sm:$0xff]
                %263 = vst [vmem:[%s151 + $0x1b8] sm:$0xff] %v262
                %v264 = vld [vmem:[%s150 + $0xe00] sm:$0xff]
                %265 = vst [vmem:[%s151 + $0x1c0] sm:$0xff] %v264
                %v266 = vld [vmem:[%s150 + $0xe08] sm:$0xff]
                %267 = vst [vmem:[%s151 + $0x1c8] sm:$0xff] %v266
                %v268 = vld [vmem:[%s150 + $0xe80] sm:$0xff]
                %269 = vst [vmem:[%s151 + $0x1d0] sm:$0xff] %v268
                %v270 = vld [vmem:[%s150 + $0xe88] sm:$0xff]
                %271 = vst [vmem:[%s151 + $0x1d8] sm:$0xff] %v270
                %v272 = vld [vmem:[%s150 + $0xf00] sm:$0xff]
                %273 = vst [vmem:[%s151 + $0x1e0] sm:$0xff] %v272
                %v274 = vld [vmem:[%s150 + $0xf08] sm:$0xff]
                %275 = vst [vmem:[%s151 + $0x1e8] sm:$0xff] %v274
                %v276 = vld [vmem:[%s150 + $0xf80] sm:$0xff]
                %277 = vst [vmem:[%s151 + $0x1f0] sm:$0xff] %v276
                %v278 = vld [vmem:[%s150 + $0xf88] sm:$0xff]
                %279 = vst [vmem:[%s151 + $0x1f8] sm:$0xff] %v278
                %v280 = vld [vmem:[%s150 + $0x1000] sm:$0xff]
                %281 = vst [vmem:[%s151 + $0x200] sm:$0xff] %v280
                %v282 = vld [vmem:[%s150 + $0x1008] sm:$0xff]
                %283 = vst [vmem:[%s151 + $0x208] sm:$0xff] %v282
                %v284 = vld [vmem:[%s150 + $0x1080] sm:$0xff]
                %285 = vst [vmem:[%s151 + $0x210] sm:$0xff] %v284
                %v286 = vld [vmem:[%s150 + $0x1088] sm:$0xff]
                %287 = vst [vmem:[%s151 + $0x218] sm:$0xff] %v286
                %v288 = vld [vmem:[%s150 + $0x1100] sm:$0xff]
                %289 = vst [vmem:[%s151 + $0x220] sm:$0xff] %v288
                %v290 = vld [vmem:[%s150 + $0x1108] sm:$0xff]
                %291 = vst [vmem:[%s151 + $0x228] sm:$0xff] %v290
                %v292 = vld [vmem:[%s150 + $0x1180] sm:$0xff]
                %293 = vst [vmem:[%s151 + $0x230] sm:$0xff] %v292
                %v294 = vld [vmem:[%s150 + $0x1188] sm:$0xff]
                %295 = vst [vmem:[%s151 + $0x238] sm:$0xff] %v294
                %v296 = vld [vmem:[%s150 + $0x1200] sm:$0xff]
                %297 = vst [vmem:[%s151 + $0x240] sm:$0xff] %v296
                %v298 = vld [vmem:[%s150 + $0x1208] sm:$0xff]
                %299 = vst [vmem:[%s151 + $0x248] sm:$0xff] %v298
                %v300 = vld [vmem:[%s150 + $0x1280] sm:$0xff]
                %301 = vst [vmem:[%s151 + $0x250] sm:$0xff] %v300
                %v302 = vld [vmem:[%s150 + $0x1288] sm:$0xff]
                %303 = vst [vmem:[%s151 + $0x258] sm:$0xff] %v302
                %v304 = vld [vmem:[%s150 + $0x1300] sm:$0xff]
                %305 = vst [vmem:[%s151 + $0x260] sm:$0xff] %v304
                %v306 = vld [vmem:[%s150 + $0x1308] sm:$0xff]
                %307 = vst [vmem:[%s151 + $0x268] sm:$0xff] %v306
                %v308 = vld [vmem:[%s150 + $0x1380] sm:$0xff]
                %309 = vst [vmem:[%s151 + $0x270] sm:$0xff] %v308
                %v310 = vld [vmem:[%s150 + $0x1388] sm:$0xff]
                %311 = vst [vmem:[%s151 + $0x278] sm:$0xff] %v310
                %v312 = vld [vmem:[%s150 + $0x1400] sm:$0xff]
                %313 = vst [vmem:[%s151 + $0x280] sm:$0xff] %v312
                %v314 = vld [vmem:[%s150 + $0x1408] sm:$0xff]
                %315 = vst [vmem:[%s151 + $0x288] sm:$0xff] %v314
                %v316 = vld [vmem:[%s150 + $0x1480] sm:$0xff]
                %317 = vst [vmem:[%s151 + $0x290] sm:$0xff] %v316
                %v318 = vld [vmem:[%s150 + $0x1488] sm:$0xff]
                %319 = vst [vmem:[%s151 + $0x298] sm:$0xff] %v318
                %v320 = vld [vmem:[%s150 + $0x1500] sm:$0xff]
                %321 = vst [vmem:[%s151 + $0x2a0] sm:$0xff] %v320
                %v322 = vld [vmem:[%s150 + $0x1508] sm:$0xff]
                %323 = vst [vmem:[%s151 + $0x2a8] sm:$0xff] %v322
                %v324 = vld [vmem:[%s150 + $0x1580] sm:$0xff]
                %325 = vst [vmem:[%s151 + $0x2b0] sm:$0xff] %v324
                %v326 = vld [vmem:[%s150 + $0x1588] sm:$0xff]
                %327 = vst [vmem:[%s151 + $0x2b8] sm:$0xff] %v326
                %v328 = vld [vmem:[%s150 + $0x1600] sm:$0xff]
                %329 = vst [vmem:[%s151 + $0x2c0] sm:$0xff] %v328
                %v330 = vld [vmem:[%s150 + $0x1608] sm:$0xff]
                %331 = vst [vmem:[%s151 + $0x2c8] sm:$0xff] %v330
                %v332 = vld [vmem:[%s150 + $0x1680] sm:$0xff]
                %333 = vst [vmem:[%s151 + $0x2d0] sm:$0xff] %v332
                %v334 = vld [vmem:[%s150 + $0x1688] sm:$0xff]
                %335 = vst [vmem:[%s151 + $0x2d8] sm:$0xff] %v334
                %v336 = vld [vmem:[%s150 + $0x1700] sm:$0xff]
                %337 = vst [vmem:[%s151 + $0x2e0] sm:$0xff] %v336
                %v338 = vld [vmem:[%s150 + $0x1708] sm:$0xff]
                %339 = vst [vmem:[%s151 + $0x2e8] sm:$0xff] %v338
                %v340 = vld [vmem:[%s150 + $0x1780] sm:$0xff]
                %341 = vst [vmem:[%s151 + $0x2f0] sm:$0xff] %v340
                %v342 = vld [vmem:[%s150 + $0x1788] sm:$0xff]
                %343 = vst [vmem:[%s151 + $0x2f8] sm:$0xff] %v342
                %v344 = vld [vmem:[%s150 + $0x1800] sm:$0xff]
                %345 = vst [vmem:[%s151 + $0x300] sm:$0xff] %v344
                %v346 = vld [vmem:[%s150 + $0x1808] sm:$0xff]
                %347 = vst [vmem:[%s151 + $0x308] sm:$0xff] %v346
                %v348 = vld [vmem:[%s150 + $0x1880] sm:$0xff]
                %349 = vst [vmem:[%s151 + $0x310] sm:$0xff] %v348
                %v350 = vld [vmem:[%s150 + $0x1888] sm:$0xff]
                %351 = vst [vmem:[%s151 + $0x318] sm:$0xff] %v350
                %v352 = vld [vmem:[%s150 + $0x1900] sm:$0xff]
                %353 = vst [vmem:[%s151 + $0x320] sm:$0xff] %v352
                %v354 = vld [vmem:[%s150 + $0x1908] sm:$0xff]
                %355 = vst [vmem:[%s151 + $0x328] sm:$0xff] %v354
                %v356 = vld [vmem:[%s150 + $0x1980] sm:$0xff]
                %357 = vst [vmem:[%s151 + $0x330] sm:$0xff] %v356
                %v358 = vld [vmem:[%s150 + $0x1988] sm:$0xff]
                %359 = vst [vmem:[%s151 + $0x338] sm:$0xff] %v358
                %v360 = vld [vmem:[%s150 + $0x1a00] sm:$0xff]
                %361 = vst [vmem:[%s151 + $0x340] sm:$0xff] %v360
                %v362 = vld [vmem:[%s150 + $0x1a08] sm:$0xff]
                %363 = vst [vmem:[%s151 + $0x348] sm:$0xff] %v362
                %v364 = vld [vmem:[%s150 + $0x1a80] sm:$0xff]
                %365 = vst [vmem:[%s151 + $0x350] sm:$0xff] %v364
                %v366 = vld [vmem:[%s150 + $0x1a88] sm:$0xff]
                %367 = vst [vmem:[%s151 + $0x358] sm:$0xff] %v366
                %v368 = vld [vmem:[%s150 + $0x1b00] sm:$0xff]
                %369 = vst [vmem:[%s151 + $0x360] sm:$0xff] %v368
                %v370 = vld [vmem:[%s150 + $0x1b08] sm:$0xff]
                %371 = vst [vmem:[%s151 + $0x368] sm:$0xff] %v370
                %v372 = vld [vmem:[%s150 + $0x1b80] sm:$0xff]
                %373 = vst [vmem:[%s151 + $0x370] sm:$0xff] %v372
                %v374 = vld [vmem:[%s150 + $0x1b88] sm:$0xff]
                %375 = vst [vmem:[%s151 + $0x378] sm:$0xff] %v374
                %v376 = vld [vmem:[%s150 + $0x1c00] sm:$0xff]
                %377 = vst [vmem:[%s151 + $0x380] sm:$0xff] %v376
                %v378 = vld [vmem:[%s150 + $0x1c08] sm:$0xff]
                %379 = vst [vmem:[%s151 + $0x388] sm:$0xff] %v378
                %v380 = vld [vmem:[%s150 + $0x1c80] sm:$0xff]
                %381 = vst [vmem:[%s151 + $0x390] sm:$0xff] %v380
                %v382 = vld [vmem:[%s150 + $0x1c88] sm:$0xff]
                %383 = vst [vmem:[%s151 + $0x398] sm:$0xff] %v382
                %v384 = vld [vmem:[%s150 + $0x1d00] sm:$0xff]
                %385 = vst [vmem:[%s151 + $0x3a0] sm:$0xff] %v384
                %v386 = vld [vmem:[%s150 + $0x1d08] sm:$0xff]
                %387 = vst [vmem:[%s151 + $0x3a8] sm:$0xff] %v386
                %v388 = vld [vmem:[%s150 + $0x1d80] sm:$0xff]
                %389 = vst [vmem:[%s151 + $0x3b0] sm:$0xff] %v388
                %v390 = vld [vmem:[%s150 + $0x1d88] sm:$0xff]
                %391 = vst [vmem:[%s151 + $0x3b8] sm:$0xff] %v390
                %v392 = vld [vmem:[%s150 + $0x1e00] sm:$0xff]
                %393 = vst [vmem:[%s151 + $0x3c0] sm:$0xff] %v392
                %v394 = vld [vmem:[%s150 + $0x1e08] sm:$0xff]
                %395 = vst [vmem:[%s151 + $0x3c8] sm:$0xff] %v394
                %v396 = vld [vmem:[%s150 + $0x1e80] sm:$0xff]
                %397 = vst [vmem:[%s151 + $0x3d0] sm:$0xff] %v396
                %v398 = vld [vmem:[%s150 + $0x1e88] sm:$0xff]
                %399 = vst [vmem:[%s151 + $0x3d8] sm:$0xff] %v398
                %v400 = vld [vmem:[%s150 + $0x1f00] sm:$0xff]
                %401 = vst [vmem:[%s151 + $0x3e0] sm:$0xff] %v400
                %v402 = vld [vmem:[%s150 + $0x1f08] sm:$0xff]
                %403 = vst [vmem:[%s151 + $0x3e8] sm:$0xff] %v402
                %v404 = vld [vmem:[%s150 + $0x1f80] sm:$0xff]
                %405 = vst [vmem:[%s151 + $0x3f0] sm:$0xff] %v404
                %v406 = vld [vmem:[%s150 + $0x1f88] sm:$0xff]
                %407 = vst [vmem:[%s151 + $0x3f8] sm:$0xff] %v406
                %v408 = vld [vmem:[%s150 + $0x2000] sm:$0xff]
                %409 = vst [vmem:[%s151 + $0x400] sm:$0xff] %v408
                %v410 = vld [vmem:[%s150 + $0x2008] sm:$0xff]
                %411 = vst [vmem:[%s151 + $0x408] sm:$0xff] %v410
                %v412 = vld [vmem:[%s150 + $0x2080] sm:$0xff]
                %413 = vst [vmem:[%s151 + $0x410] sm:$0xff] %v412
                %v414 = vld [vmem:[%s150 + $0x2088] sm:$0xff]
                %415 = vst [vmem:[%s151 + $0x418] sm:$0xff] %v414
                %v416 = vld [vmem:[%s150 + $0x2100] sm:$0xff]
                %417 = vst [vmem:[%s151 + $0x420] sm:$0xff] %v416
                %v418 = vld [vmem:[%s150 + $0x2108] sm:$0xff]
                %419 = vst [vmem:[%s151 + $0x428] sm:$0xff] %v418
                %v420 = vld [vmem:[%s150 + $0x2180] sm:$0xff]
                %421 = vst [vmem:[%s151 + $0x430] sm:$0xff] %v420
                %v422 = vld [vmem:[%s150 + $0x2188] sm:$0xff]
                %423 = vst [vmem:[%s151 + $0x438] sm:$0xff] %v422
                %v424 = vld [vmem:[%s150 + $0x2200] sm:$0xff]
                %425 = vst [vmem:[%s151 + $0x440] sm:$0xff] %v424
                %v426 = vld [vmem:[%s150 + $0x2208] sm:$0xff]
                %427 = vst [vmem:[%s151 + $0x448] sm:$0xff] %v426
                %v428 = vld [vmem:[%s150 + $0x2280] sm:$0xff]
                %429 = vst [vmem:[%s151 + $0x450] sm:$0xff] %v428
                %v430 = vld [vmem:[%s150 + $0x2288] sm:$0xff]
                %431 = vst [vmem:[%s151 + $0x458] sm:$0xff] %v430
                %v432 = vld [vmem:[%s150 + $0x2300] sm:$0xff]
                %433 = vst [vmem:[%s151 + $0x460] sm:$0xff] %v432
                %v434 = vld [vmem:[%s150 + $0x2308] sm:$0xff]
                %435 = vst [vmem:[%s151 + $0x468] sm:$0xff] %v434
                %v436 = vld [vmem:[%s150 + $0x2380] sm:$0xff]
                %437 = vst [vmem:[%s151 + $0x470] sm:$0xff] %v436
                %v438 = vld [vmem:[%s150 + $0x2388] sm:$0xff]
                %439 = vst [vmem:[%s151 + $0x478] sm:$0xff] %v438
                %v440 = vld [vmem:[%s150 + $0x2400] sm:$0xff]
                %441 = vst [vmem:[%s151 + $0x480] sm:$0xff] %v440
                %v442 = vld [vmem:[%s150 + $0x2408] sm:$0xff]
                %443 = vst [vmem:[%s151 + $0x488] sm:$0xff] %v442
                %v444 = vld [vmem:[%s150 + $0x2480] sm:$0xff]
                %445 = vst [vmem:[%s151 + $0x490] sm:$0xff] %v444
                %v446 = vld [vmem:[%s150 + $0x2488] sm:$0xff]
                %447 = vst [vmem:[%s151 + $0x498] sm:$0xff] %v446
                %v448 = vld [vmem:[%s150 + $0x2500] sm:$0xff]
                %449 = vst [vmem:[%s151 + $0x4a0] sm:$0xff] %v448
                %v450 = vld [vmem:[%s150 + $0x2508] sm:$0xff]
                %451 = vst [vmem:[%s151 + $0x4a8] sm:$0xff] %v450
                %v452 = vld [vmem:[%s150 + $0x2580] sm:$0xff]
                %453 = vst [vmem:[%s151 + $0x4b0] sm:$0xff] %v452
                %v454 = vld [vmem:[%s150 + $0x2588] sm:$0xff]
                %455 = vst [vmem:[%s151 + $0x4b8] sm:$0xff] %v454
                %v456 = vld [vmem:[%s150 + $0x2600] sm:$0xff]
                %457 = vst [vmem:[%s151 + $0x4c0] sm:$0xff] %v456
                %v458 = vld [vmem:[%s150 + $0x2608] sm:$0xff]
                %459 = vst [vmem:[%s151 + $0x4c8] sm:$0xff] %v458
                %v460 = vld [vmem:[%s150 + $0x2680] sm:$0xff]
                %461 = vst [vmem:[%s151 + $0x4d0] sm:$0xff] %v460
                %v462 = vld [vmem:[%s150 + $0x2688] sm:$0xff]
                %463 = vst [vmem:[%s151 + $0x4d8] sm:$0xff] %v462
                %v464 = vld [vmem:[%s150 + $0x2700] sm:$0xff]
                %465 = vst [vmem:[%s151 + $0x4e0] sm:$0xff] %v464
                %v466 = vld [vmem:[%s150 + $0x2708] sm:$0xff]
                %467 = vst [vmem:[%s151 + $0x4e8] sm:$0xff] %v466
                %v468 = vld [vmem:[%s150 + $0x2780] sm:$0xff]
                %469 = vst [vmem:[%s151 + $0x4f0] sm:$0xff] %v468
                %v470 = vld [vmem:[%s150 + $0x2788] sm:$0xff]
                %471 = vst [vmem:[%s151 + $0x4f8] sm:$0xff] %v470
                %v472 = vld [vmem:[%s150 + $0x2800] sm:$0xff]
                %473 = vst [vmem:[%s151 + $0x500] sm:$0xff] %v472
                %v474 = vld [vmem:[%s150 + $0x2808] sm:$0xff]
                %475 = vst [vmem:[%s151 + $0x508] sm:$0xff] %v474
                %v476 = vld [vmem:[%s150 + $0x2880] sm:$0xff]
                %477 = vst [vmem:[%s151 + $0x510] sm:$0xff] %v476
                %v478 = vld [vmem:[%s150 + $0x2888] sm:$0xff]
                %479 = vst [vmem:[%s151 + $0x518] sm:$0xff] %v478
                %v480 = vld [vmem:[%s150 + $0x2900] sm:$0xff]
                %481 = vst [vmem:[%s151 + $0x520] sm:$0xff] %v480
                %v482 = vld [vmem:[%s150 + $0x2908] sm:$0xff]
                %483 = vst [vmem:[%s151 + $0x528] sm:$0xff] %v482
                %v484 = vld [vmem:[%s150 + $0x2980] sm:$0xff]
                %485 = vst [vmem:[%s151 + $0x530] sm:$0xff] %v484
                %v486 = vld [vmem:[%s150 + $0x2988] sm:$0xff]
                %487 = vst [vmem:[%s151 + $0x538] sm:$0xff] %v486
                %v488 = vld [vmem:[%s150 + $0x2a00] sm:$0xff]
                %489 = vst [vmem:[%s151 + $0x540] sm:$0xff] %v488
                %v490 = vld [vmem:[%s150 + $0x2a08] sm:$0xff]
                %491 = vst [vmem:[%s151 + $0x548] sm:$0xff] %v490
                %v492 = vld [vmem:[%s150 + $0x2a80] sm:$0xff]
                %493 = vst [vmem:[%s151 + $0x550] sm:$0xff] %v492
                %v494 = vld [vmem:[%s150 + $0x2a88] sm:$0xff]
                %495 = vst [vmem:[%s151 + $0x558] sm:$0xff] %v494
                %v496 = vld [vmem:[%s150 + $0x2b00] sm:$0xff]
                %497 = vst [vmem:[%s151 + $0x560] sm:$0xff] %v496
                %v498 = vld [vmem:[%s150 + $0x2b08] sm:$0xff]
                %499 = vst [vmem:[%s151 + $0x568] sm:$0xff] %v498
                %v500 = vld [vmem:[%s150 + $0x2b80] sm:$0xff]
                %501 = vst [vmem:[%s151 + $0x570] sm:$0xff] %v500
                %v502 = vld [vmem:[%s150 + $0x2b88] sm:$0xff]
                %503 = vst [vmem:[%s151 + $0x578] sm:$0xff] %v502
                %v504 = vld [vmem:[%s150 + $0x2c00] sm:$0xff]
                %505 = vst [vmem:[%s151 + $0x580] sm:$0xff] %v504
                %v506 = vld [vmem:[%s150 + $0x2c08] sm:$0xff]
                %507 = vst [vmem:[%s151 + $0x588] sm:$0xff] %v506
                %v508 = vld [vmem:[%s150 + $0x2c80] sm:$0xff]
                %509 = vst [vmem:[%s151 + $0x590] sm:$0xff] %v508
                %v510 = vld [vmem:[%s150 + $0x2c88] sm:$0xff]
                %511 = vst [vmem:[%s151 + $0x598] sm:$0xff] %v510
                %v512 = vld [vmem:[%s150 + $0x2d00] sm:$0xff]
                %513 = vst [vmem:[%s151 + $0x5a0] sm:$0xff] %v512
                %v514 = vld [vmem:[%s150 + $0x2d08] sm:$0xff]
                %515 = vst [vmem:[%s151 + $0x5a8] sm:$0xff] %v514
                %v516 = vld [vmem:[%s150 + $0x2d80] sm:$0xff]
                %517 = vst [vmem:[%s151 + $0x5b0] sm:$0xff] %v516
                %v518 = vld [vmem:[%s150 + $0x2d88] sm:$0xff]
                %519 = vst [vmem:[%s151 + $0x5b8] sm:$0xff] %v518
                %v520 = vld [vmem:[%s150 + $0x2e00] sm:$0xff]
                %521 = vst [vmem:[%s151 + $0x5c0] sm:$0xff] %v520
                %v522 = vld [vmem:[%s150 + $0x2e08] sm:$0xff]
                %523 = vst [vmem:[%s151 + $0x5c8] sm:$0xff] %v522
                %v524 = vld [vmem:[%s150 + $0x2e80] sm:$0xff]
                %525 = vst [vmem:[%s151 + $0x5d0] sm:$0xff] %v524
                %v526 = vld [vmem:[%s150 + $0x2e88] sm:$0xff]
                %527 = vst [vmem:[%s151 + $0x5d8] sm:$0xff] %v526
                %v528 = vld [vmem:[%s150 + $0x2f00] sm:$0xff]
                %529 = vst [vmem:[%s151 + $0x5e0] sm:$0xff] %v528
                %v530 = vld [vmem:[%s150 + $0x2f08] sm:$0xff]
                %531 = vst [vmem:[%s151 + $0x5e8] sm:$0xff] %v530
                %v532 = vld [vmem:[%s150 + $0x2f80] sm:$0xff]
                %533 = vst [vmem:[%s151 + $0x5f0] sm:$0xff] %v532
                %v534 = vld [vmem:[%s150 + $0x2f88] sm:$0xff]
                %535 = vst [vmem:[%s151 + $0x5f8] sm:$0xff] %v534
                %v536 = vld [vmem:[%s150 + $0x3000] sm:$0xff]
                %537 = vst [vmem:[%s151 + $0x600] sm:$0xff] %v536
                %v538 = vld [vmem:[%s150 + $0x3008] sm:$0xff]
                %539 = vst [vmem:[%s151 + $0x608] sm:$0xff] %v538
                %v540 = vld [vmem:[%s150 + $0x3080] sm:$0xff]
                %541 = vst [vmem:[%s151 + $0x610] sm:$0xff] %v540
                %v542 = vld [vmem:[%s150 + $0x3088] sm:$0xff]
                %543 = vst [vmem:[%s151 + $0x618] sm:$0xff] %v542
                %v544 = vld [vmem:[%s150 + $0x3100] sm:$0xff]
                %545 = vst [vmem:[%s151 + $0x620] sm:$0xff] %v544
                %v546 = vld [vmem:[%s150 + $0x3108] sm:$0xff]
                %547 = vst [vmem:[%s151 + $0x628] sm:$0xff] %v546
                %v548 = vld [vmem:[%s150 + $0x3180] sm:$0xff]
                %549 = vst [vmem:[%s151 + $0x630] sm:$0xff] %v548
                %v550 = vld [vmem:[%s150 + $0x3188] sm:$0xff]
                %551 = vst [vmem:[%s151 + $0x638] sm:$0xff] %v550
                %v552 = vld [vmem:[%s150 + $0x3200] sm:$0xff]
                %553 = vst [vmem:[%s151 + $0x640] sm:$0xff] %v552
                %v554 = vld [vmem:[%s150 + $0x3208] sm:$0xff]
                %555 = vst [vmem:[%s151 + $0x648] sm:$0xff] %v554
                %v556 = vld [vmem:[%s150 + $0x3280] sm:$0xff]
                %557 = vst [vmem:[%s151 + $0x650] sm:$0xff] %v556
                %v558 = vld [vmem:[%s150 + $0x3288] sm:$0xff]
                %559 = vst [vmem:[%s151 + $0x658] sm:$0xff] %v558
                %v560 = vld [vmem:[%s150 + $0x3300] sm:$0xff]
                %561 = vst [vmem:[%s151 + $0x660] sm:$0xff] %v560
                %v562 = vld [vmem:[%s150 + $0x3308] sm:$0xff]
                %563 = vst [vmem:[%s151 + $0x668] sm:$0xff] %v562
                %v564 = vld [vmem:[%s150 + $0x3380] sm:$0xff]
                %565 = vst [vmem:[%s151 + $0x670] sm:$0xff] %v564
                %v566 = vld [vmem:[%s150 + $0x3388] sm:$0xff]
                %567 = vst [vmem:[%s151 + $0x678] sm:$0xff] %v566
                %v568 = vld [vmem:[%s150 + $0x3400] sm:$0xff]
                %569 = vst [vmem:[%s151 + $0x680] sm:$0xff] %v568
                %v570 = vld [vmem:[%s150 + $0x3408] sm:$0xff]
                %571 = vst [vmem:[%s151 + $0x688] sm:$0xff] %v570
                %v572 = vld [vmem:[%s150 + $0x3480] sm:$0xff]
                %573 = vst [vmem:[%s151 + $0x690] sm:$0xff] %v572
                %v574 = vld [vmem:[%s150 + $0x3488] sm:$0xff]
                %575 = vst [vmem:[%s151 + $0x698] sm:$0xff] %v574
                %v576 = vld [vmem:[%s150 + $0x3500] sm:$0xff]
                %577 = vst [vmem:[%s151 + $0x6a0] sm:$0xff] %v576
                %v578 = vld [vmem:[%s150 + $0x3508] sm:$0xff]
                %579 = vst [vmem:[%s151 + $0x6a8] sm:$0xff] %v578
                %v580 = vld [vmem:[%s150 + $0x3580] sm:$0xff]
                %581 = vst [vmem:[%s151 + $0x6b0] sm:$0xff] %v580
                %v582 = vld [vmem:[%s150 + $0x3588] sm:$0xff]
                %583 = vst [vmem:[%s151 + $0x6b8] sm:$0xff] %v582
                %v584 = vld [vmem:[%s150 + $0x3600] sm:$0xff]
                %585 = vst [vmem:[%s151 + $0x6c0] sm:$0xff] %v584
                %v586 = vld [vmem:[%s150 + $0x3608] sm:$0xff]
                %587 = vst [vmem:[%s151 + $0x6c8] sm:$0xff] %v586
                %v588 = vld [vmem:[%s150 + $0x3680] sm:$0xff]
                %589 = vst [vmem:[%s151 + $0x6d0] sm:$0xff] %v588
                %v590 = vld [vmem:[%s150 + $0x3688] sm:$0xff]
                %591 = vst [vmem:[%s151 + $0x6d8] sm:$0xff] %v590
                %v592 = vld [vmem:[%s150 + $0x3700] sm:$0xff]
                %593 = vst [vmem:[%s151 + $0x6e0] sm:$0xff] %v592
                %v594 = vld [vmem:[%s150 + $0x3708] sm:$0xff]
                %595 = vst [vmem:[%s151 + $0x6e8] sm:$0xff] %v594
                %v596 = vld [vmem:[%s150 + $0x3780] sm:$0xff]
                %597 = vst [vmem:[%s151 + $0x6f0] sm:$0xff] %v596
                %v598 = vld [vmem:[%s150 + $0x3788] sm:$0xff]
                %599 = vst [vmem:[%s151 + $0x6f8] sm:$0xff] %v598
                %v600 = vld [vmem:[%s150 + $0x3800] sm:$0xff]
                %601 = vst [vmem:[%s151 + $0x700] sm:$0xff] %v600
                %v602 = vld [vmem:[%s150 + $0x3808] sm:$0xff]
                %603 = vst [vmem:[%s151 + $0x708] sm:$0xff] %v602
                %v604 = vld [vmem:[%s150 + $0x3880] sm:$0xff]
                %605 = vst [vmem:[%s151 + $0x710] sm:$0xff] %v604
                %v606 = vld [vmem:[%s150 + $0x3888] sm:$0xff]
                %607 = vst [vmem:[%s151 + $0x718] sm:$0xff] %v606
                %v608 = vld [vmem:[%s150 + $0x3900] sm:$0xff]
                %609 = vst [vmem:[%s151 + $0x720] sm:$0xff] %v608
                %v610 = vld [vmem:[%s150 + $0x3908] sm:$0xff]
                %611 = vst [vmem:[%s151 + $0x728] sm:$0xff] %v610
                %v612 = vld [vmem:[%s150 + $0x3980] sm:$0xff]
                %613 = vst [vmem:[%s151 + $0x730] sm:$0xff] %v612
                %v614 = vld [vmem:[%s150 + $0x3988] sm:$0xff]
                %615 = vst [vmem:[%s151 + $0x738] sm:$0xff] %v614
                %v616 = vld [vmem:[%s150 + $0x3a00] sm:$0xff]
                %617 = vst [vmem:[%s151 + $0x740] sm:$0xff] %v616
                %v618 = vld [vmem:[%s150 + $0x3a08] sm:$0xff]
                %619 = vst [vmem:[%s151 + $0x748] sm:$0xff] %v618
                %v620 = vld [vmem:[%s150 + $0x3a80] sm:$0xff]
                %621 = vst [vmem:[%s151 + $0x750] sm:$0xff] %v620
                %v622 = vld [vmem:[%s150 + $0x3a88] sm:$0xff]
                %623 = vst [vmem:[%s151 + $0x758] sm:$0xff] %v622
                %v624 = vld [vmem:[%s150 + $0x3b00] sm:$0xff]
                %625 = vst [vmem:[%s151 + $0x760] sm:$0xff] %v624
                %v626 = vld [vmem:[%s150 + $0x3b08] sm:$0xff]
                %627 = vst [vmem:[%s151 + $0x768] sm:$0xff] %v626
                %v628 = vld [vmem:[%s150 + $0x3b80] sm:$0xff]
                %629 = vst [vmem:[%s151 + $0x770] sm:$0xff] %v628
                %v630 = vld [vmem:[%s150 + $0x3b88] sm:$0xff]
                %631 = vst [vmem:[%s151 + $0x778] sm:$0xff] %v630
                %v632 = vld [vmem:[%s150 + $0x3c00] sm:$0xff]
                %633 = vst [vmem:[%s151 + $0x780] sm:$0xff] %v632
                %v634 = vld [vmem:[%s150 + $0x3c08] sm:$0xff]
                %635 = vst [vmem:[%s151 + $0x788] sm:$0xff] %v634
                %v636 = vld [vmem:[%s150 + $0x3c80] sm:$0xff]
                %637 = vst [vmem:[%s151 + $0x790] sm:$0xff] %v636
                %v638 = vld [vmem:[%s150 + $0x3c88] sm:$0xff]
                %639 = vst [vmem:[%s151 + $0x798] sm:$0xff] %v638
                %v640 = vld [vmem:[%s150 + $0x3d00] sm:$0xff]
                %641 = vst [vmem:[%s151 + $0x7a0] sm:$0xff] %v640
                %v642 = vld [vmem:[%s150 + $0x3d08] sm:$0xff]
                %643 = vst [vmem:[%s151 + $0x7a8] sm:$0xff] %v642
                %v644 = vld [vmem:[%s150 + $0x3d80] sm:$0xff]
                %645 = vst [vmem:[%s151 + $0x7b0] sm:$0xff] %v644
                %v646 = vld [vmem:[%s150 + $0x3d88] sm:$0xff]
                %647 = vst [vmem:[%s151 + $0x7b8] sm:$0xff] %v646
                %v648 = vld [vmem:[%s150 + $0x3e00] sm:$0xff]
                %649 = vst [vmem:[%s151 + $0x7c0] sm:$0xff] %v648
                %v650 = vld [vmem:[%s150 + $0x3e08] sm:$0xff]
                %651 = vst [vmem:[%s151 + $0x7c8] sm:$0xff] %v650
                %v652 = vld [vmem:[%s150 + $0x3e80] sm:$0xff]
                %653 = vst [vmem:[%s151 + $0x7d0] sm:$0xff] %v652
                %v654 = vld [vmem:[%s150 + $0x3e88] sm:$0xff]
                %655 = vst [vmem:[%s151 + $0x7d8] sm:$0xff] %v654
                %v656 = vld [vmem:[%s150 + $0x3f00] sm:$0xff]
                %657 = vst [vmem:[%s151 + $0x7e0] sm:$0xff] %v656
                %v658 = vld [vmem:[%s150 + $0x3f08] sm:$0xff]
                %659 = vst [vmem:[%s151 + $0x7e8] sm:$0xff] %v658
                %v660 = vld [vmem:[%s150 + $0x3f80] sm:$0xff]
                %661 = vst [vmem:[%s151 + $0x7f0] sm:$0xff] %v660
                %v662 = vld [vmem:[%s150 + $0x3f88] sm:$0xff]
                %663 = vst [vmem:[%s151 + $0x7f8] sm:$0xff] %v662
              $region37: #{vae_forward.7} parent=31 // loop_footer
                %s149 = sadd.s32 1, %s145
              $region38: #{vae_forward.7} parent=31 // loop_footer_branch
                %144 = sbr.rel target = $region34
              $region39: #{vae_forward.7} parent=31 // loop_exit
                _
            $region32: #{vae_forward.7} parent=27 // pred_fallthru
              _
            // Predicated region
            $region40: #{vae_forward.7} parent=27 // pred_check
              _
            $region41: #{vae_forward.7} parent=27 // pred_check_branch
              %665 = sbr.rel target = $region43
            $region42: #{vae_forward.7} parent=27 // pred_region
              _
            $region43: #{vae_forward.7} parent=27 // pred_fallthru
              _
          $region28: #{vae_forward.7} parent=23 // pred_fallthru
            _
          %666 = vnop
        $region24: #{vae_forward.7} parent=19 // pred_fallthru
          _
        // Predicated region
        $region44: #{vae_forward.7} parent=19 // pred_check
          %p667 = pneg %p76
        $region45: #{vae_forward.7} parent=19 // pred_check_branch
          %669 = sbr.rel (%p667) target = $region47
        $region46: #{vae_forward.7} parent=19 // pred_region
          %s670 = smul.u32 4, %s9
          %p671 = scmp.lt.s32.totalorder %s670, 31
          %s672 = scalar_select %p671, %s670, 31
          %s673 = scalar_lea.vmem %s2, %s672
          %s674 = smul.u32 4, %s9
        $region47: #{vae_forward.7} parent=19 // pred_fallthru
          _
      $region20: #{vae_forward.7} parent=5 // pred_fallthru
        _
      %p675 = scmp.le.s32.totalorder 1, %s9
      %p676 = scmp.lt.s32.totalorder %s9, 9
      %p677 = pnand %p675, %p676
      %p678 = pneg %p677
      // Predicated region
      $region48: #{vae_forward.7} parent=5 // pred_check
        _
      $region49: #{vae_forward.7} parent=5 // pred_check_branch
        %680 = sbr.rel (%p677) target = $region51
      $region50: #{vae_forward.7} parent=5 // pred_region
        %s681 = ssub.s32 %s9, 1
        %s682 = sand.u32 %s43, 1
        %s683 = sand.u32 %s43, 1
        %s684 = smul.addr %s683, 2048
        %s685 = scalar_lea.vmem [#allocation2], %s684
        // Predicated region
        $region52: #{vae_forward.7} parent=50 // pred_check
          %p686 = pneg %p56
        $region53: #{vae_forward.7} parent=50 // pred_check_branch
          %688 = sbr.rel (%p686) target = $region55
        $region54: #{vae_forward.7} parent=50 // pred_region
          _
        $region55: #{vae_forward.7} parent=50 // pred_fallthru
          _
        %p689 = pneg %p30
        %p690 = pneg %p27
        %s691 = sand.u32 %s43, 1
        %s692 = sand.u32 %s43, 1
        %s693 = smul.addr %s692, 2048
        %s694 = scalar_lea.vmem [#allocation2], %s693
        %p695 = pneg %p56
        %p696 = pneg %p53
        %s697 = smul.u32 4, %s14
        %p698 = scmp.lt.s32.totalorder %s697, 31
        %s699 = scalar_select %p698, %s697, 31
        %s700 = scalar_lea.vmem %s2, %s699
        %p701 = pneg %p82
        %p702 = pneg %p79
        %p703 = pneg %p108
        %p704 = pneg %p105
        %s705 = smul.u32 4, %s14
        %p706 = scmp.lt.s32.totalorder %s705, 31
        %s707 = scalar_select %p706, %s705, 31
        %s708 = smul.addr %s707, 8
        %s709 = scalar_lea.vmem %s3, %s708
        %s710 = smul.u32 4, %s14
        %s711 = smul.u32 4, %s14
        %p712 = scmp.lt.s32.totalorder %s711, 31
        %s713 = scalar_select %p712, %s711, 31
        %s714 = scalar_lea.vmem %s2, %s713
        %s715 = smul.u32 4, %s14
        %s716 = smul.u32 4, %s14
        %p717 = scmp.lt.s32.totalorder %s716, 31
        %s718 = scalar_select %p717, %s716, 31
        %s719 = smul.addr %s718, 8
        %s720 = scalar_lea.vmem %s3, %s719
        %s721 = smul.u32 4, %s14
        %v722 = vld [vmem:[%s0] sm:$0xff]
        %v723 = vld [vmem:[%s0 + $0x8] sm:$0xff]
        %v724 = vld [vmem:[%s0 + $0x10] sm:$0xff]
        %v725 = vld [vmem:[%s0 + $0x18] sm:$0xff]
        %v726 = vld [vmem:[%s0 + $0x20] sm:$0xff]
        %v727 = vld [vmem:[%s0 + $0x28] sm:$0xff]
        %v728 = vld [vmem:[%s0 + $0x30] sm:$0xff]
        %v729 = vld [vmem:[%s0 + $0x38] sm:$0xff]
        %v730 = vpack.c.bf16 %v722, %v722
        %v731 = vpack.c.bf16 %v723, %v723
        %v732 = vpack.c.bf16 %v724, %v724
        %v733 = vpack.c.bf16 %v725, %v725
        %v734 = vpack.c.bf16 %v726, %v726
        %v735 = vpack.c.bf16 %v727, %v727
        %v736 = vpack.c.bf16 %v728, %v728
        %v737 = vpack.c.bf16 %v729, %v729
        %v738 = vld [vmem:[%s685] sm:$0xff]
        %v739 = vld [vmem:[%s685 + $0x8] sm:$0xff]
        %v740 = vld [vmem:[%s685 + $0x10] sm:$0xff]
        %v741 = vld [vmem:[%s685 + $0x18] sm:$0xff]
        %v742 = vld [vmem:[%s685 + $0x20] sm:$0xff]
        %v743 = vld [vmem:[%s685 + $0x28] sm:$0xff]
        %v744 = vld [vmem:[%s685 + $0x30] sm:$0xff]
        %v745 = vld [vmem:[%s685 + $0x38] sm:$0xff]
        %v746 = vld [vmem:[%s685 + $0x40] sm:$0xff]
        %v747 = vld [vmem:[%s685 + $0x48] sm:$0xff]
        %v748 = vld [vmem:[%s685 + $0x50] sm:$0xff]
        %v749 = vld [vmem:[%s685 + $0x58] sm:$0xff]
        %v750 = vld [vmem:[%s685 + $0x60] sm:$0xff]
        %v751 = vld [vmem:[%s685 + $0x68] sm:$0xff]
        %v752 = vld [vmem:[%s685 + $0x70] sm:$0xff]
        %v753 = vld [vmem:[%s685 + $0x78] sm:$0xff]
        %v754 = vld [vmem:[%s685 + $0x80] sm:$0xff]
        %v755 = vld [vmem:[%s685 + $0x88] sm:$0xff]
        %v756 = vld [vmem:[%s685 + $0x90] sm:$0xff]
        %v757 = vld [vmem:[%s685 + $0x98] sm:$0xff]
        %v758 = vld [vmem:[%s685 + $0xa0] sm:$0xff]
        %v759 = vld [vmem:[%s685 + $0xa8] sm:$0xff]
        %v760 = vld [vmem:[%s685 + $0xb0] sm:$0xff]
        %v761 = vld [vmem:[%s685 + $0xb8] sm:$0xff]
        %v762 = vld [vmem:[%s685 + $0xc0] sm:$0xff]
        %v763 = vld [vmem:[%s685 + $0xc8] sm:$0xff]
        %v764 = vld [vmem:[%s685 + $0xd0] sm:$0xff]
        %v765 = vld [vmem:[%s685 + $0xd8] sm:$0xff]
        %v766 = vld [vmem:[%s685 + $0xe0] sm:$0xff]
        %v767 = vld [vmem:[%s685 + $0xe8] sm:$0xff]
        %v768 = vld [vmem:[%s685 + $0xf0] sm:$0xff]
        %v769 = vld [vmem:[%s685 + $0xf8] sm:$0xff]
        %v770 = vld [vmem:[%s685 + $0x100] sm:$0xff]
        %v771 = vld [vmem:[%s685 + $0x108] sm:$0xff]
        %v772 = vld [vmem:[%s685 + $0x110] sm:$0xff]
        %v773 = vld [vmem:[%s685 + $0x118] sm:$0xff]
        %v774 = vld [vmem:[%s685 + $0x120] sm:$0xff]
        %v775 = vld [vmem:[%s685 + $0x128] sm:$0xff]
        %v776 = vld [vmem:[%s685 + $0x130] sm:$0xff]
        %v777 = vld [vmem:[%s685 + $0x138] sm:$0xff]
        %v778 = vld [vmem:[%s685 + $0x140] sm:$0xff]
        %v779 = vld [vmem:[%s685 + $0x148] sm:$0xff]
        %v780 = vld [vmem:[%s685 + $0x150] sm:$0xff]
        %v781 = vld [vmem:[%s685 + $0x158] sm:$0xff]
        %v782 = vld [vmem:[%s685 + $0x160] sm:$0xff]
        %v783 = vld [vmem:[%s685 + $0x168] sm:$0xff]
        %v784 = vld [vmem:[%s685 + $0x170] sm:$0xff]
        %v785 = vld [vmem:[%s685 + $0x178] sm:$0xff]
        %v786 = vld [vmem:[%s685 + $0x180] sm:$0xff]
        %v787 = vld [vmem:[%s685 + $0x188] sm:$0xff]
        %v788 = vld [vmem:[%s685 + $0x190] sm:$0xff]
        %v789 = vld [vmem:[%s685 + $0x198] sm:$0xff]
        %v790 = vld [vmem:[%s685 + $0x1a0] sm:$0xff]
        %v791 = vld [vmem:[%s685 + $0x1a8] sm:$0xff]
        %v792 = vld [vmem:[%s685 + $0x1b0] sm:$0xff]
        %v793 = vld [vmem:[%s685 + $0x1b8] sm:$0xff]
        %v794 = vld [vmem:[%s685 + $0x1c0] sm:$0xff]
        %v795 = vld [vmem:[%s685 + $0x1c8] sm:$0xff]
        %v796 = vld [vmem:[%s685 + $0x1d0] sm:$0xff]
        %v797 = vld [vmem:[%s685 + $0x1d8] sm:$0xff]
        %v798 = vld [vmem:[%s685 + $0x1e0] sm:$0xff]
        %v799 = vld [vmem:[%s685 + $0x1e8] sm:$0xff]
        %v800 = vld [vmem:[%s685 + $0x1f0] sm:$0xff]
        %v801 = vld [vmem:[%s685 + $0x1f8] sm:$0xff]
        %v802 = vld [vmem:[%s685 + $0x200] sm:$0xff]
        %v803 = vld [vmem:[%s685 + $0x208] sm:$0xff]
        %v804 = vld [vmem:[%s685 + $0x210] sm:$0xff]
        %v805 = vld [vmem:[%s685 + $0x218] sm:$0xff]
        %v806 = vld [vmem:[%s685 + $0x220] sm:$0xff]
        %v807 = vld [vmem:[%s685 + $0x228] sm:$0xff]
        %v808 = vld [vmem:[%s685 + $0x230] sm:$0xff]
        %v809 = vld [vmem:[%s685 + $0x238] sm:$0xff]
        %v810 = vld [vmem:[%s685 + $0x240] sm:$0xff]
        %v811 = vld [vmem:[%s685 + $0x248] sm:$0xff]
        %v812 = vld [vmem:[%s685 + $0x250] sm:$0xff]
        %v813 = vld [vmem:[%s685 + $0x258] sm:$0xff]
        %v814 = vld [vmem:[%s685 + $0x260] sm:$0xff]
        %v815 = vld [vmem:[%s685 + $0x268] sm:$0xff]
        %v816 = vld [vmem:[%s685 + $0x270] sm:$0xff]
        %v817 = vld [vmem:[%s685 + $0x278] sm:$0xff]
        %v818 = vld [vmem:[%s685 + $0x280] sm:$0xff]
        %v819 = vld [vmem:[%s685 + $0x288] sm:$0xff]
        %v820 = vld [vmem:[%s685 + $0x290] sm:$0xff]
        %v821 = vld [vmem:[%s685 + $0x298] sm:$0xff]
        %v822 = vld [vmem:[%s685 + $0x2a0] sm:$0xff]
        %v823 = vld [vmem:[%s685 + $0x2a8] sm:$0xff]
        %v824 = vld [vmem:[%s685 + $0x2b0] sm:$0xff]
        %v825 = vld [vmem:[%s685 + $0x2b8] sm:$0xff]
        %v826 = vld [vmem:[%s685 + $0x2c0] sm:$0xff]
        %v827 = vld [vmem:[%s685 + $0x2c8] sm:$0xff]
        %v828 = vld [vmem:[%s685 + $0x2d0] sm:$0xff]
        %v829 = vld [vmem:[%s685 + $0x2d8] sm:$0xff]
        %v830 = vld [vmem:[%s685 + $0x2e0] sm:$0xff]
        %v831 = vld [vmem:[%s685 + $0x2e8] sm:$0xff]
        %v832 = vld [vmem:[%s685 + $0x2f0] sm:$0xff]
        %v833 = vld [vmem:[%s685 + $0x2f8] sm:$0xff]
        %v834 = vld [vmem:[%s685 + $0x300] sm:$0xff]
        %v835 = vld [vmem:[%s685 + $0x308] sm:$0xff]
        %v836 = vld [vmem:[%s685 + $0x310] sm:$0xff]
        %v837 = vld [vmem:[%s685 + $0x318] sm:$0xff]
        %v838 = vld [vmem:[%s685 + $0x320] sm:$0xff]
        %v839 = vld [vmem:[%s685 + $0x328] sm:$0xff]
        %v840 = vld [vmem:[%s685 + $0x330] sm:$0xff]
        %v841 = vld [vmem:[%s685 + $0x338] sm:$0xff]
        %v842 = vld [vmem:[%s685 + $0x340] sm:$0xff]
        %v843 = vld [vmem:[%s685 + $0x348] sm:$0xff]
        %v844 = vld [vmem:[%s685 + $0x350] sm:$0xff]
        %v845 = vld [vmem:[%s685 + $0x358] sm:$0xff]
        %v846 = vld [vmem:[%s685 + $0x360] sm:$0xff]
        %v847 = vld [vmem:[%s685 + $0x368] sm:$0xff]
        %v848 = vld [vmem:[%s685 + $0x370] sm:$0xff]
        %v849 = vld [vmem:[%s685 + $0x378] sm:$0xff]
        %v850 = vld [vmem:[%s685 + $0x380] sm:$0xff]
        %v851 = vld [vmem:[%s685 + $0x388] sm:$0xff]
        %v852 = vld [vmem:[%s685 + $0x390] sm:$0xff]
        %v853 = vld [vmem:[%s685 + $0x398] sm:$0xff]
        %v854 = vld [vmem:[%s685 + $0x3a0] sm:$0xff]
        %v855 = vld [vmem:[%s685 + $0x3a8] sm:$0xff]
        %v856 = vld [vmem:[%s685 + $0x3b0] sm:$0xff]
        %v857 = vld [vmem:[%s685 + $0x3b8] sm:$0xff]
        %v858 = vld [vmem:[%s685 + $0x3c0] sm:$0xff]
        %v859 = vld [vmem:[%s685 + $0x3c8] sm:$0xff]
        %v860 = vld [vmem:[%s685 + $0x3d0] sm:$0xff]
        %v861 = vld [vmem:[%s685 + $0x3d8] sm:$0xff]
        %v862 = vld [vmem:[%s685 + $0x3e0] sm:$0xff]
        %v863 = vld [vmem:[%s685 + $0x3e8] sm:$0xff]
        %v864 = vld [vmem:[%s685 + $0x3f0] sm:$0xff]
        %v865 = vld [vmem:[%s685 + $0x3f8] sm:$0xff]
        %v866 = vld [vmem:[%s685 + $0x400] sm:$0xff]
        %v867 = vld [vmem:[%s685 + $0x408] sm:$0xff]
        %v868 = vld [vmem:[%s685 + $0x410] sm:$0xff]
        %v869 = vld [vmem:[%s685 + $0x418] sm:$0xff]
        %v870 = vld [vmem:[%s685 + $0x420] sm:$0xff]
        %v871 = vld [vmem:[%s685 + $0x428] sm:$0xff]
        %v872 = vld [vmem:[%s685 + $0x430] sm:$0xff]
        %v873 = vld [vmem:[%s685 + $0x438] sm:$0xff]
        %v874 = vld [vmem:[%s685 + $0x440] sm:$0xff]
        %v875 = vld [vmem:[%s685 + $0x448] sm:$0xff]
        %v876 = vld [vmem:[%s685 + $0x450] sm:$0xff]
        %v877 = vld [vmem:[%s685 + $0x458] sm:$0xff]
        %v878 = vld [vmem:[%s685 + $0x460] sm:$0xff]
        %v879 = vld [vmem:[%s685 + $0x468] sm:$0xff]
        %v880 = vld [vmem:[%s685 + $0x470] sm:$0xff]
        %v881 = vld [vmem:[%s685 + $0x478] sm:$0xff]
        %v882 = vld [vmem:[%s685 + $0x480] sm:$0xff]
        %v883 = vld [vmem:[%s685 + $0x488] sm:$0xff]
        %v884 = vld [vmem:[%s685 + $0x490] sm:$0xff]
        %v885 = vld [vmem:[%s685 + $0x498] sm:$0xff]
        %v886 = vld [vmem:[%s685 + $0x4a0] sm:$0xff]
        %v887 = vld [vmem:[%s685 + $0x4a8] sm:$0xff]
        %v888 = vld [vmem:[%s685 + $0x4b0] sm:$0xff]
        %v889 = vld [vmem:[%s685 + $0x4b8] sm:$0xff]
        %v890 = vld [vmem:[%s685 + $0x4c0] sm:$0xff]
        %v891 = vld [vmem:[%s685 + $0x4c8] sm:$0xff]
        %v892 = vld [vmem:[%s685 + $0x4d0] sm:$0xff]
        %v893 = vld [vmem:[%s685 + $0x4d8] sm:$0xff]
        %v894 = vld [vmem:[%s685 + $0x4e0] sm:$0xff]
        %v895 = vld [vmem:[%s685 + $0x4e8] sm:$0xff]
        %v896 = vld [vmem:[%s685 + $0x4f0] sm:$0xff]
        %v897 = vld [vmem:[%s685 + $0x4f8] sm:$0xff]
        %v898 = vld [vmem:[%s685 + $0x500] sm:$0xff]
        %v899 = vld [vmem:[%s685 + $0x508] sm:$0xff]
        %v900 = vld [vmem:[%s685 + $0x510] sm:$0xff]
        %v901 = vld [vmem:[%s685 + $0x518] sm:$0xff]
        %v902 = vld [vmem:[%s685 + $0x520] sm:$0xff]
        %v903 = vld [vmem:[%s685 + $0x528] sm:$0xff]
        %v904 = vld [vmem:[%s685 + $0x530] sm:$0xff]
        %v905 = vld [vmem:[%s685 + $0x538] sm:$0xff]
        %v906 = vld [vmem:[%s685 + $0x540] sm:$0xff]
        %v907 = vld [vmem:[%s685 + $0x548] sm:$0xff]
        %v908 = vld [vmem:[%s685 + $0x550] sm:$0xff]
        %v909 = vld [vmem:[%s685 + $0x558] sm:$0xff]
        %v910 = vld [vmem:[%s685 + $0x560] sm:$0xff]
        %v911 = vld [vmem:[%s685 + $0x568] sm:$0xff]
        %v912 = vld [vmem:[%s685 + $0x570] sm:$0xff]
        %v913 = vld [vmem:[%s685 + $0x578] sm:$0xff]
        %v914 = vld [vmem:[%s685 + $0x580] sm:$0xff]
        %v915 = vld [vmem:[%s685 + $0x588] sm:$0xff]
        %v916 = vld [vmem:[%s685 + $0x590] sm:$0xff]
        %v917 = vld [vmem:[%s685 + $0x598] sm:$0xff]
        %v918 = vld [vmem:[%s685 + $0x5a0] sm:$0xff]
        %v919 = vld [vmem:[%s685 + $0x5a8] sm:$0xff]
        %v920 = vld [vmem:[%s685 + $0x5b0] sm:$0xff]
        %v921 = vld [vmem:[%s685 + $0x5b8] sm:$0xff]
        %v922 = vld [vmem:[%s685 + $0x5c0] sm:$0xff]
        %v923 = vld [vmem:[%s685 + $0x5c8] sm:$0xff]
        %v924 = vld [vmem:[%s685 + $0x5d0] sm:$0xff]
        %v925 = vld [vmem:[%s685 + $0x5d8] sm:$0xff]
        %v926 = vld [vmem:[%s685 + $0x5e0] sm:$0xff]
        %v927 = vld [vmem:[%s685 + $0x5e8] sm:$0xff]
        %v928 = vld [vmem:[%s685 + $0x5f0] sm:$0xff]
        %v929 = vld [vmem:[%s685 + $0x5f8] sm:$0xff]
        %v930 = vld [vmem:[%s685 + $0x600] sm:$0xff]
        %v931 = vld [vmem:[%s685 + $0x608] sm:$0xff]
        %v932 = vld [vmem:[%s685 + $0x610] sm:$0xff]
        %v933 = vld [vmem:[%s685 + $0x618] sm:$0xff]
        %v934 = vld [vmem:[%s685 + $0x620] sm:$0xff]
        %v935 = vld [vmem:[%s685 + $0x628] sm:$0xff]
        %v936 = vld [vmem:[%s685 + $0x630] sm:$0xff]
        %v937 = vld [vmem:[%s685 + $0x638] sm:$0xff]
        %v938 = vld [vmem:[%s685 + $0x640] sm:$0xff]
        %v939 = vld [vmem:[%s685 + $0x648] sm:$0xff]
        %v940 = vld [vmem:[%s685 + $0x650] sm:$0xff]
        %v941 = vld [vmem:[%s685 + $0x658] sm:$0xff]
        %v942 = vld [vmem:[%s685 + $0x660] sm:$0xff]
        %v943 = vld [vmem:[%s685 + $0x668] sm:$0xff]
        %v944 = vld [vmem:[%s685 + $0x670] sm:$0xff]
        %v945 = vld [vmem:[%s685 + $0x678] sm:$0xff]
        %v946 = vld [vmem:[%s685 + $0x680] sm:$0xff]
        %v947 = vld [vmem:[%s685 + $0x688] sm:$0xff]
        %v948 = vld [vmem:[%s685 + $0x690] sm:$0xff]
        %v949 = vld [vmem:[%s685 + $0x698] sm:$0xff]
        %v950 = vld [vmem:[%s685 + $0x6a0] sm:$0xff]
        %v951 = vld [vmem:[%s685 + $0x6a8] sm:$0xff]
        %v952 = vld [vmem:[%s685 + $0x6b0] sm:$0xff]
        %v953 = vld [vmem:[%s685 + $0x6b8] sm:$0xff]
        %v954 = vld [vmem:[%s685 + $0x6c0] sm:$0xff]
        %v955 = vld [vmem:[%s685 + $0x6c8] sm:$0xff]
        %v956 = vld [vmem:[%s685 + $0x6d0] sm:$0xff]
        %v957 = vld [vmem:[%s685 + $0x6d8] sm:$0xff]
        %v958 = vld [vmem:[%s685 + $0x6e0] sm:$0xff]
        %v959 = vld [vmem:[%s685 + $0x6e8] sm:$0xff]
        %v960 = vld [vmem:[%s685 + $0x6f0] sm:$0xff]
        %v961 = vld [vmem:[%s685 + $0x6f8] sm:$0xff]
        %v962 = vld [vmem:[%s685 + $0x700] sm:$0xff]
        %v963 = vld [vmem:[%s685 + $0x708] sm:$0xff]
        %v964 = vld [vmem:[%s685 + $0x710] sm:$0xff]
        %v965 = vld [vmem:[%s685 + $0x718] sm:$0xff]
        %v966 = vld [vmem:[%s685 + $0x720] sm:$0xff]
        %v967 = vld [vmem:[%s685 + $0x728] sm:$0xff]
        %v968 = vld [vmem:[%s685 + $0x730] sm:$0xff]
        %v969 = vld [vmem:[%s685 + $0x738] sm:$0xff]
        %v970 = vld [vmem:[%s685 + $0x740] sm:$0xff]
        %v971 = vld [vmem:[%s685 + $0x748] sm:$0xff]
        %v972 = vld [vmem:[%s685 + $0x750] sm:$0xff]
        %v973 = vld [vmem:[%s685 + $0x758] sm:$0xff]
        %v974 = vld [vmem:[%s685 + $0x760] sm:$0xff]
        %v975 = vld [vmem:[%s685 + $0x768] sm:$0xff]
        %v976 = vld [vmem:[%s685 + $0x770] sm:$0xff]
        %v977 = vld [vmem:[%s685 + $0x778] sm:$0xff]
        %v978 = vld [vmem:[%s685 + $0x780] sm:$0xff]
        %v979 = vld [vmem:[%s685 + $0x788] sm:$0xff]
        %v980 = vld [vmem:[%s685 + $0x790] sm:$0xff]
        %v981 = vld [vmem:[%s685 + $0x798] sm:$0xff]
        %v982 = vld [vmem:[%s685 + $0x7a0] sm:$0xff]
        %v983 = vld [vmem:[%s685 + $0x7a8] sm:$0xff]
        %v984 = vld [vmem:[%s685 + $0x7b0] sm:$0xff]
        %v985 = vld [vmem:[%s685 + $0x7b8] sm:$0xff]
        %v986 = vld [vmem:[%s685 + $0x7c0] sm:$0xff]
        %v987 = vld [vmem:[%s685 + $0x7c8] sm:$0xff]
        %v988 = vld [vmem:[%s685 + $0x7d0] sm:$0xff]
        %v989 = vld [vmem:[%s685 + $0x7d8] sm:$0xff]
        %v990 = vld [vmem:[%s685 + $0x7e0] sm:$0xff]
        %v991 = vld [vmem:[%s685 + $0x7e8] sm:$0xff]
        %v992 = vld [vmem:[%s685 + $0x7f0] sm:$0xff]
        %v993 = vld [vmem:[%s685 + $0x7f8] sm:$0xff]
        %v994 = vld [vmem:[%s714] sm:$0xf]
        %v996 = vlaneseq
        %v997 = vshrl.u32 %v996, 7
        %v998 = vsub.s32 0, %v997
        %v999 = vrot.slane %v994, %v998
        %v1000 = vlaneseq
        %v1001 = vshrl.u32 %v1000, 7
        %v1002 = vsub.s32 1, %v1001
        %v1003 = vrot.slane %v994, %v1002
        %v1004 = vlaneseq
        %v1005 = vshrl.u32 %v1004, 7
        %v1006 = vsub.s32 2, %v1005
        %v1007 = vrot.slane %v994, %v1006
        %v1008 = vlaneseq
        %v1009 = vshrl.u32 %v1008, 7
        %v1010 = vsub.s32 3, %v1009
        %v1011 = vrot.slane %v994, %v1010
        %v1272 = vunpack.c.l.b16 %v738
        %v1273 = vunpack.c.h.b16 %v738
        %v1274 = vunpack.c.l.b16 %v739
        %v1275 = vunpack.c.h.b16 %v739
        %v1276 = vunpack.c.l.b16 %v740
        %v1277 = vunpack.c.h.b16 %v740
        %v1278 = vunpack.c.l.b16 %v741
        %v1279 = vunpack.c.h.b16 %v741
        %v1280 = vunpack.c.l.b16 %v742
        %v1281 = vunpack.c.h.b16 %v742
        %v1282 = vunpack.c.l.b16 %v743
        %v1283 = vunpack.c.h.b16 %v743
        %v1284 = vunpack.c.l.b16 %v744
        %v1285 = vunpack.c.h.b16 %v744
        %v1286 = vunpack.c.l.b16 %v745
        %v1287 = vunpack.c.h.b16 %v745
        %v1288 = vunpack.c.l.b16 %v746
        %v1289 = vunpack.c.h.b16 %v746
        %v1290 = vunpack.c.l.b16 %v747
        %v1291 = vunpack.c.h.b16 %v747
        %v1292 = vunpack.c.l.b16 %v748
        %v1293 = vunpack.c.h.b16 %v748
        %v1294 = vunpack.c.l.b16 %v749
        %v1295 = vunpack.c.h.b16 %v749
        %v1296 = vunpack.c.l.b16 %v750
        %v1297 = vunpack.c.h.b16 %v750
        %v1298 = vunpack.c.l.b16 %v751
        %v1299 = vunpack.c.h.b16 %v751
        %v1300 = vunpack.c.l.b16 %v752
        %v1301 = vunpack.c.h.b16 %v752
        %v1302 = vunpack.c.l.b16 %v753
        %v1303 = vunpack.c.h.b16 %v753
        %v1304 = vunpack.c.l.b16 %v754
        %v1305 = vunpack.c.h.b16 %v754
        %v1306 = vunpack.c.l.b16 %v755
        %v1307 = vunpack.c.h.b16 %v755
        %v1308 = vunpack.c.l.b16 %v756
        %v1309 = vunpack.c.h.b16 %v756
        %v1310 = vunpack.c.l.b16 %v757
        %v1311 = vunpack.c.h.b16 %v757
        %v1312 = vunpack.c.l.b16 %v758
        %v1313 = vunpack.c.h.b16 %v758
        %v1314 = vunpack.c.l.b16 %v759
        %v1315 = vunpack.c.h.b16 %v759
        %v1316 = vunpack.c.l.b16 %v760
        %v1317 = vunpack.c.h.b16 %v760
        %v1318 = vunpack.c.l.b16 %v761
        %v1319 = vunpack.c.h.b16 %v761
        %v1320 = vunpack.c.l.b16 %v762
        %v1321 = vunpack.c.h.b16 %v762
        %v1322 = vunpack.c.l.b16 %v763
        %v1323 = vunpack.c.h.b16 %v763
        %v1324 = vunpack.c.l.b16 %v764
        %v1325 = vunpack.c.h.b16 %v764
        %v1326 = vunpack.c.l.b16 %v765
        %v1327 = vunpack.c.h.b16 %v765
        %v1328 = vunpack.c.l.b16 %v766
        %v1329 = vunpack.c.h.b16 %v766
        %v1330 = vunpack.c.l.b16 %v767
        %v1331 = vunpack.c.h.b16 %v767
        %v1332 = vunpack.c.l.b16 %v768
        %v1333 = vunpack.c.h.b16 %v768
        %v1334 = vunpack.c.l.b16 %v769
        %v1335 = vunpack.c.h.b16 %v769
        %v1336 = vunpack.c.l.b16 %v770
        %v1337 = vunpack.c.h.b16 %v770
        %v1338 = vunpack.c.l.b16 %v771
        %v1339 = vunpack.c.h.b16 %v771
        %v1340 = vunpack.c.l.b16 %v772
        %v1341 = vunpack.c.h.b16 %v772
        %v1342 = vunpack.c.l.b16 %v773
        %v1343 = vunpack.c.h.b16 %v773
        %v1344 = vunpack.c.l.b16 %v774
        %v1345 = vunpack.c.h.b16 %v774
        %v1346 = vunpack.c.l.b16 %v775
        %v1347 = vunpack.c.h.b16 %v775
        %v1348 = vunpack.c.l.b16 %v776
        %v1349 = vunpack.c.h.b16 %v776
        %v1350 = vunpack.c.l.b16 %v777
        %v1351 = vunpack.c.h.b16 %v777
        %v1352 = vunpack.c.l.b16 %v778
        %v1353 = vunpack.c.h.b16 %v778
        %v1354 = vunpack.c.l.b16 %v779
        %v1355 = vunpack.c.h.b16 %v779
        %v1356 = vunpack.c.l.b16 %v780
        %v1357 = vunpack.c.h.b16 %v780
        %v1358 = vunpack.c.l.b16 %v781
        %v1359 = vunpack.c.h.b16 %v781
        %v1360 = vunpack.c.l.b16 %v782
        %v1361 = vunpack.c.h.b16 %v782
        %v1362 = vunpack.c.l.b16 %v783
        %v1363 = vunpack.c.h.b16 %v783
        %v1364 = vunpack.c.l.b16 %v784
        %v1365 = vunpack.c.h.b16 %v784
        %v1366 = vunpack.c.l.b16 %v785
        %v1367 = vunpack.c.h.b16 %v785
        %v1368 = vunpack.c.l.b16 %v786
        %v1369 = vunpack.c.h.b16 %v786
        %v1370 = vunpack.c.l.b16 %v787
        %v1371 = vunpack.c.h.b16 %v787
        %v1372 = vunpack.c.l.b16 %v788
        %v1373 = vunpack.c.h.b16 %v788
        %v1374 = vunpack.c.l.b16 %v789
        %v1375 = vunpack.c.h.b16 %v789
        %v1376 = vunpack.c.l.b16 %v790
        %v1377 = vunpack.c.h.b16 %v790
        %v1378 = vunpack.c.l.b16 %v791
        %v1379 = vunpack.c.h.b16 %v791
        %v1380 = vunpack.c.l.b16 %v792
        %v1381 = vunpack.c.h.b16 %v792
        %v1382 = vunpack.c.l.b16 %v793
        %v1383 = vunpack.c.h.b16 %v793
        %v1384 = vunpack.c.l.b16 %v794
        %v1385 = vunpack.c.h.b16 %v794
        %v1386 = vunpack.c.l.b16 %v795
        %v1387 = vunpack.c.h.b16 %v795
        %v1388 = vunpack.c.l.b16 %v796
        %v1389 = vunpack.c.h.b16 %v796
        %v1390 = vunpack.c.l.b16 %v797
        %v1391 = vunpack.c.h.b16 %v797
        %v1392 = vunpack.c.l.b16 %v798
        %v1393 = vunpack.c.h.b16 %v798
        %v1394 = vunpack.c.l.b16 %v799
        %v1395 = vunpack.c.h.b16 %v799
        %v1396 = vunpack.c.l.b16 %v800
        %v1397 = vunpack.c.h.b16 %v800
        %v1398 = vunpack.c.l.b16 %v801
        %v1399 = vunpack.c.h.b16 %v801
        %v1400 = vunpack.c.l.b16 %v802
        %v1401 = vunpack.c.h.b16 %v802
        %v1402 = vunpack.c.l.b16 %v803
        %v1403 = vunpack.c.h.b16 %v803
        %v1404 = vunpack.c.l.b16 %v804
        %v1405 = vunpack.c.h.b16 %v804
        %v1406 = vunpack.c.l.b16 %v805
        %v1407 = vunpack.c.h.b16 %v805
        %v1408 = vunpack.c.l.b16 %v806
        %v1409 = vunpack.c.h.b16 %v806
        %v1410 = vunpack.c.l.b16 %v807
        %v1411 = vunpack.c.h.b16 %v807
        %v1412 = vunpack.c.l.b16 %v808
        %v1413 = vunpack.c.h.b16 %v808
        %v1414 = vunpack.c.l.b16 %v809
        %v1415 = vunpack.c.h.b16 %v809
        %v1416 = vunpack.c.l.b16 %v810
        %v1417 = vunpack.c.h.b16 %v810
        %v1418 = vunpack.c.l.b16 %v811
        %v1419 = vunpack.c.h.b16 %v811
        %v1420 = vunpack.c.l.b16 %v812
        %v1421 = vunpack.c.h.b16 %v812
        %v1422 = vunpack.c.l.b16 %v813
        %v1423 = vunpack.c.h.b16 %v813
        %v1424 = vunpack.c.l.b16 %v814
        %v1425 = vunpack.c.h.b16 %v814
        %v1426 = vunpack.c.l.b16 %v815
        %v1427 = vunpack.c.h.b16 %v815
        %v1428 = vunpack.c.l.b16 %v816
        %v1429 = vunpack.c.h.b16 %v816
        %v1430 = vunpack.c.l.b16 %v817
        %v1431 = vunpack.c.h.b16 %v817
        %v1432 = vunpack.c.l.b16 %v818
        %v1433 = vunpack.c.h.b16 %v818
        %v1434 = vunpack.c.l.b16 %v819
        %v1435 = vunpack.c.h.b16 %v819
        %v1436 = vunpack.c.l.b16 %v820
        %v1437 = vunpack.c.h.b16 %v820
        %v1438 = vunpack.c.l.b16 %v821
        %v1439 = vunpack.c.h.b16 %v821
        %v1440 = vunpack.c.l.b16 %v822
        %v1441 = vunpack.c.h.b16 %v822
        %v1442 = vunpack.c.l.b16 %v823
        %v1443 = vunpack.c.h.b16 %v823
        %v1444 = vunpack.c.l.b16 %v824
        %v1445 = vunpack.c.h.b16 %v824
        %v1446 = vunpack.c.l.b16 %v825
        %v1447 = vunpack.c.h.b16 %v825
        %v1448 = vunpack.c.l.b16 %v826
        %v1449 = vunpack.c.h.b16 %v826
        %v1450 = vunpack.c.l.b16 %v827
        %v1451 = vunpack.c.h.b16 %v827
        %v1452 = vunpack.c.l.b16 %v828
        %v1453 = vunpack.c.h.b16 %v828
        %v1454 = vunpack.c.l.b16 %v829
        %v1455 = vunpack.c.h.b16 %v829
        %v1456 = vunpack.c.l.b16 %v830
        %v1457 = vunpack.c.h.b16 %v830
        %v1458 = vunpack.c.l.b16 %v831
        %v1459 = vunpack.c.h.b16 %v831
        %v1460 = vunpack.c.l.b16 %v832
        %v1461 = vunpack.c.h.b16 %v832
        %v1462 = vunpack.c.l.b16 %v833
        %v1463 = vunpack.c.h.b16 %v833
        %v1464 = vunpack.c.l.b16 %v834
        %v1465 = vunpack.c.h.b16 %v834
        %v1466 = vunpack.c.l.b16 %v835
        %v1467 = vunpack.c.h.b16 %v835
        %v1468 = vunpack.c.l.b16 %v836
        %v1469 = vunpack.c.h.b16 %v836
        %v1470 = vunpack.c.l.b16 %v837
        %v1471 = vunpack.c.h.b16 %v837
        %v1472 = vunpack.c.l.b16 %v838
        %v1473 = vunpack.c.h.b16 %v838
        %v1474 = vunpack.c.l.b16 %v839
        %v1475 = vunpack.c.h.b16 %v839
        %v1476 = vunpack.c.l.b16 %v840
        %v1477 = vunpack.c.h.b16 %v840
        %v1478 = vunpack.c.l.b16 %v841
        %v1479 = vunpack.c.h.b16 %v841
        %v1480 = vunpack.c.l.b16 %v842
        %v1481 = vunpack.c.h.b16 %v842
        %v1482 = vunpack.c.l.b16 %v843
        %v1483 = vunpack.c.h.b16 %v843
        %v1484 = vunpack.c.l.b16 %v844
        %v1485 = vunpack.c.h.b16 %v844
        %v1486 = vunpack.c.l.b16 %v845
        %v1487 = vunpack.c.h.b16 %v845
        %v1488 = vunpack.c.l.b16 %v846
        %v1489 = vunpack.c.h.b16 %v846
        %v1490 = vunpack.c.l.b16 %v847
        %v1491 = vunpack.c.h.b16 %v847
        %v1492 = vunpack.c.l.b16 %v848
        %v1493 = vunpack.c.h.b16 %v848
        %v1494 = vunpack.c.l.b16 %v849
        %v1495 = vunpack.c.h.b16 %v849
        %v1496 = vunpack.c.l.b16 %v850
        %v1497 = vunpack.c.h.b16 %v850
        %v1498 = vunpack.c.l.b16 %v851
        %v1499 = vunpack.c.h.b16 %v851
        %v1500 = vunpack.c.l.b16 %v852
        %v1501 = vunpack.c.h.b16 %v852
        %v1502 = vunpack.c.l.b16 %v853
        %v1503 = vunpack.c.h.b16 %v853
        %v1504 = vunpack.c.l.b16 %v854
        %v1505 = vunpack.c.h.b16 %v854
        %v1506 = vunpack.c.l.b16 %v855
        %v1507 = vunpack.c.h.b16 %v855
        %v1508 = vunpack.c.l.b16 %v856
        %v1509 = vunpack.c.h.b16 %v856
        %v1510 = vunpack.c.l.b16 %v857
        %v1511 = vunpack.c.h.b16 %v857
        %v1512 = vunpack.c.l.b16 %v858
        %v1513 = vunpack.c.h.b16 %v858
        %v1514 = vunpack.c.l.b16 %v859
        %v1515 = vunpack.c.h.b16 %v859
        %v1516 = vunpack.c.l.b16 %v860
        %v1517 = vunpack.c.h.b16 %v860
        %v1518 = vunpack.c.l.b16 %v861
        %v1519 = vunpack.c.h.b16 %v861
        %v1520 = vunpack.c.l.b16 %v862
        %v1521 = vunpack.c.h.b16 %v862
        %v1522 = vunpack.c.l.b16 %v863
        %v1523 = vunpack.c.h.b16 %v863
        %v1524 = vunpack.c.l.b16 %v864
        %v1525 = vunpack.c.h.b16 %v864
        %v1526 = vunpack.c.l.b16 %v865
        %v1527 = vunpack.c.h.b16 %v865
        %v1528 = vunpack.c.l.b16 %v866
        %v1529 = vunpack.c.h.b16 %v866
        %v1530 = vunpack.c.l.b16 %v867
        %v1531 = vunpack.c.h.b16 %v867
        %v1532 = vunpack.c.l.b16 %v868
        %v1533 = vunpack.c.h.b16 %v868
        %v1534 = vunpack.c.l.b16 %v869
        %v1535 = vunpack.c.h.b16 %v869
        %v1536 = vunpack.c.l.b16 %v870
        %v1537 = vunpack.c.h.b16 %v870
        %v1538 = vunpack.c.l.b16 %v871
        %v1539 = vunpack.c.h.b16 %v871
        %v1540 = vunpack.c.l.b16 %v872
        %v1541 = vunpack.c.h.b16 %v872
        %v1542 = vunpack.c.l.b16 %v873
        %v1543 = vunpack.c.h.b16 %v873
        %v1544 = vunpack.c.l.b16 %v874
        %v1545 = vunpack.c.h.b16 %v874
        %v1546 = vunpack.c.l.b16 %v875
        %v1547 = vunpack.c.h.b16 %v875
        %v1548 = vunpack.c.l.b16 %v876
        %v1549 = vunpack.c.h.b16 %v876
        %v1550 = vunpack.c.l.b16 %v877
        %v1551 = vunpack.c.h.b16 %v877
        %v1552 = vunpack.c.l.b16 %v878
        %v1553 = vunpack.c.h.b16 %v878
        %v1554 = vunpack.c.l.b16 %v879
        %v1555 = vunpack.c.h.b16 %v879
        %v1556 = vunpack.c.l.b16 %v880
        %v1557 = vunpack.c.h.b16 %v880
        %v1558 = vunpack.c.l.b16 %v881
        %v1559 = vunpack.c.h.b16 %v881
        %v1560 = vunpack.c.l.b16 %v882
        %v1561 = vunpack.c.h.b16 %v882
        %v1562 = vunpack.c.l.b16 %v883
        %v1563 = vunpack.c.h.b16 %v883
        %v1564 = vunpack.c.l.b16 %v884
        %v1565 = vunpack.c.h.b16 %v884
        %v1566 = vunpack.c.l.b16 %v885
        %v1567 = vunpack.c.h.b16 %v885
        %v1568 = vunpack.c.l.b16 %v886
        %v1569 = vunpack.c.h.b16 %v886
        %v1570 = vunpack.c.l.b16 %v887
        %v1571 = vunpack.c.h.b16 %v887
        %v1572 = vunpack.c.l.b16 %v888
        %v1573 = vunpack.c.h.b16 %v888
        %v1574 = vunpack.c.l.b16 %v889
        %v1575 = vunpack.c.h.b16 %v889
        %v1576 = vunpack.c.l.b16 %v890
        %v1577 = vunpack.c.h.b16 %v890
        %v1578 = vunpack.c.l.b16 %v891
        %v1579 = vunpack.c.h.b16 %v891
        %v1580 = vunpack.c.l.b16 %v892
        %v1581 = vunpack.c.h.b16 %v892
        %v1582 = vunpack.c.l.b16 %v893
        %v1583 = vunpack.c.h.b16 %v893
        %v1584 = vunpack.c.l.b16 %v894
        %v1585 = vunpack.c.h.b16 %v894
        %v1586 = vunpack.c.l.b16 %v895
        %v1587 = vunpack.c.h.b16 %v895
        %v1588 = vunpack.c.l.b16 %v896
        %v1589 = vunpack.c.h.b16 %v896
        %v1590 = vunpack.c.l.b16 %v897
        %v1591 = vunpack.c.h.b16 %v897
        %v1592 = vunpack.c.l.b16 %v898
        %v1593 = vunpack.c.h.b16 %v898
        %v1594 = vunpack.c.l.b16 %v899
        %v1595 = vunpack.c.h.b16 %v899
        %v1596 = vunpack.c.l.b16 %v900
        %v1597 = vunpack.c.h.b16 %v900
        %v1598 = vunpack.c.l.b16 %v901
        %v1599 = vunpack.c.h.b16 %v901
        %v1600 = vunpack.c.l.b16 %v902
        %v1601 = vunpack.c.h.b16 %v902
        %v1602 = vunpack.c.l.b16 %v903
        %v1603 = vunpack.c.h.b16 %v903
        %v1604 = vunpack.c.l.b16 %v904
        %v1605 = vunpack.c.h.b16 %v904
        %v1606 = vunpack.c.l.b16 %v905
        %v1607 = vunpack.c.h.b16 %v905
        %v1608 = vunpack.c.l.b16 %v906
        %v1609 = vunpack.c.h.b16 %v906
        %v1610 = vunpack.c.l.b16 %v907
        %v1611 = vunpack.c.h.b16 %v907
        %v1612 = vunpack.c.l.b16 %v908
        %v1613 = vunpack.c.h.b16 %v908
        %v1614 = vunpack.c.l.b16 %v909
        %v1615 = vunpack.c.h.b16 %v909
        %v1616 = vunpack.c.l.b16 %v910
        %v1617 = vunpack.c.h.b16 %v910
        %v1618 = vunpack.c.l.b16 %v911
        %v1619 = vunpack.c.h.b16 %v911
        %v1620 = vunpack.c.l.b16 %v912
        %v1621 = vunpack.c.h.b16 %v912
        %v1622 = vunpack.c.l.b16 %v913
        %v1623 = vunpack.c.h.b16 %v913
        %v1624 = vunpack.c.l.b16 %v914
        %v1625 = vunpack.c.h.b16 %v914
        %v1626 = vunpack.c.l.b16 %v915
        %v1627 = vunpack.c.h.b16 %v915
        %v1628 = vunpack.c.l.b16 %v916
        %v1629 = vunpack.c.h.b16 %v916
        %v1630 = vunpack.c.l.b16 %v917
        %v1631 = vunpack.c.h.b16 %v917
        %v1632 = vunpack.c.l.b16 %v918
        %v1633 = vunpack.c.h.b16 %v918
        %v1634 = vunpack.c.l.b16 %v919
        %v1635 = vunpack.c.h.b16 %v919
        %v1636 = vunpack.c.l.b16 %v920
        %v1637 = vunpack.c.h.b16 %v920
        %v1638 = vunpack.c.l.b16 %v921
        %v1639 = vunpack.c.h.b16 %v921
        %v1640 = vunpack.c.l.b16 %v922
        %v1641 = vunpack.c.h.b16 %v922
        %v1642 = vunpack.c.l.b16 %v923
        %v1643 = vunpack.c.h.b16 %v923
        %v1644 = vunpack.c.l.b16 %v924
        %v1645 = vunpack.c.h.b16 %v924
        %v1646 = vunpack.c.l.b16 %v925
        %v1647 = vunpack.c.h.b16 %v925
        %v1648 = vunpack.c.l.b16 %v926
        %v1649 = vunpack.c.h.b16 %v926
        %v1650 = vunpack.c.l.b16 %v927
        %v1651 = vunpack.c.h.b16 %v927
        %v1652 = vunpack.c.l.b16 %v928
        %v1653 = vunpack.c.h.b16 %v928
        %v1654 = vunpack.c.l.b16 %v929
        %v1655 = vunpack.c.h.b16 %v929
        %v1656 = vunpack.c.l.b16 %v930
        %v1657 = vunpack.c.h.b16 %v930
        %v1658 = vunpack.c.l.b16 %v931
        %v1659 = vunpack.c.h.b16 %v931
        %v1660 = vunpack.c.l.b16 %v932
        %v1661 = vunpack.c.h.b16 %v932
        %v1662 = vunpack.c.l.b16 %v933
        %v1663 = vunpack.c.h.b16 %v933
        %v1664 = vunpack.c.l.b16 %v934
        %v1665 = vunpack.c.h.b16 %v934
        %v1666 = vunpack.c.l.b16 %v935
        %v1667 = vunpack.c.h.b16 %v935
        %v1668 = vunpack.c.l.b16 %v936
        %v1669 = vunpack.c.h.b16 %v936
        %v1670 = vunpack.c.l.b16 %v937
        %v1671 = vunpack.c.h.b16 %v937
        %v1672 = vunpack.c.l.b16 %v938
        %v1673 = vunpack.c.h.b16 %v938
        %v1674 = vunpack.c.l.b16 %v939
        %v1675 = vunpack.c.h.b16 %v939
        %v1676 = vunpack.c.l.b16 %v940
        %v1677 = vunpack.c.h.b16 %v940
        %v1678 = vunpack.c.l.b16 %v941
        %v1679 = vunpack.c.h.b16 %v941
        %v1680 = vunpack.c.l.b16 %v942
        %v1681 = vunpack.c.h.b16 %v942
        %v1682 = vunpack.c.l.b16 %v943
        %v1683 = vunpack.c.h.b16 %v943
        %v1684 = vunpack.c.l.b16 %v944
        %v1685 = vunpack.c.h.b16 %v944
        %v1686 = vunpack.c.l.b16 %v945
        %v1687 = vunpack.c.h.b16 %v945
        %v1688 = vunpack.c.l.b16 %v946
        %v1689 = vunpack.c.h.b16 %v946
        %v1690 = vunpack.c.l.b16 %v947
        %v1691 = vunpack.c.h.b16 %v947
        %v1692 = vunpack.c.l.b16 %v948
        %v1693 = vunpack.c.h.b16 %v948
        %v1694 = vunpack.c.l.b16 %v949
        %v1695 = vunpack.c.h.b16 %v949
        %v1696 = vunpack.c.l.b16 %v950
        %v1697 = vunpack.c.h.b16 %v950
        %v1698 = vunpack.c.l.b16 %v951
        %v1699 = vunpack.c.h.b16 %v951
        %v1700 = vunpack.c.l.b16 %v952
        %v1701 = vunpack.c.h.b16 %v952
        %v1702 = vunpack.c.l.b16 %v953
        %v1703 = vunpack.c.h.b16 %v953
        %v1704 = vunpack.c.l.b16 %v954
        %v1705 = vunpack.c.h.b16 %v954
        %v1706 = vunpack.c.l.b16 %v955
        %v1707 = vunpack.c.h.b16 %v955
        %v1708 = vunpack.c.l.b16 %v956
        %v1709 = vunpack.c.h.b16 %v956
        %v1710 = vunpack.c.l.b16 %v957
        %v1711 = vunpack.c.h.b16 %v957
        %v1712 = vunpack.c.l.b16 %v958
        %v1713 = vunpack.c.h.b16 %v958
        %v1714 = vunpack.c.l.b16 %v959
        %v1715 = vunpack.c.h.b16 %v959
        %v1716 = vunpack.c.l.b16 %v960
        %v1717 = vunpack.c.h.b16 %v960
        %v1718 = vunpack.c.l.b16 %v961
        %v1719 = vunpack.c.h.b16 %v961
        %v1720 = vunpack.c.l.b16 %v962
        %v1721 = vunpack.c.h.b16 %v962
        %v1722 = vunpack.c.l.b16 %v963
        %v1723 = vunpack.c.h.b16 %v963
        %v1724 = vunpack.c.l.b16 %v964
        %v1725 = vunpack.c.h.b16 %v964
        %v1726 = vunpack.c.l.b16 %v965
        %v1727 = vunpack.c.h.b16 %v965
        %v1728 = vunpack.c.l.b16 %v966
        %v1729 = vunpack.c.h.b16 %v966
        %v1730 = vunpack.c.l.b16 %v967
        %v1731 = vunpack.c.h.b16 %v967
        %v1732 = vunpack.c.l.b16 %v968
        %v1733 = vunpack.c.h.b16 %v968
        %v1734 = vunpack.c.l.b16 %v969
        %v1735 = vunpack.c.h.b16 %v969
        %v1736 = vunpack.c.l.b16 %v970
        %v1737 = vunpack.c.h.b16 %v970
        %v1738 = vunpack.c.l.b16 %v971
        %v1739 = vunpack.c.h.b16 %v971
        %v1740 = vunpack.c.l.b16 %v972
        %v1741 = vunpack.c.h.b16 %v972
        %v1742 = vunpack.c.l.b16 %v973
        %v1743 = vunpack.c.h.b16 %v973
        %v1744 = vunpack.c.l.b16 %v974
        %v1745 = vunpack.c.h.b16 %v974
        %v1746 = vunpack.c.l.b16 %v975
        %v1747 = vunpack.c.h.b16 %v975
        %v1748 = vunpack.c.l.b16 %v976
        %v1749 = vunpack.c.h.b16 %v976
        %v1750 = vunpack.c.l.b16 %v977
        %v1751 = vunpack.c.h.b16 %v977
        %v1752 = vunpack.c.l.b16 %v978
        %v1753 = vunpack.c.h.b16 %v978
        %v1754 = vunpack.c.l.b16 %v979
        %v1755 = vunpack.c.h.b16 %v979
        %v1756 = vunpack.c.l.b16 %v980
        %v1757 = vunpack.c.h.b16 %v980
        %v1758 = vunpack.c.l.b16 %v981
        %v1759 = vunpack.c.h.b16 %v981
        %v1760 = vunpack.c.l.b16 %v982
        %v1761 = vunpack.c.h.b16 %v982
        %v1762 = vunpack.c.l.b16 %v983
        %v1763 = vunpack.c.h.b16 %v983
        %v1764 = vunpack.c.l.b16 %v984
        %v1765 = vunpack.c.h.b16 %v984
        %v1766 = vunpack.c.l.b16 %v985
        %v1767 = vunpack.c.h.b16 %v985
        %v1768 = vunpack.c.l.b16 %v986
        %v1769 = vunpack.c.h.b16 %v986
        %v1770 = vunpack.c.l.b16 %v987
        %v1771 = vunpack.c.h.b16 %v987
        %v1772 = vunpack.c.l.b16 %v988
        %v1773 = vunpack.c.h.b16 %v988
        %v1774 = vunpack.c.l.b16 %v989
        %v1775 = vunpack.c.h.b16 %v989
        %v1776 = vunpack.c.l.b16 %v990
        %v1777 = vunpack.c.h.b16 %v990
        %v1778 = vunpack.c.l.b16 %v991
        %v1779 = vunpack.c.h.b16 %v991
        %v1780 = vunpack.c.l.b16 %v992
        %v1781 = vunpack.c.h.b16 %v992
        %v1782 = vunpack.c.l.b16 %v993
        %v1783 = vunpack.c.h.b16 %v993
        %v1784 = vpack.c.b16 %v1276, %v1272
        %v1785 = vpack.c.b16 %v1277, %v1273
        %v1786 = vpack.c.b16 %v1278, %v1274
        %v1787 = vpack.c.b16 %v1279, %v1275
        %v1788 = vpack.c.b16 %v1284, %v1280
        %v1789 = vpack.c.b16 %v1285, %v1281
        %v1790 = vpack.c.b16 %v1286, %v1282
        %v1791 = vpack.c.b16 %v1287, %v1283
        %v1792 = vpack.c.b16 %v1292, %v1288
        %v1793 = vpack.c.b16 %v1293, %v1289
        %v1794 = vpack.c.b16 %v1294, %v1290
        %v1795 = vpack.c.b16 %v1295, %v1291
        %v1796 = vpack.c.b16 %v1300, %v1296
        %v1797 = vpack.c.b16 %v1301, %v1297
        %v1798 = vpack.c.b16 %v1302, %v1298
        %v1799 = vpack.c.b16 %v1303, %v1299
        %v1800 = vpack.c.b16 %v1308, %v1304
        %v1801 = vpack.c.b16 %v1309, %v1305
        %v1802 = vpack.c.b16 %v1310, %v1306
        %v1803 = vpack.c.b16 %v1311, %v1307
        %v1804 = vpack.c.b16 %v1316, %v1312
        %v1805 = vpack.c.b16 %v1317, %v1313
        %v1806 = vpack.c.b16 %v1318, %v1314
        %v1807 = vpack.c.b16 %v1319, %v1315
        %v1808 = vpack.c.b16 %v1324, %v1320
        %v1809 = vpack.c.b16 %v1325, %v1321
        %v1810 = vpack.c.b16 %v1326, %v1322
        %v1811 = vpack.c.b16 %v1327, %v1323
        %v1812 = vpack.c.b16 %v1332, %v1328
        %v1813 = vpack.c.b16 %v1333, %v1329
        %v1814 = vpack.c.b16 %v1334, %v1330
        %v1815 = vpack.c.b16 %v1335, %v1331
        %v1816 = vpack.c.b16 %v1340, %v1336
        %v1817 = vpack.c.b16 %v1341, %v1337
        %v1818 = vpack.c.b16 %v1342, %v1338
        %v1819 = vpack.c.b16 %v1343, %v1339
        %v1820 = vpack.c.b16 %v1348, %v1344
        %v1821 = vpack.c.b16 %v1349, %v1345
        %v1822 = vpack.c.b16 %v1350, %v1346
        %v1823 = vpack.c.b16 %v1351, %v1347
        %v1824 = vpack.c.b16 %v1356, %v1352
        %v1825 = vpack.c.b16 %v1357, %v1353
        %v1826 = vpack.c.b16 %v1358, %v1354
        %v1827 = vpack.c.b16 %v1359, %v1355
        %v1828 = vpack.c.b16 %v1364, %v1360
        %v1829 = vpack.c.b16 %v1365, %v1361
        %v1830 = vpack.c.b16 %v1366, %v1362
        %v1831 = vpack.c.b16 %v1367, %v1363
        %v1832 = vpack.c.b16 %v1372, %v1368
        %v1833 = vpack.c.b16 %v1373, %v1369
        %v1834 = vpack.c.b16 %v1374, %v1370
        %v1835 = vpack.c.b16 %v1375, %v1371
        %v1836 = vpack.c.b16 %v1380, %v1376
        %v1837 = vpack.c.b16 %v1381, %v1377
        %v1838 = vpack.c.b16 %v1382, %v1378
        %v1839 = vpack.c.b16 %v1383, %v1379
        %v1840 = vpack.c.b16 %v1388, %v1384
        %v1841 = vpack.c.b16 %v1389, %v1385
        %v1842 = vpack.c.b16 %v1390, %v1386
        %v1843 = vpack.c.b16 %v1391, %v1387
        %v1844 = vpack.c.b16 %v1396, %v1392
        %v1845 = vpack.c.b16 %v1397, %v1393
        %v1846 = vpack.c.b16 %v1398, %v1394
        %v1847 = vpack.c.b16 %v1399, %v1395
        %v1848 = vpack.c.b16 %v1404, %v1400
        %v1849 = vpack.c.b16 %v1405, %v1401
        %v1850 = vpack.c.b16 %v1406, %v1402
        %v1851 = vpack.c.b16 %v1407, %v1403
        %v1852 = vpack.c.b16 %v1412, %v1408
        %v1853 = vpack.c.b16 %v1413, %v1409
        %v1854 = vpack.c.b16 %v1414, %v1410
        %v1855 = vpack.c.b16 %v1415, %v1411
        %v1856 = vpack.c.b16 %v1420, %v1416
        %v1857 = vpack.c.b16 %v1421, %v1417
        %v1858 = vpack.c.b16 %v1422, %v1418
        %v1859 = vpack.c.b16 %v1423, %v1419
        %v1860 = vpack.c.b16 %v1428, %v1424
        %v1861 = vpack.c.b16 %v1429, %v1425
        %v1862 = vpack.c.b16 %v1430, %v1426
        %v1863 = vpack.c.b16 %v1431, %v1427
        %v1864 = vpack.c.b16 %v1436, %v1432
        %v1865 = vpack.c.b16 %v1437, %v1433
        %v1866 = vpack.c.b16 %v1438, %v1434
        %v1867 = vpack.c.b16 %v1439, %v1435
        %v1868 = vpack.c.b16 %v1444, %v1440
        %v1869 = vpack.c.b16 %v1445, %v1441
        %v1870 = vpack.c.b16 %v1446, %v1442
        %v1871 = vpack.c.b16 %v1447, %v1443
        %v1872 = vpack.c.b16 %v1452, %v1448
        %v1873 = vpack.c.b16 %v1453, %v1449
        %v1874 = vpack.c.b16 %v1454, %v1450
        %v1875 = vpack.c.b16 %v1455, %v1451
        %v1876 = vpack.c.b16 %v1460, %v1456
        %v1877 = vpack.c.b16 %v1461, %v1457
        %v1878 = vpack.c.b16 %v1462, %v1458
        %v1879 = vpack.c.b16 %v1463, %v1459
        %v1880 = vpack.c.b16 %v1468, %v1464
        %v1881 = vpack.c.b16 %v1469, %v1465
        %v1882 = vpack.c.b16 %v1470, %v1466
        %v1883 = vpack.c.b16 %v1471, %v1467
        %v1884 = vpack.c.b16 %v1476, %v1472
        %v1885 = vpack.c.b16 %v1477, %v1473
        %v1886 = vpack.c.b16 %v1478, %v1474
        %v1887 = vpack.c.b16 %v1479, %v1475
        %v1888 = vpack.c.b16 %v1484, %v1480
        %v1889 = vpack.c.b16 %v1485, %v1481
        %v1890 = vpack.c.b16 %v1486, %v1482
        %v1891 = vpack.c.b16 %v1487, %v1483
        %v1892 = vpack.c.b16 %v1492, %v1488
        %v1893 = vpack.c.b16 %v1493, %v1489
        %v1894 = vpack.c.b16 %v1494, %v1490
        %v1895 = vpack.c.b16 %v1495, %v1491
        %v1896 = vpack.c.b16 %v1500, %v1496
        %v1897 = vpack.c.b16 %v1501, %v1497
        %v1898 = vpack.c.b16 %v1502, %v1498
        %v1899 = vpack.c.b16 %v1503, %v1499
        %v1900 = vpack.c.b16 %v1508, %v1504
        %v1901 = vpack.c.b16 %v1509, %v1505
        %v1902 = vpack.c.b16 %v1510, %v1506
        %v1903 = vpack.c.b16 %v1511, %v1507
        %v1904 = vpack.c.b16 %v1516, %v1512
        %v1905 = vpack.c.b16 %v1517, %v1513
        %v1906 = vpack.c.b16 %v1518, %v1514
        %v1907 = vpack.c.b16 %v1519, %v1515
        %v1908 = vpack.c.b16 %v1524, %v1520
        %v1909 = vpack.c.b16 %v1525, %v1521
        %v1910 = vpack.c.b16 %v1526, %v1522
        %v1911 = vpack.c.b16 %v1527, %v1523
        %v1912 = vpack.c.b16 %v1532, %v1528
        %v1913 = vpack.c.b16 %v1533, %v1529
        %v1914 = vpack.c.b16 %v1534, %v1530
        %v1915 = vpack.c.b16 %v1535, %v1531
        %v1916 = vpack.c.b16 %v1540, %v1536
        %v1917 = vpack.c.b16 %v1541, %v1537
        %v1918 = vpack.c.b16 %v1542, %v1538
        %v1919 = vpack.c.b16 %v1543, %v1539
        %v1920 = vpack.c.b16 %v1548, %v1544
        %v1921 = vpack.c.b16 %v1549, %v1545
        %v1922 = vpack.c.b16 %v1550, %v1546
        %v1923 = vpack.c.b16 %v1551, %v1547
        %v1924 = vpack.c.b16 %v1556, %v1552
        %v1925 = vpack.c.b16 %v1557, %v1553
        %v1926 = vpack.c.b16 %v1558, %v1554
        %v1927 = vpack.c.b16 %v1559, %v1555
        %v1928 = vpack.c.b16 %v1564, %v1560
        %v1929 = vpack.c.b16 %v1565, %v1561
        %v1930 = vpack.c.b16 %v1566, %v1562
        %v1931 = vpack.c.b16 %v1567, %v1563
        %v1932 = vpack.c.b16 %v1572, %v1568
        %v1933 = vpack.c.b16 %v1573, %v1569
        %v1934 = vpack.c.b16 %v1574, %v1570
        %v1935 = vpack.c.b16 %v1575, %v1571
        %v1936 = vpack.c.b16 %v1580, %v1576
        %v1937 = vpack.c.b16 %v1581, %v1577
        %v1938 = vpack.c.b16 %v1582, %v1578
        %v1939 = vpack.c.b16 %v1583, %v1579
        %v1940 = vpack.c.b16 %v1588, %v1584
        %v1941 = vpack.c.b16 %v1589, %v1585
        %v1942 = vpack.c.b16 %v1590, %v1586
        %v1943 = vpack.c.b16 %v1591, %v1587
        %v1944 = vpack.c.b16 %v1596, %v1592
        %v1945 = vpack.c.b16 %v1597, %v1593
        %v1946 = vpack.c.b16 %v1598, %v1594
        %v1947 = vpack.c.b16 %v1599, %v1595
        %v1948 = vpack.c.b16 %v1604, %v1600
        %v1949 = vpack.c.b16 %v1605, %v1601
        %v1950 = vpack.c.b16 %v1606, %v1602
        %v1951 = vpack.c.b16 %v1607, %v1603
        %v1952 = vpack.c.b16 %v1612, %v1608
        %v1953 = vpack.c.b16 %v1613, %v1609
        %v1954 = vpack.c.b16 %v1614, %v1610
        %v1955 = vpack.c.b16 %v1615, %v1611
        %v1956 = vpack.c.b16 %v1620, %v1616
        %v1957 = vpack.c.b16 %v1621, %v1617
        %v1958 = vpack.c.b16 %v1622, %v1618
        %v1959 = vpack.c.b16 %v1623, %v1619
        %v1960 = vpack.c.b16 %v1628, %v1624
        %v1961 = vpack.c.b16 %v1629, %v1625
        %v1962 = vpack.c.b16 %v1630, %v1626
        %v1963 = vpack.c.b16 %v1631, %v1627
        %v1964 = vpack.c.b16 %v1636, %v1632
        %v1965 = vpack.c.b16 %v1637, %v1633
        %v1966 = vpack.c.b16 %v1638, %v1634
        %v1967 = vpack.c.b16 %v1639, %v1635
        %v1968 = vpack.c.b16 %v1644, %v1640
        %v1969 = vpack.c.b16 %v1645, %v1641
        %v1970 = vpack.c.b16 %v1646, %v1642
        %v1971 = vpack.c.b16 %v1647, %v1643
        %v1972 = vpack.c.b16 %v1652, %v1648
        %v1973 = vpack.c.b16 %v1653, %v1649
        %v1974 = vpack.c.b16 %v1654, %v1650
        %v1975 = vpack.c.b16 %v1655, %v1651
        %v1976 = vpack.c.b16 %v1660, %v1656
        %v1977 = vpack.c.b16 %v1661, %v1657
        %v1978 = vpack.c.b16 %v1662, %v1658
        %v1979 = vpack.c.b16 %v1663, %v1659
        %v1980 = vpack.c.b16 %v1668, %v1664
        %v1981 = vpack.c.b16 %v1669, %v1665
        %v1982 = vpack.c.b16 %v1670, %v1666
        %v1983 = vpack.c.b16 %v1671, %v1667
        %v1984 = vpack.c.b16 %v1676, %v1672
        %v1985 = vpack.c.b16 %v1677, %v1673
        %v1986 = vpack.c.b16 %v1678, %v1674
        %v1987 = vpack.c.b16 %v1679, %v1675
        %v1988 = vpack.c.b16 %v1684, %v1680
        %v1989 = vpack.c.b16 %v1685, %v1681
        %v1990 = vpack.c.b16 %v1686, %v1682
        %v1991 = vpack.c.b16 %v1687, %v1683
        %v1992 = vpack.c.b16 %v1692, %v1688
        %v1993 = vpack.c.b16 %v1693, %v1689
        %v1994 = vpack.c.b16 %v1694, %v1690
        %v1995 = vpack.c.b16 %v1695, %v1691
        %v1996 = vpack.c.b16 %v1700, %v1696
        %v1997 = vpack.c.b16 %v1701, %v1697
        %v1998 = vpack.c.b16 %v1702, %v1698
        %v1999 = vpack.c.b16 %v1703, %v1699
        %v2000 = vpack.c.b16 %v1708, %v1704
        %v2001 = vpack.c.b16 %v1709, %v1705
        %v2002 = vpack.c.b16 %v1710, %v1706
        %v2003 = vpack.c.b16 %v1711, %v1707
        %v2004 = vpack.c.b16 %v1716, %v1712
        %v2005 = vpack.c.b16 %v1717, %v1713
        %v2006 = vpack.c.b16 %v1718, %v1714
        %v2007 = vpack.c.b16 %v1719, %v1715
        %v2008 = vpack.c.b16 %v1724, %v1720
        %v2009 = vpack.c.b16 %v1725, %v1721
        %v2010 = vpack.c.b16 %v1726, %v1722
        %v2011 = vpack.c.b16 %v1727, %v1723
        %v2012 = vpack.c.b16 %v1732, %v1728
        %v2013 = vpack.c.b16 %v1733, %v1729
        %v2014 = vpack.c.b16 %v1734, %v1730
        %v2015 = vpack.c.b16 %v1735, %v1731
        %v2016 = vpack.c.b16 %v1740, %v1736
        %v2017 = vpack.c.b16 %v1741, %v1737
        %v2018 = vpack.c.b16 %v1742, %v1738
        %v2019 = vpack.c.b16 %v1743, %v1739
        %v2020 = vpack.c.b16 %v1748, %v1744
        %v2021 = vpack.c.b16 %v1749, %v1745
        %v2022 = vpack.c.b16 %v1750, %v1746
        %v2023 = vpack.c.b16 %v1751, %v1747
        %v2024 = vpack.c.b16 %v1756, %v1752
        %v2025 = vpack.c.b16 %v1757, %v1753
        %v2026 = vpack.c.b16 %v1758, %v1754
        %v2027 = vpack.c.b16 %v1759, %v1755
        %v2028 = vpack.c.b16 %v1764, %v1760
        %v2029 = vpack.c.b16 %v1765, %v1761
        %v2030 = vpack.c.b16 %v1766, %v1762
        %v2031 = vpack.c.b16 %v1767, %v1763
        %v2032 = vpack.c.b16 %v1772, %v1768
        %v2033 = vpack.c.b16 %v1773, %v1769
        %v2034 = vpack.c.b16 %v1774, %v1770
        %v2035 = vpack.c.b16 %v1775, %v1771
        %v2036 = vpack.c.b16 %v1780, %v1776
        %v2037 = vpack.c.b16 %v1781, %v1777
        %v2038 = vpack.c.b16 %v1782, %v1778
        %v2039 = vpack.c.b16 %v1783, %v1779
        %2296 = vmatprep.subr.bf16.mxu0 %v1813
        %2297 = vmatpush1.bf16.msra.mxu0 %v1812
        %2298 = vmatprep.subr.bf16.mxu0 %v1809
        %2299 = vmatpush1.bf16.msra.mxu0 %v1808
        %2300 = vmatprep.subr.bf16.mxu0 %v1805
        %2301 = vmatpush1.bf16.msra.mxu0 %v1804
        %2302 = vmatprep.subr.bf16.mxu0 %v1801
        %2303 = vmatpush1.bf16.msra.mxu0 %v1800
        %2304 = vmatprep.subr.bf16.mxu0 %v1797
        %2305 = vmatpush1.bf16.msra.mxu0 %v1796
        %2306 = vmatprep.subr.bf16.mxu0 %v1793
        %2307 = vmatpush1.bf16.msra.mxu0 %v1792
        %2308 = vmatprep.subr.bf16.mxu0 %v1789
        %2309 = vmatpush1.bf16.msra.mxu0 %v1788
        %2310 = vmatprep.subr.bf16.mxu0 %v1785
        %2311 = vmatpush1.bf16.msra.mxu0 %v1784
        %2312 = vmatprep.subr.bf16.mxu0 %v1845
        %2313 = vmatpush2.bf16.msra.mxu0 %v1844
        %2314 = vmatprep.subr.bf16.mxu0 %v1841
        %2315 = vmatpush2.bf16.msra.mxu0 %v1840
        %2316 = vmatprep.subr.bf16.mxu0 %v1837
        %2317 = vmatpush2.bf16.msra.mxu0 %v1836
        %2318 = vmatprep.subr.bf16.mxu0 %v1833
        %2319 = vmatpush2.bf16.msra.mxu0 %v1832
        %2320 = vmatprep.subr.bf16.mxu0 %v1829
        %2321 = vmatpush2.bf16.msra.mxu0 %v1828
        %2322 = vmatprep.subr.bf16.mxu0 %v1825
        %2323 = vmatpush2.bf16.msra.mxu0 %v1824
        %2324 = vmatprep.subr.bf16.mxu0 %v1821
        %2325 = vmatpush2.bf16.msra.mxu0 %v1820
        %2326 = vmatprep.subr.bf16.mxu0 %v1817
        %2327 = vmatpush2.bf16.msra.mxu0 %v1816
        %2328 = vmatprep.mubr.bf16.mxu0 %v731
        %2329 = vmatmul.mubr.bf16.gmra.mxu0 %v730
        %v2330 = vpop.f32.mrf.mxu0
        %v2331 = vadd.f32 %v999, %v2330
        %v2332 = vpop.f32.mrf.mxu0
        %v2333 = vadd.f32 %v1003, %v2332
        %v2334 = vpop.f32.mrf.mxu0
        %v2335 = vpop.f32.mrf.mxu0
        %2336 = vdwg.mxu0
        %2337 = vmatprep.subr.bf16.mxu0 %v1877
        %2338 = vmatpush1.bf16.msra.mxu0 %v1876
        %2339 = vmatprep.subr.bf16.mxu0 %v1873
        %2340 = vmatpush1.bf16.msra.mxu0 %v1872
        %2341 = vmatprep.subr.bf16.mxu0 %v1869
        %2342 = vmatpush1.bf16.msra.mxu0 %v1868
        %2343 = vmatprep.subr.bf16.mxu0 %v1865
        %2344 = vmatpush1.bf16.msra.mxu0 %v1864
        %2345 = vmatprep.subr.bf16.mxu0 %v1861
        %2346 = vmatpush1.bf16.msra.mxu0 %v1860
        %2347 = vmatprep.subr.bf16.mxu0 %v1857
        %2348 = vmatpush1.bf16.msra.mxu0 %v1856
        %2349 = vmatprep.subr.bf16.mxu0 %v1853
        %2350 = vmatpush1.bf16.msra.mxu0 %v1852
        %2351 = vmatprep.subr.bf16.mxu0 %v1849
        %2352 = vmatpush1.bf16.msra.mxu0 %v1848
        %2353 = vmatprep.subr.bf16.mxu0 %v1909
        %2354 = vmatpush2.bf16.msra.mxu0 %v1908
        %2355 = vmatprep.subr.bf16.mxu0 %v1905
        %2356 = vmatpush2.bf16.msra.mxu0 %v1904
        %2357 = vmatprep.subr.bf16.mxu0 %v1901
        %2358 = vmatpush2.bf16.msra.mxu0 %v1900
        %2359 = vmatprep.subr.bf16.mxu0 %v1897
        %2360 = vmatpush2.bf16.msra.mxu0 %v1896
        %2361 = vmatprep.subr.bf16.mxu0 %v1893
        %2362 = vmatpush2.bf16.msra.mxu0 %v1892
        %2363 = vmatprep.subr.bf16.mxu0 %v1889
        %2364 = vmatpush2.bf16.msra.mxu0 %v1888
        %2365 = vmatprep.subr.bf16.mxu0 %v1885
        %2366 = vmatpush2.bf16.msra.mxu0 %v1884
        %2367 = vmatprep.subr.bf16.mxu0 %v1881
        %2368 = vmatpush2.bf16.msra.mxu0 %v1880
        %2369 = vmatprep.mubr.bf16.mxu0 %v733
        %2370 = vmatmul.mubr.bf16.gmra.mxu0 %v732
        %v2371 = vpop.f32.mrf.mxu0
        %v2372 = vadd.f32 %v2331, %v2371
        %v2373 = vpop.f32.mrf.mxu0
        %v2374 = vadd.f32 %v2333, %v2373
        %v2375 = vpop.f32.mrf.mxu0
        %v2376 = vpop.f32.mrf.mxu0
        %2377 = vdwg.mxu0
        %2378 = vmatprep.subr.bf16.mxu0 %v1941
        %2379 = vmatpush1.bf16.msra.mxu0 %v1940
        %2380 = vmatprep.subr.bf16.mxu0 %v1937
        %2381 = vmatpush1.bf16.msra.mxu0 %v1936
        %2382 = vmatprep.subr.bf16.mxu0 %v1933
        %2383 = vmatpush1.bf16.msra.mxu0 %v1932
        %2384 = vmatprep.subr.bf16.mxu0 %v1929
        %2385 = vmatpush1.bf16.msra.mxu0 %v1928
        %2386 = vmatprep.subr.bf16.mxu0 %v1925
        %2387 = vmatpush1.bf16.msra.mxu0 %v1924
        %2388 = vmatprep.subr.bf16.mxu0 %v1921
        %2389 = vmatpush1.bf16.msra.mxu0 %v1920
        %2390 = vmatprep.subr.bf16.mxu0 %v1917
        %2391 = vmatpush1.bf16.msra.mxu0 %v1916
        %2392 = vmatprep.subr.bf16.mxu0 %v1913
        %2393 = vmatpush1.bf16.msra.mxu0 %v1912
        %2394 = vmatprep.subr.bf16.mxu0 %v1973
        %2395 = vmatpush2.bf16.msra.mxu0 %v1972
        %2396 = vmatprep.subr.bf16.mxu0 %v1969
        %2397 = vmatpush2.bf16.msra.mxu0 %v1968
        %2398 = vmatprep.subr.bf16.mxu0 %v1965
        %2399 = vmatpush2.bf16.msra.mxu0 %v1964
        %2400 = vmatprep.subr.bf16.mxu0 %v1961
        %2401 = vmatpush2.bf16.msra.mxu0 %v1960
        %2402 = vmatprep.subr.bf16.mxu0 %v1957
        %2403 = vmatpush2.bf16.msra.mxu0 %v1956
        %2404 = vmatprep.subr.bf16.mxu0 %v1953
        %2405 = vmatpush2.bf16.msra.mxu0 %v1952
        %2406 = vmatprep.subr.bf16.mxu0 %v1949
        %2407 = vmatpush2.bf16.msra.mxu0 %v1948
        %2408 = vmatprep.subr.bf16.mxu0 %v1945
        %2409 = vmatpush2.bf16.msra.mxu0 %v1944
        %2410 = vmatprep.mubr.bf16.mxu0 %v735
        %2411 = vmatmul.mubr.bf16.gmra.mxu0 %v734
        %v2412 = vpop.f32.mrf.mxu0
        %v2413 = vadd.f32 %v2372, %v2412
        %v2414 = vpop.f32.mrf.mxu0
        %v2415 = vadd.f32 %v2374, %v2414
        %v2416 = vpop.f32.mrf.mxu0
        %v2417 = vpop.f32.mrf.mxu0
        %2418 = vdwg.mxu0
        %2419 = vmatprep.subr.bf16.mxu0 %v2005
        %2420 = vmatpush1.bf16.msra.mxu0 %v2004
        %2421 = vmatprep.subr.bf16.mxu0 %v2001
        %2422 = vmatpush1.bf16.msra.mxu0 %v2000
        %2423 = vmatprep.subr.bf16.mxu0 %v1997
        %2424 = vmatpush1.bf16.msra.mxu0 %v1996
        %2425 = vmatprep.subr.bf16.mxu0 %v1993
        %2426 = vmatpush1.bf16.msra.mxu0 %v1992
        %2427 = vmatprep.subr.bf16.mxu0 %v1989
        %2428 = vmatpush1.bf16.msra.mxu0 %v1988
        %2429 = vmatprep.subr.bf16.mxu0 %v1985
        %2430 = vmatpush1.bf16.msra.mxu0 %v1984
        %2431 = vmatprep.subr.bf16.mxu0 %v1981
        %2432 = vmatpush1.bf16.msra.mxu0 %v1980
        %2433 = vmatprep.subr.bf16.mxu0 %v1977
        %2434 = vmatpush1.bf16.msra.mxu0 %v1976
        %2435 = vmatprep.subr.bf16.mxu0 %v2037
        %2436 = vmatpush2.bf16.msra.mxu0 %v2036
        %2437 = vmatprep.subr.bf16.mxu0 %v2033
        %2438 = vmatpush2.bf16.msra.mxu0 %v2032
        %2439 = vmatprep.subr.bf16.mxu0 %v2029
        %2440 = vmatpush2.bf16.msra.mxu0 %v2028
        %2441 = vmatprep.subr.bf16.mxu0 %v2025
        %2442 = vmatpush2.bf16.msra.mxu0 %v2024
        %2443 = vmatprep.subr.bf16.mxu0 %v2021
        %2444 = vmatpush2.bf16.msra.mxu0 %v2020
        %2445 = vmatprep.subr.bf16.mxu0 %v2017
        %2446 = vmatpush2.bf16.msra.mxu0 %v2016
        %2447 = vmatprep.subr.bf16.mxu0 %v2013
        %2448 = vmatpush2.bf16.msra.mxu0 %v2012
        %2449 = vmatprep.subr.bf16.mxu0 %v2009
        %2450 = vmatpush2.bf16.msra.mxu0 %v2008
        %2451 = vmatprep.mubr.bf16.mxu0 %v737
        %2452 = vmatmul.mubr.bf16.gmra.mxu0 %v736
        %v2453 = vpop.f32.mrf.mxu0
        %v2454 = vadd.f32 %v2413, %v2453
        %v2455 = vpop.f32.mrf.mxu0
        %v2456 = vadd.f32 %v2415, %v2455
        %v2457 = vpop.f32.mrf.mxu0
        %v2458 = vpop.f32.mrf.mxu0
        %2459 = vdwg.mxu0
        %2460 = vmatprep.subr.bf16.mxu0 %v1815
        %2461 = vmatpush1.bf16.msra.mxu0 %v1814
        %2462 = vmatprep.subr.bf16.mxu0 %v1811
        %2463 = vmatpush1.bf16.msra.mxu0 %v1810
        %2464 = vmatprep.subr.bf16.mxu0 %v1807
        %2465 = vmatpush1.bf16.msra.mxu0 %v1806
        %2466 = vmatprep.subr.bf16.mxu0 %v1803
        %2467 = vmatpush1.bf16.msra.mxu0 %v1802
        %2468 = vmatprep.subr.bf16.mxu0 %v1799
        %2469 = vmatpush1.bf16.msra.mxu0 %v1798
        %2470 = vmatprep.subr.bf16.mxu0 %v1795
        %2471 = vmatpush1.bf16.msra.mxu0 %v1794
        %2472 = vmatprep.subr.bf16.mxu0 %v1791
        %2473 = vmatpush1.bf16.msra.mxu0 %v1790
        %2474 = vmatprep.subr.bf16.mxu0 %v1787
        %2475 = vmatpush1.bf16.msra.mxu0 %v1786
        %2476 = vmatprep.subr.bf16.mxu0 %v1847
        %2477 = vmatpush2.bf16.msra.mxu0 %v1846
        %2478 = vmatprep.subr.bf16.mxu0 %v1843
        %2479 = vmatpush2.bf16.msra.mxu0 %v1842
        %2480 = vmatprep.subr.bf16.mxu0 %v1839
        %2481 = vmatpush2.bf16.msra.mxu0 %v1838
        %2482 = vmatprep.subr.bf16.mxu0 %v1835
        %2483 = vmatpush2.bf16.msra.mxu0 %v1834
        %2484 = vmatprep.subr.bf16.mxu0 %v1831
        %2485 = vmatpush2.bf16.msra.mxu0 %v1830
        %2486 = vmatprep.subr.bf16.mxu0 %v1827
        %2487 = vmatpush2.bf16.msra.mxu0 %v1826
        %2488 = vmatprep.subr.bf16.mxu0 %v1823
        %2489 = vmatpush2.bf16.msra.mxu0 %v1822
        %2490 = vmatprep.subr.bf16.mxu0 %v1819
        %2491 = vmatpush2.bf16.msra.mxu0 %v1818
        %2492 = vmatprep.mubr.bf16.mxu0 %v731
        %2493 = vmatmul.mubr.bf16.gmra.mxu0 %v730
        %v2494 = vpop.f32.mrf.mxu0
        %v2495 = vadd.f32 %v1007, %v2494
        %v2496 = vpop.f32.mrf.mxu0
        %v2497 = vadd.f32 %v1011, %v2496
        %v2498 = vpop.f32.mrf.mxu0
        %v2499 = vpop.f32.mrf.mxu0
        %2500 = vdwg.mxu0
        %2501 = vmatprep.subr.bf16.mxu0 %v1879
        %2502 = vmatpush1.bf16.msra.mxu0 %v1878
        %2503 = vmatprep.subr.bf16.mxu0 %v1875
        %2504 = vmatpush1.bf16.msra.mxu0 %v1874
        %2505 = vmatprep.subr.bf16.mxu0 %v1871
        %2506 = vmatpush1.bf16.msra.mxu0 %v1870
        %2507 = vmatprep.subr.bf16.mxu0 %v1867
        %2508 = vmatpush1.bf16.msra.mxu0 %v1866
        %2509 = vmatprep.subr.bf16.mxu0 %v1863
        %2510 = vmatpush1.bf16.msra.mxu0 %v1862
        %2511 = vmatprep.subr.bf16.mxu0 %v1859
        %2512 = vmatpush1.bf16.msra.mxu0 %v1858
        %2513 = vmatprep.subr.bf16.mxu0 %v1855
        %2514 = vmatpush1.bf16.msra.mxu0 %v1854
        %2515 = vmatprep.subr.bf16.mxu0 %v1851
        %2516 = vmatpush1.bf16.msra.mxu0 %v1850
        %2517 = vmatprep.subr.bf16.mxu0 %v1911
        %2518 = vmatpush2.bf16.msra.mxu0 %v1910
        %2519 = vmatprep.subr.bf16.mxu0 %v1907
        %2520 = vmatpush2.bf16.msra.mxu0 %v1906
        %2521 = vmatprep.subr.bf16.mxu0 %v1903
        %2522 = vmatpush2.bf16.msra.mxu0 %v1902
        %2523 = vmatprep.subr.bf16.mxu0 %v1899
        %2524 = vmatpush2.bf16.msra.mxu0 %v1898
        %2525 = vmatprep.subr.bf16.mxu0 %v1895
        %2526 = vmatpush2.bf16.msra.mxu0 %v1894
        %2527 = vmatprep.subr.bf16.mxu0 %v1891
        %2528 = vmatpush2.bf16.msra.mxu0 %v1890
        %2529 = vmatprep.subr.bf16.mxu0 %v1887
        %2530 = vmatpush2.bf16.msra.mxu0 %v1886
        %2531 = vmatprep.subr.bf16.mxu0 %v1883
        %2532 = vmatpush2.bf16.msra.mxu0 %v1882
        %2533 = vmatprep.mubr.bf16.mxu0 %v733
        %2534 = vmatmul.mubr.bf16.gmra.mxu0 %v732
        %v2535 = vpop.f32.mrf.mxu0
        %v2536 = vadd.f32 %v2495, %v2535
        %v2537 = vpop.f32.mrf.mxu0
        %v2538 = vadd.f32 %v2497, %v2537
        %v2539 = vpop.f32.mrf.mxu0
        %v2540 = vpop.f32.mrf.mxu0
        %2541 = vdwg.mxu0
        %2542 = vmatprep.subr.bf16.mxu0 %v1943
        %2543 = vmatpush1.bf16.msra.mxu0 %v1942
        %2544 = vmatprep.subr.bf16.mxu0 %v1939
        %2545 = vmatpush1.bf16.msra.mxu0 %v1938
        %2546 = vmatprep.subr.bf16.mxu0 %v1935
        %2547 = vmatpush1.bf16.msra.mxu0 %v1934
        %2548 = vmatprep.subr.bf16.mxu0 %v1931
        %2549 = vmatpush1.bf16.msra.mxu0 %v1930
        %2550 = vmatprep.subr.bf16.mxu0 %v1927
        %2551 = vmatpush1.bf16.msra.mxu0 %v1926
        %2552 = vmatprep.subr.bf16.mxu0 %v1923
        %2553 = vmatpush1.bf16.msra.mxu0 %v1922
        %2554 = vmatprep.subr.bf16.mxu0 %v1919
        %2555 = vmatpush1.bf16.msra.mxu0 %v1918
        %2556 = vmatprep.subr.bf16.mxu0 %v1915
        %2557 = vmatpush1.bf16.msra.mxu0 %v1914
        %2558 = vmatprep.subr.bf16.mxu0 %v1975
        %2559 = vmatpush2.bf16.msra.mxu0 %v1974
        %2560 = vmatprep.subr.bf16.mxu0 %v1971
        %2561 = vmatpush2.bf16.msra.mxu0 %v1970
        %2562 = vmatprep.subr.bf16.mxu0 %v1967
        %2563 = vmatpush2.bf16.msra.mxu0 %v1966
        %2564 = vmatprep.subr.bf16.mxu0 %v1963
        %2565 = vmatpush2.bf16.msra.mxu0 %v1962
        %2566 = vmatprep.subr.bf16.mxu0 %v1959
        %2567 = vmatpush2.bf16.msra.mxu0 %v1958
        %2568 = vmatprep.subr.bf16.mxu0 %v1955
        %2569 = vmatpush2.bf16.msra.mxu0 %v1954
        %2570 = vmatprep.subr.bf16.mxu0 %v1951
        %2571 = vmatpush2.bf16.msra.mxu0 %v1950
        %2572 = vmatprep.subr.bf16.mxu0 %v1947
        %2573 = vmatpush2.bf16.msra.mxu0 %v1946
        %2574 = vmatprep.mubr.bf16.mxu0 %v735
        %2575 = vmatmul.mubr.bf16.gmra.mxu0 %v734
        %v2576 = vpop.f32.mrf.mxu0
        %v2577 = vadd.f32 %v2536, %v2576
        %v2578 = vpop.f32.mrf.mxu0
        %v2579 = vadd.f32 %v2538, %v2578
        %v2580 = vpop.f32.mrf.mxu0
        %v2581 = vpop.f32.mrf.mxu0
        %2582 = vdwg.mxu0
        %2583 = vmatprep.subr.bf16.mxu0 %v2007
        %2584 = vmatpush1.bf16.msra.mxu0 %v2006
        %2585 = vmatprep.subr.bf16.mxu0 %v2003
        %2586 = vmatpush1.bf16.msra.mxu0 %v2002
        %2587 = vmatprep.subr.bf16.mxu0 %v1999
        %2588 = vmatpush1.bf16.msra.mxu0 %v1998
        %2589 = vmatprep.subr.bf16.mxu0 %v1995
        %2590 = vmatpush1.bf16.msra.mxu0 %v1994
        %2591 = vmatprep.subr.bf16.mxu0 %v1991
        %2592 = vmatpush1.bf16.msra.mxu0 %v1990
        %2593 = vmatprep.subr.bf16.mxu0 %v1987
        %2594 = vmatpush1.bf16.msra.mxu0 %v1986
        %2595 = vmatprep.subr.bf16.mxu0 %v1983
        %2596 = vmatpush1.bf16.msra.mxu0 %v1982
        %2597 = vmatprep.subr.bf16.mxu0 %v1979
        %2598 = vmatpush1.bf16.msra.mxu0 %v1978
        %2599 = vmatprep.subr.bf16.mxu0 %v2039
        %2600 = vmatpush2.bf16.msra.mxu0 %v2038
        %2601 = vmatprep.subr.bf16.mxu0 %v2035
        %2602 = vmatpush2.bf16.msra.mxu0 %v2034
        %2603 = vmatprep.subr.bf16.mxu0 %v2031
        %2604 = vmatpush2.bf16.msra.mxu0 %v2030
        %2605 = vmatprep.subr.bf16.mxu0 %v2027
        %2606 = vmatpush2.bf16.msra.mxu0 %v2026
        %2607 = vmatprep.subr.bf16.mxu0 %v2023
        %2608 = vmatpush2.bf16.msra.mxu0 %v2022
        %2609 = vmatprep.subr.bf16.mxu0 %v2019
        %2610 = vmatpush2.bf16.msra.mxu0 %v2018
        %2611 = vmatprep.subr.bf16.mxu0 %v2015
        %2612 = vmatpush2.bf16.msra.mxu0 %v2014
        %2613 = vmatprep.subr.bf16.mxu0 %v2011
        %2614 = vmatpush2.bf16.msra.mxu0 %v2010
        %2615 = vmatprep.mubr.bf16.mxu0 %v737
        %2616 = vmatmul.mubr.bf16.gmra.mxu0 %v736
        %v2617 = vpop.f32.mrf.mxu0
        %v2618 = vadd.f32 %v2577, %v2617
        %v2619 = vpop.f32.mrf.mxu0
        %v2620 = vadd.f32 %v2579, %v2619
        %v2621 = vpop.f32.mrf.mxu0
        %v2622 = vpop.f32.mrf.mxu0
        %2623 = vdwg.mxu0
        %v2624 = vxor.u32 %v2454, 2147483648
        %v2625 = vxor.u32 %v2456, 2147483648
        %v2626 = vxor.u32 %v2618, 2147483648
        %v2627 = vxor.u32 %v2620, 2147483648
        %v2628 = vmul.f32 %v2624, 1.442695
        %v2629 = vpow.pop %v2628
        %v2630 = vmul.f32 %v2625, 1.442695
        %v2631 = vpow.pop %v2630
        %v2632 = vmul.f32 %v2626, 1.442695
        %v2633 = vpow.pop %v2632
        %v2634 = vmul.f32 %v2627, 1.442695
        %v2635 = vpow.pop %v2634
        %v2636 = vadd.f32 %v2629, 1.0
        %v2637 = vadd.f32 %v2631, 1.0
        %v2638 = vadd.f32 %v2633, 1.0
        %v2639 = vadd.f32 %v2635, 1.0
        %v2640 = vrcp.pop %v2636
        %v2641 = vmul.f32 1.0, %v2640
        %v2642 = vrcp.pop %v2637
        %v2643 = vmul.f32 1.0, %v2642
        %v2644 = vrcp.pop %v2638
        %v2645 = vmul.f32 1.0, %v2644
        %v2646 = vrcp.pop %v2639
        %v2647 = vmul.f32 1.0, %v2646
        %2648 = vst [vmem:[%s720] sm:$0xff] %v2641
        %2649 = vst [vmem:[%s720 + $0x8] sm:$0xff] %v2643
        %2650 = vst [vmem:[%s720 + $0x10] sm:$0xff] %v2645
        %2651 = vst [vmem:[%s720 + $0x18] sm:$0xff] %v2647
        %s2652 = smul.u32 4, %s14
        %p2653 = scmp.lt.s32.totalorder %s2652, 31
        %s2654 = scalar_select %p2653, %s2652, 31
        %s2655 = smul.addr %s2654, 8
        %s2656 = scalar_lea.vmem %s3, %s2655
        // Predicated region
        $region56: #{vae_forward.7} parent=50 // pred_check
          %p2657 = pneg %p105
        $region57: #{vae_forward.7} parent=50 // pred_check_branch
          %2659 = sbr.rel (%p2657) target = $region59
        $region58: #{vae_forward.7} parent=50 // pred_region
          %s2660 = smul.u32 4, %s14
        $region59: #{vae_forward.7} parent=50 // pred_fallthru
          _
      $region51: #{vae_forward.7} parent=5 // pred_fallthru
        _
      %p2661 = scmp.le.s32.totalorder 2, %s9
      // Predicated region
      $region60: #{vae_forward.7} parent=5 // pred_check
        %p2662 = pneg %p2661
      $region61: #{vae_forward.7} parent=5 // pred_check_branch
        %2664 = sbr.rel (%p2662) target = $region63
      $region62: #{vae_forward.7} parent=5 // pred_region
        %s2665 = ssub.s32 %s9, 2
        // Predicated region
        $region64: #{vae_forward.7} parent=62 // pred_check
          %p2666 = pneg %p111
        $region65: #{vae_forward.7} parent=62 // pred_check_branch
          %2668 = sbr.rel (%p2666) target = $region67
        $region66: #{vae_forward.7} parent=62 // pred_region
          %s2669 = smul.u32 4, %s15
          %p2670 = scmp.lt.s32.totalorder %s2669, 31
          %s2671 = scalar_select %p2670, %s2669, 31
          %s2672 = smul.addr %s2671, 8
          %s2673 = scalar_lea.vmem %s3, %s2672
        $region67: #{vae_forward.7} parent=62 // pred_fallthru
          _
      $region63: #{vae_forward.7} parent=5 // pred_fallthru
        _
    $region6: #{vae_forward.7} parent=1 // loop_footer
      %s13 = sadd.s32 1, %s9
    $region7: #{vae_forward.7} parent=1 // loop_footer_branch
      %8 = sbr.rel target = $region3
    $region8: #{vae_forward.7} parent=1 // loop_exit
      _

// kernel: vae_forward.4
$region0: #{vae_forward.4}
  #allocation0 [shape = 'u32[]', space=smem, size = 0x4, offset = 0x4, fixed_abs, tag = 'smem constant byte address 0x4 - core index']
  #allocation1 [shape = 'u32[144,128]{1,0:T(1,128)}', space=vmem, size = 0x12000, scoped, tag = 'internal scratch']
  %s0 = inlined_call_operand.vmem [shape: f32[8,4096], index: 0, kind: input, shape index: {}]
  %s1 = inlined_call_operand.hbm [shape: bf16[4096,1024], index: 1, kind: input, shape index: {}]
  %s2 = inlined_call_operand.hbm [shape: f32[1,1024], index: 2, kind: input, shape index: {}]
  %s3 = inlined_call_operand.vmem [shape: f32[8,1024], index: 3, kind: output, shape index: {}]
  %s4 = sld [smem:[#allocation0]]
  $region53: #{vae_forward.4} parent=0
    _
  %s6 = ssub.s32 1, %s4
  %s7 = scalar_select 0, %s6, %s4
  $region1: #{vae_forward.4} parent=0
    #allocation2 [shape = 'u8[8388608]{0}', space=vmem, size = 0x800000, scoped, tag = 'input window, operand 1']
    #allocation3 [shape = 's32[2]{0}', space=sflag, size = 0x8, scoped, tag = 'scoped memory for vae_forward.4']
    #allocation4 [shape = 'u8[4096]{0}', space=vmem, size = 0x1000, scoped, tag = 'input window, operand 2']
    #allocation5 [shape = 's32[2]{0}', space=sflag, size = 0x8, scoped, tag = 'scoped memory for vae_forward.4']
    %8 = vsyncpa [#allocation3], 0
    %s9 = scalar_lea.sflag [#allocation3], 1
    %10 = vsyncpa %s9, 0
    %11 = vsyncpa [#allocation5], 0
    %s12 = scalar_lea.sflag [#allocation5], 1
    %13 = vsyncpa %s12, 0
    loop: start=0, step=1, limit=4
    $region2: #{vae_forward.4} parent=1 // loop_pre_header
      _
    $region3: #{vae_forward.4} parent=1 // loop_header
      %s15 = sphi 0, %s19
      %p16 = scmp.ge.s32.totalorder %s15, 4
      %s23 = sphi 0, %s23
      %s25 = sphi 0, %s23
      %s26 = sphi 0, %s25
      %s40 = sphi 0, %s26
      %s46 = sphi 0, %s48
      %s49 = sphi 0, %s46
      %s50 = sphi 0, %s49
      %s66 = sphi 0, %s50
      %s72 = sphi 0, %s74
      %s75 = sphi 0, %s72
      %s76 = sphi 0, %s75
      %s92 = sphi 0, %s76
      %s98 = sphi 0, %s100
      %s101 = sphi 0, %s98
      %s102 = sphi 0, %s101
      %s118 = sphi 0, %s102
    $region4: #{vae_forward.4} parent=1 // loop_header_branch
      %18 = sbr.rel (%p16) target = $region8
    $region5: #{vae_forward.4} parent=1 // loop_body
      %s20 = ssub.s32 %s15, 1
      %s21 = ssub.s32 %s15, 2
      %s22 = sadd.s32 %s15, 1
      %s24 = sadd.s32 %s23, 1
      %p27 = scmp.eq.s32.totalorder %s15, 1
      %p28 = scmp.ne.s32.totalorder %s23, %s25
      %p29 = scmp.eq.s32.totalorder %s15, 0
      %p30 = por %p28, %p29
      %p31 = scmp.ne.s32.totalorder %s23, %s25
      %p32 = scmp.eq.s32.totalorder %s20, 1
      %p33 = por %p31, %p32
      %p34 = scmp.ne.s32.totalorder %s25, %s26
      %p35 = scmp.eq.s32.totalorder %s20, 0
      %p36 = por %p34, %p35
      %p37 = scmp.ne.s32.totalorder %s25, %s26
      %p38 = scmp.eq.s32.totalorder %s21, 1
      %p39 = por %p37, %p38
      %p41 = scmp.ne.s32.totalorder %s26, %s40
      %p42 = scmp.eq.s32.totalorder %s21, 0
      %p43 = por %p41, %p42
      %s44 = ssub.s32 %s15, %s22
      %p45 = scmp.eq.s32.totalorder %s44, 0
      %s47 = sadd.s32 %s46, 1
      %s48 = scalar_select %p45, %s46, %s47
      %p51 = pneg %p45
      %p52 = scmp.eq.s32.totalorder %s15, 1
      %p53 = por %p51, %p52
      %p54 = scmp.ne.s32.totalorder %s46, %s49
      %p55 = scmp.eq.s32.totalorder %s15, 0
      %p56 = por %p54, %p55
      %p57 = scmp.ne.s32.totalorder %s46, %s49
      %p58 = scmp.eq.s32.totalorder %s20, 1
      %p59 = por %p57, %p58
      %p60 = scmp.ne.s32.totalorder %s49, %s50
      %p61 = scmp.eq.s32.totalorder %s20, 0
      %p62 = por %p60, %p61
      %p63 = scmp.ne.s32.totalorder %s49, %s50
      %p64 = scmp.eq.s32.totalorder %s21, 1
      %p65 = por %p63, %p64
      %p67 = scmp.ne.s32.totalorder %s50, %s66
      %p68 = scmp.eq.s32.totalorder %s21, 0
      %p69 = por %p67, %p68
      %s70 = ssub.s32 %s15, %s22
      %p71 = scmp.eq.s32.totalorder %s70, 0
      %s73 = sadd.s32 %s72, 1
      %s74 = scalar_select %p71, %s72, %s73
      %p77 = pneg %p71
      %p78 = scmp.eq.s32.totalorder %s15, 1
      %p79 = por %p77, %p78
      %p80 = scmp.ne.s32.totalorder %s72, %s75
      %p81 = scmp.eq.s32.totalorder %s15, 0
      %p82 = por %p80, %p81
      %p83 = scmp.ne.s32.totalorder %s72, %s75
      %p84 = scmp.eq.s32.totalorder %s20, 1
      %p85 = por %p83, %p84
      %p86 = scmp.ne.s32.totalorder %s75, %s76
      %p87 = scmp.eq.s32.totalorder %s20, 0
      %p88 = por %p86, %p87
      %p89 = scmp.ne.s32.totalorder %s75, %s76
      %p90 = scmp.eq.s32.totalorder %s21, 1
      %p91 = por %p89, %p90
      %p93 = scmp.ne.s32.totalorder %s76, %s92
      %p94 = scmp.eq.s32.totalorder %s21, 0
      %p95 = por %p93, %p94
      %s96 = ssub.s32 %s15, %s22
      %p97 = scmp.eq.s32.totalorder %s96, 0
      %s99 = sadd.s32 %s98, 1
      %s100 = scalar_select %p97, %s98, %s99
      %p103 = pneg %p97
      %p104 = scmp.eq.s32.totalorder %s15, 1
      %p105 = por %p103, %p104
      %p106 = scmp.ne.s32.totalorder %s98, %s101
      %p107 = scmp.eq.s32.totalorder %s15, 0
      %p108 = por %p106, %p107
      %p109 = scmp.ne.s32.totalorder %s98, %s101
      %p110 = scmp.eq.s32.totalorder %s20, 1
      %p111 = por %p109, %p110
      %p112 = scmp.ne.s32.totalorder %s101, %s102
      %p113 = scmp.eq.s32.totalorder %s20, 0
      %p114 = por %p112, %p113
      %p115 = scmp.ne.s32.totalorder %s101, %s102
      %p116 = scmp.eq.s32.totalorder %s21, 1
      %p117 = por %p115, %p116
      %p119 = scmp.ne.s32.totalorder %s102, %s118
      %p120 = scmp.eq.s32.totalorder %s21, 0
      %p121 = por %p119, %p120
      %p122 = scmp.le.s32.totalorder 1, %s15
      %p123 = scmp.lt.s32.totalorder %s15, 3
      %p124 = pnand %p122, %p123
      %p125 = pneg %p124
      // Predicated region
      $region9: #{vae_forward.4} parent=5 // pred_check
        _
      $region10: #{vae_forward.4} parent=5 // pred_check_branch
        %127 = sbr.rel (%p124) target = $region12
      $region11: #{vae_forward.4} parent=5 // pred_region
        %s128 = ssub.s32 %s15, 1
        // Predicated region
        $region13: #{vae_forward.4} parent=11 // pred_check
          %p129 = pneg %p36
        $region14: #{vae_forward.4} parent=11 // pred_check_branch
          %131 = sbr.rel (%p129) target = $region16
        $region15: #{vae_forward.4} parent=11 // pred_region
          _
        $region16: #{vae_forward.4} parent=11 // pred_fallthru
          _
      $region12: #{vae_forward.4} parent=5 // pred_fallthru
        _
      %p132 = scmp.lt.s32.totalorder %s15, 2
      // Predicated region
      $region17: #{vae_forward.4} parent=5 // pred_check
        %p133 = pneg %p132
      $region18: #{vae_forward.4} parent=5 // pred_check_branch
        %135 = sbr.rel (%p133) target = $region20
      $region19: #{vae_forward.4} parent=5 // pred_region
        // Predicated region
        $region21: #{vae_forward.4} parent=19 // pred_check
          %p136 = pneg %p56
        $region22: #{vae_forward.4} parent=19 // pred_check_branch
          %138 = sbr.rel (%p136) target = $region24
        $region23: #{vae_forward.4} parent=19 // pred_region
          %s139 = sand.u32 %s46, 1
          %s140 = scalar_lea.sflag [#allocation3], %s139
          %s141 = sand.u32 %s46, 1
          %s142 = smul.addr %s141, 8192
          %s143 = scalar_lea.vmem [#allocation2], %s142
          %s144 = smul.u32 4, %s15
          %s146 = ssub.s32 131072, 131072
          %147 = vsyncadd %s140, %s146
          %s148 = smul.addr %s144, 64
          %s149 = scalar_lea.hbm %s1, %s148
          %s150 = sshll.u32 %s143, 4
          %s151 = int_to_ptr.vmem [resolvable:$true] %s150
          %156 = dma.hbm_to_vmem [thread:$0]  %s149, 131072, %s151, %s140, 512, 256, 16
        $region24: #{vae_forward.4} parent=19 // pred_fallthru
          _
        // Predicated region
        $region25: #{vae_forward.4} parent=19 // pred_check
          %p157 = pneg %p82
        $region26: #{vae_forward.4} parent=19 // pred_check_branch
          %159 = sbr.rel (%p157) target = $region28
        $region27: #{vae_forward.4} parent=19 // pred_region
          %s160 = sand.u32 %s72, 1
          %s161 = scalar_lea.sflag [#allocation5], %s160
          %s162 = sand.u32 %s72, 1
          %s163 = smul.addr %s162, 4
          %s164 = scalar_lea.vmem [#allocation4], %s163
          %s165 = smul.u32 4, %s15
          %s167 = ssub.s32 64, 64
          %168 = vsyncadd %s161, %s167
          %s169 = smul.addr %s165, 16
          %s170 = scalar_lea.hbm %s2, %s169
          %s172 = sshll.u32 %s164, 4
          %s173 = int_to_ptr.vmem [resolvable:$true] %s172
          %175 = dma.hbm_to_vmem [thread:$0]  %s170, 64, %s173, %s161
        $region28: #{vae_forward.4} parent=19 // pred_fallthru
          _
      $region20: #{vae_forward.4} parent=5 // pred_fallthru
        _
      %p176 = scmp.le.s32.totalorder 1, %s15
      %p177 = scmp.lt.s32.totalorder %s15, 3
      %p178 = pnand %p176, %p177
      %p179 = pneg %p178
      // Predicated region
      $region29: #{vae_forward.4} parent=5 // pred_check
        _
      $region30: #{vae_forward.4} parent=5 // pred_check_branch
        %181 = sbr.rel (%p178) target = $region32
      $region31: #{vae_forward.4} parent=5 // pred_region
        %s182 = ssub.s32 %s15, 1
        %s183 = sand.u32 %s49, 1
        %s184 = scalar_lea.sflag [#allocation3], %s183
        %s185 = sand.u32 %s49, 1
        %s186 = smul.addr %s185, 8192
        %s187 = scalar_lea.vmem [#allocation2], %s186
        // Predicated region
        $region33: #{vae_forward.4} parent=31 // pred_check
          %p188 = pneg %p62
        $region34: #{vae_forward.4} parent=31 // pred_check_branch
          %190 = sbr.rel (%p188) target = $region36
        $region35: #{vae_forward.4} parent=31 // pred_region
          %191 = dma.done %s184, 131072
        $region36: #{vae_forward.4} parent=31 // pred_fallthru
          _
        %s192 = sand.u32 %s75, 1
        %s193 = scalar_lea.sflag [#allocation5], %s192
        %s194 = sand.u32 %s75, 1
        %s195 = smul.addr %s194, 4
        %s196 = scalar_lea.vmem [#allocation4], %s195
        // Predicated region
        $region37: #{vae_forward.4} parent=31 // pred_check
          %p197 = pneg %p88
        $region38: #{vae_forward.4} parent=31 // pred_check_branch
          %199 = sbr.rel (%p197) target = $region40
        $region39: #{vae_forward.4} parent=31 // pred_region
          %200 = dma.done %s193, 64
        $region40: #{vae_forward.4} parent=31 // pred_fallthru
          _
        %p201 = pneg %p36
        %p202 = pneg %p33
        %s203 = sand.u32 %s49, 1
        %s204 = scalar_lea.sflag [#allocation3], %s203
        %s205 = sand.u32 %s49, 1
        %s206 = smul.addr %s205, 8192
        %s207 = scalar_lea.vmem [#allocation2], %s206
        %p208 = pneg %p62
        %p209 = pneg %p59
        %s210 = sand.u32 %s75, 1
        %s211 = scalar_lea.sflag [#allocation5], %s210
        %s212 = sand.u32 %s75, 1
        %s213 = smul.addr %s212, 4
        %s214 = scalar_lea.vmem [#allocation4], %s213
        %p215 = pneg %p88
        %p216 = pneg %p85
        %p217 = pneg %p114
        %p218 = pneg %p111
        %s219 = smul.u32 4, %s20
        %p220 = scmp.lt.s32.totalorder %s219, 7
        %s221 = scalar_select %p220, %s219, 7
        %s222 = smul.addr %s221, 8
        %s223 = scalar_lea.vmem %s3, %s222
        %s224 = smul.u32 4, %s20
        %s225 = smul.u32 4, %s20
        %s226 = smul.u32 4, %s20
        %p227 = scmp.lt.s32.totalorder %s226, 7
        %s228 = scalar_select %p227, %s226, 7
        %s229 = smul.addr %s228, 8
        %s230 = scalar_lea.vmem %s3, %s229
        %s231 = smul.u32 4, %s20
        %v232 = vld [vmem:[%s0] sm:$0xff]
        %v233 = vld [vmem:[%s0 + $0x8] sm:$0xff]
        %v234 = vld [vmem:[%s0 + $0x10] sm:$0xff]
        %v235 = vld [vmem:[%s0 + $0x18] sm:$0xff]
        %v236 = vld [vmem:[%s0 + $0x20] sm:$0xff]
        %v237 = vld [vmem:[%s0 + $0x28] sm:$0xff]
        %v238 = vld [vmem:[%s0 + $0x30] sm:$0xff]
        %v239 = vld [vmem:[%s0 + $0x38] sm:$0xff]
        %v240 = vld [vmem:[%s0 + $0x40] sm:$0xff]
        %v241 = vld [vmem:[%s0 + $0x48] sm:$0xff]
        %v242 = vld [vmem:[%s0 + $0x50] sm:$0xff]
        %v243 = vld [vmem:[%s0 + $0x58] sm:$0xff]
        %v244 = vld [vmem:[%s0 + $0x60] sm:$0xff]
        %v245 = vld [vmem:[%s0 + $0x68] sm:$0xff]
        %v246 = vld [vmem:[%s0 + $0x70] sm:$0xff]
        %v247 = vld [vmem:[%s0 + $0x78] sm:$0xff]
        %v248 = vld [vmem:[%s0 + $0x80] sm:$0xff]
        %v249 = vld [vmem:[%s0 + $0x88] sm:$0xff]
        %v250 = vld [vmem:[%s0 + $0x90] sm:$0xff]
        %v251 = vld [vmem:[%s0 + $0x98] sm:$0xff]
        %v252 = vld [vmem:[%s0 + $0xa0] sm:$0xff]
        %v253 = vld [vmem:[%s0 + $0xa8] sm:$0xff]
        %v254 = vld [vmem:[%s0 + $0xb0] sm:$0xff]
        %v255 = vld [vmem:[%s0 + $0xb8] sm:$0xff]
        %v256 = vld [vmem:[%s0 + $0xc0] sm:$0xff]
        %v257 = vld [vmem:[%s0 + $0xc8] sm:$0xff]
        %v258 = vld [vmem:[%s0 + $0xd0] sm:$0xff]
        %v259 = vld [vmem:[%s0 + $0xd8] sm:$0xff]
        %v260 = vld [vmem:[%s0 + $0xe0] sm:$0xff]
        %v261 = vld [vmem:[%s0 + $0xe8] sm:$0xff]
        %v262 = vld [vmem:[%s0 + $0xf0] sm:$0xff]
        %v263 = vld [vmem:[%s0 + $0xf8] sm:$0xff]
        %v264 = vpack.c.bf16 %v232, %v232
        %v265 = vpack.c.bf16 %v233, %v233
        %v266 = vpack.c.bf16 %v234, %v234
        %v267 = vpack.c.bf16 %v235, %v235
        %v268 = vpack.c.bf16 %v236, %v236
        %v269 = vpack.c.bf16 %v237, %v237
        %v270 = vpack.c.bf16 %v238, %v238
        %v271 = vpack.c.bf16 %v239, %v239
        %v272 = vpack.c.bf16 %v240, %v240
        %v273 = vpack.c.bf16 %v241, %v241
        %v274 = vpack.c.bf16 %v242, %v242
        %v275 = vpack.c.bf16 %v243, %v243
        %v276 = vpack.c.bf16 %v244, %v244
        %v277 = vpack.c.bf16 %v245, %v245
        %v278 = vpack.c.bf16 %v246, %v246
        %v279 = vpack.c.bf16 %v247, %v247
        %v280 = vpack.c.bf16 %v248, %v248
        %v281 = vpack.c.bf16 %v249, %v249
        %v282 = vpack.c.bf16 %v250, %v250
        %v283 = vpack.c.bf16 %v251, %v251
        %v284 = vpack.c.bf16 %v252, %v252
        %v285 = vpack.c.bf16 %v253, %v253
        %v286 = vpack.c.bf16 %v254, %v254
        %v287 = vpack.c.bf16 %v255, %v255
        %v288 = vpack.c.bf16 %v256, %v256
        %v289 = vpack.c.bf16 %v257, %v257
        %v290 = vpack.c.bf16 %v258, %v258
        %v291 = vpack.c.bf16 %v259, %v259
        %v292 = vpack.c.bf16 %v260, %v260
        %v293 = vpack.c.bf16 %v261, %v261
        %v294 = vpack.c.bf16 %v262, %v262
        %v295 = vpack.c.bf16 %v263, %v263
        %v296 = vld [vmem:[%s187] sm:$0xff]
        %v297 = vld [vmem:[%s187 + $0x8] sm:$0xff]
        %v298 = vld [vmem:[%s187 + $0x10] sm:$0xff]
        %v299 = vld [vmem:[%s187 + $0x18] sm:$0xff]
        %v300 = vld [vmem:[%s187 + $0x20] sm:$0xff]
        %v301 = vld [vmem:[%s187 + $0x28] sm:$0xff]
        %v302 = vld [vmem:[%s187 + $0x30] sm:$0xff]
        %v303 = vld [vmem:[%s187 + $0x38] sm:$0xff]
        %v304 = vld [vmem:[%s187 + $0x40] sm:$0xff]
        %v305 = vld [vmem:[%s187 + $0x48] sm:$0xff]
        %v306 = vld [vmem:[%s187 + $0x50] sm:$0xff]
        %v307 = vld [vmem:[%s187 + $0x58] sm:$0xff]
        %v308 = vld [vmem:[%s187 + $0x60] sm:$0xff]
        %v309 = vld [vmem:[%s187 + $0x68] sm:$0xff]
        %v310 = vld [vmem:[%s187 + $0x70] sm:$0xff]
        %v311 = vld [vmem:[%s187 + $0x78] sm:$0xff]
        %v312 = vld [vmem:[%s187 + $0x80] sm:$0xff]
        %v313 = vld [vmem:[%s187 + $0x88] sm:$0xff]
        %v314 = vld [vmem:[%s187 + $0x90] sm:$0xff]
        %v315 = vld [vmem:[%s187 + $0x98] sm:$0xff]
        %v316 = vld [vmem:[%s187 + $0xa0] sm:$0xff]
        %v317 = vld [vmem:[%s187 + $0xa8] sm:$0xff]
        %v318 = vld [vmem:[%s187 + $0xb0] sm:$0xff]
        %v319 = vld [vmem:[%s187 + $0xb8] sm:$0xff]
        %v320 = vld [vmem:[%s187 + $0xc0] sm:$0xff]
        %v321 = vld [vmem:[%s187 + $0xc8] sm:$0xff]
        %v322 = vld [vmem:[%s187 + $0xd0] sm:$0xff]
        %v323 = vld [vmem:[%s187 + $0xd8] sm:$0xff]
        %v324 = vld [vmem:[%s187 + $0xe0] sm:$0xff]
        %v325 = vld [vmem:[%s187 + $0xe8] sm:$0xff]
        %v326 = vld [vmem:[%s187 + $0xf0] sm:$0xff]
        %v327 = vld [vmem:[%s187 + $0xf8] sm:$0xff]
        %v328 = vld [vmem:[%s187 + $0x100] sm:$0xff]
        %v329 = vld [vmem:[%s187 + $0x108] sm:$0xff]
        %v330 = vld [vmem:[%s187 + $0x110] sm:$0xff]
        %v331 = vld [vmem:[%s187 + $0x118] sm:$0xff]
        %v332 = vld [vmem:[%s187 + $0x120] sm:$0xff]
        %v333 = vld [vmem:[%s187 + $0x128] sm:$0xff]
        %v334 = vld [vmem:[%s187 + $0x130] sm:$0xff]
        %v335 = vld [vmem:[%s187 + $0x138] sm:$0xff]
        %v336 = vld [vmem:[%s187 + $0x140] sm:$0xff]
        %v337 = vld [vmem:[%s187 + $0x148] sm:$0xff]
        %v338 = vld [vmem:[%s187 + $0x150] sm:$0xff]
        %v339 = vld [vmem:[%s187 + $0x158] sm:$0xff]
        %v340 = vld [vmem:[%s187 + $0x160] sm:$0xff]
        %v341 = vld [vmem:[%s187 + $0x168] sm:$0xff]
        %v342 = vld [vmem:[%s187 + $0x170] sm:$0xff]
        %v343 = vld [vmem:[%s187 + $0x178] sm:$0xff]
        %v344 = vld [vmem:[%s187 + $0x180] sm:$0xff]
        %v345 = vld [vmem:[%s187 + $0x188] sm:$0xff]
        %v346 = vld [vmem:[%s187 + $0x190] sm:$0xff]
        %v347 = vld [vmem:[%s187 + $0x198] sm:$0xff]
        %v348 = vld [vmem:[%s187 + $0x1a0] sm:$0xff]
        %v349 = vld [vmem:[%s187 + $0x1a8] sm:$0xff]
        %v350 = vld [vmem:[%s187 + $0x1b0] sm:$0xff]
        %v351 = vld [vmem:[%s187 + $0x1b8] sm:$0xff]
        %v352 = vld [vmem:[%s187 + $0x1c0] sm:$0xff]
        %v353 = vld [vmem:[%s187 + $0x1c8] sm:$0xff]
        %v354 = vld [vmem:[%s187 + $0x1d0] sm:$0xff]
        %v355 = vld [vmem:[%s187 + $0x1d8] sm:$0xff]
        %v356 = vld [vmem:[%s187 + $0x1e0] sm:$0xff]
        %v357 = vld [vmem:[%s187 + $0x1e8] sm:$0xff]
        %v358 = vld [vmem:[%s187 + $0x1f0] sm:$0xff]
        %v359 = vld [vmem:[%s187 + $0x1f8] sm:$0xff]
        %v360 = vld [vmem:[%s187 + $0x200] sm:$0xff]
        %v361 = vld [vmem:[%s187 + $0x208] sm:$0xff]
        %v362 = vld [vmem:[%s187 + $0x210] sm:$0xff]
        %v363 = vld [vmem:[%s187 + $0x218] sm:$0xff]
        %v364 = vld [vmem:[%s187 + $0x220] sm:$0xff]
        %v365 = vld [vmem:[%s187 + $0x228] sm:$0xff]
        %v366 = vld [vmem:[%s187 + $0x230] sm:$0xff]
        %v367 = vld [vmem:[%s187 + $0x238] sm:$0xff]
        %v368 = vld [vmem:[%s187 + $0x240] sm:$0xff]
        %v369 = vld [vmem:[%s187 + $0x248] sm:$0xff]
        %v370 = vld [vmem:[%s187 + $0x250] sm:$0xff]
        %v371 = vld [vmem:[%s187 + $0x258] sm:$0xff]
        %v372 = vld [vmem:[%s187 + $0x260] sm:$0xff]
        %v373 = vld [vmem:[%s187 + $0x268] sm:$0xff]
        %v374 = vld [vmem:[%s187 + $0x270] sm:$0xff]
        %v375 = vld [vmem:[%s187 + $0x278] sm:$0xff]
        %v376 = vld [vmem:[%s187 + $0x280] sm:$0xff]
        %v377 = vld [vmem:[%s187 + $0x288] sm:$0xff]
        %v378 = vld [vmem:[%s187 + $0x290] sm:$0xff]
        %v379 = vld [vmem:[%s187 + $0x298] sm:$0xff]
        %v380 = vld [vmem:[%s187 + $0x2a0] sm:$0xff]
        %v381 = vld [vmem:[%s187 + $0x2a8] sm:$0xff]
        %v382 = vld [vmem:[%s187 + $0x2b0] sm:$0xff]
        %v383 = vld [vmem:[%s187 + $0x2b8] sm:$0xff]
        %v384 = vld [vmem:[%s187 + $0x2c0] sm:$0xff]
        %v385 = vld [vmem:[%s187 + $0x2c8] sm:$0xff]
        %v386 = vld [vmem:[%s187 + $0x2d0] sm:$0xff]
        %v387 = vld [vmem:[%s187 + $0x2d8] sm:$0xff]
        %v388 = vld [vmem:[%s187 + $0x2e0] sm:$0xff]
        %v389 = vld [vmem:[%s187 + $0x2e8] sm:$0xff]
        %v390 = vld [vmem:[%s187 + $0x2f0] sm:$0xff]
        %v391 = vld [vmem:[%s187 + $0x2f8] sm:$0xff]
        %v392 = vld [vmem:[%s187 + $0x300] sm:$0xff]
        %v393 = vld [vmem:[%s187 + $0x308] sm:$0xff]
        %v394 = vld [vmem:[%s187 + $0x310] sm:$0xff]
        %v395 = vld [vmem:[%s187 + $0x318] sm:$0xff]
        %v396 = vld [vmem:[%s187 + $0x320] sm:$0xff]
        %v397 = vld [vmem:[%s187 + $0x328] sm:$0xff]
        %v398 = vld [vmem:[%s187 + $0x330] sm:$0xff]
        %v399 = vld [vmem:[%s187 + $0x338] sm:$0xff]
        %v400 = vld [vmem:[%s187 + $0x340] sm:$0xff]
        %v401 = vld [vmem:[%s187 + $0x348] sm:$0xff]
        %v402 = vld [vmem:[%s187 + $0x350] sm:$0xff]
        %v403 = vld [vmem:[%s187 + $0x358] sm:$0xff]
        %v404 = vld [vmem:[%s187 + $0x360] sm:$0xff]
        %v405 = vld [vmem:[%s187 + $0x368] sm:$0xff]
        %v406 = vld [vmem:[%s187 + $0x370] sm:$0xff]
        %v407 = vld [vmem:[%s187 + $0x378] sm:$0xff]
        %v408 = vld [vmem:[%s187 + $0x380] sm:$0xff]
        %v409 = vld [vmem:[%s187 + $0x388] sm:$0xff]
        %v410 = vld [vmem:[%s187 + $0x390] sm:$0xff]
        %v411 = vld [vmem:[%s187 + $0x398] sm:$0xff]
        %v412 = vld [vmem:[%s187 + $0x3a0] sm:$0xff]
        %v413 = vld [vmem:[%s187 + $0x3a8] sm:$0xff]
        %v414 = vld [vmem:[%s187 + $0x3b0] sm:$0xff]
        %v415 = vld [vmem:[%s187 + $0x3b8] sm:$0xff]
        %v416 = vld [vmem:[%s187 + $0x3c0] sm:$0xff]
        %v417 = vld [vmem:[%s187 + $0x3c8] sm:$0xff]
        %v418 = vld [vmem:[%s187 + $0x3d0] sm:$0xff]
        %v419 = vld [vmem:[%s187 + $0x3d8] sm:$0xff]
        %v420 = vld [vmem:[%s187 + $0x3e0] sm:$0xff]
        %v421 = vld [vmem:[%s187 + $0x3e8] sm:$0xff]
        %v422 = vld [vmem:[%s187 + $0x3f0] sm:$0xff]
        %v423 = vld [vmem:[%s187 + $0x3f8] sm:$0xff]
        %v424 = vld [vmem:[%s187 + $0x400] sm:$0xff]
        %v425 = vld [vmem:[%s187 + $0x408] sm:$0xff]
        %v426 = vld [vmem:[%s187 + $0x410] sm:$0xff]
        %v427 = vld [vmem:[%s187 + $0x418] sm:$0xff]
        %v428 = vld [vmem:[%s187 + $0x420] sm:$0xff]
        %v429 = vld [vmem:[%s187 + $0x428] sm:$0xff]
        %v430 = vld [vmem:[%s187 + $0x430] sm:$0xff]
        %v431 = vld [vmem:[%s187 + $0x438] sm:$0xff]
        %v432 = vld [vmem:[%s187 + $0x440] sm:$0xff]
        %v433 = vld [vmem:[%s187 + $0x448] sm:$0xff]
        %v434 = vld [vmem:[%s187 + $0x450] sm:$0xff]
        %v435 = vld [vmem:[%s187 + $0x458] sm:$0xff]
        %v436 = vld [vmem:[%s187 + $0x460] sm:$0xff]
        %v437 = vld [vmem:[%s187 + $0x468] sm:$0xff]
        %v438 = vld [vmem:[%s187 + $0x470] sm:$0xff]
        %v439 = vld [vmem:[%s187 + $0x478] sm:$0xff]
        %v440 = vld [vmem:[%s187 + $0x480] sm:$0xff]
        %v441 = vld [vmem:[%s187 + $0x488] sm:$0xff]
        %v442 = vld [vmem:[%s187 + $0x490] sm:$0xff]
        %v443 = vld [vmem:[%s187 + $0x498] sm:$0xff]
        %v444 = vld [vmem:[%s187 + $0x4a0] sm:$0xff]
        %v445 = vld [vmem:[%s187 + $0x4a8] sm:$0xff]
        %v446 = vld [vmem:[%s187 + $0x4b0] sm:$0xff]
        %v447 = vld [vmem:[%s187 + $0x4b8] sm:$0xff]
        %v448 = vld [vmem:[%s187 + $0x4c0] sm:$0xff]
        %v449 = vld [vmem:[%s187 + $0x4c8] sm:$0xff]
        %v450 = vld [vmem:[%s187 + $0x4d0] sm:$0xff]
        %v451 = vld [vmem:[%s187 + $0x4d8] sm:$0xff]
        %v452 = vld [vmem:[%s187 + $0x4e0] sm:$0xff]
        %v453 = vld [vmem:[%s187 + $0x4e8] sm:$0xff]
        %v454 = vld [vmem:[%s187 + $0x4f0] sm:$0xff]
        %v455 = vld [vmem:[%s187 + $0x4f8] sm:$0xff]
        %v456 = vld [vmem:[%s187 + $0x500] sm:$0xff]
        %v457 = vld [vmem:[%s187 + $0x508] sm:$0xff]
        %v458 = vld [vmem:[%s187 + $0x510] sm:$0xff]
        %v459 = vld [vmem:[%s187 + $0x518] sm:$0xff]
        %v460 = vld [vmem:[%s187 + $0x520] sm:$0xff]
        %v461 = vld [vmem:[%s187 + $0x528] sm:$0xff]
        %v462 = vld [vmem:[%s187 + $0x530] sm:$0xff]
        %v463 = vld [vmem:[%s187 + $0x538] sm:$0xff]
        %v464 = vld [vmem:[%s187 + $0x540] sm:$0xff]
        %v465 = vld [vmem:[%s187 + $0x548] sm:$0xff]
        %v466 = vld [vmem:[%s187 + $0x550] sm:$0xff]
        %v467 = vld [vmem:[%s187 + $0x558] sm:$0xff]
        %v468 = vld [vmem:[%s187 + $0x560] sm:$0xff]
        %v469 = vld [vmem:[%s187 + $0x568] sm:$0xff]
        %v470 = vld [vmem:[%s187 + $0x570] sm:$0xff]
        %v471 = vld [vmem:[%s187 + $0x578] sm:$0xff]
        %v472 = vld [vmem:[%s187 + $0x580] sm:$0xff]
        %v473 = vld [vmem:[%s187 + $0x588] sm:$0xff]
        %v474 = vld [vmem:[%s187 + $0x590] sm:$0xff]
        %v475 = vld [vmem:[%s187 + $0x598] sm:$0xff]
        %v476 = vld [vmem:[%s187 + $0x5a0] sm:$0xff]
        %v477 = vld [vmem:[%s187 + $0x5a8] sm:$0xff]
        %v478 = vld [vmem:[%s187 + $0x5b0] sm:$0xff]
        %v479 = vld [vmem:[%s187 + $0x5b8] sm:$0xff]
        %v480 = vld [vmem:[%s187 + $0x5c0] sm:$0xff]
        %v481 = vld [vmem:[%s187 + $0x5c8] sm:$0xff]
        %v482 = vld [vmem:[%s187 + $0x5d0] sm:$0xff]
        %v483 = vld [vmem:[%s187 + $0x5d8] sm:$0xff]
        %v484 = vld [vmem:[%s187 + $0x5e0] sm:$0xff]
        %v485 = vld [vmem:[%s187 + $0x5e8] sm:$0xff]
        %v486 = vld [vmem:[%s187 + $0x5f0] sm:$0xff]
        %v487 = vld [vmem:[%s187 + $0x5f8] sm:$0xff]
        %v488 = vld [vmem:[%s187 + $0x600] sm:$0xff]
        %v489 = vld [vmem:[%s187 + $0x608] sm:$0xff]
        %v490 = vld [vmem:[%s187 + $0x610] sm:$0xff]
        %v491 = vld [vmem:[%s187 + $0x618] sm:$0xff]
        %v492 = vld [vmem:[%s187 + $0x620] sm:$0xff]
        %v493 = vld [vmem:[%s187 + $0x628] sm:$0xff]
        %v494 = vld [vmem:[%s187 + $0x630] sm:$0xff]
        %v495 = vld [vmem:[%s187 + $0x638] sm:$0xff]
        %v496 = vld [vmem:[%s187 + $0x640] sm:$0xff]
        %v497 = vld [vmem:[%s187 + $0x648] sm:$0xff]
        %v498 = vld [vmem:[%s187 + $0x650] sm:$0xff]
        %v499 = vld [vmem:[%s187 + $0x658] sm:$0xff]
        %v500 = vld [vmem:[%s187 + $0x660] sm:$0xff]
        %v501 = vld [vmem:[%s187 + $0x668] sm:$0xff]
        %v502 = vld [vmem:[%s187 + $0x670] sm:$0xff]
        %v503 = vld [vmem:[%s187 + $0x678] sm:$0xff]
        %v504 = vld [vmem:[%s187 + $0x680] sm:$0xff]
        %v505 = vld [vmem:[%s187 + $0x688] sm:$0xff]
        %v506 = vld [vmem:[%s187 + $0x690] sm:$0xff]
        %v507 = vld [vmem:[%s187 + $0x698] sm:$0xff]
        %v508 = vld [vmem:[%s187 + $0x6a0] sm:$0xff]
        %v509 = vld [vmem:[%s187 + $0x6a8] sm:$0xff]
        %v510 = vld [vmem:[%s187 + $0x6b0] sm:$0xff]
        %v511 = vld [vmem:[%s187 + $0x6b8] sm:$0xff]
        %v512 = vld [vmem:[%s187 + $0x6c0] sm:$0xff]
        %v513 = vld [vmem:[%s187 + $0x6c8] sm:$0xff]
        %v514 = vld [vmem:[%s187 + $0x6d0] sm:$0xff]
        %v515 = vld [vmem:[%s187 + $0x6d8] sm:$0xff]
        %v516 = vld [vmem:[%s187 + $0x6e0] sm:$0xff]
        %v517 = vld [vmem:[%s187 + $0x6e8] sm:$0xff]
        %v518 = vld [vmem:[%s187 + $0x6f0] sm:$0xff]
        %v519 = vld [vmem:[%s187 + $0x6f8] sm:$0xff]
        %v520 = vld [vmem:[%s187 + $0x700] sm:$0xff]
        %v521 = vld [vmem:[%s187 + $0x708] sm:$0xff]
        %v522 = vld [vmem:[%s187 + $0x710] sm:$0xff]
        %v523 = vld [vmem:[%s187 + $0x718] sm:$0xff]
        %v524 = vld [vmem:[%s187 + $0x720] sm:$0xff]
        %v525 = vld [vmem:[%s187 + $0x728] sm:$0xff]
        %v526 = vld [vmem:[%s187 + $0x730] sm:$0xff]
        %v527 = vld [vmem:[%s187 + $0x738] sm:$0xff]
        %v528 = vld [vmem:[%s187 + $0x740] sm:$0xff]
        %v529 = vld [vmem:[%s187 + $0x748] sm:$0xff]
        %v530 = vld [vmem:[%s187 + $0x750] sm:$0xff]
        %v531 = vld [vmem:[%s187 + $0x758] sm:$0xff]
        %v532 = vld [vmem:[%s187 + $0x760] sm:$0xff]
        %v533 = vld [vmem:[%s187 + $0x768] sm:$0xff]
        %v534 = vld [vmem:[%s187 + $0x770] sm:$0xff]
        %v535 = vld [vmem:[%s187 + $0x778] sm:$0xff]
        %v536 = vld [vmem:[%s187 + $0x780] sm:$0xff]
        %v537 = vld [vmem:[%s187 + $0x788] sm:$0xff]
        %v538 = vld [vmem:[%s187 + $0x790] sm:$0xff]
        %v539 = vld [vmem:[%s187 + $0x798] sm:$0xff]
        %v540 = vld [vmem:[%s187 + $0x7a0] sm:$0xff]
        %v541 = vld [vmem:[%s187 + $0x7a8] sm:$0xff]
        %v542 = vld [vmem:[%s187 + $0x7b0] sm:$0xff]
        %v543 = vld [vmem:[%s187 + $0x7b8] sm:$0xff]
        %v544 = vld [vmem:[%s187 + $0x7c0] sm:$0xff]
        %v545 = vld [vmem:[%s187 + $0x7c8] sm:$0xff]
        %v546 = vld [vmem:[%s187 + $0x7d0] sm:$0xff]
        %v547 = vld [vmem:[%s187 + $0x7d8] sm:$0xff]
        %v548 = vld [vmem:[%s187 + $0x7e0] sm:$0xff]
        %v549 = vld [vmem:[%s187 + $0x7e8] sm:$0xff]
        %v550 = vld [vmem:[%s187 + $0x7f0] sm:$0xff]
        %v551 = vld [vmem:[%s187 + $0x7f8] sm:$0xff]
        %v552 = vld [vmem:[%s187 + $0x800] sm:$0xff]
        %v553 = vld [vmem:[%s187 + $0x808] sm:$0xff]
        %v554 = vld [vmem:[%s187 + $0x810] sm:$0xff]
        %v555 = vld [vmem:[%s187 + $0x818] sm:$0xff]
        %v556 = vld [vmem:[%s187 + $0x820] sm:$0xff]
        %v557 = vld [vmem:[%s187 + $0x828] sm:$0xff]
        %v558 = vld [vmem:[%s187 + $0x830] sm:$0xff]
        %v559 = vld [vmem:[%s187 + $0x838] sm:$0xff]
        %v560 = vld [vmem:[%s187 + $0x840] sm:$0xff]
        %v561 = vld [vmem:[%s187 + $0x848] sm:$0xff]
        %v562 = vld [vmem:[%s187 + $0x850] sm:$0xff]
        %v563 = vld [vmem:[%s187 + $0x858] sm:$0xff]
        %v564 = vld [vmem:[%s187 + $0x860] sm:$0xff]
        %v565 = vld [vmem:[%s187 + $0x868] sm:$0xff]
        %v566 = vld [vmem:[%s187 + $0x870] sm:$0xff]
        %v567 = vld [vmem:[%s187 + $0x878] sm:$0xff]
        %v568 = vld [vmem:[%s187 + $0x880] sm:$0xff]
        %v569 = vld [vmem:[%s187 + $0x888] sm:$0xff]
        %v570 = vld [vmem:[%s187 + $0x890] sm:$0xff]
        %v571 = vld [vmem:[%s187 + $0x898] sm:$0xff]
        %v572 = vld [vmem:[%s187 + $0x8a0] sm:$0xff]
        %v573 = vld [vmem:[%s187 + $0x8a8] sm:$0xff]
        %v574 = vld [vmem:[%s187 + $0x8b0] sm:$0xff]
        %v575 = vld [vmem:[%s187 + $0x8b8] sm:$0xff]
        %v576 = vld [vmem:[%s187 + $0x8c0] sm:$0xff]
        %v577 = vld [vmem:[%s187 + $0x8c8] sm:$0xff]
        %v578 = vld [vmem:[%s187 + $0x8d0] sm:$0xff]
        %v579 = vld [vmem:[%s187 + $0x8d8] sm:$0xff]
        %v580 = vld [vmem:[%s187 + $0x8e0] sm:$0xff]
        %v581 = vld [vmem:[%s187 + $0x8e8] sm:$0xff]
        %v582 = vld [vmem:[%s187 + $0x8f0] sm:$0xff]
        %v583 = vld [vmem:[%s187 + $0x8f8] sm:$0xff]
        %v584 = vld [vmem:[%s187 + $0x900] sm:$0xff]
        %v585 = vld [vmem:[%s187 + $0x908] sm:$0xff]
        %v586 = vld [vmem:[%s187 + $0x910] sm:$0xff]
        %v587 = vld [vmem:[%s187 + $0x918] sm:$0xff]
        %v588 = vld [vmem:[%s187 + $0x920] sm:$0xff]
        %v589 = vld [vmem:[%s187 + $0x928] sm:$0xff]
        %v590 = vld [vmem:[%s187 + $0x930] sm:$0xff]
        %v591 = vld [vmem:[%s187 + $0x938] sm:$0xff]
        %v592 = vld [vmem:[%s187 + $0x940] sm:$0xff]
        %v593 = vld [vmem:[%s187 + $0x948] sm:$0xff]
        %v594 = vld [vmem:[%s187 + $0x950] sm:$0xff]
        %v595 = vld [vmem:[%s187 + $0x958] sm:$0xff]
        %v596 = vld [vmem:[%s187 + $0x960] sm:$0xff]
        %v597 = vld [vmem:[%s187 + $0x968] sm:$0xff]
        %v598 = vld [vmem:[%s187 + $0x970] sm:$0xff]
        %v599 = vld [vmem:[%s187 + $0x978] sm:$0xff]
        %v600 = vld [vmem:[%s187 + $0x980] sm:$0xff]
        %v601 = vld [vmem:[%s187 + $0x988] sm:$0xff]
        %v602 = vld [vmem:[%s187 + $0x990] sm:$0xff]
        %v603 = vld [vmem:[%s187 + $0x998] sm:$0xff]
        %v604 = vld [vmem:[%s187 + $0x9a0] sm:$0xff]
        %v605 = vld [vmem:[%s187 + $0x9a8] sm:$0xff]
        %v606 = vld [vmem:[%s187 + $0x9b0] sm:$0xff]
        %v607 = vld [vmem:[%s187 + $0x9b8] sm:$0xff]
        %v608 = vld [vmem:[%s187 + $0x9c0] sm:$0xff]
        %v609 = vld [vmem:[%s187 + $0x9c8] sm:$0xff]
        %v610 = vld [vmem:[%s187 + $0x9d0] sm:$0xff]
        %v611 = vld [vmem:[%s187 + $0x9d8] sm:$0xff]
        %v612 = vld [vmem:[%s187 + $0x9e0] sm:$0xff]
        %v613 = vld [vmem:[%s187 + $0x9e8] sm:$0xff]
        %v614 = vld [vmem:[%s187 + $0x9f0] sm:$0xff]
        %v615 = vld [vmem:[%s187 + $0x9f8] sm:$0xff]
        %v616 = vld [vmem:[%s187 + $0xa00] sm:$0xff]
        %v617 = vld [vmem:[%s187 + $0xa08] sm:$0xff]
        %v618 = vld [vmem:[%s187 + $0xa10] sm:$0xff]
        %v619 = vld [vmem:[%s187 + $0xa18] sm:$0xff]
        %v620 = vld [vmem:[%s187 + $0xa20] sm:$0xff]
        %v621 = vld [vmem:[%s187 + $0xa28] sm:$0xff]
        %v622 = vld [vmem:[%s187 + $0xa30] sm:$0xff]
        %v623 = vld [vmem:[%s187 + $0xa38] sm:$0xff]
        %v624 = vld [vmem:[%s187 + $0xa40] sm:$0xff]
        %v625 = vld [vmem:[%s187 + $0xa48] sm:$0xff]
        %v626 = vld [vmem:[%s187 + $0xa50] sm:$0xff]
        %v627 = vld [vmem:[%s187 + $0xa58] sm:$0xff]
        %v628 = vld [vmem:[%s187 + $0xa60] sm:$0xff]
        %v629 = vld [vmem:[%s187 + $0xa68] sm:$0xff]
        %v630 = vld [vmem:[%s187 + $0xa70] sm:$0xff]
        %v631 = vld [vmem:[%s187 + $0xa78] sm:$0xff]
        %v632 = vld [vmem:[%s187 + $0xa80] sm:$0xff]
        %v633 = vld [vmem:[%s187 + $0xa88] sm:$0xff]
        %v634 = vld [vmem:[%s187 + $0xa90] sm:$0xff]
        %v635 = vld [vmem:[%s187 + $0xa98] sm:$0xff]
        %v636 = vld [vmem:[%s187 + $0xaa0] sm:$0xff]
        %v637 = vld [vmem:[%s187 + $0xaa8] sm:$0xff]
        %v638 = vld [vmem:[%s187 + $0xab0] sm:$0xff]
        %v639 = vld [vmem:[%s187 + $0xab8] sm:$0xff]
        %v640 = vld [vmem:[%s187 + $0xac0] sm:$0xff]
        %v641 = vld [vmem:[%s187 + $0xac8] sm:$0xff]
        %v642 = vld [vmem:[%s187 + $0xad0] sm:$0xff]
        %v643 = vld [vmem:[%s187 + $0xad8] sm:$0xff]
        %v644 = vld [vmem:[%s187 + $0xae0] sm:$0xff]
        %v645 = vld [vmem:[%s187 + $0xae8] sm:$0xff]
        %v646 = vld [vmem:[%s187 + $0xaf0] sm:$0xff]
        %v647 = vld [vmem:[%s187 + $0xaf8] sm:$0xff]
        %v648 = vld [vmem:[%s187 + $0xb00] sm:$0xff]
        %v649 = vld [vmem:[%s187 + $0xb08] sm:$0xff]
        %v650 = vld [vmem:[%s187 + $0xb10] sm:$0xff]
        %v651 = vld [vmem:[%s187 + $0xb18] sm:$0xff]
        %v652 = vld [vmem:[%s187 + $0xb20] sm:$0xff]
        %v653 = vld [vmem:[%s187 + $0xb28] sm:$0xff]
        %v654 = vld [vmem:[%s187 + $0xb30] sm:$0xff]
        %v655 = vld [vmem:[%s187 + $0xb38] sm:$0xff]
        %v656 = vld [vmem:[%s187 + $0xb40] sm:$0xff]
        %v657 = vld [vmem:[%s187 + $0xb48] sm:$0xff]
        %v658 = vld [vmem:[%s187 + $0xb50] sm:$0xff]
        %v659 = vld [vmem:[%s187 + $0xb58] sm:$0xff]
        %v660 = vld [vmem:[%s187 + $0xb60] sm:$0xff]
        %v661 = vld [vmem:[%s187 + $0xb68] sm:$0xff]
        %v662 = vld [vmem:[%s187 + $0xb70] sm:$0xff]
        %v663 = vld [vmem:[%s187 + $0xb78] sm:$0xff]
        %v664 = vld [vmem:[%s187 + $0xb80] sm:$0xff]
        %v665 = vld [vmem:[%s187 + $0xb88] sm:$0xff]
        %v666 = vld [vmem:[%s187 + $0xb90] sm:$0xff]
        %v667 = vld [vmem:[%s187 + $0xb98] sm:$0xff]
        %v668 = vld [vmem:[%s187 + $0xba0] sm:$0xff]
        %v669 = vld [vmem:[%s187 + $0xba8] sm:$0xff]
        %v670 = vld [vmem:[%s187 + $0xbb0] sm:$0xff]
        %v671 = vld [vmem:[%s187 + $0xbb8] sm:$0xff]
        %v672 = vld [vmem:[%s187 + $0xbc0] sm:$0xff]
        %v673 = vld [vmem:[%s187 + $0xbc8] sm:$0xff]
        %v674 = vld [vmem:[%s187 + $0xbd0] sm:$0xff]
        %v675 = vld [vmem:[%s187 + $0xbd8] sm:$0xff]
        %v676 = vld [vmem:[%s187 + $0xbe0] sm:$0xff]
        %v677 = vld [vmem:[%s187 + $0xbe8] sm:$0xff]
        %v678 = vld [vmem:[%s187 + $0xbf0] sm:$0xff]
        %v679 = vld [vmem:[%s187 + $0xbf8] sm:$0xff]
        %v680 = vld [vmem:[%s187 + $0xc00] sm:$0xff]
        %v681 = vld [vmem:[%s187 + $0xc08] sm:$0xff]
        %v682 = vld [vmem:[%s187 + $0xc10] sm:$0xff]
        %v683 = vld [vmem:[%s187 + $0xc18] sm:$0xff]
        %v684 = vld [vmem:[%s187 + $0xc20] sm:$0xff]
        %v685 = vld [vmem:[%s187 + $0xc28] sm:$0xff]
        %v686 = vld [vmem:[%s187 + $0xc30] sm:$0xff]
        %v687 = vld [vmem:[%s187 + $0xc38] sm:$0xff]
        %v688 = vld [vmem:[%s187 + $0xc40] sm:$0xff]
        %v689 = vld [vmem:[%s187 + $0xc48] sm:$0xff]
        %v690 = vld [vmem:[%s187 + $0xc50] sm:$0xff]
        %v691 = vld [vmem:[%s187 + $0xc58] sm:$0xff]
        %v692 = vld [vmem:[%s187 + $0xc60] sm:$0xff]
        %v693 = vld [vmem:[%s187 + $0xc68] sm:$0xff]
        %v694 = vld [vmem:[%s187 + $0xc70] sm:$0xff]
        %v695 = vld [vmem:[%s187 + $0xc78] sm:$0xff]
        %v696 = vld [vmem:[%s187 + $0xc80] sm:$0xff]
        %v697 = vld [vmem:[%s187 + $0xc88] sm:$0xff]
        %v698 = vld [vmem:[%s187 + $0xc90] sm:$0xff]
        %v699 = vld [vmem:[%s187 + $0xc98] sm:$0xff]
        %v700 = vld [vmem:[%s187 + $0xca0] sm:$0xff]
        %v701 = vld [vmem:[%s187 + $0xca8] sm:$0xff]
        %v702 = vld [vmem:[%s187 + $0xcb0] sm:$0xff]
        %v703 = vld [vmem:[%s187 + $0xcb8] sm:$0xff]
        %v704 = vld [vmem:[%s187 + $0xcc0] sm:$0xff]
        %v705 = vld [vmem:[%s187 + $0xcc8] sm:$0xff]
        %v706 = vld [vmem:[%s187 + $0xcd0] sm:$0xff]
        %v707 = vld [vmem:[%s187 + $0xcd8] sm:$0xff]
        %v708 = vld [vmem:[%s187 + $0xce0] sm:$0xff]
        %v709 = vld [vmem:[%s187 + $0xce8] sm:$0xff]
        %v710 = vld [vmem:[%s187 + $0xcf0] sm:$0xff]
        %v711 = vld [vmem:[%s187 + $0xcf8] sm:$0xff]
        %v712 = vld [vmem:[%s187 + $0xd00] sm:$0xff]
        %v713 = vld [vmem:[%s187 + $0xd08] sm:$0xff]
        %v714 = vld [vmem:[%s187 + $0xd10] sm:$0xff]
        %v715 = vld [vmem:[%s187 + $0xd18] sm:$0xff]
        %v716 = vld [vmem:[%s187 + $0xd20] sm:$0xff]
        %v717 = vld [vmem:[%s187 + $0xd28] sm:$0xff]
        %v718 = vld [vmem:[%s187 + $0xd30] sm:$0xff]
        %v719 = vld [vmem:[%s187 + $0xd38] sm:$0xff]
        %v720 = vld [vmem:[%s187 + $0xd40] sm:$0xff]
        %v721 = vld [vmem:[%s187 + $0xd48] sm:$0xff]
        %v722 = vld [vmem:[%s187 + $0xd50] sm:$0xff]
        %v723 = vld [vmem:[%s187 + $0xd58] sm:$0xff]
        %v724 = vld [vmem:[%s187 + $0xd60] sm:$0xff]
        %v725 = vld [vmem:[%s187 + $0xd68] sm:$0xff]
        %v726 = vld [vmem:[%s187 + $0xd70] sm:$0xff]
        %v727 = vld [vmem:[%s187 + $0xd78] sm:$0xff]
        %v728 = vld [vmem:[%s187 + $0xd80] sm:$0xff]
        %v729 = vld [vmem:[%s187 + $0xd88] sm:$0xff]
        %v730 = vld [vmem:[%s187 + $0xd90] sm:$0xff]
        %v731 = vld [vmem:[%s187 + $0xd98] sm:$0xff]
        %v732 = vld [vmem:[%s187 + $0xda0] sm:$0xff]
        %v733 = vld [vmem:[%s187 + $0xda8] sm:$0xff]
        %v734 = vld [vmem:[%s187 + $0xdb0] sm:$0xff]
        %v735 = vld [vmem:[%s187 + $0xdb8] sm:$0xff]
        %v736 = vld [vmem:[%s187 + $0xdc0] sm:$0xff]
        %v737 = vld [vmem:[%s187 + $0xdc8] sm:$0xff]
        %v738 = vld [vmem:[%s187 + $0xdd0] sm:$0xff]
        %v739 = vld [vmem:[%s187 + $0xdd8] sm:$0xff]
        %v740 = vld [vmem:[%s187 + $0xde0] sm:$0xff]
        %v741 = vld [vmem:[%s187 + $0xde8] sm:$0xff]
        %v742 = vld [vmem:[%s187 + $0xdf0] sm:$0xff]
        %v743 = vld [vmem:[%s187 + $0xdf8] sm:$0xff]
        %v744 = vld [vmem:[%s187 + $0xe00] sm:$0xff]
        %v745 = vld [vmem:[%s187 + $0xe08] sm:$0xff]
        %v746 = vld [vmem:[%s187 + $0xe10] sm:$0xff]
        %v747 = vld [vmem:[%s187 + $0xe18] sm:$0xff]
        %v748 = vld [vmem:[%s187 + $0xe20] sm:$0xff]
        %v749 = vld [vmem:[%s187 + $0xe28] sm:$0xff]
        %v750 = vld [vmem:[%s187 + $0xe30] sm:$0xff]
        %v751 = vld [vmem:[%s187 + $0xe38] sm:$0xff]
        %v752 = vld [vmem:[%s187 + $0xe40] sm:$0xff]
        %v753 = vld [vmem:[%s187 + $0xe48] sm:$0xff]
        %v754 = vld [vmem:[%s187 + $0xe50] sm:$0xff]
        %v755 = vld [vmem:[%s187 + $0xe58] sm:$0xff]
        %v756 = vld [vmem:[%s187 + $0xe60] sm:$0xff]
        %v757 = vld [vmem:[%s187 + $0xe68] sm:$0xff]
        %v758 = vld [vmem:[%s187 + $0xe70] sm:$0xff]
        %v759 = vld [vmem:[%s187 + $0xe78] sm:$0xff]
        %v760 = vld [vmem:[%s187 + $0xe80] sm:$0xff]
        %v761 = vld [vmem:[%s187 + $0xe88] sm:$0xff]
        %v762 = vld [vmem:[%s187 + $0xe90] sm:$0xff]
        %v763 = vld [vmem:[%s187 + $0xe98] sm:$0xff]
        %v764 = vld [vmem:[%s187 + $0xea0] sm:$0xff]
        %v765 = vld [vmem:[%s187 + $0xea8] sm:$0xff]
        %v766 = vld [vmem:[%s187 + $0xeb0] sm:$0xff]
        %v767 = vld [vmem:[%s187 + $0xeb8] sm:$0xff]
        %v768 = vld [vmem:[%s187 + $0xec0] sm:$0xff]
        %v769 = vld [vmem:[%s187 + $0xec8] sm:$0xff]
        %v770 = vld [vmem:[%s187 + $0xed0] sm:$0xff]
        %v771 = vld [vmem:[%s187 + $0xed8] sm:$0xff]
        %v772 = vld [vmem:[%s187 + $0xee0] sm:$0xff]
        %v773 = vld [vmem:[%s187 + $0xee8] sm:$0xff]
        %v774 = vld [vmem:[%s187 + $0xef0] sm:$0xff]
        %v775 = vld [vmem:[%s187 + $0xef8] sm:$0xff]
        %v776 = vld [vmem:[%s187 + $0xf00] sm:$0xff]
        %v777 = vld [vmem:[%s187 + $0xf08] sm:$0xff]
        %v778 = vld [vmem:[%s187 + $0xf10] sm:$0xff]
        %v779 = vld [vmem:[%s187 + $0xf18] sm:$0xff]
        %v780 = vld [vmem:[%s187 + $0xf20] sm:$0xff]
        %v781 = vld [vmem:[%s187 + $0xf28] sm:$0xff]
        %v782 = vld [vmem:[%s187 + $0xf30] sm:$0xff]
        %v783 = vld [vmem:[%s187 + $0xf38] sm:$0xff]
        %v784 = vld [vmem:[%s187 + $0xf40] sm:$0xff]
        %v785 = vld [vmem:[%s187 + $0xf48] sm:$0xff]
        %v786 = vld [vmem:[%s187 + $0xf50] sm:$0xff]
        %v787 = vld [vmem:[%s187 + $0xf58] sm:$0xff]
        %v788 = vld [vmem:[%s187 + $0xf60] sm:$0xff]
        %v789 = vld [vmem:[%s187 + $0xf68] sm:$0xff]
        %v790 = vld [vmem:[%s187 + $0xf70] sm:$0xff]
        %v791 = vld [vmem:[%s187 + $0xf78] sm:$0xff]
        %v792 = vld [vmem:[%s187 + $0xf80] sm:$0xff]
        %v793 = vld [vmem:[%s187 + $0xf88] sm:$0xff]
        %v794 = vld [vmem:[%s187 + $0xf90] sm:$0xff]
        %v795 = vld [vmem:[%s187 + $0xf98] sm:$0xff]
        %v796 = vld [vmem:[%s187 + $0xfa0] sm:$0xff]
        %v797 = vld [vmem:[%s187 + $0xfa8] sm:$0xff]
        %v798 = vld [vmem:[%s187 + $0xfb0] sm:$0xff]
        %v799 = vld [vmem:[%s187 + $0xfb8] sm:$0xff]
        %v800 = vld [vmem:[%s187 + $0xfc0] sm:$0xff]
        %v801 = vld [vmem:[%s187 + $0xfc8] sm:$0xff]
        %v802 = vld [vmem:[%s187 + $0xfd0] sm:$0xff]
        %v803 = vld [vmem:[%s187 + $0xfd8] sm:$0xff]
        %v804 = vld [vmem:[%s187 + $0xfe0] sm:$0xff]
        %v805 = vld [vmem:[%s187 + $0xfe8] sm:$0xff]
        %v806 = vld [vmem:[%s187 + $0xff0] sm:$0xff]
        %v807 = vld [vmem:[%s187 + $0xff8] sm:$0xff]
        %v808 = vld [vmem:[%s187 + $0x1000] sm:$0xff]
        %v809 = vld [vmem:[%s187 + $0x1008] sm:$0xff]
        %v810 = vld [vmem:[%s187 + $0x1010] sm:$0xff]
        %v811 = vld [vmem:[%s187 + $0x1018] sm:$0xff]
        %v812 = vld [vmem:[%s187 + $0x1020] sm:$0xff]
        %v813 = vld [vmem:[%s187 + $0x1028] sm:$0xff]
        %v814 = vld [vmem:[%s187 + $0x1030] sm:$0xff]
        %v815 = vld [vmem:[%s187 + $0x1038] sm:$0xff]
        %v816 = vld [vmem:[%s187 + $0x1040] sm:$0xff]
        %v817 = vld [vmem:[%s187 + $0x1048] sm:$0xff]
        %v818 = vld [vmem:[%s187 + $0x1050] sm:$0xff]
        %v819 = vld [vmem:[%s187 + $0x1058] sm:$0xff]
        %v820 = vld [vmem:[%s187 + $0x1060] sm:$0xff]
        %v821 = vld [vmem:[%s187 + $0x1068] sm:$0xff]
        %v822 = vld [vmem:[%s187 + $0x1070] sm:$0xff]
        %v823 = vld [vmem:[%s187 + $0x1078] sm:$0xff]
        %v824 = vld [vmem:[%s187 + $0x1080] sm:$0xff]
        %v825 = vld [vmem:[%s187 + $0x1088] sm:$0xff]
        %v826 = vld [vmem:[%s187 + $0x1090] sm:$0xff]
        %v827 = vld [vmem:[%s187 + $0x1098] sm:$0xff]
        %v828 = vld [vmem:[%s187 + $0x10a0] sm:$0xff]
        %v829 = vld [vmem:[%s187 + $0x10a8] sm:$0xff]
        %v830 = vld [vmem:[%s187 + $0x10b0] sm:$0xff]
        %v831 = vld [vmem:[%s187 + $0x10b8] sm:$0xff]
        %v832 = vld [vmem:[%s187 + $0x10c0] sm:$0xff]
        %v833 = vld [vmem:[%s187 + $0x10c8] sm:$0xff]
        %v834 = vld [vmem:[%s187 + $0x10d0] sm:$0xff]
        %v835 = vld [vmem:[%s187 + $0x10d8] sm:$0xff]
        %v836 = vld [vmem:[%s187 + $0x10e0] sm:$0xff]
        %v837 = vld [vmem:[%s187 + $0x10e8] sm:$0xff]
        %v838 = vld [vmem:[%s187 + $0x10f0] sm:$0xff]
        %v839 = vld [vmem:[%s187 + $0x10f8] sm:$0xff]
        %v840 = vld [vmem:[%s187 + $0x1100] sm:$0xff]
        %v841 = vld [vmem:[%s187 + $0x1108] sm:$0xff]
        %v842 = vld [vmem:[%s187 + $0x1110] sm:$0xff]
        %v843 = vld [vmem:[%s187 + $0x1118] sm:$0xff]
        %v844 = vld [vmem:[%s187 + $0x1120] sm:$0xff]
        %v845 = vld [vmem:[%s187 + $0x1128] sm:$0xff]
        %v846 = vld [vmem:[%s187 + $0x1130] sm:$0xff]
        %v847 = vld [vmem:[%s187 + $0x1138] sm:$0xff]
        %v848 = vld [vmem:[%s187 + $0x1140] sm:$0xff]
        %v849 = vld [vmem:[%s187 + $0x1148] sm:$0xff]
        %v850 = vld [vmem:[%s187 + $0x1150] sm:$0xff]
        %v851 = vld [vmem:[%s187 + $0x1158] sm:$0xff]
        %v852 = vld [vmem:[%s187 + $0x1160] sm:$0xff]
        %v853 = vld [vmem:[%s187 + $0x1168] sm:$0xff]
        %v854 = vld [vmem:[%s187 + $0x1170] sm:$0xff]
        %v855 = vld [vmem:[%s187 + $0x1178] sm:$0xff]
        %v856 = vld [vmem:[%s187 + $0x1180] sm:$0xff]
        %v857 = vld [vmem:[%s187 + $0x1188] sm:$0xff]
        %v858 = vld [vmem:[%s187 + $0x1190] sm:$0xff]
        %v859 = vld [vmem:[%s187 + $0x1198] sm:$0xff]
        %v860 = vld [vmem:[%s187 + $0x11a0] sm:$0xff]
        %v861 = vld [vmem:[%s187 + $0x11a8] sm:$0xff]
        %v862 = vld [vmem:[%s187 + $0x11b0] sm:$0xff]
        %v863 = vld [vmem:[%s187 + $0x11b8] sm:$0xff]
        %v864 = vld [vmem:[%s187 + $0x11c0] sm:$0xff]
        %v865 = vld [vmem:[%s187 + $0x11c8] sm:$0xff]
        %v866 = vld [vmem:[%s187 + $0x11d0] sm:$0xff]
        %v867 = vld [vmem:[%s187 + $0x11d8] sm:$0xff]
        %v868 = vld [vmem:[%s187 + $0x11e0] sm:$0xff]
        %v869 = vld [vmem:[%s187 + $0x11e8] sm:$0xff]
        %v870 = vld [vmem:[%s187 + $0x11f0] sm:$0xff]
        %v871 = vld [vmem:[%s187 + $0x11f8] sm:$0xff]
        %v872 = vld [vmem:[%s187 + $0x1200] sm:$0xff]
        %v873 = vld [vmem:[%s187 + $0x1208] sm:$0xff]
        %v874 = vld [vmem:[%s187 + $0x1210] sm:$0xff]
        %v875 = vld [vmem:[%s187 + $0x1218] sm:$0xff]
        %v876 = vld [vmem:[%s187 + $0x1220] sm:$0xff]
        %v877 = vld [vmem:[%s187 + $0x1228] sm:$0xff]
        %v878 = vld [vmem:[%s187 + $0x1230] sm:$0xff]
        %v879 = vld [vmem:[%s187 + $0x1238] sm:$0xff]
        %v880 = vld [vmem:[%s187 + $0x1240] sm:$0xff]
        %v881 = vld [vmem:[%s187 + $0x1248] sm:$0xff]
        %v882 = vld [vmem:[%s187 + $0x1250] sm:$0xff]
        %v883 = vld [vmem:[%s187 + $0x1258] sm:$0xff]
        %v884 = vld [vmem:[%s187 + $0x1260] sm:$0xff]
        %v885 = vld [vmem:[%s187 + $0x1268] sm:$0xff]
        %v886 = vld [vmem:[%s187 + $0x1270] sm:$0xff]
        %v887 = vld [vmem:[%s187 + $0x1278] sm:$0xff]
        %v888 = vld [vmem:[%s187 + $0x1280] sm:$0xff]
        %v889 = vld [vmem:[%s187 + $0x1288] sm:$0xff]
        %v890 = vld [vmem:[%s187 + $0x1290] sm:$0xff]
        %v891 = vld [vmem:[%s187 + $0x1298] sm:$0xff]
        %v892 = vld [vmem:[%s187 + $0x12a0] sm:$0xff]
        %v893 = vld [vmem:[%s187 + $0x12a8] sm:$0xff]
        %v894 = vld [vmem:[%s187 + $0x12b0] sm:$0xff]
        %v895 = vld [vmem:[%s187 + $0x12b8] sm:$0xff]
        %v896 = vld [vmem:[%s187 + $0x12c0] sm:$0xff]
        %v897 = vld [vmem:[%s187 + $0x12c8] sm:$0xff]
        %v898 = vld [vmem:[%s187 + $0x12d0] sm:$0xff]
        %v899 = vld [vmem:[%s187 + $0x12d8] sm:$0xff]
        %v900 = vld [vmem:[%s187 + $0x12e0] sm:$0xff]
        %v901 = vld [vmem:[%s187 + $0x12e8] sm:$0xff]
        %v902 = vld [vmem:[%s187 + $0x12f0] sm:$0xff]
        %v903 = vld [vmem:[%s187 + $0x12f8] sm:$0xff]
        %v904 = vld [vmem:[%s187 + $0x1300] sm:$0xff]
        %v905 = vld [vmem:[%s187 + $0x1308] sm:$0xff]
        %v906 = vld [vmem:[%s187 + $0x1310] sm:$0xff]
        %v907 = vld [vmem:[%s187 + $0x1318] sm:$0xff]
        %v908 = vld [vmem:[%s187 + $0x1320] sm:$0xff]
        %v909 = vld [vmem:[%s187 + $0x1328] sm:$0xff]
        %v910 = vld [vmem:[%s187 + $0x1330] sm:$0xff]
        %v911 = vld [vmem:[%s187 + $0x1338] sm:$0xff]
        %v912 = vld [vmem:[%s187 + $0x1340] sm:$0xff]
        %v913 = vld [vmem:[%s187 + $0x1348] sm:$0xff]
        %v914 = vld [vmem:[%s187 + $0x1350] sm:$0xff]
        %v915 = vld [vmem:[%s187 + $0x1358] sm:$0xff]
        %v916 = vld [vmem:[%s187 + $0x1360] sm:$0xff]
        %v917 = vld [vmem:[%s187 + $0x1368] sm:$0xff]
        %v918 = vld [vmem:[%s187 + $0x1370] sm:$0xff]
        %v919 = vld [vmem:[%s187 + $0x1378] sm:$0xff]
        %v920 = vld [vmem:[%s187 + $0x1380] sm:$0xff]
        %v921 = vld [vmem:[%s187 + $0x1388] sm:$0xff]
        %v922 = vld [vmem:[%s187 + $0x1390] sm:$0xff]
        %v923 = vld [vmem:[%s187 + $0x1398] sm:$0xff]
        %v924 = vld [vmem:[%s187 + $0x13a0] sm:$0xff]
        %v925 = vld [vmem:[%s187 + $0x13a8] sm:$0xff]
        %v926 = vld [vmem:[%s187 + $0x13b0] sm:$0xff]
        %v927 = vld [vmem:[%s187 + $0x13b8] sm:$0xff]
        %v928 = vld [vmem:[%s187 + $0x13c0] sm:$0xff]
        %v929 = vld [vmem:[%s187 + $0x13c8] sm:$0xff]
        %v930 = vld [vmem:[%s187 + $0x13d0] sm:$0xff]
        %v931 = vld [vmem:[%s187 + $0x13d8] sm:$0xff]
        %v932 = vld [vmem:[%s187 + $0x13e0] sm:$0xff]
        %v933 = vld [vmem:[%s187 + $0x13e8] sm:$0xff]
        %v934 = vld [vmem:[%s187 + $0x13f0] sm:$0xff]
        %v935 = vld [vmem:[%s187 + $0x13f8] sm:$0xff]
        %v936 = vld [vmem:[%s187 + $0x1400] sm:$0xff]
        %v937 = vld [vmem:[%s187 + $0x1408] sm:$0xff]
        %v938 = vld [vmem:[%s187 + $0x1410] sm:$0xff]
        %v939 = vld [vmem:[%s187 + $0x1418] sm:$0xff]
        %v940 = vld [vmem:[%s187 + $0x1420] sm:$0xff]
        %v941 = vld [vmem:[%s187 + $0x1428] sm:$0xff]
        %v942 = vld [vmem:[%s187 + $0x1430] sm:$0xff]
        %v943 = vld [vmem:[%s187 + $0x1438] sm:$0xff]
        %v944 = vld [vmem:[%s187 + $0x1440] sm:$0xff]
        %v945 = vld [vmem:[%s187 + $0x1448] sm:$0xff]
        %v946 = vld [vmem:[%s187 + $0x1450] sm:$0xff]
        %v947 = vld [vmem:[%s187 + $0x1458] sm:$0xff]
        %v948 = vld [vmem:[%s187 + $0x1460] sm:$0xff]
        %v949 = vld [vmem:[%s187 + $0x1468] sm:$0xff]
        %v950 = vld [vmem:[%s187 + $0x1470] sm:$0xff]
        %v951 = vld [vmem:[%s187 + $0x1478] sm:$0xff]
        %v952 = vld [vmem:[%s187 + $0x1480] sm:$0xff]
        %v953 = vld [vmem:[%s187 + $0x1488] sm:$0xff]
        %v954 = vld [vmem:[%s187 + $0x1490] sm:$0xff]
        %v955 = vld [vmem:[%s187 + $0x1498] sm:$0xff]
        %v956 = vld [vmem:[%s187 + $0x14a0] sm:$0xff]
        %v957 = vld [vmem:[%s187 + $0x14a8] sm:$0xff]
        %v958 = vld [vmem:[%s187 + $0x14b0] sm:$0xff]
        %v959 = vld [vmem:[%s187 + $0x14b8] sm:$0xff]
        %v960 = vld [vmem:[%s187 + $0x14c0] sm:$0xff]
        %v961 = vld [vmem:[%s187 + $0x14c8] sm:$0xff]
        %v962 = vld [vmem:[%s187 + $0x14d0] sm:$0xff]
        %v963 = vld [vmem:[%s187 + $0x14d8] sm:$0xff]
        %v964 = vld [vmem:[%s187 + $0x14e0] sm:$0xff]
        %v965 = vld [vmem:[%s187 + $0x14e8] sm:$0xff]
        %v966 = vld [vmem:[%s187 + $0x14f0] sm:$0xff]
        %v967 = vld [vmem:[%s187 + $0x14f8] sm:$0xff]
        %v968 = vld [vmem:[%s187 + $0x1500] sm:$0xff]
        %v969 = vld [vmem:[%s187 + $0x1508] sm:$0xff]
        %v970 = vld [vmem:[%s187 + $0x1510] sm:$0xff]
        %v971 = vld [vmem:[%s187 + $0x1518] sm:$0xff]
        %v972 = vld [vmem:[%s187 + $0x1520] sm:$0xff]
        %v973 = vld [vmem:[%s187 + $0x1528] sm:$0xff]
        %v974 = vld [vmem:[%s187 + $0x1530] sm:$0xff]
        %v975 = vld [vmem:[%s187 + $0x1538] sm:$0xff]
        %v976 = vld [vmem:[%s187 + $0x1540] sm:$0xff]
        %v977 = vld [vmem:[%s187 + $0x1548] sm:$0xff]
        %v978 = vld [vmem:[%s187 + $0x1550] sm:$0xff]
        %v979 = vld [vmem:[%s187 + $0x1558] sm:$0xff]
        %v980 = vld [vmem:[%s187 + $0x1560] sm:$0xff]
        %v981 = vld [vmem:[%s187 + $0x1568] sm:$0xff]
        %v982 = vld [vmem:[%s187 + $0x1570] sm:$0xff]
        %v983 = vld [vmem:[%s187 + $0x1578] sm:$0xff]
        %v984 = vld [vmem:[%s187 + $0x1580] sm:$0xff]
        %v985 = vld [vmem:[%s187 + $0x1588] sm:$0xff]
        %v986 = vld [vmem:[%s187 + $0x1590] sm:$0xff]
        %v987 = vld [vmem:[%s187 + $0x1598] sm:$0xff]
        %v988 = vld [vmem:[%s187 + $0x15a0] sm:$0xff]
        %v989 = vld [vmem:[%s187 + $0x15a8] sm:$0xff]
        %v990 = vld [vmem:[%s187 + $0x15b0] sm:$0xff]
        %v991 = vld [vmem:[%s187 + $0x15b8] sm:$0xff]
        %v992 = vld [vmem:[%s187 + $0x15c0] sm:$0xff]
        %v993 = vld [vmem:[%s187 + $0x15c8] sm:$0xff]
        %v994 = vld [vmem:[%s187 + $0x15d0] sm:$0xff]
        %v995 = vld [vmem:[%s187 + $0x15d8] sm:$0xff]
        %v996 = vld [vmem:[%s187 + $0x15e0] sm:$0xff]
        %v997 = vld [vmem:[%s187 + $0x15e8] sm:$0xff]
        %v998 = vld [vmem:[%s187 + $0x15f0] sm:$0xff]
        %v999 = vld [vmem:[%s187 + $0x15f8] sm:$0xff]
        %v1000 = vld [vmem:[%s187 + $0x1600] sm:$0xff]
        %v1001 = vld [vmem:[%s187 + $0x1608] sm:$0xff]
        %v1002 = vld [vmem:[%s187 + $0x1610] sm:$0xff]
        %v1003 = vld [vmem:[%s187 + $0x1618] sm:$0xff]
        %v1004 = vld [vmem:[%s187 + $0x1620] sm:$0xff]
        %v1005 = vld [vmem:[%s187 + $0x1628] sm:$0xff]
        %v1006 = vld [vmem:[%s187 + $0x1630] sm:$0xff]
        %v1007 = vld [vmem:[%s187 + $0x1638] sm:$0xff]
        %v1008 = vld [vmem:[%s187 + $0x1640] sm:$0xff]
        %v1009 = vld [vmem:[%s187 + $0x1648] sm:$0xff]
        %v1010 = vld [vmem:[%s187 + $0x1650] sm:$0xff]
        %v1011 = vld [vmem:[%s187 + $0x1658] sm:$0xff]
        %v1012 = vld [vmem:[%s187 + $0x1660] sm:$0xff]
        %v1013 = vld [vmem:[%s187 + $0x1668] sm:$0xff]
        %v1014 = vld [vmem:[%s187 + $0x1670] sm:$0xff]
        %v1015 = vld [vmem:[%s187 + $0x1678] sm:$0xff]
        %v1016 = vld [vmem:[%s187 + $0x1680] sm:$0xff]
        %v1017 = vld [vmem:[%s187 + $0x1688] sm:$0xff]
        %v1018 = vld [vmem:[%s187 + $0x1690] sm:$0xff]
        %v1019 = vld [vmem:[%s187 + $0x1698] sm:$0xff]
        %v1020 = vld [vmem:[%s187 + $0x16a0] sm:$0xff]
        %v1021 = vld [vmem:[%s187 + $0x16a8] sm:$0xff]
        %v1022 = vld [vmem:[%s187 + $0x16b0] sm:$0xff]
        %v1023 = vld [vmem:[%s187 + $0x16b8] sm:$0xff]
        %v1024 = vld [vmem:[%s187 + $0x16c0] sm:$0xff]
        %v1025 = vld [vmem:[%s187 + $0x16c8] sm:$0xff]
        %v1026 = vld [vmem:[%s187 + $0x16d0] sm:$0xff]
        %v1027 = vld [vmem:[%s187 + $0x16d8] sm:$0xff]
        %v1028 = vld [vmem:[%s187 + $0x16e0] sm:$0xff]
        %v1029 = vld [vmem:[%s187 + $0x16e8] sm:$0xff]
        %v1030 = vld [vmem:[%s187 + $0x16f0] sm:$0xff]
        %v1031 = vld [vmem:[%s187 + $0x16f8] sm:$0xff]
        %v1032 = vld [vmem:[%s187 + $0x1700] sm:$0xff]
        %v1033 = vld [vmem:[%s187 + $0x1708] sm:$0xff]
        %v1034 = vld [vmem:[%s187 + $0x1710] sm:$0xff]
        %v1035 = vld [vmem:[%s187 + $0x1718] sm:$0xff]
        %v1036 = vld [vmem:[%s187 + $0x1720] sm:$0xff]
        %v1037 = vld [vmem:[%s187 + $0x1728] sm:$0xff]
        %v1038 = vld [vmem:[%s187 + $0x1730] sm:$0xff]
        %v1039 = vld [vmem:[%s187 + $0x1738] sm:$0xff]
        %v1040 = vld [vmem:[%s187 + $0x1740] sm:$0xff]
        %v1041 = vld [vmem:[%s187 + $0x1748] sm:$0xff]
        %v1042 = vld [vmem:[%s187 + $0x1750] sm:$0xff]
        %v1043 = vld [vmem:[%s187 + $0x1758] sm:$0xff]
        %v1044 = vld [vmem:[%s187 + $0x1760] sm:$0xff]
        %v1045 = vld [vmem:[%s187 + $0x1768] sm:$0xff]
        %v1046 = vld [vmem:[%s187 + $0x1770] sm:$0xff]
        %v1047 = vld [vmem:[%s187 + $0x1778] sm:$0xff]
        %v1048 = vld [vmem:[%s187 + $0x1780] sm:$0xff]
        %v1049 = vld [vmem:[%s187 + $0x1788] sm:$0xff]
        %v1050 = vld [vmem:[%s187 + $0x1790] sm:$0xff]
        %v1051 = vld [vmem:[%s187 + $0x1798] sm:$0xff]
        %v1052 = vld [vmem:[%s187 + $0x17a0] sm:$0xff]
        %v1053 = vld [vmem:[%s187 + $0x17a8] sm:$0xff]
        %v1054 = vld [vmem:[%s187 + $0x17b0] sm:$0xff]
        %v1055 = vld [vmem:[%s187 + $0x17b8] sm:$0xff]
        %v1056 = vld [vmem:[%s187 + $0x17c0] sm:$0xff]
        %v1057 = vld [vmem:[%s187 + $0x17c8] sm:$0xff]
        %v1058 = vld [vmem:[%s187 + $0x17d0] sm:$0xff]
        %v1059 = vld [vmem:[%s187 + $0x17d8] sm:$0xff]
        %v1060 = vld [vmem:[%s187 + $0x17e0] sm:$0xff]
        %v1061 = vld [vmem:[%s187 + $0x17e8] sm:$0xff]
        %v1062 = vld [vmem:[%s187 + $0x17f0] sm:$0xff]
        %v1063 = vld [vmem:[%s187 + $0x17f8] sm:$0xff]
        %v1064 = vld [vmem:[%s187 + $0x1800] sm:$0xff]
        %v1065 = vld [vmem:[%s187 + $0x1808] sm:$0xff]
        %v1066 = vld [vmem:[%s187 + $0x1810] sm:$0xff]
        %v1067 = vld [vmem:[%s187 + $0x1818] sm:$0xff]
        %v1068 = vld [vmem:[%s187 + $0x1820] sm:$0xff]
        %v1069 = vld [vmem:[%s187 + $0x1828] sm:$0xff]
        %v1070 = vld [vmem:[%s187 + $0x1830] sm:$0xff]
        %v1071 = vld [vmem:[%s187 + $0x1838] sm:$0xff]
        %v1072 = vld [vmem:[%s187 + $0x1840] sm:$0xff]
        %v1073 = vld [vmem:[%s187 + $0x1848] sm:$0xff]
        %v1074 = vld [vmem:[%s187 + $0x1850] sm:$0xff]
        %v1075 = vld [vmem:[%s187 + $0x1858] sm:$0xff]
        %v1076 = vld [vmem:[%s187 + $0x1860] sm:$0xff]
        %v1077 = vld [vmem:[%s187 + $0x1868] sm:$0xff]
        %v1078 = vld [vmem:[%s187 + $0x1870] sm:$0xff]
        %v1079 = vld [vmem:[%s187 + $0x1878] sm:$0xff]
        %v1080 = vld [vmem:[%s187 + $0x1880] sm:$0xff]
        %v1081 = vld [vmem:[%s187 + $0x1888] sm:$0xff]
        %v1082 = vld [vmem:[%s187 + $0x1890] sm:$0xff]
        %v1083 = vld [vmem:[%s187 + $0x1898] sm:$0xff]
        %v1084 = vld [vmem:[%s187 + $0x18a0] sm:$0xff]
        %v1085 = vld [vmem:[%s187 + $0x18a8] sm:$0xff]
        %v1086 = vld [vmem:[%s187 + $0x18b0] sm:$0xff]
        %v1087 = vld [vmem:[%s187 + $0x18b8] sm:$0xff]
        %v1088 = vld [vmem:[%s187 + $0x18c0] sm:$0xff]
        %v1089 = vld [vmem:[%s187 + $0x18c8] sm:$0xff]
        %v1090 = vld [vmem:[%s187 + $0x18d0] sm:$0xff]
        %v1091 = vld [vmem:[%s187 + $0x18d8] sm:$0xff]
        %v1092 = vld [vmem:[%s187 + $0x18e0] sm:$0xff]
        %v1093 = vld [vmem:[%s187 + $0x18e8] sm:$0xff]
        %v1094 = vld [vmem:[%s187 + $0x18f0] sm:$0xff]
        %v1095 = vld [vmem:[%s187 + $0x18f8] sm:$0xff]
        %v1096 = vld [vmem:[%s187 + $0x1900] sm:$0xff]
        %v1097 = vld [vmem:[%s187 + $0x1908] sm:$0xff]
        %v1098 = vld [vmem:[%s187 + $0x1910] sm:$0xff]
        %v1099 = vld [vmem:[%s187 + $0x1918] sm:$0xff]
        %v1100 = vld [vmem:[%s187 + $0x1920] sm:$0xff]
        %v1101 = vld [vmem:[%s187 + $0x1928] sm:$0xff]
        %v1102 = vld [vmem:[%s187 + $0x1930] sm:$0xff]
        %v1103 = vld [vmem:[%s187 + $0x1938] sm:$0xff]
        %v1104 = vld [vmem:[%s187 + $0x1940] sm:$0xff]
        %v1105 = vld [vmem:[%s187 + $0x1948] sm:$0xff]
        %v1106 = vld [vmem:[%s187 + $0x1950] sm:$0xff]
        %v1107 = vld [vmem:[%s187 + $0x1958] sm:$0xff]
        %v1108 = vld [vmem:[%s187 + $0x1960] sm:$0xff]
        %v1109 = vld [vmem:[%s187 + $0x1968] sm:$0xff]
        %v1110 = vld [vmem:[%s187 + $0x1970] sm:$0xff]
        %v1111 = vld [vmem:[%s187 + $0x1978] sm:$0xff]
        %v1112 = vld [vmem:[%s187 + $0x1980] sm:$0xff]
        %v1113 = vld [vmem:[%s187 + $0x1988] sm:$0xff]
        %v1114 = vld [vmem:[%s187 + $0x1990] sm:$0xff]
        %v1115 = vld [vmem:[%s187 + $0x1998] sm:$0xff]
        %v1116 = vld [vmem:[%s187 + $0x19a0] sm:$0xff]
        %v1117 = vld [vmem:[%s187 + $0x19a8] sm:$0xff]
        %v1118 = vld [vmem:[%s187 + $0x19b0] sm:$0xff]
        %v1119 = vld [vmem:[%s187 + $0x19b8] sm:$0xff]
        %v1120 = vld [vmem:[%s187 + $0x19c0] sm:$0xff]
        %v1121 = vld [vmem:[%s187 + $0x19c8] sm:$0xff]
        %v1122 = vld [vmem:[%s187 + $0x19d0] sm:$0xff]
        %v1123 = vld [vmem:[%s187 + $0x19d8] sm:$0xff]
        %v1124 = vld [vmem:[%s187 + $0x19e0] sm:$0xff]
        %v1125 = vld [vmem:[%s187 + $0x19e8] sm:$0xff]
        %v1126 = vld [vmem:[%s187 + $0x19f0] sm:$0xff]
        %v1127 = vld [vmem:[%s187 + $0x19f8] sm:$0xff]
        %v1128 = vld [vmem:[%s187 + $0x1a00] sm:$0xff]
        %v1129 = vld [vmem:[%s187 + $0x1a08] sm:$0xff]
        %v1130 = vld [vmem:[%s187 + $0x1a10] sm:$0xff]
        %v1131 = vld [vmem:[%s187 + $0x1a18] sm:$0xff]
        %v1132 = vld [vmem:[%s187 + $0x1a20] sm:$0xff]
        %v1133 = vld [vmem:[%s187 + $0x1a28] sm:$0xff]
        %v1134 = vld [vmem:[%s187 + $0x1a30] sm:$0xff]
        %v1135 = vld [vmem:[%s187 + $0x1a38] sm:$0xff]
        %v1136 = vld [vmem:[%s187 + $0x1a40] sm:$0xff]
        %v1137 = vld [vmem:[%s187 + $0x1a48] sm:$0xff]
        %v1138 = vld [vmem:[%s187 + $0x1a50] sm:$0xff]
        %v1139 = vld [vmem:[%s187 + $0x1a58] sm:$0xff]
        %v1140 = vld [vmem:[%s187 + $0x1a60] sm:$0xff]
        %v1141 = vld [vmem:[%s187 + $0x1a68] sm:$0xff]
        %v1142 = vld [vmem:[%s187 + $0x1a70] sm:$0xff]
        %v1143 = vld [vmem:[%s187 + $0x1a78] sm:$0xff]
        %v1144 = vld [vmem:[%s187 + $0x1a80] sm:$0xff]
        %v1145 = vld [vmem:[%s187 + $0x1a88] sm:$0xff]
        %v1146 = vld [vmem:[%s187 + $0x1a90] sm:$0xff]
        %v1147 = vld [vmem:[%s187 + $0x1a98] sm:$0xff]
        %v1148 = vld [vmem:[%s187 + $0x1aa0] sm:$0xff]
        %v1149 = vld [vmem:[%s187 + $0x1aa8] sm:$0xff]
        %v1150 = vld [vmem:[%s187 + $0x1ab0] sm:$0xff]
        %v1151 = vld [vmem:[%s187 + $0x1ab8] sm:$0xff]
        %v1152 = vld [vmem:[%s187 + $0x1ac0] sm:$0xff]
        %v1153 = vld [vmem:[%s187 + $0x1ac8] sm:$0xff]
        %v1154 = vld [vmem:[%s187 + $0x1ad0] sm:$0xff]
        %v1155 = vld [vmem:[%s187 + $0x1ad8] sm:$0xff]
        %v1156 = vld [vmem:[%s187 + $0x1ae0] sm:$0xff]
        %v1157 = vld [vmem:[%s187 + $0x1ae8] sm:$0xff]
        %v1158 = vld [vmem:[%s187 + $0x1af0] sm:$0xff]
        %v1159 = vld [vmem:[%s187 + $0x1af8] sm:$0xff]
        %v1160 = vld [vmem:[%s187 + $0x1b00] sm:$0xff]
        %v1161 = vld [vmem:[%s187 + $0x1b08] sm:$0xff]
        %v1162 = vld [vmem:[%s187 + $0x1b10] sm:$0xff]
        %v1163 = vld [vmem:[%s187 + $0x1b18] sm:$0xff]
        %v1164 = vld [vmem:[%s187 + $0x1b20] sm:$0xff]
        %v1165 = vld [vmem:[%s187 + $0x1b28] sm:$0xff]
        %v1166 = vld [vmem:[%s187 + $0x1b30] sm:$0xff]
        %v1167 = vld [vmem:[%s187 + $0x1b38] sm:$0xff]
        %v1168 = vld [vmem:[%s187 + $0x1b40] sm:$0xff]
        %v1169 = vld [vmem:[%s187 + $0x1b48] sm:$0xff]
        %v1170 = vld [vmem:[%s187 + $0x1b50] sm:$0xff]
        %v1171 = vld [vmem:[%s187 + $0x1b58] sm:$0xff]
        %v1172 = vld [vmem:[%s187 + $0x1b60] sm:$0xff]
        %v1173 = vld [vmem:[%s187 + $0x1b68] sm:$0xff]
        %v1174 = vld [vmem:[%s187 + $0x1b70] sm:$0xff]
        %v1175 = vld [vmem:[%s187 + $0x1b78] sm:$0xff]
        %v1176 = vld [vmem:[%s187 + $0x1b80] sm:$0xff]
        %v1177 = vld [vmem:[%s187 + $0x1b88] sm:$0xff]
        %v1178 = vld [vmem:[%s187 + $0x1b90] sm:$0xff]
        %v1179 = vld [vmem:[%s187 + $0x1b98] sm:$0xff]
        %v1180 = vld [vmem:[%s187 + $0x1ba0] sm:$0xff]
        %v1181 = vld [vmem:[%s187 + $0x1ba8] sm:$0xff]
        %v1182 = vld [vmem:[%s187 + $0x1bb0] sm:$0xff]
        %v1183 = vld [vmem:[%s187 + $0x1bb8] sm:$0xff]
        %v1184 = vld [vmem:[%s187 + $0x1bc0] sm:$0xff]
        %v1185 = vld [vmem:[%s187 + $0x1bc8] sm:$0xff]
        %v1186 = vld [vmem:[%s187 + $0x1bd0] sm:$0xff]
        %v1187 = vld [vmem:[%s187 + $0x1bd8] sm:$0xff]
        %v1188 = vld [vmem:[%s187 + $0x1be0] sm:$0xff]
        %v1189 = vld [vmem:[%s187 + $0x1be8] sm:$0xff]
        %v1190 = vld [vmem:[%s187 + $0x1bf0] sm:$0xff]
        %v1191 = vld [vmem:[%s187 + $0x1bf8] sm:$0xff]
        %v1192 = vld [vmem:[%s187 + $0x1c00] sm:$0xff]
        %v1193 = vld [vmem:[%s187 + $0x1c08] sm:$0xff]
        %v1194 = vld [vmem:[%s187 + $0x1c10] sm:$0xff]
        %v1195 = vld [vmem:[%s187 + $0x1c18] sm:$0xff]
        %v1196 = vld [vmem:[%s187 + $0x1c20] sm:$0xff]
        %v1197 = vld [vmem:[%s187 + $0x1c28] sm:$0xff]
        %v1198 = vld [vmem:[%s187 + $0x1c30] sm:$0xff]
        %v1199 = vld [vmem:[%s187 + $0x1c38] sm:$0xff]
        %v1200 = vld [vmem:[%s187 + $0x1c40] sm:$0xff]
        %v1201 = vld [vmem:[%s187 + $0x1c48] sm:$0xff]
        %v1202 = vld [vmem:[%s187 + $0x1c50] sm:$0xff]
        %v1203 = vld [vmem:[%s187 + $0x1c58] sm:$0xff]
        %v1204 = vld [vmem:[%s187 + $0x1c60] sm:$0xff]
        %v1205 = vld [vmem:[%s187 + $0x1c68] sm:$0xff]
        %v1206 = vld [vmem:[%s187 + $0x1c70] sm:$0xff]
        %v1207 = vld [vmem:[%s187 + $0x1c78] sm:$0xff]
        %v1208 = vld [vmem:[%s187 + $0x1c80] sm:$0xff]
        %v1209 = vld [vmem:[%s187 + $0x1c88] sm:$0xff]
        %v1210 = vld [vmem:[%s187 + $0x1c90] sm:$0xff]
        %v1211 = vld [vmem:[%s187 + $0x1c98] sm:$0xff]
        %v1212 = vld [vmem:[%s187 + $0x1ca0] sm:$0xff]
        %v1213 = vld [vmem:[%s187 + $0x1ca8] sm:$0xff]
        %v1214 = vld [vmem:[%s187 + $0x1cb0] sm:$0xff]
        %v1215 = vld [vmem:[%s187 + $0x1cb8] sm:$0xff]
        %v1216 = vld [vmem:[%s187 + $0x1cc0] sm:$0xff]
        %v1217 = vld [vmem:[%s187 + $0x1cc8] sm:$0xff]
        %v1218 = vld [vmem:[%s187 + $0x1cd0] sm:$0xff]
        %v1219 = vld [vmem:[%s187 + $0x1cd8] sm:$0xff]
        %v1220 = vld [vmem:[%s187 + $0x1ce0] sm:$0xff]
        %v1221 = vld [vmem:[%s187 + $0x1ce8] sm:$0xff]
        %v1222 = vld [vmem:[%s187 + $0x1cf0] sm:$0xff]
        %v1223 = vld [vmem:[%s187 + $0x1cf8] sm:$0xff]
        %v1224 = vld [vmem:[%s187 + $0x1d00] sm:$0xff]
        %v1225 = vld [vmem:[%s187 + $0x1d08] sm:$0xff]
        %v1226 = vld [vmem:[%s187 + $0x1d10] sm:$0xff]
        %v1227 = vld [vmem:[%s187 + $0x1d18] sm:$0xff]
        %v1228 = vld [vmem:[%s187 + $0x1d20] sm:$0xff]
        %v1229 = vld [vmem:[%s187 + $0x1d28] sm:$0xff]
        %v1230 = vld [vmem:[%s187 + $0x1d30] sm:$0xff]
        %v1231 = vld [vmem:[%s187 + $0x1d38] sm:$0xff]
        %v1232 = vld [vmem:[%s187 + $0x1d40] sm:$0xff]
        %v1233 = vld [vmem:[%s187 + $0x1d48] sm:$0xff]
        %v1234 = vld [vmem:[%s187 + $0x1d50] sm:$0xff]
        %v1235 = vld [vmem:[%s187 + $0x1d58] sm:$0xff]
        %v1236 = vld [vmem:[%s187 + $0x1d60] sm:$0xff]
        %v1237 = vld [vmem:[%s187 + $0x1d68] sm:$0xff]
        %v1238 = vld [vmem:[%s187 + $0x1d70] sm:$0xff]
        %v1239 = vld [vmem:[%s187 + $0x1d78] sm:$0xff]
        %v1240 = vld [vmem:[%s187 + $0x1d80] sm:$0xff]
        %v1241 = vld [vmem:[%s187 + $0x1d88] sm:$0xff]
        %v1242 = vld [vmem:[%s187 + $0x1d90] sm:$0xff]
        %v1243 = vld [vmem:[%s187 + $0x1d98] sm:$0xff]
        %v1244 = vld [vmem:[%s187 + $0x1da0] sm:$0xff]
        %v1245 = vld [vmem:[%s187 + $0x1da8] sm:$0xff]
        %v1246 = vld [vmem:[%s187 + $0x1db0] sm:$0xff]
        %v1247 = vld [vmem:[%s187 + $0x1db8] sm:$0xff]
        %v1248 = vld [vmem:[%s187 + $0x1dc0] sm:$0xff]
        %v1249 = vld [vmem:[%s187 + $0x1dc8] sm:$0xff]
        %v1250 = vld [vmem:[%s187 + $0x1dd0] sm:$0xff]
        %v1251 = vld [vmem:[%s187 + $0x1dd8] sm:$0xff]
        %v1252 = vld [vmem:[%s187 + $0x1de0] sm:$0xff]
        %v1253 = vld [vmem:[%s187 + $0x1de8] sm:$0xff]
        %v1254 = vld [vmem:[%s187 + $0x1df0] sm:$0xff]
        %v1255 = vld [vmem:[%s187 + $0x1df8] sm:$0xff]
        %v1256 = vld [vmem:[%s187 + $0x1e00] sm:$0xff]
        %v1257 = vld [vmem:[%s187 + $0x1e08] sm:$0xff]
        %v1258 = vld [vmem:[%s187 + $0x1e10] sm:$0xff]
        %v1259 = vld [vmem:[%s187 + $0x1e18] sm:$0xff]
        %v1260 = vld [vmem:[%s187 + $0x1e20] sm:$0xff]
        %v1261 = vld [vmem:[%s187 + $0x1e28] sm:$0xff]
        %v1262 = vld [vmem:[%s187 + $0x1e30] sm:$0xff]
        %v1263 = vld [vmem:[%s187 + $0x1e38] sm:$0xff]
        %v1264 = vld [vmem:[%s187 + $0x1e40] sm:$0xff]
        %v1265 = vld [vmem:[%s187 + $0x1e48] sm:$0xff]
        %v1266 = vld [vmem:[%s187 + $0x1e50] sm:$0xff]
        %v1267 = vld [vmem:[%s187 + $0x1e58] sm:$0xff]
        %v1268 = vld [vmem:[%s187 + $0x1e60] sm:$0xff]
        %v1269 = vld [vmem:[%s187 + $0x1e68] sm:$0xff]
        %v1270 = vld [vmem:[%s187 + $0x1e70] sm:$0xff]
        %v1271 = vld [vmem:[%s187 + $0x1e78] sm:$0xff]
        %v1272 = vld [vmem:[%s187 + $0x1e80] sm:$0xff]
        %v1273 = vld [vmem:[%s187 + $0x1e88] sm:$0xff]
        %v1274 = vld [vmem:[%s187 + $0x1e90] sm:$0xff]
        %v1275 = vld [vmem:[%s187 + $0x1e98] sm:$0xff]
        %v1276 = vld [vmem:[%s187 + $0x1ea0] sm:$0xff]
        %v1277 = vld [vmem:[%s187 + $0x1ea8] sm:$0xff]
        %v1278 = vld [vmem:[%s187 + $0x1eb0] sm:$0xff]
        %v1279 = vld [vmem:[%s187 + $0x1eb8] sm:$0xff]
        %v1280 = vld [vmem:[%s187 + $0x1ec0] sm:$0xff]
        %v1281 = vld [vmem:[%s187 + $0x1ec8] sm:$0xff]
        %v1282 = vld [vmem:[%s187 + $0x1ed0] sm:$0xff]
        %v1283 = vld [vmem:[%s187 + $0x1ed8] sm:$0xff]
        %v1284 = vld [vmem:[%s187 + $0x1ee0] sm:$0xff]
        %v1285 = vld [vmem:[%s187 + $0x1ee8] sm:$0xff]
        %v1286 = vld [vmem:[%s187 + $0x1ef0] sm:$0xff]
        %v1287 = vld [vmem:[%s187 + $0x1ef8] sm:$0xff]
        %v1288 = vld [vmem:[%s187 + $0x1f00] sm:$0xff]
        %v1289 = vld [vmem:[%s187 + $0x1f08] sm:$0xff]
        %v1290 = vld [vmem:[%s187 + $0x1f10] sm:$0xff]
        %v1291 = vld [vmem:[%s187 + $0x1f18] sm:$0xff]
        %v1292 = vld [vmem:[%s187 + $0x1f20] sm:$0xff]
        %v1293 = vld [vmem:[%s187 + $0x1f28] sm:$0xff]
        %v1294 = vld [vmem:[%s187 + $0x1f30] sm:$0xff]
        %v1295 = vld [vmem:[%s187 + $0x1f38] sm:$0xff]
        %v1296 = vld [vmem:[%s187 + $0x1f40] sm:$0xff]
        %v1297 = vld [vmem:[%s187 + $0x1f48] sm:$0xff]
        %v1298 = vld [vmem:[%s187 + $0x1f50] sm:$0xff]
        %v1299 = vld [vmem:[%s187 + $0x1f58] sm:$0xff]
        %v1300 = vld [vmem:[%s187 + $0x1f60] sm:$0xff]
        %v1301 = vld [vmem:[%s187 + $0x1f68] sm:$0xff]
        %v1302 = vld [vmem:[%s187 + $0x1f70] sm:$0xff]
        %v1303 = vld [vmem:[%s187 + $0x1f78] sm:$0xff]
        %v1304 = vld [vmem:[%s187 + $0x1f80] sm:$0xff]
        %v1305 = vld [vmem:[%s187 + $0x1f88] sm:$0xff]
        %v1306 = vld [vmem:[%s187 + $0x1f90] sm:$0xff]
        %v1307 = vld [vmem:[%s187 + $0x1f98] sm:$0xff]
        %v1308 = vld [vmem:[%s187 + $0x1fa0] sm:$0xff]
        %v1309 = vld [vmem:[%s187 + $0x1fa8] sm:$0xff]
        %v1310 = vld [vmem:[%s187 + $0x1fb0] sm:$0xff]
        %v1311 = vld [vmem:[%s187 + $0x1fb8] sm:$0xff]
        %v1312 = vld [vmem:[%s187 + $0x1fc0] sm:$0xff]
        %v1313 = vld [vmem:[%s187 + $0x1fc8] sm:$0xff]
        %v1314 = vld [vmem:[%s187 + $0x1fd0] sm:$0xff]
        %v1315 = vld [vmem:[%s187 + $0x1fd8] sm:$0xff]
        %v1316 = vld [vmem:[%s187 + $0x1fe0] sm:$0xff]
        %v1317 = vld [vmem:[%s187 + $0x1fe8] sm:$0xff]
        %v1318 = vld [vmem:[%s187 + $0x1ff0] sm:$0xff]
        %v1319 = vld [vmem:[%s187 + $0x1ff8] sm:$0xff]
        %v1320 = vld [vmem:[%s196] sm:$0xf]
        %v1322 = vlaneseq
        %v1323 = vshrl.u32 %v1322, 7
        %v1324 = vsub.s32 0, %v1323
        %v1325 = vrot.slane %v1320, %v1324
        %v1326 = vlaneseq
        %v1327 = vshrl.u32 %v1326, 7
        %v1328 = vsub.s32 1, %v1327
        %v1329 = vrot.slane %v1320, %v1328
        %v1330 = vlaneseq
        %v1331 = vshrl.u32 %v1330, 7
        %v1332 = vsub.s32 2, %v1331
        %v1333 = vrot.slane %v1320, %v1332
        %v1334 = vlaneseq
        %v1335 = vshrl.u32 %v1334, 7
        %v1336 = vsub.s32 3, %v1335
        %v1337 = vrot.slane %v1320, %v1336
        %v2366 = vunpack.c.l.b16 %v296
        %v2367 = vunpack.c.h.b16 %v296
        %v2368 = vunpack.c.l.b16 %v297
        %v2369 = vunpack.c.h.b16 %v297
        %v2370 = vunpack.c.l.b16 %v298
        %v2371 = vunpack.c.h.b16 %v298
        %v2372 = vunpack.c.l.b16 %v299
        %v2373 = vunpack.c.h.b16 %v299
        %v2374 = vunpack.c.l.b16 %v300
        %v2375 = vunpack.c.h.b16 %v300
        %v2376 = vunpack.c.l.b16 %v301
        %v2377 = vunpack.c.h.b16 %v301
        %v2378 = vunpack.c.l.b16 %v302
        %v2379 = vunpack.c.h.b16 %v302
        %v2380 = vunpack.c.l.b16 %v303
        %v2381 = vunpack.c.h.b16 %v303
        %v2382 = vunpack.c.l.b16 %v304
        %v2383 = vunpack.c.h.b16 %v304
        %v2384 = vunpack.c.l.b16 %v305
        %v2385 = vunpack.c.h.b16 %v305
        %v2386 = vunpack.c.l.b16 %v306
        %v2387 = vunpack.c.h.b16 %v306
        %v2388 = vunpack.c.l.b16 %v307
        %v2389 = vunpack.c.h.b16 %v307
        %v2390 = vunpack.c.l.b16 %v308
        %v2391 = vunpack.c.h.b16 %v308
        %v2392 = vunpack.c.l.b16 %v309
        %v2393 = vunpack.c.h.b16 %v309
        %v2394 = vunpack.c.l.b16 %v310
        %v2395 = vunpack.c.h.b16 %v310
        %v2396 = vunpack.c.l.b16 %v311
        %v2397 = vunpack.c.h.b16 %v311
        %v2398 = vunpack.c.l.b16 %v312
        %v2399 = vunpack.c.h.b16 %v312
        %v2400 = vunpack.c.l.b16 %v313
        %v2401 = vunpack.c.h.b16 %v313
        %v2402 = vunpack.c.l.b16 %v314
        %v2403 = vunpack.c.h.b16 %v314
        %v2404 = vunpack.c.l.b16 %v315
        %v2405 = vunpack.c.h.b16 %v315
        %v2406 = vunpack.c.l.b16 %v316
        %v2407 = vunpack.c.h.b16 %v316
        %v2408 = vunpack.c.l.b16 %v317
        %v2409 = vunpack.c.h.b16 %v317
        %v2410 = vunpack.c.l.b16 %v318
        %v2411 = vunpack.c.h.b16 %v318
        %v2412 = vunpack.c.l.b16 %v319
        %v2413 = vunpack.c.h.b16 %v319
        %v2414 = vunpack.c.l.b16 %v320
        %v2415 = vunpack.c.h.b16 %v320
        %v2416 = vunpack.c.l.b16 %v321
        %v2417 = vunpack.c.h.b16 %v321
        %v2418 = vunpack.c.l.b16 %v322
        %v2419 = vunpack.c.h.b16 %v322
        %v2420 = vunpack.c.l.b16 %v323
        %v2421 = vunpack.c.h.b16 %v323
        %v2422 = vunpack.c.l.b16 %v324
        %v2423 = vunpack.c.h.b16 %v324
        %v2424 = vunpack.c.l.b16 %v325
        %v2425 = vunpack.c.h.b16 %v325
        %v2426 = vunpack.c.l.b16 %v326
        %v2427 = vunpack.c.h.b16 %v326
        %v2428 = vunpack.c.l.b16 %v327
        %v2429 = vunpack.c.h.b16 %v327
        %v2430 = vunpack.c.l.b16 %v328
        %v2431 = vunpack.c.h.b16 %v328
        %v2432 = vunpack.c.l.b16 %v329
        %v2433 = vunpack.c.h.b16 %v329
        %v2434 = vunpack.c.l.b16 %v330
        %v2435 = vunpack.c.h.b16 %v330
        %v2436 = vunpack.c.l.b16 %v331
        %v2437 = vunpack.c.h.b16 %v331
        %v2438 = vunpack.c.l.b16 %v332
        %v2439 = vunpack.c.h.b16 %v332
        %v2440 = vunpack.c.l.b16 %v333
        %v2441 = vunpack.c.h.b16 %v333
        %v2442 = vunpack.c.l.b16 %v334
        %v2443 = vunpack.c.h.b16 %v334
        %v2444 = vunpack.c.l.b16 %v335
        %v2445 = vunpack.c.h.b16 %v335
        %v2446 = vunpack.c.l.b16 %v336
        %v2447 = vunpack.c.h.b16 %v336
        %v2448 = vunpack.c.l.b16 %v337
        %v2449 = vunpack.c.h.b16 %v337
        %v2450 = vunpack.c.l.b16 %v338
        %v2451 = vunpack.c.h.b16 %v338
        %v2452 = vunpack.c.l.b16 %v339
        %v2453 = vunpack.c.h.b16 %v339
        %v2454 = vunpack.c.l.b16 %v340
        %v2455 = vunpack.c.h.b16 %v340
        %v2456 = vunpack.c.l.b16 %v341
        %v2457 = vunpack.c.h.b16 %v341
        %v2458 = vunpack.c.l.b16 %v342
        %v2459 = vunpack.c.h.b16 %v342
        %v2460 = vunpack.c.l.b16 %v343
        %v2461 = vunpack.c.h.b16 %v343
        %v2462 = vunpack.c.l.b16 %v344
        %v2463 = vunpack.c.h.b16 %v344
        %v2464 = vunpack.c.l.b16 %v345
        %v2465 = vunpack.c.h.b16 %v345
        %v2466 = vunpack.c.l.b16 %v346
        %v2467 = vunpack.c.h.b16 %v346
        %v2468 = vunpack.c.l.b16 %v347
        %v2469 = vunpack.c.h.b16 %v347
        %v2470 = vunpack.c.l.b16 %v348
        %v2471 = vunpack.c.h.b16 %v348
        %v2472 = vunpack.c.l.b16 %v349
        %v2473 = vunpack.c.h.b16 %v349
        %v2474 = vunpack.c.l.b16 %v350
        %v2475 = vunpack.c.h.b16 %v350
        %v2476 = vunpack.c.l.b16 %v351
        %v2477 = vunpack.c.h.b16 %v351
        %v2478 = vunpack.c.l.b16 %v352
        %v2479 = vunpack.c.h.b16 %v352
        %v2480 = vunpack.c.l.b16 %v353
        %v2481 = vunpack.c.h.b16 %v353
        %v2482 = vunpack.c.l.b16 %v354
        %v2483 = vunpack.c.h.b16 %v354
        %v2484 = vunpack.c.l.b16 %v355
        %v2485 = vunpack.c.h.b16 %v355
        %v2486 = vunpack.c.l.b16 %v356
        %v2487 = vunpack.c.h.b16 %v356
        %v2488 = vunpack.c.l.b16 %v357
        %v2489 = vunpack.c.h.b16 %v357
        %v2490 = vunpack.c.l.b16 %v358
        %v2491 = vunpack.c.h.b16 %v358
        %v2492 = vunpack.c.l.b16 %v359
        %v2493 = vunpack.c.h.b16 %v359
        %v2494 = vunpack.c.l.b16 %v360
        %v2495 = vunpack.c.h.b16 %v360
        %v2496 = vunpack.c.l.b16 %v361
        %v2497 = vunpack.c.h.b16 %v361
        %v2498 = vunpack.c.l.b16 %v362
        %v2499 = vunpack.c.h.b16 %v362
        %v2500 = vunpack.c.l.b16 %v363
        %v2501 = vunpack.c.h.b16 %v363
        %v2502 = vunpack.c.l.b16 %v364
        %v2503 = vunpack.c.h.b16 %v364
        %v2504 = vunpack.c.l.b16 %v365
        %v2505 = vunpack.c.h.b16 %v365
        %v2506 = vunpack.c.l.b16 %v366
        %v2507 = vunpack.c.h.b16 %v366
        %v2508 = vunpack.c.l.b16 %v367
        %v2509 = vunpack.c.h.b16 %v367
        %v2510 = vunpack.c.l.b16 %v368
        %v2511 = vunpack.c.h.b16 %v368
        %v2512 = vunpack.c.l.b16 %v369
        %v2513 = vunpack.c.h.b16 %v369
        %v2514 = vunpack.c.l.b16 %v370
        %v2515 = vunpack.c.h.b16 %v370
        %v2516 = vunpack.c.l.b16 %v371
        %v2517 = vunpack.c.h.b16 %v371
        %v2518 = vunpack.c.l.b16 %v372
        %v2519 = vunpack.c.h.b16 %v372
        %v2520 = vunpack.c.l.b16 %v373
        %v2521 = vunpack.c.h.b16 %v373
        %v2522 = vunpack.c.l.b16 %v374
        %v2523 = vunpack.c.h.b16 %v374
        %v2524 = vunpack.c.l.b16 %v375
        %v2525 = vunpack.c.h.b16 %v375
        %v2526 = vunpack.c.l.b16 %v376
        %v2527 = vunpack.c.h.b16 %v376
        %v2528 = vunpack.c.l.b16 %v377
        %v2529 = vunpack.c.h.b16 %v377
        %v2530 = vunpack.c.l.b16 %v378
        %v2531 = vunpack.c.h.b16 %v378
        %v2532 = vunpack.c.l.b16 %v379
        %v2533 = vunpack.c.h.b16 %v379
        %v2534 = vunpack.c.l.b16 %v380
        %v2535 = vunpack.c.h.b16 %v380
        %v2536 = vunpack.c.l.b16 %v381
        %v2537 = vunpack.c.h.b16 %v381
        %v2538 = vunpack.c.l.b16 %v382
        %v2539 = vunpack.c.h.b16 %v382
        %v2540 = vunpack.c.l.b16 %v383
        %v2541 = vunpack.c.h.b16 %v383
        %v2542 = vunpack.c.l.b16 %v384
        %v2543 = vunpack.c.h.b16 %v384
        %v2544 = vunpack.c.l.b16 %v385
        %v2545 = vunpack.c.h.b16 %v385
        %v2546 = vunpack.c.l.b16 %v386
        %v2547 = vunpack.c.h.b16 %v386
        %v2548 = vunpack.c.l.b16 %v387
        %v2549 = vunpack.c.h.b16 %v387
        %v2550 = vunpack.c.l.b16 %v388
        %v2551 = vunpack.c.h.b16 %v388
        %v2552 = vunpack.c.l.b16 %v389
        %v2553 = vunpack.c.h.b16 %v389
        %v2554 = vunpack.c.l.b16 %v390
        %v2555 = vunpack.c.h.b16 %v390
        %v2556 = vunpack.c.l.b16 %v391
        %v2557 = vunpack.c.h.b16 %v391
        %v2558 = vunpack.c.l.b16 %v392
        %v2559 = vunpack.c.h.b16 %v392
        %v2560 = vunpack.c.l.b16 %v393
        %v2561 = vunpack.c.h.b16 %v393
        %v2562 = vunpack.c.l.b16 %v394
        %v2563 = vunpack.c.h.b16 %v394
        %v2564 = vunpack.c.l.b16 %v395
        %v2565 = vunpack.c.h.b16 %v395
        %v2566 = vunpack.c.l.b16 %v396
        %v2567 = vunpack.c.h.b16 %v396
        %v2568 = vunpack.c.l.b16 %v397
        %v2569 = vunpack.c.h.b16 %v397
        %v2570 = vunpack.c.l.b16 %v398
        %v2571 = vunpack.c.h.b16 %v398
        %v2572 = vunpack.c.l.b16 %v399
        %v2573 = vunpack.c.h.b16 %v399
        %v2574 = vunpack.c.l.b16 %v400
        %v2575 = vunpack.c.h.b16 %v400
        %v2576 = vunpack.c.l.b16 %v401
        %v2577 = vunpack.c.h.b16 %v401
        %v2578 = vunpack.c.l.b16 %v402
        %v2579 = vunpack.c.h.b16 %v402
        %v2580 = vunpack.c.l.b16 %v403
        %v2581 = vunpack.c.h.b16 %v403
        %v2582 = vunpack.c.l.b16 %v404
        %v2583 = vunpack.c.h.b16 %v404
        %v2584 = vunpack.c.l.b16 %v405
        %v2585 = vunpack.c.h.b16 %v405
        %v2586 = vunpack.c.l.b16 %v406
        %v2587 = vunpack.c.h.b16 %v406
        %v2588 = vunpack.c.l.b16 %v407
        %v2589 = vunpack.c.h.b16 %v407
        %v2590 = vunpack.c.l.b16 %v408
        %v2591 = vunpack.c.h.b16 %v408
        %v2592 = vunpack.c.l.b16 %v409
        %v2593 = vunpack.c.h.b16 %v409
        %v2594 = vunpack.c.l.b16 %v410
        %v2595 = vunpack.c.h.b16 %v410
        %v2596 = vunpack.c.l.b16 %v411
        %v2597 = vunpack.c.h.b16 %v411
        %v2598 = vunpack.c.l.b16 %v412
        %v2599 = vunpack.c.h.b16 %v412
        %v2600 = vunpack.c.l.b16 %v413
        %v2601 = vunpack.c.h.b16 %v413
        %v2602 = vunpack.c.l.b16 %v414
        %v2603 = vunpack.c.h.b16 %v414
        %v2604 = vunpack.c.l.b16 %v415
        %v2605 = vunpack.c.h.b16 %v415
        %v2606 = vunpack.c.l.b16 %v416
        %v2607 = vunpack.c.h.b16 %v416
        %v2608 = vunpack.c.l.b16 %v417
        %v2609 = vunpack.c.h.b16 %v417
        %v2610 = vunpack.c.l.b16 %v418
        %v2611 = vunpack.c.h.b16 %v418
        %v2612 = vunpack.c.l.b16 %v419
        %v2613 = vunpack.c.h.b16 %v419
        %v2614 = vunpack.c.l.b16 %v420
        %v2615 = vunpack.c.h.b16 %v420
        %v2616 = vunpack.c.l.b16 %v421
        %v2617 = vunpack.c.h.b16 %v421
        %v2618 = vunpack.c.l.b16 %v422
        %v2619 = vunpack.c.h.b16 %v422
        %v2620 = vunpack.c.l.b16 %v423
        %v2621 = vunpack.c.h.b16 %v423
        %v2622 = vunpack.c.l.b16 %v424
        %v2623 = vunpack.c.h.b16 %v424
        %v2624 = vunpack.c.l.b16 %v425
        %v2625 = vunpack.c.h.b16 %v425
        %v2626 = vunpack.c.l.b16 %v426
        %v2627 = vunpack.c.h.b16 %v426
        %v2628 = vunpack.c.l.b16 %v427
        %v2629 = vunpack.c.h.b16 %v427
        %v2630 = vunpack.c.l.b16 %v428
        %v2631 = vunpack.c.h.b16 %v428
        %v2632 = vunpack.c.l.b16 %v429
        %v2633 = vunpack.c.h.b16 %v429
        %v2634 = vunpack.c.l.b16 %v430
        %v2635 = vunpack.c.h.b16 %v430
        %v2636 = vunpack.c.l.b16 %v431
        %v2637 = vunpack.c.h.b16 %v431
        %v2638 = vunpack.c.l.b16 %v432
        %v2639 = vunpack.c.h.b16 %v432
        %v2640 = vunpack.c.l.b16 %v433
        %v2641 = vunpack.c.h.b16 %v433
        %v2642 = vunpack.c.l.b16 %v434
        %v2643 = vunpack.c.h.b16 %v434
        %v2644 = vunpack.c.l.b16 %v435
        %v2645 = vunpack.c.h.b16 %v435
        %v2646 = vunpack.c.l.b16 %v436
        %v2647 = vunpack.c.h.b16 %v436
        %v2648 = vunpack.c.l.b16 %v437
        %v2649 = vunpack.c.h.b16 %v437
        %v2650 = vunpack.c.l.b16 %v438
        %v2651 = vunpack.c.h.b16 %v438
        %v2652 = vunpack.c.l.b16 %v439
        %v2653 = vunpack.c.h.b16 %v439
        %v2654 = vunpack.c.l.b16 %v440
        %v2655 = vunpack.c.h.b16 %v440
        %v2656 = vunpack.c.l.b16 %v441
        %v2657 = vunpack.c.h.b16 %v441
        %v2658 = vunpack.c.l.b16 %v442
        %v2659 = vunpack.c.h.b16 %v442
        %v2660 = vunpack.c.l.b16 %v443
        %v2661 = vunpack.c.h.b16 %v443
        %v2662 = vunpack.c.l.b16 %v444
        %v2663 = vunpack.c.h.b16 %v444
        %v2664 = vunpack.c.l.b16 %v445
        %v2665 = vunpack.c.h.b16 %v445
        %v2666 = vunpack.c.l.b16 %v446
        %v2667 = vunpack.c.h.b16 %v446
        %v2668 = vunpack.c.l.b16 %v447
        %v2669 = vunpack.c.h.b16 %v447
        %v2670 = vunpack.c.l.b16 %v448
        %v2671 = vunpack.c.h.b16 %v448
        %v2672 = vunpack.c.l.b16 %v449
        %v2673 = vunpack.c.h.b16 %v449
        %v2674 = vunpack.c.l.b16 %v450
        %v2675 = vunpack.c.h.b16 %v450
        %v2676 = vunpack.c.l.b16 %v451
        %v2677 = vunpack.c.h.b16 %v451
        %v2678 = vunpack.c.l.b16 %v452
        %v2679 = vunpack.c.h.b16 %v452
        %v2680 = vunpack.c.l.b16 %v453
        %v2681 = vunpack.c.h.b16 %v453
        %v2682 = vunpack.c.l.b16 %v454
        %v2683 = vunpack.c.h.b16 %v454
        %v2684 = vunpack.c.l.b16 %v455
        %v2685 = vunpack.c.h.b16 %v455
        %v2686 = vunpack.c.l.b16 %v456
        %v2687 = vunpack.c.h.b16 %v456
        %v2688 = vunpack.c.l.b16 %v457
        %v2689 = vunpack.c.h.b16 %v457
        %v2690 = vunpack.c.l.b16 %v458
        %v2691 = vunpack.c.h.b16 %v458
        %v2692 = vunpack.c.l.b16 %v459
        %v2693 = vunpack.c.h.b16 %v459
        %v2694 = vunpack.c.l.b16 %v460
        %v2695 = vunpack.c.h.b16 %v460
        %v2696 = vunpack.c.l.b16 %v461
        %v2697 = vunpack.c.h.b16 %v461
        %v2698 = vunpack.c.l.b16 %v462
        %v2699 = vunpack.c.h.b16 %v462
        %v2700 = vunpack.c.l.b16 %v463
        %v2701 = vunpack.c.h.b16 %v463
        %v2702 = vunpack.c.l.b16 %v464
        %v2703 = vunpack.c.h.b16 %v464
        %v2704 = vunpack.c.l.b16 %v465
        %v2705 = vunpack.c.h.b16 %v465
        %v2706 = vunpack.c.l.b16 %v466
        %v2707 = vunpack.c.h.b16 %v466
        %v2708 = vunpack.c.l.b16 %v467
        %v2709 = vunpack.c.h.b16 %v467
        %v2710 = vunpack.c.l.b16 %v468
        %v2711 = vunpack.c.h.b16 %v468
        %v2712 = vunpack.c.l.b16 %v469
        %v2713 = vunpack.c.h.b16 %v469
        %v2714 = vunpack.c.l.b16 %v470
        %v2715 = vunpack.c.h.b16 %v470
        %v2716 = vunpack.c.l.b16 %v471
        %v2717 = vunpack.c.h.b16 %v471
        %v2718 = vunpack.c.l.b16 %v472
        %v2719 = vunpack.c.h.b16 %v472
        %v2720 = vunpack.c.l.b16 %v473
        %v2721 = vunpack.c.h.b16 %v473
        %v2722 = vunpack.c.l.b16 %v474
        %v2723 = vunpack.c.h.b16 %v474
        %v2724 = vunpack.c.l.b16 %v475
        %v2725 = vunpack.c.h.b16 %v475
        %v2726 = vunpack.c.l.b16 %v476
        %v2727 = vunpack.c.h.b16 %v476
        %v2728 = vunpack.c.l.b16 %v477
        %v2729 = vunpack.c.h.b16 %v477
        %v2730 = vunpack.c.l.b16 %v478
        %v2731 = vunpack.c.h.b16 %v478
        %v2732 = vunpack.c.l.b16 %v479
        %v2733 = vunpack.c.h.b16 %v479
        %v2734 = vunpack.c.l.b16 %v480
        %v2735 = vunpack.c.h.b16 %v480
        %v2736 = vunpack.c.l.b16 %v481
        %v2737 = vunpack.c.h.b16 %v481
        %v2738 = vunpack.c.l.b16 %v482
        %v2739 = vunpack.c.h.b16 %v482
        %v2740 = vunpack.c.l.b16 %v483
        %v2741 = vunpack.c.h.b16 %v483
        %v2742 = vunpack.c.l.b16 %v484
        %v2743 = vunpack.c.h.b16 %v484
        %v2744 = vunpack.c.l.b16 %v485
        %v2745 = vunpack.c.h.b16 %v485
        %v2746 = vunpack.c.l.b16 %v486
        %v2747 = vunpack.c.h.b16 %v486
        %v2748 = vunpack.c.l.b16 %v487
        %v2749 = vunpack.c.h.b16 %v487
        %v2750 = vunpack.c.l.b16 %v488
        %v2751 = vunpack.c.h.b16 %v488
        %v2752 = vunpack.c.l.b16 %v489
        %v2753 = vunpack.c.h.b16 %v489
        %v2754 = vunpack.c.l.b16 %v490
        %v2755 = vunpack.c.h.b16 %v490
        %v2756 = vunpack.c.l.b16 %v491
        %v2757 = vunpack.c.h.b16 %v491
        %v2758 = vunpack.c.l.b16 %v492
        %v2759 = vunpack.c.h.b16 %v492
        %v2760 = vunpack.c.l.b16 %v493
        %v2761 = vunpack.c.h.b16 %v493
        %v2762 = vunpack.c.l.b16 %v494
        %v2763 = vunpack.c.h.b16 %v494
        %v2764 = vunpack.c.l.b16 %v495
        %v2765 = vunpack.c.h.b16 %v495
        %v2766 = vunpack.c.l.b16 %v496
        %v2767 = vunpack.c.h.b16 %v496
        %v2768 = vunpack.c.l.b16 %v497
        %v2769 = vunpack.c.h.b16 %v497
        %v2770 = vunpack.c.l.b16 %v498
        %v2771 = vunpack.c.h.b16 %v498
        %v2772 = vunpack.c.l.b16 %v499
        %v2773 = vunpack.c.h.b16 %v499
        %v2774 = vunpack.c.l.b16 %v500
        %v2775 = vunpack.c.h.b16 %v500
        %v2776 = vunpack.c.l.b16 %v501
        %v2777 = vunpack.c.h.b16 %v501
        %v2778 = vunpack.c.l.b16 %v502
        %v2779 = vunpack.c.h.b16 %v502
        %v2780 = vunpack.c.l.b16 %v503
        %v2781 = vunpack.c.h.b16 %v503
        %v2782 = vunpack.c.l.b16 %v504
        %v2783 = vunpack.c.h.b16 %v504
        %v2784 = vunpack.c.l.b16 %v505
        %v2785 = vunpack.c.h.b16 %v505
        %v2786 = vunpack.c.l.b16 %v506
        %v2787 = vunpack.c.h.b16 %v506
        %v2788 = vunpack.c.l.b16 %v507
        %v2789 = vunpack.c.h.b16 %v507
        %v2790 = vunpack.c.l.b16 %v508
        %v2791 = vunpack.c.h.b16 %v508
        %v2792 = vunpack.c.l.b16 %v509
        %v2793 = vunpack.c.h.b16 %v509
        %v2794 = vunpack.c.l.b16 %v510
        %v2795 = vunpack.c.h.b16 %v510
        %v2796 = vunpack.c.l.b16 %v511
        %v2797 = vunpack.c.h.b16 %v511
        %v2798 = vunpack.c.l.b16 %v512
        %v2799 = vunpack.c.h.b16 %v512
        %v2800 = vunpack.c.l.b16 %v513
        %v2801 = vunpack.c.h.b16 %v513
        %v2802 = vunpack.c.l.b16 %v514
        %v2803 = vunpack.c.h.b16 %v514
        %v2804 = vunpack.c.l.b16 %v515
        %v2805 = vunpack.c.h.b16 %v515
        %v2806 = vunpack.c.l.b16 %v516
        %v2807 = vunpack.c.h.b16 %v516
        %v2808 = vunpack.c.l.b16 %v517
        %v2809 = vunpack.c.h.b16 %v517
        %v2810 = vunpack.c.l.b16 %v518
        %v2811 = vunpack.c.h.b16 %v518
        %v2812 = vunpack.c.l.b16 %v519
        %v2813 = vunpack.c.h.b16 %v519
        %v2814 = vunpack.c.l.b16 %v520
        %v2815 = vunpack.c.h.b16 %v520
        %v2816 = vunpack.c.l.b16 %v521
        %v2817 = vunpack.c.h.b16 %v521
        %v2818 = vunpack.c.l.b16 %v522
        %v2819 = vunpack.c.h.b16 %v522
        %v2820 = vunpack.c.l.b16 %v523
        %v2821 = vunpack.c.h.b16 %v523
        %v2822 = vunpack.c.l.b16 %v524
        %v2823 = vunpack.c.h.b16 %v524
        %v2824 = vunpack.c.l.b16 %v525
        %v2825 = vunpack.c.h.b16 %v525
        %v2826 = vunpack.c.l.b16 %v526
        %v2827 = vunpack.c.h.b16 %v526
        %v2828 = vunpack.c.l.b16 %v527
        %v2829 = vunpack.c.h.b16 %v527
        %v2830 = vunpack.c.l.b16 %v528
        %v2831 = vunpack.c.h.b16 %v528
        %v2832 = vunpack.c.l.b16 %v529
        %v2833 = vunpack.c.h.b16 %v529
        %v2834 = vunpack.c.l.b16 %v530
        %v2835 = vunpack.c.h.b16 %v530
        %v2836 = vunpack.c.l.b16 %v531
        %v2837 = vunpack.c.h.b16 %v531
        %v2838 = vunpack.c.l.b16 %v532
        %v2839 = vunpack.c.h.b16 %v532
        %v2840 = vunpack.c.l.b16 %v533
        %v2841 = vunpack.c.h.b16 %v533
        %v2842 = vunpack.c.l.b16 %v534
        %v2843 = vunpack.c.h.b16 %v534
        %v2844 = vunpack.c.l.b16 %v535
        %v2845 = vunpack.c.h.b16 %v535
        %v2846 = vunpack.c.l.b16 %v536
        %v2847 = vunpack.c.h.b16 %v536
        %v2848 = vunpack.c.l.b16 %v537
        %v2849 = vunpack.c.h.b16 %v537
        %v2850 = vunpack.c.l.b16 %v538
        %v2851 = vunpack.c.h.b16 %v538
        %v2852 = vunpack.c.l.b16 %v539
        %v2853 = vunpack.c.h.b16 %v539
        %v2854 = vunpack.c.l.b16 %v540
        %v2855 = vunpack.c.h.b16 %v540
        %v2856 = vunpack.c.l.b16 %v541
        %v2857 = vunpack.c.h.b16 %v541
        %v2858 = vunpack.c.l.b16 %v542
        %v2859 = vunpack.c.h.b16 %v542
        %v2860 = vunpack.c.l.b16 %v543
        %v2861 = vunpack.c.h.b16 %v543
        %v2862 = vunpack.c.l.b16 %v544
        %v2863 = vunpack.c.h.b16 %v544
        %v2864 = vunpack.c.l.b16 %v545
        %v2865 = vunpack.c.h.b16 %v545
        %v2866 = vunpack.c.l.b16 %v546
        %v2867 = vunpack.c.h.b16 %v546
        %v2868 = vunpack.c.l.b16 %v547
        %v2869 = vunpack.c.h.b16 %v547
        %v2870 = vunpack.c.l.b16 %v548
        %v2871 = vunpack.c.h.b16 %v548
        %v2872 = vunpack.c.l.b16 %v549
        %v2873 = vunpack.c.h.b16 %v549
        %v2874 = vunpack.c.l.b16 %v550
        %v2875 = vunpack.c.h.b16 %v550
        %v2876 = vunpack.c.l.b16 %v551
        %v2877 = vunpack.c.h.b16 %v551
        %v2878 = vunpack.c.l.b16 %v552
        %v2879 = vunpack.c.h.b16 %v552
        %v2880 = vunpack.c.l.b16 %v553
        %v2881 = vunpack.c.h.b16 %v553
        %v2882 = vunpack.c.l.b16 %v554
        %v2883 = vunpack.c.h.b16 %v554
        %v2884 = vunpack.c.l.b16 %v555
        %v2885 = vunpack.c.h.b16 %v555
        %v2886 = vunpack.c.l.b16 %v556
        %v2887 = vunpack.c.h.b16 %v556
        %v2888 = vunpack.c.l.b16 %v557
        %v2889 = vunpack.c.h.b16 %v557
        %v2890 = vunpack.c.l.b16 %v558
        %v2891 = vunpack.c.h.b16 %v558
        %v2892 = vunpack.c.l.b16 %v559
        %v2893 = vunpack.c.h.b16 %v559
        %v2894 = vunpack.c.l.b16 %v560
        %v2895 = vunpack.c.h.b16 %v560
        %v2896 = vunpack.c.l.b16 %v561
        %v2897 = vunpack.c.h.b16 %v561
        %v2898 = vunpack.c.l.b16 %v562
        %v2899 = vunpack.c.h.b16 %v562
        %v2900 = vunpack.c.l.b16 %v563
        %v2901 = vunpack.c.h.b16 %v563
        %v2902 = vunpack.c.l.b16 %v564
        %v2903 = vunpack.c.h.b16 %v564
        %v2904 = vunpack.c.l.b16 %v565
        %v2905 = vunpack.c.h.b16 %v565
        %v2906 = vunpack.c.l.b16 %v566
        %v2907 = vunpack.c.h.b16 %v566
        %v2908 = vunpack.c.l.b16 %v567
        %v2909 = vunpack.c.h.b16 %v567
        %v2910 = vunpack.c.l.b16 %v568
        %v2911 = vunpack.c.h.b16 %v568
        %v2912 = vunpack.c.l.b16 %v569
        %v2913 = vunpack.c.h.b16 %v569
        %v2914 = vunpack.c.l.b16 %v570
        %v2915 = vunpack.c.h.b16 %v570
        %v2916 = vunpack.c.l.b16 %v571
        %v2917 = vunpack.c.h.b16 %v571
        %v2918 = vunpack.c.l.b16 %v572
        %v2919 = vunpack.c.h.b16 %v572
        %v2920 = vunpack.c.l.b16 %v573
        %v2921 = vunpack.c.h.b16 %v573
        %v2922 = vunpack.c.l.b16 %v574
        %v2923 = vunpack.c.h.b16 %v574
        %v2924 = vunpack.c.l.b16 %v575
        %v2925 = vunpack.c.h.b16 %v575
        %v2926 = vunpack.c.l.b16 %v576
        %v2927 = vunpack.c.h.b16 %v576
        %v2928 = vunpack.c.l.b16 %v577
        %v2929 = vunpack.c.h.b16 %v577
        %v2930 = vunpack.c.l.b16 %v578
        %v2931 = vunpack.c.h.b16 %v578
        %v2932 = vunpack.c.l.b16 %v579
        %v2933 = vunpack.c.h.b16 %v579
        %v2934 = vunpack.c.l.b16 %v580
        %v2935 = vunpack.c.h.b16 %v580
        %v2936 = vunpack.c.l.b16 %v581
        %v2937 = vunpack.c.h.b16 %v581
        %v2938 = vunpack.c.l.b16 %v582
        %v2939 = vunpack.c.h.b16 %v582
        %v2940 = vunpack.c.l.b16 %v583
        %v2941 = vunpack.c.h.b16 %v583
        %v2942 = vunpack.c.l.b16 %v584
        %v2943 = vunpack.c.h.b16 %v584
        %v2944 = vunpack.c.l.b16 %v585
        %v2945 = vunpack.c.h.b16 %v585
        %v2946 = vunpack.c.l.b16 %v586
        %v2947 = vunpack.c.h.b16 %v586
        %v2948 = vunpack.c.l.b16 %v587
        %v2949 = vunpack.c.h.b16 %v587
        %v2950 = vunpack.c.l.b16 %v588
        %v2951 = vunpack.c.h.b16 %v588
        %v2952 = vunpack.c.l.b16 %v589
        %v2953 = vunpack.c.h.b16 %v589
        %v2954 = vunpack.c.l.b16 %v590
        %v2955 = vunpack.c.h.b16 %v590
        %v2956 = vunpack.c.l.b16 %v591
        %v2957 = vunpack.c.h.b16 %v591
        %v2958 = vunpack.c.l.b16 %v592
        %v2959 = vunpack.c.h.b16 %v592
        %v2960 = vunpack.c.l.b16 %v593
        %v2961 = vunpack.c.h.b16 %v593
        %v2962 = vunpack.c.l.b16 %v594
        %v2963 = vunpack.c.h.b16 %v594
        %v2964 = vunpack.c.l.b16 %v595
        %v2965 = vunpack.c.h.b16 %v595
        %v2966 = vunpack.c.l.b16 %v596
        %v2967 = vunpack.c.h.b16 %v596
        %v2968 = vunpack.c.l.b16 %v597
        %v2969 = vunpack.c.h.b16 %v597
        %v2970 = vunpack.c.l.b16 %v598
        %v2971 = vunpack.c.h.b16 %v598
        %v2972 = vunpack.c.l.b16 %v599
        %v2973 = vunpack.c.h.b16 %v599
        %v2974 = vunpack.c.l.b16 %v600
        %v2975 = vunpack.c.h.b16 %v600
        %v2976 = vunpack.c.l.b16 %v601
        %v2977 = vunpack.c.h.b16 %v601
        %v2978 = vunpack.c.l.b16 %v602
        %v2979 = vunpack.c.h.b16 %v602
        %v2980 = vunpack.c.l.b16 %v603
        %v2981 = vunpack.c.h.b16 %v603
        %v2982 = vunpack.c.l.b16 %v604
        %v2983 = vunpack.c.h.b16 %v604
        %v2984 = vunpack.c.l.b16 %v605
        %v2985 = vunpack.c.h.b16 %v605
        %v2986 = vunpack.c.l.b16 %v606
        %v2987 = vunpack.c.h.b16 %v606
        %v2988 = vunpack.c.l.b16 %v607
        %v2989 = vunpack.c.h.b16 %v607
        %v2990 = vunpack.c.l.b16 %v608
        %v2991 = vunpack.c.h.b16 %v608
        %v2992 = vunpack.c.l.b16 %v609
        %v2993 = vunpack.c.h.b16 %v609
        %v2994 = vunpack.c.l.b16 %v610
        %v2995 = vunpack.c.h.b16 %v610
        %v2996 = vunpack.c.l.b16 %v611
        %v2997 = vunpack.c.h.b16 %v611
        %v2998 = vunpack.c.l.b16 %v612
        %v2999 = vunpack.c.h.b16 %v612
        %v3000 = vunpack.c.l.b16 %v613
        %v3001 = vunpack.c.h.b16 %v613
        %v3002 = vunpack.c.l.b16 %v614
        %v3003 = vunpack.c.h.b16 %v614
        %v3004 = vunpack.c.l.b16 %v615
        %v3005 = vunpack.c.h.b16 %v615
        %v3006 = vunpack.c.l.b16 %v616
        %v3007 = vunpack.c.h.b16 %v616
        %v3008 = vunpack.c.l.b16 %v617
        %v3009 = vunpack.c.h.b16 %v617
        %v3010 = vunpack.c.l.b16 %v618
        %v3011 = vunpack.c.h.b16 %v618
        %v3012 = vunpack.c.l.b16 %v619
        %v3013 = vunpack.c.h.b16 %v619
        %v3014 = vunpack.c.l.b16 %v620
        %v3015 = vunpack.c.h.b16 %v620
        %v3016 = vunpack.c.l.b16 %v621
        %v3017 = vunpack.c.h.b16 %v621
        %v3018 = vunpack.c.l.b16 %v622
        %v3019 = vunpack.c.h.b16 %v622
        %v3020 = vunpack.c.l.b16 %v623
        %v3021 = vunpack.c.h.b16 %v623
        %v3022 = vunpack.c.l.b16 %v624
        %v3023 = vunpack.c.h.b16 %v624
        %v3024 = vunpack.c.l.b16 %v625
        %v3025 = vunpack.c.h.b16 %v625
        %v3026 = vunpack.c.l.b16 %v626
        %v3027 = vunpack.c.h.b16 %v626
        %v3028 = vunpack.c.l.b16 %v627
        %v3029 = vunpack.c.h.b16 %v627
        %v3030 = vunpack.c.l.b16 %v628
        %v3031 = vunpack.c.h.b16 %v628
        %v3032 = vunpack.c.l.b16 %v629
        %v3033 = vunpack.c.h.b16 %v629
        %v3034 = vunpack.c.l.b16 %v630
        %v3035 = vunpack.c.h.b16 %v630
        %v3036 = vunpack.c.l.b16 %v631
        %v3037 = vunpack.c.h.b16 %v631
        %v3038 = vunpack.c.l.b16 %v632
        %v3039 = vunpack.c.h.b16 %v632
        %v3040 = vunpack.c.l.b16 %v633
        %v3041 = vunpack.c.h.b16 %v633
        %v3042 = vunpack.c.l.b16 %v634
        %v3043 = vunpack.c.h.b16 %v634
        %v3044 = vunpack.c.l.b16 %v635
        %v3045 = vunpack.c.h.b16 %v635
        %v3046 = vunpack.c.l.b16 %v636
        %v3047 = vunpack.c.h.b16 %v636
        %v3048 = vunpack.c.l.b16 %v637
        %v3049 = vunpack.c.h.b16 %v637
        %v3050 = vunpack.c.l.b16 %v638
        %v3051 = vunpack.c.h.b16 %v638
        %v3052 = vunpack.c.l.b16 %v639
        %v3053 = vunpack.c.h.b16 %v639
        %v3054 = vunpack.c.l.b16 %v640
        %v3055 = vunpack.c.h.b16 %v640
        %v3056 = vunpack.c.l.b16 %v641
        %v3057 = vunpack.c.h.b16 %v641
        %v3058 = vunpack.c.l.b16 %v642
        %v3059 = vunpack.c.h.b16 %v642
        %v3060 = vunpack.c.l.b16 %v643
        %v3061 = vunpack.c.h.b16 %v643
        %v3062 = vunpack.c.l.b16 %v644
        %v3063 = vunpack.c.h.b16 %v644
        %v3064 = vunpack.c.l.b16 %v645
        %v3065 = vunpack.c.h.b16 %v645
        %v3066 = vunpack.c.l.b16 %v646
        %v3067 = vunpack.c.h.b16 %v646
        %v3068 = vunpack.c.l.b16 %v647
        %v3069 = vunpack.c.h.b16 %v647
        %v3070 = vunpack.c.l.b16 %v648
        %v3071 = vunpack.c.h.b16 %v648
        %v3072 = vunpack.c.l.b16 %v649
        %v3073 = vunpack.c.h.b16 %v649
        %v3074 = vunpack.c.l.b16 %v650
        %v3075 = vunpack.c.h.b16 %v650
        %v3076 = vunpack.c.l.b16 %v651
        %v3077 = vunpack.c.h.b16 %v651
        %v3078 = vunpack.c.l.b16 %v652
        %v3079 = vunpack.c.h.b16 %v652
        %v3080 = vunpack.c.l.b16 %v653
        %v3081 = vunpack.c.h.b16 %v653
        %v3082 = vunpack.c.l.b16 %v654
        %v3083 = vunpack.c.h.b16 %v654
        %v3084 = vunpack.c.l.b16 %v655
        %v3085 = vunpack.c.h.b16 %v655
        %v3086 = vunpack.c.l.b16 %v656
        %v3087 = vunpack.c.h.b16 %v656
        %v3088 = vunpack.c.l.b16 %v657
        %v3089 = vunpack.c.h.b16 %v657
        %v3090 = vunpack.c.l.b16 %v658
        %v3091 = vunpack.c.h.b16 %v658
        %v3092 = vunpack.c.l.b16 %v659
        %v3093 = vunpack.c.h.b16 %v659
        %v3094 = vunpack.c.l.b16 %v660
        %v3095 = vunpack.c.h.b16 %v660
        %v3096 = vunpack.c.l.b16 %v661
        %v3097 = vunpack.c.h.b16 %v661
        %v3098 = vunpack.c.l.b16 %v662
        %v3099 = vunpack.c.h.b16 %v662
        %v3100 = vunpack.c.l.b16 %v663
        %v3101 = vunpack.c.h.b16 %v663
        %v3102 = vunpack.c.l.b16 %v664
        %v3103 = vunpack.c.h.b16 %v664
        %v3104 = vunpack.c.l.b16 %v665
        %v3105 = vunpack.c.h.b16 %v665
        %v3106 = vunpack.c.l.b16 %v666
        %v3107 = vunpack.c.h.b16 %v666
        %v3108 = vunpack.c.l.b16 %v667
        %v3109 = vunpack.c.h.b16 %v667
        %v3110 = vunpack.c.l.b16 %v668
        %v3111 = vunpack.c.h.b16 %v668
        %v3112 = vunpack.c.l.b16 %v669
        %v3113 = vunpack.c.h.b16 %v669
        %v3114 = vunpack.c.l.b16 %v670
        %v3115 = vunpack.c.h.b16 %v670
        %v3116 = vunpack.c.l.b16 %v671
        %v3117 = vunpack.c.h.b16 %v671
        %v3118 = vunpack.c.l.b16 %v672
        %v3119 = vunpack.c.h.b16 %v672
        %v3120 = vunpack.c.l.b16 %v673
        %v3121 = vunpack.c.h.b16 %v673
        %v3122 = vunpack.c.l.b16 %v674
        %v3123 = vunpack.c.h.b16 %v674
        %v3124 = vunpack.c.l.b16 %v675
        %v3125 = vunpack.c.h.b16 %v675
        %v3126 = vunpack.c.l.b16 %v676
        %v3127 = vunpack.c.h.b16 %v676
        %v3128 = vunpack.c.l.b16 %v677
        %v3129 = vunpack.c.h.b16 %v677
        %v3130 = vunpack.c.l.b16 %v678
        %v3131 = vunpack.c.h.b16 %v678
        %v3132 = vunpack.c.l.b16 %v679
        %v3133 = vunpack.c.h.b16 %v679
        %v3134 = vunpack.c.l.b16 %v680
        %v3135 = vunpack.c.h.b16 %v680
        %v3136 = vunpack.c.l.b16 %v681
        %v3137 = vunpack.c.h.b16 %v681
        %v3138 = vunpack.c.l.b16 %v682
        %v3139 = vunpack.c.h.b16 %v682
        %v3140 = vunpack.c.l.b16 %v683
        %v3141 = vunpack.c.h.b16 %v683
        %v3142 = vunpack.c.l.b16 %v684
        %v3143 = vunpack.c.h.b16 %v684
        %v3144 = vunpack.c.l.b16 %v685
        %v3145 = vunpack.c.h.b16 %v685
        %v3146 = vunpack.c.l.b16 %v686
        %v3147 = vunpack.c.h.b16 %v686
        %v3148 = vunpack.c.l.b16 %v687
        %v3149 = vunpack.c.h.b16 %v687
        %v3150 = vunpack.c.l.b16 %v688
        %v3151 = vunpack.c.h.b16 %v688
        %v3152 = vunpack.c.l.b16 %v689
        %v3153 = vunpack.c.h.b16 %v689
        %v3154 = vunpack.c.l.b16 %v690
        %v3155 = vunpack.c.h.b16 %v690
        %v3156 = vunpack.c.l.b16 %v691
        %v3157 = vunpack.c.h.b16 %v691
        %v3158 = vunpack.c.l.b16 %v692
        %v3159 = vunpack.c.h.b16 %v692
        %v3160 = vunpack.c.l.b16 %v693
        %v3161 = vunpack.c.h.b16 %v693
        %v3162 = vunpack.c.l.b16 %v694
        %v3163 = vunpack.c.h.b16 %v694
        %v3164 = vunpack.c.l.b16 %v695
        %v3165 = vunpack.c.h.b16 %v695
        %v3166 = vunpack.c.l.b16 %v696
        %v3167 = vunpack.c.h.b16 %v696
        %v3168 = vunpack.c.l.b16 %v697
        %v3169 = vunpack.c.h.b16 %v697
        %v3170 = vunpack.c.l.b16 %v698
        %v3171 = vunpack.c.h.b16 %v698
        %v3172 = vunpack.c.l.b16 %v699
        %v3173 = vunpack.c.h.b16 %v699
        %v3174 = vunpack.c.l.b16 %v700
        %v3175 = vunpack.c.h.b16 %v700
        %v3176 = vunpack.c.l.b16 %v701
        %v3177 = vunpack.c.h.b16 %v701
        %v3178 = vunpack.c.l.b16 %v702
        %v3179 = vunpack.c.h.b16 %v702
        %v3180 = vunpack.c.l.b16 %v703
        %v3181 = vunpack.c.h.b16 %v703
        %v3182 = vunpack.c.l.b16 %v704
        %v3183 = vunpack.c.h.b16 %v704
        %v3184 = vunpack.c.l.b16 %v705
        %v3185 = vunpack.c.h.b16 %v705
        %v3186 = vunpack.c.l.b16 %v706
        %v3187 = vunpack.c.h.b16 %v706
        %v3188 = vunpack.c.l.b16 %v707
        %v3189 = vunpack.c.h.b16 %v707
        %v3190 = vunpack.c.l.b16 %v708
        %v3191 = vunpack.c.h.b16 %v708
        %v3192 = vunpack.c.l.b16 %v709
        %v3193 = vunpack.c.h.b16 %v709
        %v3194 = vunpack.c.l.b16 %v710
        %v3195 = vunpack.c.h.b16 %v710
        %v3196 = vunpack.c.l.b16 %v711
        %v3197 = vunpack.c.h.b16 %v711
        %v3198 = vunpack.c.l.b16 %v712
        %v3199 = vunpack.c.h.b16 %v712
        %v3200 = vunpack.c.l.b16 %v713
        %v3201 = vunpack.c.h.b16 %v713
        %v3202 = vunpack.c.l.b16 %v714
        %v3203 = vunpack.c.h.b16 %v714
        %v3204 = vunpack.c.l.b16 %v715
        %v3205 = vunpack.c.h.b16 %v715
        %v3206 = vunpack.c.l.b16 %v716
        %v3207 = vunpack.c.h.b16 %v716
        %v3208 = vunpack.c.l.b16 %v717
        %v3209 = vunpack.c.h.b16 %v717
        %v3210 = vunpack.c.l.b16 %v718
        %v3211 = vunpack.c.h.b16 %v718
        %v3212 = vunpack.c.l.b16 %v719
        %v3213 = vunpack.c.h.b16 %v719
        %v3214 = vunpack.c.l.b16 %v720
        %v3215 = vunpack.c.h.b16 %v720
        %v3216 = vunpack.c.l.b16 %v721
        %v3217 = vunpack.c.h.b16 %v721
        %v3218 = vunpack.c.l.b16 %v722
        %v3219 = vunpack.c.h.b16 %v722
        %v3220 = vunpack.c.l.b16 %v723
        %v3221 = vunpack.c.h.b16 %v723
        %v3222 = vunpack.c.l.b16 %v724
        %v3223 = vunpack.c.h.b16 %v724
        %v3224 = vunpack.c.l.b16 %v725
        %v3225 = vunpack.c.h.b16 %v725
        %v3226 = vunpack.c.l.b16 %v726
        %v3227 = vunpack.c.h.b16 %v726
        %v3228 = vunpack.c.l.b16 %v727
        %v3229 = vunpack.c.h.b16 %v727
        %v3230 = vunpack.c.l.b16 %v728
        %v3231 = vunpack.c.h.b16 %v728
        %v3232 = vunpack.c.l.b16 %v729
        %v3233 = vunpack.c.h.b16 %v729
        %v3234 = vunpack.c.l.b16 %v730
        %v3235 = vunpack.c.h.b16 %v730
        %v3236 = vunpack.c.l.b16 %v731
        %v3237 = vunpack.c.h.b16 %v731
        %v3238 = vunpack.c.l.b16 %v732
        %v3239 = vunpack.c.h.b16 %v732
        %v3240 = vunpack.c.l.b16 %v733
        %v3241 = vunpack.c.h.b16 %v733
        %v3242 = vunpack.c.l.b16 %v734
        %v3243 = vunpack.c.h.b16 %v734
        %v3244 = vunpack.c.l.b16 %v735
        %v3245 = vunpack.c.h.b16 %v735
        %v3246 = vunpack.c.l.b16 %v736
        %v3247 = vunpack.c.h.b16 %v736
        %v3248 = vunpack.c.l.b16 %v737
        %v3249 = vunpack.c.h.b16 %v737
        %v3250 = vunpack.c.l.b16 %v738
        %v3251 = vunpack.c.h.b16 %v738
        %v3252 = vunpack.c.l.b16 %v739
        %v3253 = vunpack.c.h.b16 %v739
        %v3254 = vunpack.c.l.b16 %v740
        %v3255 = vunpack.c.h.b16 %v740
        %v3256 = vunpack.c.l.b16 %v741
        %v3257 = vunpack.c.h.b16 %v741
        %v3258 = vunpack.c.l.b16 %v742
        %v3259 = vunpack.c.h.b16 %v742
        %v3260 = vunpack.c.l.b16 %v743
        %v3261 = vunpack.c.h.b16 %v743
        %v3262 = vunpack.c.l.b16 %v744
        %v3263 = vunpack.c.h.b16 %v744
        %v3264 = vunpack.c.l.b16 %v745
        %v3265 = vunpack.c.h.b16 %v745
        %v3266 = vunpack.c.l.b16 %v746
        %v3267 = vunpack.c.h.b16 %v746
        %v3268 = vunpack.c.l.b16 %v747
        %v3269 = vunpack.c.h.b16 %v747
        %v3270 = vunpack.c.l.b16 %v748
        %v3271 = vunpack.c.h.b16 %v748
        %v3272 = vunpack.c.l.b16 %v749
        %v3273 = vunpack.c.h.b16 %v749
        %v3274 = vunpack.c.l.b16 %v750
        %v3275 = vunpack.c.h.b16 %v750
        %v3276 = vunpack.c.l.b16 %v751
        %v3277 = vunpack.c.h.b16 %v751
        %v3278 = vunpack.c.l.b16 %v752
        %v3279 = vunpack.c.h.b16 %v752
        %v3280 = vunpack.c.l.b16 %v753
        %v3281 = vunpack.c.h.b16 %v753
        %v3282 = vunpack.c.l.b16 %v754
        %v3283 = vunpack.c.h.b16 %v754
        %v3284 = vunpack.c.l.b16 %v755
        %v3285 = vunpack.c.h.b16 %v755
        %v3286 = vunpack.c.l.b16 %v756
        %v3287 = vunpack.c.h.b16 %v756
        %v3288 = vunpack.c.l.b16 %v757
        %v3289 = vunpack.c.h.b16 %v757
        %v3290 = vunpack.c.l.b16 %v758
        %v3291 = vunpack.c.h.b16 %v758
        %v3292 = vunpack.c.l.b16 %v759
        %v3293 = vunpack.c.h.b16 %v759
        %v3294 = vunpack.c.l.b16 %v760
        %v3295 = vunpack.c.h.b16 %v760
        %v3296 = vunpack.c.l.b16 %v761
        %v3297 = vunpack.c.h.b16 %v761
        %v3298 = vunpack.c.l.b16 %v762
        %v3299 = vunpack.c.h.b16 %v762
        %v3300 = vunpack.c.l.b16 %v763
        %v3301 = vunpack.c.h.b16 %v763
        %v3302 = vunpack.c.l.b16 %v764
        %v3303 = vunpack.c.h.b16 %v764
        %v3304 = vunpack.c.l.b16 %v765
        %v3305 = vunpack.c.h.b16 %v765
        %v3306 = vunpack.c.l.b16 %v766
        %v3307 = vunpack.c.h.b16 %v766
        %v3308 = vunpack.c.l.b16 %v767
        %v3309 = vunpack.c.h.b16 %v767
        %v3310 = vunpack.c.l.b16 %v768
        %v3311 = vunpack.c.h.b16 %v768
        %v3312 = vunpack.c.l.b16 %v769
        %v3313 = vunpack.c.h.b16 %v769
        %v3314 = vunpack.c.l.b16 %v770
        %v3315 = vunpack.c.h.b16 %v770
        %v3316 = vunpack.c.l.b16 %v771
        %v3317 = vunpack.c.h.b16 %v771
        %v3318 = vunpack.c.l.b16 %v772
        %v3319 = vunpack.c.h.b16 %v772
        %v3320 = vunpack.c.l.b16 %v773
        %v3321 = vunpack.c.h.b16 %v773
        %v3322 = vunpack.c.l.b16 %v774
        %v3323 = vunpack.c.h.b16 %v774
        %v3324 = vunpack.c.l.b16 %v775
        %v3325 = vunpack.c.h.b16 %v775
        %v3326 = vunpack.c.l.b16 %v776
        %v3327 = vunpack.c.h.b16 %v776
        %v3328 = vunpack.c.l.b16 %v777
        %v3329 = vunpack.c.h.b16 %v777
        %v3330 = vunpack.c.l.b16 %v778
        %v3331 = vunpack.c.h.b16 %v778
        %v3332 = vunpack.c.l.b16 %v779
        %v3333 = vunpack.c.h.b16 %v779
        %v3334 = vunpack.c.l.b16 %v780
        %v3335 = vunpack.c.h.b16 %v780
        %v3336 = vunpack.c.l.b16 %v781
        %v3337 = vunpack.c.h.b16 %v781
        %v3338 = vunpack.c.l.b16 %v782
        %v3339 = vunpack.c.h.b16 %v782
        %v3340 = vunpack.c.l.b16 %v783
        %v3341 = vunpack.c.h.b16 %v783
        %v3342 = vunpack.c.l.b16 %v784
        %v3343 = vunpack.c.h.b16 %v784
        %v3344 = vunpack.c.l.b16 %v785
        %v3345 = vunpack.c.h.b16 %v785
        %v3346 = vunpack.c.l.b16 %v786
        %v3347 = vunpack.c.h.b16 %v786
        %v3348 = vunpack.c.l.b16 %v787
        %v3349 = vunpack.c.h.b16 %v787
        %v3350 = vunpack.c.l.b16 %v788
        %v3351 = vunpack.c.h.b16 %v788
        %v3352 = vunpack.c.l.b16 %v789
        %v3353 = vunpack.c.h.b16 %v789
        %v3354 = vunpack.c.l.b16 %v790
        %v3355 = vunpack.c.h.b16 %v790
        %v3356 = vunpack.c.l.b16 %v791
        %v3357 = vunpack.c.h.b16 %v791
        %v3358 = vunpack.c.l.b16 %v792
        %v3359 = vunpack.c.h.b16 %v792
        %v3360 = vunpack.c.l.b16 %v793
        %v3361 = vunpack.c.h.b16 %v793
        %v3362 = vunpack.c.l.b16 %v794
        %v3363 = vunpack.c.h.b16 %v794
        %v3364 = vunpack.c.l.b16 %v795
        %v3365 = vunpack.c.h.b16 %v795
        %v3366 = vunpack.c.l.b16 %v796
        %v3367 = vunpack.c.h.b16 %v796
        %v3368 = vunpack.c.l.b16 %v797
        %v3369 = vunpack.c.h.b16 %v797
        %v3370 = vunpack.c.l.b16 %v798
        %v3371 = vunpack.c.h.b16 %v798
        %v3372 = vunpack.c.l.b16 %v799
        %v3373 = vunpack.c.h.b16 %v799
        %v3374 = vunpack.c.l.b16 %v800
        %v3375 = vunpack.c.h.b16 %v800
        %v3376 = vunpack.c.l.b16 %v801
        %v3377 = vunpack.c.h.b16 %v801
        %v3378 = vunpack.c.l.b16 %v802
        %v3379 = vunpack.c.h.b16 %v802
        %v3380 = vunpack.c.l.b16 %v803
        %v3381 = vunpack.c.h.b16 %v803
        %v3382 = vunpack.c.l.b16 %v804
        %v3383 = vunpack.c.h.b16 %v804
        %v3384 = vunpack.c.l.b16 %v805
        %v3385 = vunpack.c.h.b16 %v805
        %v3386 = vunpack.c.l.b16 %v806
        %v3387 = vunpack.c.h.b16 %v806
        %v3388 = vunpack.c.l.b16 %v807
        %v3389 = vunpack.c.h.b16 %v807
        %v3390 = vunpack.c.l.b16 %v808
        %v3391 = vunpack.c.h.b16 %v808
        %v3392 = vunpack.c.l.b16 %v809
        %v3393 = vunpack.c.h.b16 %v809
        %v3394 = vunpack.c.l.b16 %v810
        %v3395 = vunpack.c.h.b16 %v810
        %v3396 = vunpack.c.l.b16 %v811
        %v3397 = vunpack.c.h.b16 %v811
        %v3398 = vunpack.c.l.b16 %v812
        %v3399 = vunpack.c.h.b16 %v812
        %v3400 = vunpack.c.l.b16 %v813
        %v3401 = vunpack.c.h.b16 %v813
        %v3402 = vunpack.c.l.b16 %v814
        %v3403 = vunpack.c.h.b16 %v814
        %v3404 = vunpack.c.l.b16 %v815
        %v3405 = vunpack.c.h.b16 %v815
        %v3406 = vunpack.c.l.b16 %v816
        %v3407 = vunpack.c.h.b16 %v816
        %v3408 = vunpack.c.l.b16 %v817
        %v3409 = vunpack.c.h.b16 %v817
        %v3410 = vunpack.c.l.b16 %v818
        %v3411 = vunpack.c.h.b16 %v818
        %v3412 = vunpack.c.l.b16 %v819
        %v3413 = vunpack.c.h.b16 %v819
        %v3414 = vunpack.c.l.b16 %v820
        %v3415 = vunpack.c.h.b16 %v820
        %v3416 = vunpack.c.l.b16 %v821
        %v3417 = vunpack.c.h.b16 %v821
        %v3418 = vunpack.c.l.b16 %v822
        %v3419 = vunpack.c.h.b16 %v822
        %v3420 = vunpack.c.l.b16 %v823
        %v3421 = vunpack.c.h.b16 %v823
        %v3422 = vunpack.c.l.b16 %v824
        %v3423 = vunpack.c.h.b16 %v824
        %v3424 = vunpack.c.l.b16 %v825
        %v3425 = vunpack.c.h.b16 %v825
        %v3426 = vunpack.c.l.b16 %v826
        %v3427 = vunpack.c.h.b16 %v826
        %v3428 = vunpack.c.l.b16 %v827
        %v3429 = vunpack.c.h.b16 %v827
        %v3430 = vunpack.c.l.b16 %v828
        %v3431 = vunpack.c.h.b16 %v828
        %v3432 = vunpack.c.l.b16 %v829
        %v3433 = vunpack.c.h.b16 %v829
        %v3434 = vunpack.c.l.b16 %v830
        %v3435 = vunpack.c.h.b16 %v830
        %v3436 = vunpack.c.l.b16 %v831
        %v3437 = vunpack.c.h.b16 %v831
        %v3438 = vunpack.c.l.b16 %v832
        %v3439 = vunpack.c.h.b16 %v832
        %v3440 = vunpack.c.l.b16 %v833
        %v3441 = vunpack.c.h.b16 %v833
        %v3442 = vunpack.c.l.b16 %v834
        %v3443 = vunpack.c.h.b16 %v834
        %v3444 = vunpack.c.l.b16 %v835
        %v3445 = vunpack.c.h.b16 %v835
        %v3446 = vunpack.c.l.b16 %v836
        %v3447 = vunpack.c.h.b16 %v836
        %v3448 = vunpack.c.l.b16 %v837
        %v3449 = vunpack.c.h.b16 %v837
        %v3450 = vunpack.c.l.b16 %v838
        %v3451 = vunpack.c.h.b16 %v838
        %v3452 = vunpack.c.l.b16 %v839
        %v3453 = vunpack.c.h.b16 %v839
        %v3454 = vunpack.c.l.b16 %v840
        %v3455 = vunpack.c.h.b16 %v840
        %v3456 = vunpack.c.l.b16 %v841
        %v3457 = vunpack.c.h.b16 %v841
        %v3458 = vunpack.c.l.b16 %v842
        %v3459 = vunpack.c.h.b16 %v842
        %v3460 = vunpack.c.l.b16 %v843
        %v3461 = vunpack.c.h.b16 %v843
        %v3462 = vunpack.c.l.b16 %v844
        %v3463 = vunpack.c.h.b16 %v844
        %v3464 = vunpack.c.l.b16 %v845
        %v3465 = vunpack.c.h.b16 %v845
        %v3466 = vunpack.c.l.b16 %v846
        %v3467 = vunpack.c.h.b16 %v846
        %v3468 = vunpack.c.l.b16 %v847
        %v3469 = vunpack.c.h.b16 %v847
        %v3470 = vunpack.c.l.b16 %v848
        %v3471 = vunpack.c.h.b16 %v848
        %v3472 = vunpack.c.l.b16 %v849
        %v3473 = vunpack.c.h.b16 %v849
        %v3474 = vunpack.c.l.b16 %v850
        %v3475 = vunpack.c.h.b16 %v850
        %v3476 = vunpack.c.l.b16 %v851
        %v3477 = vunpack.c.h.b16 %v851
        %v3478 = vunpack.c.l.b16 %v852
        %v3479 = vunpack.c.h.b16 %v852
        %v3480 = vunpack.c.l.b16 %v853
        %v3481 = vunpack.c.h.b16 %v853
        %v3482 = vunpack.c.l.b16 %v854
        %v3483 = vunpack.c.h.b16 %v854
        %v3484 = vunpack.c.l.b16 %v855
        %v3485 = vunpack.c.h.b16 %v855
        %v3486 = vunpack.c.l.b16 %v856
        %v3487 = vunpack.c.h.b16 %v856
        %v3488 = vunpack.c.l.b16 %v857
        %v3489 = vunpack.c.h.b16 %v857
        %v3490 = vunpack.c.l.b16 %v858
        %v3491 = vunpack.c.h.b16 %v858
        %v3492 = vunpack.c.l.b16 %v859
        %v3493 = vunpack.c.h.b16 %v859
        %v3494 = vunpack.c.l.b16 %v860
        %v3495 = vunpack.c.h.b16 %v860
        %v3496 = vunpack.c.l.b16 %v861
        %v3497 = vunpack.c.h.b16 %v861
        %v3498 = vunpack.c.l.b16 %v862
        %v3499 = vunpack.c.h.b16 %v862
        %v3500 = vunpack.c.l.b16 %v863
        %v3501 = vunpack.c.h.b16 %v863
        %v3502 = vunpack.c.l.b16 %v864
        %v3503 = vunpack.c.h.b16 %v864
        %v3504 = vunpack.c.l.b16 %v865
        %v3505 = vunpack.c.h.b16 %v865
        %v3506 = vunpack.c.l.b16 %v866
        %v3507 = vunpack.c.h.b16 %v866
        %v3508 = vunpack.c.l.b16 %v867
        %v3509 = vunpack.c.h.b16 %v867
        %v3510 = vunpack.c.l.b16 %v868
        %v3511 = vunpack.c.h.b16 %v868
        %v3512 = vunpack.c.l.b16 %v869
        %v3513 = vunpack.c.h.b16 %v869
        %v3514 = vunpack.c.l.b16 %v870
        %v3515 = vunpack.c.h.b16 %v870
        %v3516 = vunpack.c.l.b16 %v871
        %v3517 = vunpack.c.h.b16 %v871
        %v3518 = vunpack.c.l.b16 %v872
        %v3519 = vunpack.c.h.b16 %v872
        %v3520 = vunpack.c.l.b16 %v873
        %v3521 = vunpack.c.h.b16 %v873
        %v3522 = vunpack.c.l.b16 %v874
        %v3523 = vunpack.c.h.b16 %v874
        %v3524 = vunpack.c.l.b16 %v875
        %v3525 = vunpack.c.h.b16 %v875
        %v3526 = vunpack.c.l.b16 %v876
        %v3527 = vunpack.c.h.b16 %v876
        %v3528 = vunpack.c.l.b16 %v877
        %v3529 = vunpack.c.h.b16 %v877
        %v3530 = vunpack.c.l.b16 %v878
        %v3531 = vunpack.c.h.b16 %v878
        %v3532 = vunpack.c.l.b16 %v879
        %v3533 = vunpack.c.h.b16 %v879
        %v3534 = vunpack.c.l.b16 %v880
        %v3535 = vunpack.c.h.b16 %v880
        %v3536 = vunpack.c.l.b16 %v881
        %v3537 = vunpack.c.h.b16 %v881
        %v3538 = vunpack.c.l.b16 %v882
        %v3539 = vunpack.c.h.b16 %v882
        %v3540 = vunpack.c.l.b16 %v883
        %v3541 = vunpack.c.h.b16 %v883
        %v3542 = vunpack.c.l.b16 %v884
        %v3543 = vunpack.c.h.b16 %v884
        %v3544 = vunpack.c.l.b16 %v885
        %v3545 = vunpack.c.h.b16 %v885
        %v3546 = vunpack.c.l.b16 %v886
        %v3547 = vunpack.c.h.b16 %v886
        %v3548 = vunpack.c.l.b16 %v887
        %v3549 = vunpack.c.h.b16 %v887
        %v3550 = vunpack.c.l.b16 %v888
        %v3551 = vunpack.c.h.b16 %v888
        %v3552 = vunpack.c.l.b16 %v889
        %v3553 = vunpack.c.h.b16 %v889
        %v3554 = vunpack.c.l.b16 %v890
        %v3555 = vunpack.c.h.b16 %v890
        %v3556 = vunpack.c.l.b16 %v891
        %v3557 = vunpack.c.h.b16 %v891
        %v3558 = vunpack.c.l.b16 %v892
        %v3559 = vunpack.c.h.b16 %v892
        %v3560 = vunpack.c.l.b16 %v893
        %v3561 = vunpack.c.h.b16 %v893
        %v3562 = vunpack.c.l.b16 %v894
        %v3563 = vunpack.c.h.b16 %v894
        %v3564 = vunpack.c.l.b16 %v895
        %v3565 = vunpack.c.h.b16 %v895
        %v3566 = vunpack.c.l.b16 %v896
        %v3567 = vunpack.c.h.b16 %v896
        %v3568 = vunpack.c.l.b16 %v897
        %v3569 = vunpack.c.h.b16 %v897
        %v3570 = vunpack.c.l.b16 %v898
        %v3571 = vunpack.c.h.b16 %v898
        %v3572 = vunpack.c.l.b16 %v899
        %v3573 = vunpack.c.h.b16 %v899
        %v3574 = vunpack.c.l.b16 %v900
        %v3575 = vunpack.c.h.b16 %v900
        %v3576 = vunpack.c.l.b16 %v901
        %v3577 = vunpack.c.h.b16 %v901
        %v3578 = vunpack.c.l.b16 %v902
        %v3579 = vunpack.c.h.b16 %v902
        %v3580 = vunpack.c.l.b16 %v903
        %v3581 = vunpack.c.h.b16 %v903
        %v3582 = vunpack.c.l.b16 %v904
        %v3583 = vunpack.c.h.b16 %v904
        %v3584 = vunpack.c.l.b16 %v905
        %v3585 = vunpack.c.h.b16 %v905
        %v3586 = vunpack.c.l.b16 %v906
        %v3587 = vunpack.c.h.b16 %v906
        %v3588 = vunpack.c.l.b16 %v907
        %v3589 = vunpack.c.h.b16 %v907
        %v3590 = vunpack.c.l.b16 %v908
        %v3591 = vunpack.c.h.b16 %v908
        %v3592 = vunpack.c.l.b16 %v909
        %v3593 = vunpack.c.h.b16 %v909
        %v3594 = vunpack.c.l.b16 %v910
        %v3595 = vunpack.c.h.b16 %v910
        %v3596 = vunpack.c.l.b16 %v911
        %v3597 = vunpack.c.h.b16 %v911
        %v3598 = vunpack.c.l.b16 %v912
        %v3599 = vunpack.c.h.b16 %v912
        %v3600 = vunpack.c.l.b16 %v913
        %v3601 = vunpack.c.h.b16 %v913
        %v3602 = vunpack.c.l.b16 %v914
        %v3603 = vunpack.c.h.b16 %v914
        %v3604 = vunpack.c.l.b16 %v915
        %v3605 = vunpack.c.h.b16 %v915
        %v3606 = vunpack.c.l.b16 %v916
        %v3607 = vunpack.c.h.b16 %v916
        %v3608 = vunpack.c.l.b16 %v917
        %v3609 = vunpack.c.h.b16 %v917
        %v3610 = vunpack.c.l.b16 %v918
        %v3611 = vunpack.c.h.b16 %v918
        %v3612 = vunpack.c.l.b16 %v919
        %v3613 = vunpack.c.h.b16 %v919
        %v3614 = vunpack.c.l.b16 %v920
        %v3615 = vunpack.c.h.b16 %v920
        %v3616 = vunpack.c.l.b16 %v921
        %v3617 = vunpack.c.h.b16 %v921
        %v3618 = vunpack.c.l.b16 %v922
        %v3619 = vunpack.c.h.b16 %v922
        %v3620 = vunpack.c.l.b16 %v923
        %v3621 = vunpack.c.h.b16 %v923
        %v3622 = vunpack.c.l.b16 %v924
        %v3623 = vunpack.c.h.b16 %v924
        %v3624 = vunpack.c.l.b16 %v925
        %v3625 = vunpack.c.h.b16 %v925
        %v3626 = vunpack.c.l.b16 %v926
        %v3627 = vunpack.c.h.b16 %v926
        %v3628 = vunpack.c.l.b16 %v927
        %v3629 = vunpack.c.h.b16 %v927
        %v3630 = vunpack.c.l.b16 %v928
        %v3631 = vunpack.c.h.b16 %v928
        %v3632 = vunpack.c.l.b16 %v929
        %v3633 = vunpack.c.h.b16 %v929
        %v3634 = vunpack.c.l.b16 %v930
        %v3635 = vunpack.c.h.b16 %v930
        %v3636 = vunpack.c.l.b16 %v931
        %v3637 = vunpack.c.h.b16 %v931
        %v3638 = vunpack.c.l.b16 %v932
        %v3639 = vunpack.c.h.b16 %v932
        %v3640 = vunpack.c.l.b16 %v933
        %v3641 = vunpack.c.h.b16 %v933
        %v3642 = vunpack.c.l.b16 %v934
        %v3643 = vunpack.c.h.b16 %v934
        %v3644 = vunpack.c.l.b16 %v935
        %v3645 = vunpack.c.h.b16 %v935
        %v3646 = vunpack.c.l.b16 %v936
        %v3647 = vunpack.c.h.b16 %v936
        %v3648 = vunpack.c.l.b16 %v937
        %v3649 = vunpack.c.h.b16 %v937
        %v3650 = vunpack.c.l.b16 %v938
        %v3651 = vunpack.c.h.b16 %v938
        %v3652 = vunpack.c.l.b16 %v939
        %v3653 = vunpack.c.h.b16 %v939
        %v3654 = vunpack.c.l.b16 %v940
        %v3655 = vunpack.c.h.b16 %v940
        %v3656 = vunpack.c.l.b16 %v941
        %v3657 = vunpack.c.h.b16 %v941
        %v3658 = vunpack.c.l.b16 %v942
        %v3659 = vunpack.c.h.b16 %v942
        %v3660 = vunpack.c.l.b16 %v943
        %v3661 = vunpack.c.h.b16 %v943
        %v3662 = vunpack.c.l.b16 %v944
        %v3663 = vunpack.c.h.b16 %v944
        %v3664 = vunpack.c.l.b16 %v945
        %v3665 = vunpack.c.h.b16 %v945
        %v3666 = vunpack.c.l.b16 %v946
        %v3667 = vunpack.c.h.b16 %v946
        %v3668 = vunpack.c.l.b16 %v947
        %v3669 = vunpack.c.h.b16 %v947
        %v3670 = vunpack.c.l.b16 %v948
        %v3671 = vunpack.c.h.b16 %v948
        %v3672 = vunpack.c.l.b16 %v949
        %v3673 = vunpack.c.h.b16 %v949
        %v3674 = vunpack.c.l.b16 %v950
        %v3675 = vunpack.c.h.b16 %v950
        %v3676 = vunpack.c.l.b16 %v951
        %v3677 = vunpack.c.h.b16 %v951
        %v3678 = vunpack.c.l.b16 %v952
        %v3679 = vunpack.c.h.b16 %v952
        %v3680 = vunpack.c.l.b16 %v953
        %v3681 = vunpack.c.h.b16 %v953
        %v3682 = vunpack.c.l.b16 %v954
        %v3683 = vunpack.c.h.b16 %v954
        %v3684 = vunpack.c.l.b16 %v955
        %v3685 = vunpack.c.h.b16 %v955
        %v3686 = vunpack.c.l.b16 %v956
        %v3687 = vunpack.c.h.b16 %v956
        %v3688 = vunpack.c.l.b16 %v957
        %v3689 = vunpack.c.h.b16 %v957
        %v3690 = vunpack.c.l.b16 %v958
        %v3691 = vunpack.c.h.b16 %v958
        %v3692 = vunpack.c.l.b16 %v959
        %v3693 = vunpack.c.h.b16 %v959
        %v3694 = vunpack.c.l.b16 %v960
        %v3695 = vunpack.c.h.b16 %v960
        %v3696 = vunpack.c.l.b16 %v961
        %v3697 = vunpack.c.h.b16 %v961
        %v3698 = vunpack.c.l.b16 %v962
        %v3699 = vunpack.c.h.b16 %v962
        %v3700 = vunpack.c.l.b16 %v963
        %v3701 = vunpack.c.h.b16 %v963
        %v3702 = vunpack.c.l.b16 %v964
        %v3703 = vunpack.c.h.b16 %v964
        %v3704 = vunpack.c.l.b16 %v965
        %v3705 = vunpack.c.h.b16 %v965
        %v3706 = vunpack.c.l.b16 %v966
        %v3707 = vunpack.c.h.b16 %v966
        %v3708 = vunpack.c.l.b16 %v967
        %v3709 = vunpack.c.h.b16 %v967
        %v3710 = vunpack.c.l.b16 %v968
        %v3711 = vunpack.c.h.b16 %v968
        %v3712 = vunpack.c.l.b16 %v969
        %v3713 = vunpack.c.h.b16 %v969
        %v3714 = vunpack.c.l.b16 %v970
        %v3715 = vunpack.c.h.b16 %v970
        %v3716 = vunpack.c.l.b16 %v971
        %v3717 = vunpack.c.h.b16 %v971
        %v3718 = vunpack.c.l.b16 %v972
        %v3719 = vunpack.c.h.b16 %v972
        %v3720 = vunpack.c.l.b16 %v973
        %v3721 = vunpack.c.h.b16 %v973
        %v3722 = vunpack.c.l.b16 %v974
        %v3723 = vunpack.c.h.b16 %v974
        %v3724 = vunpack.c.l.b16 %v975
        %v3725 = vunpack.c.h.b16 %v975
        %v3726 = vunpack.c.l.b16 %v976
        %v3727 = vunpack.c.h.b16 %v976
        %v3728 = vunpack.c.l.b16 %v977
        %v3729 = vunpack.c.h.b16 %v977
        %v3730 = vunpack.c.l.b16 %v978
        %v3731 = vunpack.c.h.b16 %v978
        %v3732 = vunpack.c.l.b16 %v979
        %v3733 = vunpack.c.h.b16 %v979
        %v3734 = vunpack.c.l.b16 %v980
        %v3735 = vunpack.c.h.b16 %v980
        %v3736 = vunpack.c.l.b16 %v981
        %v3737 = vunpack.c.h.b16 %v981
        %v3738 = vunpack.c.l.b16 %v982
        %v3739 = vunpack.c.h.b16 %v982
        %v3740 = vunpack.c.l.b16 %v983
        %v3741 = vunpack.c.h.b16 %v983
        %v3742 = vunpack.c.l.b16 %v984
        %v3743 = vunpack.c.h.b16 %v984
        %v3744 = vunpack.c.l.b16 %v985
        %v3745 = vunpack.c.h.b16 %v985
        %v3746 = vunpack.c.l.b16 %v986
        %v3747 = vunpack.c.h.b16 %v986
        %v3748 = vunpack.c.l.b16 %v987
        %v3749 = vunpack.c.h.b16 %v987
        %v3750 = vunpack.c.l.b16 %v988
        %v3751 = vunpack.c.h.b16 %v988
        %v3752 = vunpack.c.l.b16 %v989
        %v3753 = vunpack.c.h.b16 %v989
        %v3754 = vunpack.c.l.b16 %v990
        %v3755 = vunpack.c.h.b16 %v990
        %v3756 = vunpack.c.l.b16 %v991
        %v3757 = vunpack.c.h.b16 %v991
        %v3758 = vunpack.c.l.b16 %v992
        %v3759 = vunpack.c.h.b16 %v992
        %v3760 = vunpack.c.l.b16 %v993
        %v3761 = vunpack.c.h.b16 %v993
        %v3762 = vunpack.c.l.b16 %v994
        %v3763 = vunpack.c.h.b16 %v994
        %v3764 = vunpack.c.l.b16 %v995
        %v3765 = vunpack.c.h.b16 %v995
        %v3766 = vunpack.c.l.b16 %v996
        %v3767 = vunpack.c.h.b16 %v996
        %v3768 = vunpack.c.l.b16 %v997
        %v3769 = vunpack.c.h.b16 %v997
        %v3770 = vunpack.c.l.b16 %v998
        %v3771 = vunpack.c.h.b16 %v998
        %v3772 = vunpack.c.l.b16 %v999
        %v3773 = vunpack.c.h.b16 %v999
        %v3774 = vunpack.c.l.b16 %v1000
        %v3775 = vunpack.c.h.b16 %v1000
        %v3776 = vunpack.c.l.b16 %v1001
        %v3777 = vunpack.c.h.b16 %v1001
        %v3778 = vunpack.c.l.b16 %v1002
        %v3779 = vunpack.c.h.b16 %v1002
        %v3780 = vunpack.c.l.b16 %v1003
        %v3781 = vunpack.c.h.b16 %v1003
        %v3782 = vunpack.c.l.b16 %v1004
        %v3783 = vunpack.c.h.b16 %v1004
        %v3784 = vunpack.c.l.b16 %v1005
        %v3785 = vunpack.c.h.b16 %v1005
        %v3786 = vunpack.c.l.b16 %v1006
        %v3787 = vunpack.c.h.b16 %v1006
        %v3788 = vunpack.c.l.b16 %v1007
        %v3789 = vunpack.c.h.b16 %v1007
        %v3790 = vunpack.c.l.b16 %v1008
        %v3791 = vunpack.c.h.b16 %v1008
        %v3792 = vunpack.c.l.b16 %v1009
        %v3793 = vunpack.c.h.b16 %v1009
        %v3794 = vunpack.c.l.b16 %v1010
        %v3795 = vunpack.c.h.b16 %v1010
        %v3796 = vunpack.c.l.b16 %v1011
        %v3797 = vunpack.c.h.b16 %v1011
        %v3798 = vunpack.c.l.b16 %v1012
        %v3799 = vunpack.c.h.b16 %v1012
        %v3800 = vunpack.c.l.b16 %v1013
        %v3801 = vunpack.c.h.b16 %v1013
        %v3802 = vunpack.c.l.b16 %v1014
        %v3803 = vunpack.c.h.b16 %v1014
        %v3804 = vunpack.c.l.b16 %v1015
        %v3805 = vunpack.c.h.b16 %v1015
        %v3806 = vunpack.c.l.b16 %v1016
        %v3807 = vunpack.c.h.b16 %v1016
        %v3808 = vunpack.c.l.b16 %v1017
        %v3809 = vunpack.c.h.b16 %v1017
        %v3810 = vunpack.c.l.b16 %v1018
        %v3811 = vunpack.c.h.b16 %v1018
        %v3812 = vunpack.c.l.b16 %v1019
        %v3813 = vunpack.c.h.b16 %v1019
        %v3814 = vunpack.c.l.b16 %v1020
        %v3815 = vunpack.c.h.b16 %v1020
        %v3816 = vunpack.c.l.b16 %v1021
        %v3817 = vunpack.c.h.b16 %v1021
        %v3818 = vunpack.c.l.b16 %v1022
        %v3819 = vunpack.c.h.b16 %v1022
        %v3820 = vunpack.c.l.b16 %v1023
        %v3821 = vunpack.c.h.b16 %v1023
        %v3822 = vunpack.c.l.b16 %v1024
        %v3823 = vunpack.c.h.b16 %v1024
        %v3824 = vunpack.c.l.b16 %v1025
        %v3825 = vunpack.c.h.b16 %v1025
        %v3826 = vunpack.c.l.b16 %v1026
        %v3827 = vunpack.c.h.b16 %v1026
        %v3828 = vunpack.c.l.b16 %v1027
        %v3829 = vunpack.c.h.b16 %v1027
        %v3830 = vunpack.c.l.b16 %v1028
        %v3831 = vunpack.c.h.b16 %v1028
        %v3832 = vunpack.c.l.b16 %v1029
        %v3833 = vunpack.c.h.b16 %v1029
        %v3834 = vunpack.c.l.b16 %v1030
        %v3835 = vunpack.c.h.b16 %v1030
        %v3836 = vunpack.c.l.b16 %v1031
        %v3837 = vunpack.c.h.b16 %v1031
        %v3838 = vunpack.c.l.b16 %v1032
        %v3839 = vunpack.c.h.b16 %v1032
        %v3840 = vunpack.c.l.b16 %v1033
        %v3841 = vunpack.c.h.b16 %v1033
        %v3842 = vunpack.c.l.b16 %v1034
        %v3843 = vunpack.c.h.b16 %v1034
        %v3844 = vunpack.c.l.b16 %v1035
        %v3845 = vunpack.c.h.b16 %v1035
        %v3846 = vunpack.c.l.b16 %v1036
        %v3847 = vunpack.c.h.b16 %v1036
        %v3848 = vunpack.c.l.b16 %v1037
        %v3849 = vunpack.c.h.b16 %v1037
        %v3850 = vunpack.c.l.b16 %v1038
        %v3851 = vunpack.c.h.b16 %v1038
        %v3852 = vunpack.c.l.b16 %v1039
        %v3853 = vunpack.c.h.b16 %v1039
        %v3854 = vunpack.c.l.b16 %v1040
        %v3855 = vunpack.c.h.b16 %v1040
        %v3856 = vunpack.c.l.b16 %v1041
        %v3857 = vunpack.c.h.b16 %v1041
        %v3858 = vunpack.c.l.b16 %v1042
        %v3859 = vunpack.c.h.b16 %v1042
        %v3860 = vunpack.c.l.b16 %v1043
        %v3861 = vunpack.c.h.b16 %v1043
        %v3862 = vunpack.c.l.b16 %v1044
        %v3863 = vunpack.c.h.b16 %v1044
        %v3864 = vunpack.c.l.b16 %v1045
        %v3865 = vunpack.c.h.b16 %v1045
        %v3866 = vunpack.c.l.b16 %v1046
        %v3867 = vunpack.c.h.b16 %v1046
        %v3868 = vunpack.c.l.b16 %v1047
        %v3869 = vunpack.c.h.b16 %v1047
        %v3870 = vunpack.c.l.b16 %v1048
        %v3871 = vunpack.c.h.b16 %v1048
        %v3872 = vunpack.c.l.b16 %v1049
        %v3873 = vunpack.c.h.b16 %v1049
        %v3874 = vunpack.c.l.b16 %v1050
        %v3875 = vunpack.c.h.b16 %v1050
        %v3876 = vunpack.c.l.b16 %v1051
        %v3877 = vunpack.c.h.b16 %v1051
        %v3878 = vunpack.c.l.b16 %v1052
        %v3879 = vunpack.c.h.b16 %v1052
        %v3880 = vunpack.c.l.b16 %v1053
        %v3881 = vunpack.c.h.b16 %v1053
        %v3882 = vunpack.c.l.b16 %v1054
        %v3883 = vunpack.c.h.b16 %v1054
        %v3884 = vunpack.c.l.b16 %v1055
        %v3885 = vunpack.c.h.b16 %v1055
        %v3886 = vunpack.c.l.b16 %v1056
        %v3887 = vunpack.c.h.b16 %v1056
        %v3888 = vunpack.c.l.b16 %v1057
        %v3889 = vunpack.c.h.b16 %v1057
        %v3890 = vunpack.c.l.b16 %v1058
        %v3891 = vunpack.c.h.b16 %v1058
        %v3892 = vunpack.c.l.b16 %v1059
        %v3893 = vunpack.c.h.b16 %v1059
        %v3894 = vunpack.c.l.b16 %v1060
        %v3895 = vunpack.c.h.b16 %v1060
        %v3896 = vunpack.c.l.b16 %v1061
        %v3897 = vunpack.c.h.b16 %v1061
        %v3898 = vunpack.c.l.b16 %v1062
        %v3899 = vunpack.c.h.b16 %v1062
        %v3900 = vunpack.c.l.b16 %v1063
        %v3901 = vunpack.c.h.b16 %v1063
        %v3902 = vunpack.c.l.b16 %v1064
        %v3903 = vunpack.c.h.b16 %v1064
        %v3904 = vunpack.c.l.b16 %v1065
        %v3905 = vunpack.c.h.b16 %v1065
        %v3906 = vunpack.c.l.b16 %v1066
        %v3907 = vunpack.c.h.b16 %v1066
        %v3908 = vunpack.c.l.b16 %v1067
        %v3909 = vunpack.c.h.b16 %v1067
        %v3910 = vunpack.c.l.b16 %v1068
        %v3911 = vunpack.c.h.b16 %v1068
        %v3912 = vunpack.c.l.b16 %v1069
        %v3913 = vunpack.c.h.b16 %v1069
        %v3914 = vunpack.c.l.b16 %v1070
        %v3915 = vunpack.c.h.b16 %v1070
        %v3916 = vunpack.c.l.b16 %v1071
        %v3917 = vunpack.c.h.b16 %v1071
        %v3918 = vunpack.c.l.b16 %v1072
        %v3919 = vunpack.c.h.b16 %v1072
        %v3920 = vunpack.c.l.b16 %v1073
        %v3921 = vunpack.c.h.b16 %v1073
        %v3922 = vunpack.c.l.b16 %v1074
        %v3923 = vunpack.c.h.b16 %v1074
        %v3924 = vunpack.c.l.b16 %v1075
        %v3925 = vunpack.c.h.b16 %v1075
        %v3926 = vunpack.c.l.b16 %v1076
        %v3927 = vunpack.c.h.b16 %v1076
        %v3928 = vunpack.c.l.b16 %v1077
        %v3929 = vunpack.c.h.b16 %v1077
        %v3930 = vunpack.c.l.b16 %v1078
        %v3931 = vunpack.c.h.b16 %v1078
        %v3932 = vunpack.c.l.b16 %v1079
        %v3933 = vunpack.c.h.b16 %v1079
        %v3934 = vunpack.c.l.b16 %v1080
        %v3935 = vunpack.c.h.b16 %v1080
        %v3936 = vunpack.c.l.b16 %v1081
        %v3937 = vunpack.c.h.b16 %v1081
        %v3938 = vunpack.c.l.b16 %v1082
        %v3939 = vunpack.c.h.b16 %v1082
        %v3940 = vunpack.c.l.b16 %v1083
        %v3941 = vunpack.c.h.b16 %v1083
        %v3942 = vunpack.c.l.b16 %v1084
        %v3943 = vunpack.c.h.b16 %v1084
        %v3944 = vunpack.c.l.b16 %v1085
        %v3945 = vunpack.c.h.b16 %v1085
        %v3946 = vunpack.c.l.b16 %v1086
        %v3947 = vunpack.c.h.b16 %v1086
        %v3948 = vunpack.c.l.b16 %v1087
        %v3949 = vunpack.c.h.b16 %v1087
        %v3950 = vunpack.c.l.b16 %v1088
        %v3951 = vunpack.c.h.b16 %v1088
        %v3952 = vunpack.c.l.b16 %v1089
        %v3953 = vunpack.c.h.b16 %v1089
        %v3954 = vunpack.c.l.b16 %v1090
        %v3955 = vunpack.c.h.b16 %v1090
        %v3956 = vunpack.c.l.b16 %v1091
        %v3957 = vunpack.c.h.b16 %v1091
        %v3958 = vunpack.c.l.b16 %v1092
        %v3959 = vunpack.c.h.b16 %v1092
        %v3960 = vunpack.c.l.b16 %v1093
        %v3961 = vunpack.c.h.b16 %v1093
        %v3962 = vunpack.c.l.b16 %v1094
        %v3963 = vunpack.c.h.b16 %v1094
        %v3964 = vunpack.c.l.b16 %v1095
        %v3965 = vunpack.c.h.b16 %v1095
        %v3966 = vunpack.c.l.b16 %v1096
        %v3967 = vunpack.c.h.b16 %v1096
        %v3968 = vunpack.c.l.b16 %v1097
        %v3969 = vunpack.c.h.b16 %v1097
        %v3970 = vunpack.c.l.b16 %v1098
        %v3971 = vunpack.c.h.b16 %v1098
        %v3972 = vunpack.c.l.b16 %v1099
        %v3973 = vunpack.c.h.b16 %v1099
        %v3974 = vunpack.c.l.b16 %v1100
        %v3975 = vunpack.c.h.b16 %v1100
        %v3976 = vunpack.c.l.b16 %v1101
        %v3977 = vunpack.c.h.b16 %v1101
        %v3978 = vunpack.c.l.b16 %v1102
        %v3979 = vunpack.c.h.b16 %v1102
        %v3980 = vunpack.c.l.b16 %v1103
        %v3981 = vunpack.c.h.b16 %v1103
        %v3982 = vunpack.c.l.b16 %v1104
        %v3983 = vunpack.c.h.b16 %v1104
        %v3984 = vunpack.c.l.b16 %v1105
        %v3985 = vunpack.c.h.b16 %v1105
        %v3986 = vunpack.c.l.b16 %v1106
        %v3987 = vunpack.c.h.b16 %v1106
        %v3988 = vunpack.c.l.b16 %v1107
        %v3989 = vunpack.c.h.b16 %v1107
        %v3990 = vunpack.c.l.b16 %v1108
        %v3991 = vunpack.c.h.b16 %v1108
        %v3992 = vunpack.c.l.b16 %v1109
        %v3993 = vunpack.c.h.b16 %v1109
        %v3994 = vunpack.c.l.b16 %v1110
        %v3995 = vunpack.c.h.b16 %v1110
        %v3996 = vunpack.c.l.b16 %v1111
        %v3997 = vunpack.c.h.b16 %v1111
        %v3998 = vunpack.c.l.b16 %v1112
        %v3999 = vunpack.c.h.b16 %v1112
        %v4000 = vunpack.c.l.b16 %v1113
        %v4001 = vunpack.c.h.b16 %v1113
        %v4002 = vunpack.c.l.b16 %v1114
        %v4003 = vunpack.c.h.b16 %v1114
        %v4004 = vunpack.c.l.b16 %v1115
        %v4005 = vunpack.c.h.b16 %v1115
        %v4006 = vunpack.c.l.b16 %v1116
        %v4007 = vunpack.c.h.b16 %v1116
        %v4008 = vunpack.c.l.b16 %v1117
        %v4009 = vunpack.c.h.b16 %v1117
        %v4010 = vunpack.c.l.b16 %v1118
        %v4011 = vunpack.c.h.b16 %v1118
        %v4012 = vunpack.c.l.b16 %v1119
        %v4013 = vunpack.c.h.b16 %v1119
        %v4014 = vunpack.c.l.b16 %v1120
        %v4015 = vunpack.c.h.b16 %v1120
        %v4016 = vunpack.c.l.b16 %v1121
        %v4017 = vunpack.c.h.b16 %v1121
        %v4018 = vunpack.c.l.b16 %v1122
        %v4019 = vunpack.c.h.b16 %v1122
        %v4020 = vunpack.c.l.b16 %v1123
        %v4021 = vunpack.c.h.b16 %v1123
        %v4022 = vunpack.c.l.b16 %v1124
        %v4023 = vunpack.c.h.b16 %v1124
        %v4024 = vunpack.c.l.b16 %v1125
        %v4025 = vunpack.c.h.b16 %v1125
        %v4026 = vunpack.c.l.b16 %v1126
        %v4027 = vunpack.c.h.b16 %v1126
        %v4028 = vunpack.c.l.b16 %v1127
        %v4029 = vunpack.c.h.b16 %v1127
        %v4030 = vunpack.c.l.b16 %v1128
        %v4031 = vunpack.c.h.b16 %v1128
        %v4032 = vunpack.c.l.b16 %v1129
        %v4033 = vunpack.c.h.b16 %v1129
        %v4034 = vunpack.c.l.b16 %v1130
        %v4035 = vunpack.c.h.b16 %v1130
        %v4036 = vunpack.c.l.b16 %v1131
        %v4037 = vunpack.c.h.b16 %v1131
        %v4038 = vunpack.c.l.b16 %v1132
        %v4039 = vunpack.c.h.b16 %v1132
        %v4040 = vunpack.c.l.b16 %v1133
        %v4041 = vunpack.c.h.b16 %v1133
        %v4042 = vunpack.c.l.b16 %v1134
        %v4043 = vunpack.c.h.b16 %v1134
        %v4044 = vunpack.c.l.b16 %v1135
        %v4045 = vunpack.c.h.b16 %v1135
        %v4046 = vunpack.c.l.b16 %v1136
        %v4047 = vunpack.c.h.b16 %v1136
        %v4048 = vunpack.c.l.b16 %v1137
        %v4049 = vunpack.c.h.b16 %v1137
        %v4050 = vunpack.c.l.b16 %v1138
        %v4051 = vunpack.c.h.b16 %v1138
        %v4052 = vunpack.c.l.b16 %v1139
        %v4053 = vunpack.c.h.b16 %v1139
        %v4054 = vunpack.c.l.b16 %v1140
        %v4055 = vunpack.c.h.b16 %v1140
        %v4056 = vunpack.c.l.b16 %v1141
        %v4057 = vunpack.c.h.b16 %v1141
        %v4058 = vunpack.c.l.b16 %v1142
        %v4059 = vunpack.c.h.b16 %v1142
        %v4060 = vunpack.c.l.b16 %v1143
        %v4061 = vunpack.c.h.b16 %v1143
        %v4062 = vunpack.c.l.b16 %v1144
        %v4063 = vunpack.c.h.b16 %v1144
        %v4064 = vunpack.c.l.b16 %v1145
        %v4065 = vunpack.c.h.b16 %v1145
        %v4066 = vunpack.c.l.b16 %v1146
        %v4067 = vunpack.c.h.b16 %v1146
        %v4068 = vunpack.c.l.b16 %v1147
        %v4069 = vunpack.c.h.b16 %v1147
        %v4070 = vunpack.c.l.b16 %v1148
        %v4071 = vunpack.c.h.b16 %v1148
        %v4072 = vunpack.c.l.b16 %v1149
        %v4073 = vunpack.c.h.b16 %v1149
        %v4074 = vunpack.c.l.b16 %v1150
        %v4075 = vunpack.c.h.b16 %v1150
        %v4076 = vunpack.c.l.b16 %v1151
        %v4077 = vunpack.c.h.b16 %v1151
        %v4078 = vunpack.c.l.b16 %v1152
        %v4079 = vunpack.c.h.b16 %v1152
        %v4080 = vunpack.c.l.b16 %v1153
        %v4081 = vunpack.c.h.b16 %v1153
        %v4082 = vunpack.c.l.b16 %v1154
        %v4083 = vunpack.c.h.b16 %v1154
        %v4084 = vunpack.c.l.b16 %v1155
        %v4085 = vunpack.c.h.b16 %v1155
        %v4086 = vunpack.c.l.b16 %v1156
        %v4087 = vunpack.c.h.b16 %v1156
        %v4088 = vunpack.c.l.b16 %v1157
        %v4089 = vunpack.c.h.b16 %v1157
        %v4090 = vunpack.c.l.b16 %v1158
        %v4091 = vunpack.c.h.b16 %v1158
        %v4092 = vunpack.c.l.b16 %v1159
        %v4093 = vunpack.c.h.b16 %v1159
        %v4094 = vunpack.c.l.b16 %v1160
        %v4095 = vunpack.c.h.b16 %v1160
        %v4096 = vunpack.c.l.b16 %v1161
        %v4097 = vunpack.c.h.b16 %v1161
        %v4098 = vunpack.c.l.b16 %v1162
        %v4099 = vunpack.c.h.b16 %v1162
        %v4100 = vunpack.c.l.b16 %v1163
        %v4101 = vunpack.c.h.b16 %v1163
        %v4102 = vunpack.c.l.b16 %v1164
        %v4103 = vunpack.c.h.b16 %v1164
        %v4104 = vunpack.c.l.b16 %v1165
        %v4105 = vunpack.c.h.b16 %v1165
        %v4106 = vunpack.c.l.b16 %v1166
        %v4107 = vunpack.c.h.b16 %v1166
        %v4108 = vunpack.c.l.b16 %v1167
        %v4109 = vunpack.c.h.b16 %v1167
        %v4110 = vunpack.c.l.b16 %v1168
        %v4111 = vunpack.c.h.b16 %v1168
        %v4112 = vunpack.c.l.b16 %v1169
        %v4113 = vunpack.c.h.b16 %v1169
        %v4114 = vunpack.c.l.b16 %v1170
        %v4115 = vunpack.c.h.b16 %v1170
        %v4116 = vunpack.c.l.b16 %v1171
        %v4117 = vunpack.c.h.b16 %v1171
        %v4118 = vunpack.c.l.b16 %v1172
        %v4119 = vunpack.c.h.b16 %v1172
        %v4120 = vunpack.c.l.b16 %v1173
        %v4121 = vunpack.c.h.b16 %v1173
        %v4122 = vunpack.c.l.b16 %v1174
        %v4123 = vunpack.c.h.b16 %v1174
        %v4124 = vunpack.c.l.b16 %v1175
        %v4125 = vunpack.c.h.b16 %v1175
        %v4126 = vunpack.c.l.b16 %v1176
        %v4127 = vunpack.c.h.b16 %v1176
        %v4128 = vunpack.c.l.b16 %v1177
        %v4129 = vunpack.c.h.b16 %v1177
        %v4130 = vunpack.c.l.b16 %v1178
        %v4131 = vunpack.c.h.b16 %v1178
        %v4132 = vunpack.c.l.b16 %v1179
        %v4133 = vunpack.c.h.b16 %v1179
        %v4134 = vunpack.c.l.b16 %v1180
        %v4135 = vunpack.c.h.b16 %v1180
        %v4136 = vunpack.c.l.b16 %v1181
        %v4137 = vunpack.c.h.b16 %v1181
        %v4138 = vunpack.c.l.b16 %v1182
        %v4139 = vunpack.c.h.b16 %v1182
        %v4140 = vunpack.c.l.b16 %v1183
        %v4141 = vunpack.c.h.b16 %v1183
        %v4142 = vunpack.c.l.b16 %v1184
        %v4143 = vunpack.c.h.b16 %v1184
        %v4144 = vunpack.c.l.b16 %v1185
        %v4145 = vunpack.c.h.b16 %v1185
        %v4146 = vunpack.c.l.b16 %v1186
        %v4147 = vunpack.c.h.b16 %v1186
        %v4148 = vunpack.c.l.b16 %v1187
        %v4149 = vunpack.c.h.b16 %v1187
        %v4150 = vunpack.c.l.b16 %v1188
        %v4151 = vunpack.c.h.b16 %v1188
        %v4152 = vunpack.c.l.b16 %v1189
        %v4153 = vunpack.c.h.b16 %v1189
        %v4154 = vunpack.c.l.b16 %v1190
        %v4155 = vunpack.c.h.b16 %v1190
        %v4156 = vunpack.c.l.b16 %v1191
        %v4157 = vunpack.c.h.b16 %v1191
        %v4158 = vunpack.c.l.b16 %v1192
        %v4159 = vunpack.c.h.b16 %v1192
        %v4160 = vunpack.c.l.b16 %v1193
        %v4161 = vunpack.c.h.b16 %v1193
        %v4162 = vunpack.c.l.b16 %v1194
        %v4163 = vunpack.c.h.b16 %v1194
        %v4164 = vunpack.c.l.b16 %v1195
        %v4165 = vunpack.c.h.b16 %v1195
        %v4166 = vunpack.c.l.b16 %v1196
        %v4167 = vunpack.c.h.b16 %v1196
        %v4168 = vunpack.c.l.b16 %v1197
        %v4169 = vunpack.c.h.b16 %v1197
        %v4170 = vunpack.c.l.b16 %v1198
        %v4171 = vunpack.c.h.b16 %v1198
        %v4172 = vunpack.c.l.b16 %v1199
        %v4173 = vunpack.c.h.b16 %v1199
        %v4174 = vunpack.c.l.b16 %v1200
        %v4175 = vunpack.c.h.b16 %v1200
        %v4176 = vunpack.c.l.b16 %v1201
        %v4177 = vunpack.c.h.b16 %v1201
        %v4178 = vunpack.c.l.b16 %v1202
        %v4179 = vunpack.c.h.b16 %v1202
        %v4180 = vunpack.c.l.b16 %v1203
        %v4181 = vunpack.c.h.b16 %v1203
        %v4182 = vunpack.c.l.b16 %v1204
        %v4183 = vunpack.c.h.b16 %v1204
        %v4184 = vunpack.c.l.b16 %v1205
        %v4185 = vunpack.c.h.b16 %v1205
        %v4186 = vunpack.c.l.b16 %v1206
        %v4187 = vunpack.c.h.b16 %v1206
        %v4188 = vunpack.c.l.b16 %v1207
        %v4189 = vunpack.c.h.b16 %v1207
        %v4190 = vunpack.c.l.b16 %v1208
        %v4191 = vunpack.c.h.b16 %v1208
        %v4192 = vunpack.c.l.b16 %v1209
        %v4193 = vunpack.c.h.b16 %v1209
        %v4194 = vunpack.c.l.b16 %v1210
        %v4195 = vunpack.c.h.b16 %v1210
        %v4196 = vunpack.c.l.b16 %v1211
        %v4197 = vunpack.c.h.b16 %v1211
        %v4198 = vunpack.c.l.b16 %v1212
        %v4199 = vunpack.c.h.b16 %v1212
        %v4200 = vunpack.c.l.b16 %v1213
        %v4201 = vunpack.c.h.b16 %v1213
        %v4202 = vunpack.c.l.b16 %v1214
        %v4203 = vunpack.c.h.b16 %v1214
        %v4204 = vunpack.c.l.b16 %v1215
        %v4205 = vunpack.c.h.b16 %v1215
        %v4206 = vunpack.c.l.b16 %v1216
        %v4207 = vunpack.c.h.b16 %v1216
        %v4208 = vunpack.c.l.b16 %v1217
        %v4209 = vunpack.c.h.b16 %v1217
        %v4210 = vunpack.c.l.b16 %v1218
        %v4211 = vunpack.c.h.b16 %v1218
        %v4212 = vunpack.c.l.b16 %v1219
        %v4213 = vunpack.c.h.b16 %v1219
        %v4214 = vunpack.c.l.b16 %v1220
        %v4215 = vunpack.c.h.b16 %v1220
        %v4216 = vunpack.c.l.b16 %v1221
        %v4217 = vunpack.c.h.b16 %v1221
        %v4218 = vunpack.c.l.b16 %v1222
        %v4219 = vunpack.c.h.b16 %v1222
        %v4220 = vunpack.c.l.b16 %v1223
        %v4221 = vunpack.c.h.b16 %v1223
        %v4222 = vunpack.c.l.b16 %v1224
        %v4223 = vunpack.c.h.b16 %v1224
        %v4224 = vunpack.c.l.b16 %v1225
        %v4225 = vunpack.c.h.b16 %v1225
        %v4226 = vunpack.c.l.b16 %v1226
        %v4227 = vunpack.c.h.b16 %v1226
        %v4228 = vunpack.c.l.b16 %v1227
        %v4229 = vunpack.c.h.b16 %v1227
        %v4230 = vunpack.c.l.b16 %v1228
        %v4231 = vunpack.c.h.b16 %v1228
        %v4232 = vunpack.c.l.b16 %v1229
        %v4233 = vunpack.c.h.b16 %v1229
        %v4234 = vunpack.c.l.b16 %v1230
        %v4235 = vunpack.c.h.b16 %v1230
        %v4236 = vunpack.c.l.b16 %v1231
        %v4237 = vunpack.c.h.b16 %v1231
        %v4238 = vunpack.c.l.b16 %v1232
        %v4239 = vunpack.c.h.b16 %v1232
        %v4240 = vunpack.c.l.b16 %v1233
        %v4241 = vunpack.c.h.b16 %v1233
        %v4242 = vunpack.c.l.b16 %v1234
        %v4243 = vunpack.c.h.b16 %v1234
        %v4244 = vunpack.c.l.b16 %v1235
        %v4245 = vunpack.c.h.b16 %v1235
        %v4246 = vunpack.c.l.b16 %v1236
        %v4247 = vunpack.c.h.b16 %v1236
        %v4248 = vunpack.c.l.b16 %v1237
        %v4249 = vunpack.c.h.b16 %v1237
        %v4250 = vunpack.c.l.b16 %v1238
        %v4251 = vunpack.c.h.b16 %v1238
        %v4252 = vunpack.c.l.b16 %v1239
        %v4253 = vunpack.c.h.b16 %v1239
        %v4254 = vunpack.c.l.b16 %v1240
        %v4255 = vunpack.c.h.b16 %v1240
        %v4256 = vunpack.c.l.b16 %v1241
        %v4257 = vunpack.c.h.b16 %v1241
        %v4258 = vunpack.c.l.b16 %v1242
        %v4259 = vunpack.c.h.b16 %v1242
        %v4260 = vunpack.c.l.b16 %v1243
        %v4261 = vunpack.c.h.b16 %v1243
        %v4262 = vunpack.c.l.b16 %v1244
        %v4263 = vunpack.c.h.b16 %v1244
        %v4264 = vunpack.c.l.b16 %v1245
        %v4265 = vunpack.c.h.b16 %v1245
        %v4266 = vunpack.c.l.b16 %v1246
        %v4267 = vunpack.c.h.b16 %v1246
        %v4268 = vunpack.c.l.b16 %v1247
        %v4269 = vunpack.c.h.b16 %v1247
        %v4270 = vunpack.c.l.b16 %v1248
        %v4271 = vunpack.c.h.b16 %v1248
        %v4272 = vunpack.c.l.b16 %v1249
        %v4273 = vunpack.c.h.b16 %v1249
        %v4274 = vunpack.c.l.b16 %v1250
        %v4275 = vunpack.c.h.b16 %v1250
        %v4276 = vunpack.c.l.b16 %v1251
        %v4277 = vunpack.c.h.b16 %v1251
        %v4278 = vunpack.c.l.b16 %v1252
        %v4279 = vunpack.c.h.b16 %v1252
        %v4280 = vunpack.c.l.b16 %v1253
        %v4281 = vunpack.c.h.b16 %v1253
        %v4282 = vunpack.c.l.b16 %v1254
        %v4283 = vunpack.c.h.b16 %v1254
        %v4284 = vunpack.c.l.b16 %v1255
        %v4285 = vunpack.c.h.b16 %v1255
        %v4286 = vunpack.c.l.b16 %v1256
        %v4287 = vunpack.c.h.b16 %v1256
        %v4288 = vunpack.c.l.b16 %v1257
        %v4289 = vunpack.c.h.b16 %v1257
        %v4290 = vunpack.c.l.b16 %v1258
        %v4291 = vunpack.c.h.b16 %v1258
        %v4292 = vunpack.c.l.b16 %v1259
        %v4293 = vunpack.c.h.b16 %v1259
        %v4294 = vunpack.c.l.b16 %v1260
        %v4295 = vunpack.c.h.b16 %v1260
        %v4296 = vunpack.c.l.b16 %v1261
        %v4297 = vunpack.c.h.b16 %v1261
        %v4298 = vunpack.c.l.b16 %v1262
        %v4299 = vunpack.c.h.b16 %v1262
        %v4300 = vunpack.c.l.b16 %v1263
        %v4301 = vunpack.c.h.b16 %v1263
        %v4302 = vunpack.c.l.b16 %v1264
        %v4303 = vunpack.c.h.b16 %v1264
        %v4304 = vunpack.c.l.b16 %v1265
        %v4305 = vunpack.c.h.b16 %v1265
        %v4306 = vunpack.c.l.b16 %v1266
        %v4307 = vunpack.c.h.b16 %v1266
        %v4308 = vunpack.c.l.b16 %v1267
        %v4309 = vunpack.c.h.b16 %v1267
        %v4310 = vunpack.c.l.b16 %v1268
        %v4311 = vunpack.c.h.b16 %v1268
        %v4312 = vunpack.c.l.b16 %v1269
        %v4313 = vunpack.c.h.b16 %v1269
        %v4314 = vunpack.c.l.b16 %v1270
        %v4315 = vunpack.c.h.b16 %v1270
        %v4316 = vunpack.c.l.b16 %v1271
        %v4317 = vunpack.c.h.b16 %v1271
        %v4318 = vunpack.c.l.b16 %v1272
        %v4319 = vunpack.c.h.b16 %v1272
        %v4320 = vunpack.c.l.b16 %v1273
        %v4321 = vunpack.c.h.b16 %v1273
        %v4322 = vunpack.c.l.b16 %v1274
        %v4323 = vunpack.c.h.b16 %v1274
        %v4324 = vunpack.c.l.b16 %v1275
        %v4325 = vunpack.c.h.b16 %v1275
        %v4326 = vunpack.c.l.b16 %v1276
        %v4327 = vunpack.c.h.b16 %v1276
        %v4328 = vunpack.c.l.b16 %v1277
        %v4329 = vunpack.c.h.b16 %v1277
        %v4330 = vunpack.c.l.b16 %v1278
        %v4331 = vunpack.c.h.b16 %v1278
        %v4332 = vunpack.c.l.b16 %v1279
        %v4333 = vunpack.c.h.b16 %v1279
        %v4334 = vunpack.c.l.b16 %v1280
        %v4335 = vunpack.c.h.b16 %v1280
        %v4336 = vunpack.c.l.b16 %v1281
        %v4337 = vunpack.c.h.b16 %v1281
        %v4338 = vunpack.c.l.b16 %v1282
        %v4339 = vunpack.c.h.b16 %v1282
        %v4340 = vunpack.c.l.b16 %v1283
        %v4341 = vunpack.c.h.b16 %v1283
        %v4342 = vunpack.c.l.b16 %v1284
        %v4343 = vunpack.c.h.b16 %v1284
        %v4344 = vunpack.c.l.b16 %v1285
        %v4345 = vunpack.c.h.b16 %v1285
        %v4346 = vunpack.c.l.b16 %v1286
        %v4347 = vunpack.c.h.b16 %v1286
        %v4348 = vunpack.c.l.b16 %v1287
        %v4349 = vunpack.c.h.b16 %v1287
        %v4350 = vunpack.c.l.b16 %v1288
        %v4351 = vunpack.c.h.b16 %v1288
        %v4352 = vunpack.c.l.b16 %v1289
        %v4353 = vunpack.c.h.b16 %v1289
        %v4354 = vunpack.c.l.b16 %v1290
        %v4355 = vunpack.c.h.b16 %v1290
        %v4356 = vunpack.c.l.b16 %v1291
        %v4357 = vunpack.c.h.b16 %v1291
        %v4358 = vunpack.c.l.b16 %v1292
        %v4359 = vunpack.c.h.b16 %v1292
        %v4360 = vunpack.c.l.b16 %v1293
        %v4361 = vunpack.c.h.b16 %v1293
        %v4362 = vunpack.c.l.b16 %v1294
        %v4363 = vunpack.c.h.b16 %v1294
        %v4364 = vunpack.c.l.b16 %v1295
        %v4365 = vunpack.c.h.b16 %v1295
        %v4366 = vunpack.c.l.b16 %v1296
        %v4367 = vunpack.c.h.b16 %v1296
        %v4368 = vunpack.c.l.b16 %v1297
        %v4369 = vunpack.c.h.b16 %v1297
        %v4370 = vunpack.c.l.b16 %v1298
        %v4371 = vunpack.c.h.b16 %v1298
        %v4372 = vunpack.c.l.b16 %v1299
        %v4373 = vunpack.c.h.b16 %v1299
        %v4374 = vunpack.c.l.b16 %v1300
        %v4375 = vunpack.c.h.b16 %v1300
        %v4376 = vunpack.c.l.b16 %v1301
        %v4377 = vunpack.c.h.b16 %v1301
        %v4378 = vunpack.c.l.b16 %v1302
        %v4379 = vunpack.c.h.b16 %v1302
        %v4380 = vunpack.c.l.b16 %v1303
        %v4381 = vunpack.c.h.b16 %v1303
        %v4382 = vunpack.c.l.b16 %v1304
        %v4383 = vunpack.c.h.b16 %v1304
        %v4384 = vunpack.c.l.b16 %v1305
        %v4385 = vunpack.c.h.b16 %v1305
        %v4386 = vunpack.c.l.b16 %v1306
        %v4387 = vunpack.c.h.b16 %v1306
        %v4388 = vunpack.c.l.b16 %v1307
        %v4389 = vunpack.c.h.b16 %v1307
        %v4390 = vunpack.c.l.b16 %v1308
        %v4391 = vunpack.c.h.b16 %v1308
        %v4392 = vunpack.c.l.b16 %v1309
        %v4393 = vunpack.c.h.b16 %v1309
        %v4394 = vunpack.c.l.b16 %v1310
        %v4395 = vunpack.c.h.b16 %v1310
        %v4396 = vunpack.c.l.b16 %v1311
        %v4397 = vunpack.c.h.b16 %v1311
        %v4398 = vunpack.c.l.b16 %v1312
        %v4399 = vunpack.c.h.b16 %v1312
        %v4400 = vunpack.c.l.b16 %v1313
        %v4401 = vunpack.c.h.b16 %v1313
        %v4402 = vunpack.c.l.b16 %v1314
        %v4403 = vunpack.c.h.b16 %v1314
        %v4404 = vunpack.c.l.b16 %v1315
        %v4405 = vunpack.c.h.b16 %v1315
        %v4406 = vunpack.c.l.b16 %v1316
        %v4407 = vunpack.c.h.b16 %v1316
        %v4408 = vunpack.c.l.b16 %v1317
        %v4409 = vunpack.c.h.b16 %v1317
        %v4410 = vunpack.c.l.b16 %v1318
        %v4411 = vunpack.c.h.b16 %v1318
        %v4412 = vunpack.c.l.b16 %v1319
        %v4413 = vunpack.c.h.b16 %v1319
        %v4414 = vpack.c.b16 %v2370, %v2366
        %v4415 = vpack.c.b16 %v2371, %v2367
        %v4416 = vpack.c.b16 %v2372, %v2368
        %v4417 = vpack.c.b16 %v2373, %v2369
        %v4418 = vpack.c.b16 %v2378, %v2374
        %v4419 = vpack.c.b16 %v2379, %v2375
        %v4420 = vpack.c.b16 %v2380, %v2376
        %v4421 = vpack.c.b16 %v2381, %v2377
        %v4422 = vpack.c.b16 %v2386, %v2382
        %v4423 = vpack.c.b16 %v2387, %v2383
        %v4424 = vpack.c.b16 %v2388, %v2384
        %v4425 = vpack.c.b16 %v2389, %v2385
        %v4426 = vpack.c.b16 %v2394, %v2390
        %v4427 = vpack.c.b16 %v2395, %v2391
        %v4428 = vpack.c.b16 %v2396, %v2392
        %v4429 = vpack.c.b16 %v2397, %v2393
        %v4430 = vpack.c.b16 %v2402, %v2398
        %v4431 = vpack.c.b16 %v2403, %v2399
        %v4432 = vpack.c.b16 %v2404, %v2400
        %v4433 = vpack.c.b16 %v2405, %v2401
        %v4434 = vpack.c.b16 %v2410, %v2406
        %v4435 = vpack.c.b16 %v2411, %v2407
        %v4436 = vpack.c.b16 %v2412, %v2408
        %v4437 = vpack.c.b16 %v2413, %v2409
        %v4438 = vpack.c.b16 %v2418, %v2414
        %v4439 = vpack.c.b16 %v2419, %v2415
        %v4440 = vpack.c.b16 %v2420, %v2416
        %v4441 = vpack.c.b16 %v2421, %v2417
        %v4442 = vpack.c.b16 %v2426, %v2422
        %v4443 = vpack.c.b16 %v2427, %v2423
        %v4444 = vpack.c.b16 %v2428, %v2424
        %v4445 = vpack.c.b16 %v2429, %v2425
        %v4446 = vpack.c.b16 %v2434, %v2430
        %v4447 = vpack.c.b16 %v2435, %v2431
        %v4448 = vpack.c.b16 %v2436, %v2432
        %v4449 = vpack.c.b16 %v2437, %v2433
        %v4450 = vpack.c.b16 %v2442, %v2438
        %v4451 = vpack.c.b16 %v2443, %v2439
        %v4452 = vpack.c.b16 %v2444, %v2440
        %v4453 = vpack.c.b16 %v2445, %v2441
        %v4454 = vpack.c.b16 %v2450, %v2446
        %v4455 = vpack.c.b16 %v2451, %v2447
        %v4456 = vpack.c.b16 %v2452, %v2448
        %v4457 = vpack.c.b16 %v2453, %v2449
        %v4458 = vpack.c.b16 %v2458, %v2454
        %v4459 = vpack.c.b16 %v2459, %v2455
        %v4460 = vpack.c.b16 %v2460, %v2456
        %v4461 = vpack.c.b16 %v2461, %v2457
        %v4462 = vpack.c.b16 %v2466, %v2462
        %v4463 = vpack.c.b16 %v2467, %v2463
        %v4464 = vpack.c.b16 %v2468, %v2464
        %v4465 = vpack.c.b16 %v2469, %v2465
        %v4466 = vpack.c.b16 %v2474, %v2470
        %v4467 = vpack.c.b16 %v2475, %v2471
        %v4468 = vpack.c.b16 %v2476, %v2472
        %v4469 = vpack.c.b16 %v2477, %v2473
        %v4470 = vpack.c.b16 %v2482, %v2478
        %v4471 = vpack.c.b16 %v2483, %v2479
        %v4472 = vpack.c.b16 %v2484, %v2480
        %v4473 = vpack.c.b16 %v2485, %v2481
        %v4474 = vpack.c.b16 %v2490, %v2486
        %v4475 = vpack.c.b16 %v2491, %v2487
        %v4476 = vpack.c.b16 %v2492, %v2488
        %v4477 = vpack.c.b16 %v2493, %v2489
        %v4478 = vpack.c.b16 %v2498, %v2494
        %v4479 = vpack.c.b16 %v2499, %v2495
        %v4480 = vpack.c.b16 %v2500, %v2496
        %v4481 = vpack.c.b16 %v2501, %v2497
        %v4482 = vpack.c.b16 %v2506, %v2502
        %v4483 = vpack.c.b16 %v2507, %v2503
        %v4484 = vpack.c.b16 %v2508, %v2504
        %v4485 = vpack.c.b16 %v2509, %v2505
        %v4486 = vpack.c.b16 %v2514, %v2510
        %v4487 = vpack.c.b16 %v2515, %v2511
        %v4488 = vpack.c.b16 %v2516, %v2512
        %v4489 = vpack.c.b16 %v2517, %v2513
        %v4490 = vpack.c.b16 %v2522, %v2518
        %v4491 = vpack.c.b16 %v2523, %v2519
        %v4492 = vpack.c.b16 %v2524, %v2520
        %v4493 = vpack.c.b16 %v2525, %v2521
        %v4494 = vpack.c.b16 %v2530, %v2526
        %v4495 = vpack.c.b16 %v2531, %v2527
        %v4496 = vpack.c.b16 %v2532, %v2528
        %v4497 = vpack.c.b16 %v2533, %v2529
        %v4498 = vpack.c.b16 %v2538, %v2534
        %v4499 = vpack.c.b16 %v2539, %v2535
        %v4500 = vpack.c.b16 %v2540, %v2536
        %v4501 = vpack.c.b16 %v2541, %v2537
        %v4502 = vpack.c.b16 %v2546, %v2542
        %v4503 = vpack.c.b16 %v2547, %v2543
        %v4504 = vpack.c.b16 %v2548, %v2544
        %v4505 = vpack.c.b16 %v2549, %v2545
        %v4506 = vpack.c.b16 %v2554, %v2550
        %v4507 = vpack.c.b16 %v2555, %v2551
        %v4508 = vpack.c.b16 %v2556, %v2552
        %v4509 = vpack.c.b16 %v2557, %v2553
        %v4510 = vpack.c.b16 %v2562, %v2558
        %v4511 = vpack.c.b16 %v2563, %v2559
        %v4512 = vpack.c.b16 %v2564, %v2560
        %v4513 = vpack.c.b16 %v2565, %v2561
        %v4514 = vpack.c.b16 %v2570, %v2566
        %v4515 = vpack.c.b16 %v2571, %v2567
        %v4516 = vpack.c.b16 %v2572, %v2568
        %v4517 = vpack.c.b16 %v2573, %v2569
        %v4518 = vpack.c.b16 %v2578, %v2574
        %v4519 = vpack.c.b16 %v2579, %v2575
        %v4520 = vpack.c.b16 %v2580, %v2576
        %v4521 = vpack.c.b16 %v2581, %v2577
        %v4522 = vpack.c.b16 %v2586, %v2582
        %v4523 = vpack.c.b16 %v2587, %v2583
        %v4524 = vpack.c.b16 %v2588, %v2584
        %v4525 = vpack.c.b16 %v2589, %v2585
        %v4526 = vpack.c.b16 %v2594, %v2590
        %v4527 = vpack.c.b16 %v2595, %v2591
        %v4528 = vpack.c.b16 %v2596, %v2592
        %v4529 = vpack.c.b16 %v2597, %v2593
        %v4530 = vpack.c.b16 %v2602, %v2598
        %v4531 = vpack.c.b16 %v2603, %v2599
        %v4532 = vpack.c.b16 %v2604, %v2600
        %v4533 = vpack.c.b16 %v2605, %v2601
        %v4534 = vpack.c.b16 %v2610, %v2606
        %v4535 = vpack.c.b16 %v2611, %v2607
        %v4536 = vpack.c.b16 %v2612, %v2608
        %v4537 = vpack.c.b16 %v2613, %v2609
        %v4538 = vpack.c.b16 %v2618, %v2614
        %v4539 = vpack.c.b16 %v2619, %v2615
        %v4540 = vpack.c.b16 %v2620, %v2616
        %v4541 = vpack.c.b16 %v2621, %v2617
        %v4542 = vpack.c.b16 %v2626, %v2622
        %v4543 = vpack.c.b16 %v2627, %v2623
        %v4544 = vpack.c.b16 %v2628, %v2624
        %v4545 = vpack.c.b16 %v2629, %v2625
        %v4546 = vpack.c.b16 %v2634, %v2630
        %v4547 = vpack.c.b16 %v2635, %v2631
        %v4548 = vpack.c.b16 %v2636, %v2632
        %v4549 = vpack.c.b16 %v2637, %v2633
        %v4550 = vpack.c.b16 %v2642, %v2638
        %v4551 = vpack.c.b16 %v2643, %v2639
        %v4552 = vpack.c.b16 %v2644, %v2640
        %v4553 = vpack.c.b16 %v2645, %v2641
        %v4554 = vpack.c.b16 %v2650, %v2646
        %v4555 = vpack.c.b16 %v2651, %v2647
        %v4556 = vpack.c.b16 %v2652, %v2648
        %v4557 = vpack.c.b16 %v2653, %v2649
        %v4558 = vpack.c.b16 %v2658, %v2654
        %v4559 = vpack.c.b16 %v2659, %v2655
        %v4560 = vpack.c.b16 %v2660, %v2656
        %v4561 = vpack.c.b16 %v2661, %v2657
        %v4562 = vpack.c.b16 %v2666, %v2662
        %v4563 = vpack.c.b16 %v2667, %v2663
        %v4564 = vpack.c.b16 %v2668, %v2664
        %v4565 = vpack.c.b16 %v2669, %v2665
        %v4566 = vpack.c.b16 %v2674, %v2670
        %v4567 = vpack.c.b16 %v2675, %v2671
        %v4568 = vpack.c.b16 %v2676, %v2672
        %v4569 = vpack.c.b16 %v2677, %v2673
        %v4570 = vpack.c.b16 %v2682, %v2678
        %v4571 = vpack.c.b16 %v2683, %v2679
        %v4572 = vpack.c.b16 %v2684, %v2680
        %v4573 = vpack.c.b16 %v2685, %v2681
        %v4574 = vpack.c.b16 %v2690, %v2686
        %v4575 = vpack.c.b16 %v2691, %v2687
        %v4576 = vpack.c.b16 %v2692, %v2688
        %v4577 = vpack.c.b16 %v2693, %v2689
        %v4578 = vpack.c.b16 %v2698, %v2694
        %v4579 = vpack.c.b16 %v2699, %v2695
        %v4580 = vpack.c.b16 %v2700, %v2696
        %v4581 = vpack.c.b16 %v2701, %v2697
        %v4582 = vpack.c.b16 %v2706, %v2702
        %v4583 = vpack.c.b16 %v2707, %v2703
        %v4584 = vpack.c.b16 %v2708, %v2704
        %v4585 = vpack.c.b16 %v2709, %v2705
        %v4586 = vpack.c.b16 %v2714, %v2710
        %v4587 = vpack.c.b16 %v2715, %v2711
        %v4588 = vpack.c.b16 %v2716, %v2712
        %v4589 = vpack.c.b16 %v2717, %v2713
        %v4590 = vpack.c.b16 %v2722, %v2718
        %v4591 = vpack.c.b16 %v2723, %v2719
        %v4592 = vpack.c.b16 %v2724, %v2720
        %v4593 = vpack.c.b16 %v2725, %v2721
        %v4594 = vpack.c.b16 %v2730, %v2726
        %v4595 = vpack.c.b16 %v2731, %v2727
        %v4596 = vpack.c.b16 %v2732, %v2728
        %v4597 = vpack.c.b16 %v2733, %v2729
        %v4598 = vpack.c.b16 %v2738, %v2734
        %v4599 = vpack.c.b16 %v2739, %v2735
        %v4600 = vpack.c.b16 %v2740, %v2736
        %v4601 = vpack.c.b16 %v2741, %v2737
        %v4602 = vpack.c.b16 %v2746, %v2742
        %v4603 = vpack.c.b16 %v2747, %v2743
        %v4604 = vpack.c.b16 %v2748, %v2744
        %v4605 = vpack.c.b16 %v2749, %v2745
        %v4606 = vpack.c.b16 %v2754, %v2750
        %v4607 = vpack.c.b16 %v2755, %v2751
        %v4608 = vpack.c.b16 %v2756, %v2752
        %v4609 = vpack.c.b16 %v2757, %v2753
        %v4610 = vpack.c.b16 %v2762, %v2758
        %v4611 = vpack.c.b16 %v2763, %v2759
        %v4612 = vpack.c.b16 %v2764, %v2760
        %v4613 = vpack.c.b16 %v2765, %v2761
        %v4614 = vpack.c.b16 %v2770, %v2766
        %v4615 = vpack.c.b16 %v2771, %v2767
        %v4616 = vpack.c.b16 %v2772, %v2768
        %v4617 = vpack.c.b16 %v2773, %v2769
        %v4618 = vpack.c.b16 %v2778, %v2774
        %v4619 = vpack.c.b16 %v2779, %v2775
        %v4620 = vpack.c.b16 %v2780, %v2776
        %v4621 = vpack.c.b16 %v2781, %v2777
        %v4622 = vpack.c.b16 %v2786, %v2782
        %v4623 = vpack.c.b16 %v2787, %v2783
        %v4624 = vpack.c.b16 %v2788, %v2784
        %v4625 = vpack.c.b16 %v2789, %v2785
        %v4626 = vpack.c.b16 %v2794, %v2790
        %v4627 = vpack.c.b16 %v2795, %v2791
        %v4628 = vpack.c.b16 %v2796, %v2792
        %v4629 = vpack.c.b16 %v2797, %v2793
        %v4630 = vpack.c.b16 %v2802, %v2798
        %v4631 = vpack.c.b16 %v2803, %v2799
        %v4632 = vpack.c.b16 %v2804, %v2800
        %v4633 = vpack.c.b16 %v2805, %v2801
        %v4634 = vpack.c.b16 %v2810, %v2806
        %v4635 = vpack.c.b16 %v2811, %v2807
        %v4636 = vpack.c.b16 %v2812, %v2808
        %v4637 = vpack.c.b16 %v2813, %v2809
        %v4638 = vpack.c.b16 %v2818, %v2814
        %v4639 = vpack.c.b16 %v2819, %v2815
        %v4640 = vpack.c.b16 %v2820, %v2816
        %v4641 = vpack.c.b16 %v2821, %v2817
        %v4642 = vpack.c.b16 %v2826, %v2822
        %v4643 = vpack.c.b16 %v2827, %v2823
        %v4644 = vpack.c.b16 %v2828, %v2824
        %v4645 = vpack.c.b16 %v2829, %v2825
        %v4646 = vpack.c.b16 %v2834, %v2830
        %v4647 = vpack.c.b16 %v2835, %v2831
        %v4648 = vpack.c.b16 %v2836, %v2832
        %v4649 = vpack.c.b16 %v2837, %v2833
        %v4650 = vpack.c.b16 %v2842, %v2838
        %v4651 = vpack.c.b16 %v2843, %v2839
        %v4652 = vpack.c.b16 %v2844, %v2840
        %v4653 = vpack.c.b16 %v2845, %v2841
        %v4654 = vpack.c.b16 %v2850, %v2846
        %v4655 = vpack.c.b16 %v2851, %v2847
        %v4656 = vpack.c.b16 %v2852, %v2848
        %v4657 = vpack.c.b16 %v2853, %v2849
        %v4658 = vpack.c.b16 %v2858, %v2854
        %v4659 = vpack.c.b16 %v2859, %v2855
        %v4660 = vpack.c.b16 %v2860, %v2856
        %v4661 = vpack.c.b16 %v2861, %v2857
        %v4662 = vpack.c.b16 %v2866, %v2862
        %v4663 = vpack.c.b16 %v2867, %v2863
        %v4664 = vpack.c.b16 %v2868, %v2864
        %v4665 = vpack.c.b16 %v2869, %v2865
        %v4666 = vpack.c.b16 %v2874, %v2870
        %v4667 = vpack.c.b16 %v2875, %v2871
        %v4668 = vpack.c.b16 %v2876, %v2872
        %v4669 = vpack.c.b16 %v2877, %v2873
        %v4670 = vpack.c.b16 %v2882, %v2878
        %v4671 = vpack.c.b16 %v2883, %v2879
        %v4672 = vpack.c.b16 %v2884, %v2880
        %v4673 = vpack.c.b16 %v2885, %v2881
        %v4674 = vpack.c.b16 %v2890, %v2886
        %v4675 = vpack.c.b16 %v2891, %v2887
        %v4676 = vpack.c.b16 %v2892, %v2888
        %v4677 = vpack.c.b16 %v2893, %v2889
        %v4678 = vpack.c.b16 %v2898, %v2894
        %v4679 = vpack.c.b16 %v2899, %v2895
        %v4680 = vpack.c.b16 %v2900, %v2896
        %v4681 = vpack.c.b16 %v2901, %v2897
        %v4682 = vpack.c.b16 %v2906, %v2902
        %v4683 = vpack.c.b16 %v2907, %v2903
        %v4684 = vpack.c.b16 %v2908, %v2904
        %v4685 = vpack.c.b16 %v2909, %v2905
        %v4686 = vpack.c.b16 %v2914, %v2910
        %v4687 = vpack.c.b16 %v2915, %v2911
        %v4688 = vpack.c.b16 %v2916, %v2912
        %v4689 = vpack.c.b16 %v2917, %v2913
        %v4690 = vpack.c.b16 %v2922, %v2918
        %v4691 = vpack.c.b16 %v2923, %v2919
        %v4692 = vpack.c.b16 %v2924, %v2920
        %v4693 = vpack.c.b16 %v2925, %v2921
        %v4694 = vpack.c.b16 %v2930, %v2926
        %v4695 = vpack.c.b16 %v2931, %v2927
        %v4696 = vpack.c.b16 %v2932, %v2928
        %v4697 = vpack.c.b16 %v2933, %v2929
        %v4698 = vpack.c.b16 %v2938, %v2934
        %v4699 = vpack.c.b16 %v2939, %v2935
        %v4700 = vpack.c.b16 %v2940, %v2936
        %v4701 = vpack.c.b16 %v2941, %v2937
        %v4702 = vpack.c.b16 %v2946, %v2942
        %v4703 = vpack.c.b16 %v2947, %v2943
        %v4704 = vpack.c.b16 %v2948, %v2944
        %v4705 = vpack.c.b16 %v2949, %v2945
        %v4706 = vpack.c.b16 %v2954, %v2950
        %v4707 = vpack.c.b16 %v2955, %v2951
        %v4708 = vpack.c.b16 %v2956, %v2952
        %v4709 = vpack.c.b16 %v2957, %v2953
        %v4710 = vpack.c.b16 %v2962, %v2958
        %v4711 = vpack.c.b16 %v2963, %v2959
        %v4712 = vpack.c.b16 %v2964, %v2960
        %v4713 = vpack.c.b16 %v2965, %v2961
        %v4714 = vpack.c.b16 %v2970, %v2966
        %v4715 = vpack.c.b16 %v2971, %v2967
        %v4716 = vpack.c.b16 %v2972, %v2968
        %v4717 = vpack.c.b16 %v2973, %v2969
        %v4718 = vpack.c.b16 %v2978, %v2974
        %v4719 = vpack.c.b16 %v2979, %v2975
        %v4720 = vpack.c.b16 %v2980, %v2976
        %v4721 = vpack.c.b16 %v2981, %v2977
        %v4722 = vpack.c.b16 %v2986, %v2982
        %v4723 = vpack.c.b16 %v2987, %v2983
        %v4724 = vpack.c.b16 %v2988, %v2984
        %v4725 = vpack.c.b16 %v2989, %v2985
        %v4726 = vpack.c.b16 %v2994, %v2990
        %v4727 = vpack.c.b16 %v2995, %v2991
        %v4728 = vpack.c.b16 %v2996, %v2992
        %v4729 = vpack.c.b16 %v2997, %v2993
        %v4730 = vpack.c.b16 %v3002, %v2998
        %v4731 = vpack.c.b16 %v3003, %v2999
        %v4732 = vpack.c.b16 %v3004, %v3000
        %v4733 = vpack.c.b16 %v3005, %v3001
        %v4734 = vpack.c.b16 %v3010, %v3006
        %v4735 = vpack.c.b16 %v3011, %v3007
        %v4736 = vpack.c.b16 %v3012, %v3008
        %v4737 = vpack.c.b16 %v3013, %v3009
        %v4738 = vpack.c.b16 %v3018, %v3014
        %v4739 = vpack.c.b16 %v3019, %v3015
        %v4740 = vpack.c.b16 %v3020, %v3016
        %v4741 = vpack.c.b16 %v3021, %v3017
        %v4742 = vpack.c.b16 %v3026, %v3022
        %v4743 = vpack.c.b16 %v3027, %v3023
        %v4744 = vpack.c.b16 %v3028, %v3024
        %v4745 = vpack.c.b16 %v3029, %v3025
        %v4746 = vpack.c.b16 %v3034, %v3030
        %v4747 = vpack.c.b16 %v3035, %v3031
        %v4748 = vpack.c.b16 %v3036, %v3032
        %v4749 = vpack.c.b16 %v3037, %v3033
        %v4750 = vpack.c.b16 %v3042, %v3038
        %v4751 = vpack.c.b16 %v3043, %v3039
        %v4752 = vpack.c.b16 %v3044, %v3040
        %v4753 = vpack.c.b16 %v3045, %v3041
        %v4754 = vpack.c.b16 %v3050, %v3046
        %v4755 = vpack.c.b16 %v3051, %v3047
        %v4756 = vpack.c.b16 %v3052, %v3048
        %v4757 = vpack.c.b16 %v3053, %v3049
        %v4758 = vpack.c.b16 %v3058, %v3054
        %v4759 = vpack.c.b16 %v3059, %v3055
        %v4760 = vpack.c.b16 %v3060, %v3056
        %v4761 = vpack.c.b16 %v3061, %v3057
        %v4762 = vpack.c.b16 %v3066, %v3062
        %v4763 = vpack.c.b16 %v3067, %v3063
        %v4764 = vpack.c.b16 %v3068, %v3064
        %v4765 = vpack.c.b16 %v3069, %v3065
        %v4766 = vpack.c.b16 %v3074, %v3070
        %v4767 = vpack.c.b16 %v3075, %v3071
        %v4768 = vpack.c.b16 %v3076, %v3072
        %v4769 = vpack.c.b16 %v3077, %v3073
        %v4770 = vpack.c.b16 %v3082, %v3078
        %v4771 = vpack.c.b16 %v3083, %v3079
        %v4772 = vpack.c.b16 %v3084, %v3080
        %v4773 = vpack.c.b16 %v3085, %v3081
        %v4774 = vpack.c.b16 %v3090, %v3086
        %v4775 = vpack.c.b16 %v3091, %v3087
        %v4776 = vpack.c.b16 %v3092, %v3088
        %v4777 = vpack.c.b16 %v3093, %v3089
        %v4778 = vpack.c.b16 %v3098, %v3094
        %v4779 = vpack.c.b16 %v3099, %v3095
        %v4780 = vpack.c.b16 %v3100, %v3096
        %v4781 = vpack.c.b16 %v3101, %v3097
        %v4782 = vpack.c.b16 %v3106, %v3102
        %v4783 = vpack.c.b16 %v3107, %v3103
        %v4784 = vpack.c.b16 %v3108, %v3104
        %v4785 = vpack.c.b16 %v3109, %v3105
        %v4786 = vpack.c.b16 %v3114, %v3110
        %v4787 = vpack.c.b16 %v3115, %v3111
        %v4788 = vpack.c.b16 %v3116, %v3112
        %v4789 = vpack.c.b16 %v3117, %v3113
        %v4790 = vpack.c.b16 %v3122, %v3118
        %v4791 = vpack.c.b16 %v3123, %v3119
        %v4792 = vpack.c.b16 %v3124, %v3120
        %v4793 = vpack.c.b16 %v3125, %v3121
        %v4794 = vpack.c.b16 %v3130, %v3126
        %v4795 = vpack.c.b16 %v3131, %v3127
        %v4796 = vpack.c.b16 %v3132, %v3128
        %v4797 = vpack.c.b16 %v3133, %v3129
        %v4798 = vpack.c.b16 %v3138, %v3134
        %v4799 = vpack.c.b16 %v3139, %v3135
        %v4800 = vpack.c.b16 %v3140, %v3136
        %v4801 = vpack.c.b16 %v3141, %v3137
        %v4802 = vpack.c.b16 %v3146, %v3142
        %v4803 = vpack.c.b16 %v3147, %v3143
        %v4804 = vpack.c.b16 %v3148, %v3144
        %v4805 = vpack.c.b16 %v3149, %v3145
        %v4806 = vpack.c.b16 %v3154, %v3150
        %v4807 = vpack.c.b16 %v3155, %v3151
        %v4808 = vpack.c.b16 %v3156, %v3152
        %v4809 = vpack.c.b16 %v3157, %v3153
        %v4810 = vpack.c.b16 %v3162, %v3158
        %v4811 = vpack.c.b16 %v3163, %v3159
        %v4812 = vpack.c.b16 %v3164, %v3160
        %v4813 = vpack.c.b16 %v3165, %v3161
        %v4814 = vpack.c.b16 %v3170, %v3166
        %v4815 = vpack.c.b16 %v3171, %v3167
        %v4816 = vpack.c.b16 %v3172, %v3168
        %v4817 = vpack.c.b16 %v3173, %v3169
        %v4818 = vpack.c.b16 %v3178, %v3174
        %v4819 = vpack.c.b16 %v3179, %v3175
        %v4820 = vpack.c.b16 %v3180, %v3176
        %v4821 = vpack.c.b16 %v3181, %v3177
        %v4822 = vpack.c.b16 %v3186, %v3182
        %v4823 = vpack.c.b16 %v3187, %v3183
        %v4824 = vpack.c.b16 %v3188, %v3184
        %v4825 = vpack.c.b16 %v3189, %v3185
        %v4826 = vpack.c.b16 %v3194, %v3190
        %v4827 = vpack.c.b16 %v3195, %v3191
        %v4828 = vpack.c.b16 %v3196, %v3192
        %v4829 = vpack.c.b16 %v3197, %v3193
        %v4830 = vpack.c.b16 %v3202, %v3198
        %v4831 = vpack.c.b16 %v3203, %v3199
        %v4832 = vpack.c.b16 %v3204, %v3200
        %v4833 = vpack.c.b16 %v3205, %v3201
        %v4834 = vpack.c.b16 %v3210, %v3206
        %v4835 = vpack.c.b16 %v3211, %v3207
        %v4836 = vpack.c.b16 %v3212, %v3208
        %v4837 = vpack.c.b16 %v3213, %v3209
        %v4838 = vpack.c.b16 %v3218, %v3214
        %v4839 = vpack.c.b16 %v3219, %v3215
        %v4840 = vpack.c.b16 %v3220, %v3216
        %v4841 = vpack.c.b16 %v3221, %v3217
        %v4842 = vpack.c.b16 %v3226, %v3222
        %v4843 = vpack.c.b16 %v3227, %v3223
        %v4844 = vpack.c.b16 %v3228, %v3224
        %v4845 = vpack.c.b16 %v3229, %v3225
        %v4846 = vpack.c.b16 %v3234, %v3230
        %v4847 = vpack.c.b16 %v3235, %v3231
        %v4848 = vpack.c.b16 %v3236, %v3232
        %v4849 = vpack.c.b16 %v3237, %v3233
        %v4850 = vpack.c.b16 %v3242, %v3238
        %v4851 = vpack.c.b16 %v3243, %v3239
        %v4852 = vpack.c.b16 %v3244, %v3240
        %v4853 = vpack.c.b16 %v3245, %v3241
        %v4854 = vpack.c.b16 %v3250, %v3246
        %v4855 = vpack.c.b16 %v3251, %v3247
        %v4856 = vpack.c.b16 %v3252, %v3248
        %v4857 = vpack.c.b16 %v3253, %v3249
        %v4858 = vpack.c.b16 %v3258, %v3254
        %v4859 = vpack.c.b16 %v3259, %v3255
        %v4860 = vpack.c.b16 %v3260, %v3256
        %v4861 = vpack.c.b16 %v3261, %v3257
        %v4862 = vpack.c.b16 %v3266, %v3262
        %v4863 = vpack.c.b16 %v3267, %v3263
        %v4864 = vpack.c.b16 %v3268, %v3264
        %v4865 = vpack.c.b16 %v3269, %v3265
        %v4866 = vpack.c.b16 %v3274, %v3270
        %v4867 = vpack.c.b16 %v3275, %v3271
        %v4868 = vpack.c.b16 %v3276, %v3272
        %v4869 = vpack.c.b16 %v3277, %v3273
        %v4870 = vpack.c.b16 %v3282, %v3278
        %v4871 = vpack.c.b16 %v3283, %v3279
        %v4872 = vpack.c.b16 %v3284, %v3280
        %v4873 = vpack.c.b16 %v3285, %v3281
        %v4874 = vpack.c.b16 %v3290, %v3286
        %v4875 = vpack.c.b16 %v3291, %v3287
        %v4876 = vpack.c.b16 %v3292, %v3288
        %v4877 = vpack.c.b16 %v3293, %v3289
        %v4878 = vpack.c.b16 %v3298, %v3294
        %v4879 = vpack.c.b16 %v3299, %v3295
        %v4880 = vpack.c.b16 %v3300, %v3296
        %v4881 = vpack.c.b16 %v3301, %v3297
        %v4882 = vpack.c.b16 %v3306, %v3302
        %v4883 = vpack.c.b16 %v3307, %v3303
        %v4884 = vpack.c.b16 %v3308, %v3304
        %v4885 = vpack.c.b16 %v3309, %v3305
        %v4886 = vpack.c.b16 %v3314, %v3310
        %v4887 = vpack.c.b16 %v3315, %v3311
        %v4888 = vpack.c.b16 %v3316, %v3312
        %v4889 = vpack.c.b16 %v3317, %v3313
        %v4890 = vpack.c.b16 %v3322, %v3318
        %v4891 = vpack.c.b16 %v3323, %v3319
        %v4892 = vpack.c.b16 %v3324, %v3320
        %v4893 = vpack.c.b16 %v3325, %v3321
        %v4894 = vpack.c.b16 %v3330, %v3326
        %v4895 = vpack.c.b16 %v3331, %v3327
        %v4896 = vpack.c.b16 %v3332, %v3328
        %v4897 = vpack.c.b16 %v3333, %v3329
        %v4898 = vpack.c.b16 %v3338, %v3334
        %v4899 = vpack.c.b16 %v3339, %v3335
        %v4900 = vpack.c.b16 %v3340, %v3336
        %v4901 = vpack.c.b16 %v3341, %v3337
        %v4902 = vpack.c.b16 %v3346, %v3342
        %v4903 = vpack.c.b16 %v3347, %v3343
        %v4904 = vpack.c.b16 %v3348, %v3344
        %v4905 = vpack.c.b16 %v3349, %v3345
        %v4906 = vpack.c.b16 %v3354, %v3350
        %v4907 = vpack.c.b16 %v3355, %v3351
        %v4908 = vpack.c.b16 %v3356, %v3352
        %v4909 = vpack.c.b16 %v3357, %v3353
        %v4910 = vpack.c.b16 %v3362, %v3358
        %v4911 = vpack.c.b16 %v3363, %v3359
        %v4912 = vpack.c.b16 %v3364, %v3360
        %v4913 = vpack.c.b16 %v3365, %v3361
        %v4914 = vpack.c.b16 %v3370, %v3366
        %v4915 = vpack.c.b16 %v3371, %v3367
        %v4916 = vpack.c.b16 %v3372, %v3368
        %v4917 = vpack.c.b16 %v3373, %v3369
        %v4918 = vpack.c.b16 %v3378, %v3374
        %v4919 = vpack.c.b16 %v3379, %v3375
        %v4920 = vpack.c.b16 %v3380, %v3376
        %v4921 = vpack.c.b16 %v3381, %v3377
        %v4922 = vpack.c.b16 %v3386, %v3382
        %v4923 = vpack.c.b16 %v3387, %v3383
        %v4924 = vpack.c.b16 %v3388, %v3384
        %v4925 = vpack.c.b16 %v3389, %v3385
        %v4926 = vpack.c.b16 %v3394, %v3390
        %v4927 = vpack.c.b16 %v3395, %v3391
        %v4928 = vpack.c.b16 %v3396, %v3392
        %v4929 = vpack.c.b16 %v3397, %v3393
        %v4930 = vpack.c.b16 %v3402, %v3398
        %v4931 = vpack.c.b16 %v3403, %v3399
        %v4932 = vpack.c.b16 %v3404, %v3400
        %v4933 = vpack.c.b16 %v3405, %v3401
        %v4934 = vpack.c.b16 %v3410, %v3406
        %v4935 = vpack.c.b16 %v3411, %v3407
        %v4936 = vpack.c.b16 %v3412, %v3408
        %v4937 = vpack.c.b16 %v3413, %v3409
        %v4938 = vpack.c.b16 %v3418, %v3414
        %v4939 = vpack.c.b16 %v3419, %v3415
        %v4940 = vpack.c.b16 %v3420, %v3416
        %v4941 = vpack.c.b16 %v3421, %v3417
        %v4942 = vpack.c.b16 %v3426, %v3422
        %v4943 = vpack.c.b16 %v3427, %v3423
        %v4944 = vpack.c.b16 %v3428, %v3424
        %v4945 = vpack.c.b16 %v3429, %v3425
        %v4946 = vpack.c.b16 %v3434, %v3430
        %v4947 = vpack.c.b16 %v3435, %v3431
        %v4948 = vpack.c.b16 %v3436, %v3432
        %v4949 = vpack.c.b16 %v3437, %v3433
        %v4950 = vpack.c.b16 %v3442, %v3438
        %v4951 = vpack.c.b16 %v3443, %v3439
        %v4952 = vpack.c.b16 %v3444, %v3440
        %v4953 = vpack.c.b16 %v3445, %v3441
        %v4954 = vpack.c.b16 %v3450, %v3446
        %v4955 = vpack.c.b16 %v3451, %v3447
        %v4956 = vpack.c.b16 %v3452, %v3448
        %v4957 = vpack.c.b16 %v3453, %v3449
        %v4958 = vpack.c.b16 %v3458, %v3454
        %v4959 = vpack.c.b16 %v3459, %v3455
        %v4960 = vpack.c.b16 %v3460, %v3456
        %v4961 = vpack.c.b16 %v3461, %v3457
        %v4962 = vpack.c.b16 %v3466, %v3462
        %v4963 = vpack.c.b16 %v3467, %v3463
        %v4964 = vpack.c.b16 %v3468, %v3464
        %v4965 = vpack.c.b16 %v3469, %v3465
        %v4966 = vpack.c.b16 %v3474, %v3470
        %v4967 = vpack.c.b16 %v3475, %v3471
        %v4968 = vpack.c.b16 %v3476, %v3472
        %v4969 = vpack.c.b16 %v3477, %v3473
        %v4970 = vpack.c.b16 %v3482, %v3478
        %v4971 = vpack.c.b16 %v3483, %v3479
        %v4972 = vpack.c.b16 %v3484, %v3480
        %v4973 = vpack.c.b16 %v3485, %v3481
        %v4974 = vpack.c.b16 %v3490, %v3486
        %v4975 = vpack.c.b16 %v3491, %v3487
        %v4976 = vpack.c.b16 %v3492, %v3488
        %v4977 = vpack.c.b16 %v3493, %v3489
        %v4978 = vpack.c.b16 %v3498, %v3494
        %v4979 = vpack.c.b16 %v3499, %v3495
        %v4980 = vpack.c.b16 %v3500, %v3496
        %v4981 = vpack.c.b16 %v3501, %v3497
        %v4982 = vpack.c.b16 %v3506, %v3502
        %v4983 = vpack.c.b16 %v3507, %v3503
        %v4984 = vpack.c.b16 %v3508, %v3504
        %v4985 = vpack.c.b16 %v3509, %v3505
        %v4986 = vpack.c.b16 %v3514, %v3510
        %v4987 = vpack.c.b16 %v3515, %v3511
        %v4988 = vpack.c.b16 %v3516, %v3512
        %v4989 = vpack.c.b16 %v3517, %v3513
        %v4990 = vpack.c.b16 %v3522, %v3518
        %v4991 = vpack.c.b16 %v3523, %v3519
        %v4992 = vpack.c.b16 %v3524, %v3520
        %v4993 = vpack.c.b16 %v3525, %v3521
        %v4994 = vpack.c.b16 %v3530, %v3526
        %v4995 = vpack.c.b16 %v3531, %v3527
        %v4996 = vpack.c.b16 %v3532, %v3528
        %v4997 = vpack.c.b16 %v3533, %v3529
        %v4998 = vpack.c.b16 %v3538, %v3534
        %v4999 = vpack.c.b16 %v3539, %v3535
        %v5000 = vpack.c.b16 %v3540, %v3536
        %v5001 = vpack.c.b16 %v3541, %v3537
        %v5002 = vpack.c.b16 %v3546, %v3542
        %v5003 = vpack.c.b16 %v3547, %v3543
        %v5004 = vpack.c.b16 %v3548, %v3544
        %v5005 = vpack.c.b16 %v3549, %v3545
        %v5006 = vpack.c.b16 %v3554, %v3550
        %v5007 = vpack.c.b16 %v3555, %v3551
        %v5008 = vpack.c.b16 %v3556, %v3552
        %v5009 = vpack.c.b16 %v3557, %v3553
        %v5010 = vpack.c.b16 %v3562, %v3558
        %v5011 = vpack.c.b16 %v3563, %v3559
        %v5012 = vpack.c.b16 %v3564, %v3560
        %v5013 = vpack.c.b16 %v3565, %v3561
        %v5014 = vpack.c.b16 %v3570, %v3566
        %v5015 = vpack.c.b16 %v3571, %v3567
        %v5016 = vpack.c.b16 %v3572, %v3568
        %v5017 = vpack.c.b16 %v3573, %v3569
        %v5018 = vpack.c.b16 %v3578, %v3574
        %v5019 = vpack.c.b16 %v3579, %v3575
        %v5020 = vpack.c.b16 %v3580, %v3576
        %v5021 = vpack.c.b16 %v3581, %v3577
        %v5022 = vpack.c.b16 %v3586, %v3582
        %v5023 = vpack.c.b16 %v3587, %v3583
        %v5024 = vpack.c.b16 %v3588, %v3584
        %v5025 = vpack.c.b16 %v3589, %v3585
        %v5026 = vpack.c.b16 %v3594, %v3590
        %v5027 = vpack.c.b16 %v3595, %v3591
        %v5028 = vpack.c.b16 %v3596, %v3592
        %v5029 = vpack.c.b16 %v3597, %v3593
        %v5030 = vpack.c.b16 %v3602, %v3598
        %v5031 = vpack.c.b16 %v3603, %v3599
        %v5032 = vpack.c.b16 %v3604, %v3600
        %v5033 = vpack.c.b16 %v3605, %v3601
        %v5034 = vpack.c.b16 %v3610, %v3606
        %v5035 = vpack.c.b16 %v3611, %v3607
        %v5036 = vpack.c.b16 %v3612, %v3608
        %v5037 = vpack.c.b16 %v3613, %v3609
        %v5038 = vpack.c.b16 %v3618, %v3614
        %v5039 = vpack.c.b16 %v3619, %v3615
        %v5040 = vpack.c.b16 %v3620, %v3616
        %v5041 = vpack.c.b16 %v3621, %v3617
        %v5042 = vpack.c.b16 %v3626, %v3622
        %v5043 = vpack.c.b16 %v3627, %v3623
        %v5044 = vpack.c.b16 %v3628, %v3624
        %v5045 = vpack.c.b16 %v3629, %v3625
        %v5046 = vpack.c.b16 %v3634, %v3630
        %v5047 = vpack.c.b16 %v3635, %v3631
        %v5048 = vpack.c.b16 %v3636, %v3632
        %v5049 = vpack.c.b16 %v3637, %v3633
        %v5050 = vpack.c.b16 %v3642, %v3638
        %v5051 = vpack.c.b16 %v3643, %v3639
        %v5052 = vpack.c.b16 %v3644, %v3640
        %v5053 = vpack.c.b16 %v3645, %v3641
        %v5054 = vpack.c.b16 %v3650, %v3646
        %v5055 = vpack.c.b16 %v3651, %v3647
        %v5056 = vpack.c.b16 %v3652, %v3648
        %v5057 = vpack.c.b16 %v3653, %v3649
        %v5058 = vpack.c.b16 %v3658, %v3654
        %v5059 = vpack.c.b16 %v3659, %v3655
        %v5060 = vpack.c.b16 %v3660, %v3656
        %v5061 = vpack.c.b16 %v3661, %v3657
        %v5062 = vpack.c.b16 %v3666, %v3662
        %v5063 = vpack.c.b16 %v3667, %v3663
        %v5064 = vpack.c.b16 %v3668, %v3664
        %v5065 = vpack.c.b16 %v3669, %v3665
        %v5066 = vpack.c.b16 %v3674, %v3670
        %v5067 = vpack.c.b16 %v3675, %v3671
        %v5068 = vpack.c.b16 %v3676, %v3672
        %v5069 = vpack.c.b16 %v3677, %v3673
        %v5070 = vpack.c.b16 %v3682, %v3678
        %v5071 = vpack.c.b16 %v3683, %v3679
        %v5072 = vpack.c.b16 %v3684, %v3680
        %v5073 = vpack.c.b16 %v3685, %v3681
        %v5074 = vpack.c.b16 %v3690, %v3686
        %v5075 = vpack.c.b16 %v3691, %v3687
        %v5076 = vpack.c.b16 %v3692, %v3688
        %v5077 = vpack.c.b16 %v3693, %v3689
        %v5078 = vpack.c.b16 %v3698, %v3694
        %v5079 = vpack.c.b16 %v3699, %v3695
        %v5080 = vpack.c.b16 %v3700, %v3696
        %v5081 = vpack.c.b16 %v3701, %v3697
        %v5082 = vpack.c.b16 %v3706, %v3702
        %v5083 = vpack.c.b16 %v3707, %v3703
        %v5084 = vpack.c.b16 %v3708, %v3704
        %v5085 = vpack.c.b16 %v3709, %v3705
        %v5086 = vpack.c.b16 %v3714, %v3710
        %v5087 = vpack.c.b16 %v3715, %v3711
        %v5088 = vpack.c.b16 %v3716, %v3712
        %v5089 = vpack.c.b16 %v3717, %v3713
        %v5090 = vpack.c.b16 %v3722, %v3718
        %v5091 = vpack.c.b16 %v3723, %v3719
        %v5092 = vpack.c.b16 %v3724, %v3720
        %v5093 = vpack.c.b16 %v3725, %v3721
        %v5094 = vpack.c.b16 %v3730, %v3726
        %v5095 = vpack.c.b16 %v3731, %v3727
        %v5096 = vpack.c.b16 %v3732, %v3728
        %v5097 = vpack.c.b16 %v3733, %v3729
        %v5098 = vpack.c.b16 %v3738, %v3734
        %v5099 = vpack.c.b16 %v3739, %v3735
        %v5100 = vpack.c.b16 %v3740, %v3736
        %v5101 = vpack.c.b16 %v3741, %v3737
        %v5102 = vpack.c.b16 %v3746, %v3742
        %v5103 = vpack.c.b16 %v3747, %v3743
        %v5104 = vpack.c.b16 %v3748, %v3744
        %v5105 = vpack.c.b16 %v3749, %v3745
        %v5106 = vpack.c.b16 %v3754, %v3750
        %v5107 = vpack.c.b16 %v3755, %v3751
        %v5108 = vpack.c.b16 %v3756, %v3752
        %v5109 = vpack.c.b16 %v3757, %v3753
        %v5110 = vpack.c.b16 %v3762, %v3758
        %v5111 = vpack.c.b16 %v3763, %v3759
        %v5112 = vpack.c.b16 %v3764, %v3760
        %v5113 = vpack.c.b16 %v3765, %v3761
        %v5114 = vpack.c.b16 %v3770, %v3766
        %v5115 = vpack.c.b16 %v3771, %v3767
        %v5116 = vpack.c.b16 %v3772, %v3768
        %v5117 = vpack.c.b16 %v3773, %v3769
        %v5118 = vpack.c.b16 %v3778, %v3774
        %v5119 = vpack.c.b16 %v3779, %v3775
        %v5120 = vpack.c.b16 %v3780, %v3776
        %v5121 = vpack.c.b16 %v3781, %v3777
        %v5122 = vpack.c.b16 %v3786, %v3782
        %v5123 = vpack.c.b16 %v3787, %v3783
        %v5124 = vpack.c.b16 %v3788, %v3784
        %v5125 = vpack.c.b16 %v3789, %v3785
        %v5126 = vpack.c.b16 %v3794, %v3790
        %v5127 = vpack.c.b16 %v3795, %v3791
        %v5128 = vpack.c.b16 %v3796, %v3792
        %v5129 = vpack.c.b16 %v3797, %v3793
        %v5130 = vpack.c.b16 %v3802, %v3798
        %v5131 = vpack.c.b16 %v3803, %v3799
        %v5132 = vpack.c.b16 %v3804, %v3800
        %v5133 = vpack.c.b16 %v3805, %v3801
        %v5134 = vpack.c.b16 %v3810, %v3806
        %v5135 = vpack.c.b16 %v3811, %v3807
        %v5136 = vpack.c.b16 %v3812, %v3808
        %v5137 = vpack.c.b16 %v3813, %v3809
        %v5138 = vpack.c.b16 %v3818, %v3814
        %v5139 = vpack.c.b16 %v3819, %v3815
        %v5140 = vpack.c.b16 %v3820, %v3816
        %v5141 = vpack.c.b16 %v3821, %v3817
        %v5142 = vpack.c.b16 %v3826, %v3822
        %v5143 = vpack.c.b16 %v3827, %v3823
        %v5144 = vpack.c.b16 %v3828, %v3824
        %v5145 = vpack.c.b16 %v3829, %v3825
        %v5146 = vpack.c.b16 %v3834, %v3830
        %v5147 = vpack.c.b16 %v3835, %v3831
        %v5148 = vpack.c.b16 %v3836, %v3832
        %v5149 = vpack.c.b16 %v3837, %v3833
        %v5150 = vpack.c.b16 %v3842, %v3838
        %v5151 = vpack.c.b16 %v3843, %v3839
        %v5152 = vpack.c.b16 %v3844, %v3840
        %v5153 = vpack.c.b16 %v3845, %v3841
        %v5154 = vpack.c.b16 %v3850, %v3846
        %v5155 = vpack.c.b16 %v3851, %v3847
        %v5156 = vpack.c.b16 %v3852, %v3848
        %v5157 = vpack.c.b16 %v3853, %v3849
        %v5158 = vpack.c.b16 %v3858, %v3854
        %v5159 = vpack.c.b16 %v3859, %v3855
        %v5160 = vpack.c.b16 %v3860, %v3856
        %v5161 = vpack.c.b16 %v3861, %v3857
        %v5162 = vpack.c.b16 %v3866, %v3862
        %v5163 = vpack.c.b16 %v3867, %v3863
        %v5164 = vpack.c.b16 %v3868, %v3864
        %v5165 = vpack.c.b16 %v3869, %v3865
        %v5166 = vpack.c.b16 %v3874, %v3870
        %v5167 = vpack.c.b16 %v3875, %v3871
        %v5168 = vpack.c.b16 %v3876, %v3872
        %v5169 = vpack.c.b16 %v3877, %v3873
        %v5170 = vpack.c.b16 %v3882, %v3878
        %v5171 = vpack.c.b16 %v3883, %v3879
        %v5172 = vpack.c.b16 %v3884, %v3880
        %v5173 = vpack.c.b16 %v3885, %v3881
        %v5174 = vpack.c.b16 %v3890, %v3886
        %v5175 = vpack.c.b16 %v3891, %v3887
        %v5176 = vpack.c.b16 %v3892, %v3888
        %v5177 = vpack.c.b16 %v3893, %v3889
        %v5178 = vpack.c.b16 %v3898, %v3894
        %v5179 = vpack.c.b16 %v3899, %v3895
        %v5180 = vpack.c.b16 %v3900, %v3896
        %v5181 = vpack.c.b16 %v3901, %v3897
        %v5182 = vpack.c.b16 %v3906, %v3902
        %v5183 = vpack.c.b16 %v3907, %v3903
        %v5184 = vpack.c.b16 %v3908, %v3904
        %v5185 = vpack.c.b16 %v3909, %v3905
        %v5186 = vpack.c.b16 %v3914, %v3910
        %v5187 = vpack.c.b16 %v3915, %v3911
        %v5188 = vpack.c.b16 %v3916, %v3912
        %v5189 = vpack.c.b16 %v3917, %v3913
        %v5190 = vpack.c.b16 %v3922, %v3918
        %v5191 = vpack.c.b16 %v3923, %v3919
        %v5192 = vpack.c.b16 %v3924, %v3920
        %v5193 = vpack.c.b16 %v3925, %v3921
        %v5194 = vpack.c.b16 %v3930, %v3926
        %v5195 = vpack.c.b16 %v3931, %v3927
        %v5196 = vpack.c.b16 %v3932, %v3928
        %v5197 = vpack.c.b16 %v3933, %v3929
        %v5198 = vpack.c.b16 %v3938, %v3934
        %v5199 = vpack.c.b16 %v3939, %v3935
        %v5200 = vpack.c.b16 %v3940, %v3936
        %v5201 = vpack.c.b16 %v3941, %v3937
        %v5202 = vpack.c.b16 %v3946, %v3942
        %v5203 = vpack.c.b16 %v3947, %v3943
        %v5204 = vpack.c.b16 %v3948, %v3944
        %v5205 = vpack.c.b16 %v3949, %v3945
        %v5206 = vpack.c.b16 %v3954, %v3950
        %v5207 = vpack.c.b16 %v3955, %v3951
        %v5208 = vpack.c.b16 %v3956, %v3952
        %v5209 = vpack.c.b16 %v3957, %v3953
        %v5210 = vpack.c.b16 %v3962, %v3958
        %v5211 = vpack.c.b16 %v3963, %v3959
        %v5212 = vpack.c.b16 %v3964, %v3960
        %v5213 = vpack.c.b16 %v3965, %v3961
        %v5214 = vpack.c.b16 %v3970, %v3966
        %v5215 = vpack.c.b16 %v3971, %v3967
        %v5216 = vpack.c.b16 %v3972, %v3968
        %v5217 = vpack.c.b16 %v3973, %v3969
        %v5218 = vpack.c.b16 %v3978, %v3974
        %v5219 = vpack.c.b16 %v3979, %v3975
        %v5220 = vpack.c.b16 %v3980, %v3976
        %v5221 = vpack.c.b16 %v3981, %v3977
        %v5222 = vpack.c.b16 %v3986, %v3982
        %v5223 = vpack.c.b16 %v3987, %v3983
        %v5224 = vpack.c.b16 %v3988, %v3984
        %v5225 = vpack.c.b16 %v3989, %v3985
        %v5226 = vpack.c.b16 %v3994, %v3990
        %v5227 = vpack.c.b16 %v3995, %v3991
        %v5228 = vpack.c.b16 %v3996, %v3992
        %v5229 = vpack.c.b16 %v3997, %v3993
        %v5230 = vpack.c.b16 %v4002, %v3998
        %v5231 = vpack.c.b16 %v4003, %v3999
        %v5232 = vpack.c.b16 %v4004, %v4000
        %v5233 = vpack.c.b16 %v4005, %v4001
        %v5234 = vpack.c.b16 %v4010, %v4006
        %v5235 = vpack.c.b16 %v4011, %v4007
        %v5236 = vpack.c.b16 %v4012, %v4008
        %v5237 = vpack.c.b16 %v4013, %v4009
        %v5238 = vpack.c.b16 %v4018, %v4014
        %v5239 = vpack.c.b16 %v4019, %v4015
        %v5240 = vpack.c.b16 %v4020, %v4016
        %v5241 = vpack.c.b16 %v4021, %v4017
        %v5242 = vpack.c.b16 %v4026, %v4022
        %v5243 = vpack.c.b16 %v4027, %v4023
        %v5244 = vpack.c.b16 %v4028, %v4024
        %v5245 = vpack.c.b16 %v4029, %v4025
        %v5246 = vpack.c.b16 %v4034, %v4030
        %v5247 = vpack.c.b16 %v4035, %v4031
        %v5248 = vpack.c.b16 %v4036, %v4032
        %v5249 = vpack.c.b16 %v4037, %v4033
        %v5250 = vpack.c.b16 %v4042, %v4038
        %v5251 = vpack.c.b16 %v4043, %v4039
        %v5252 = vpack.c.b16 %v4044, %v4040
        %v5253 = vpack.c.b16 %v4045, %v4041
        %v5254 = vpack.c.b16 %v4050, %v4046
        %v5255 = vpack.c.b16 %v4051, %v4047
        %v5256 = vpack.c.b16 %v4052, %v4048
        %v5257 = vpack.c.b16 %v4053, %v4049
        %v5258 = vpack.c.b16 %v4058, %v4054
        %v5259 = vpack.c.b16 %v4059, %v4055
        %v5260 = vpack.c.b16 %v4060, %v4056
        %v5261 = vpack.c.b16 %v4061, %v4057
        %v5262 = vpack.c.b16 %v4066, %v4062
        %v5263 = vpack.c.b16 %v4067, %v4063
        %v5264 = vpack.c.b16 %v4068, %v4064
        %v5265 = vpack.c.b16 %v4069, %v4065
        %v5266 = vpack.c.b16 %v4074, %v4070
        %v5267 = vpack.c.b16 %v4075, %v4071
        %v5268 = vpack.c.b16 %v4076, %v4072
        %v5269 = vpack.c.b16 %v4077, %v4073
        %v5270 = vpack.c.b16 %v4082, %v4078
        %v5271 = vpack.c.b16 %v4083, %v4079
        %v5272 = vpack.c.b16 %v4084, %v4080
        %v5273 = vpack.c.b16 %v4085, %v4081
        %v5274 = vpack.c.b16 %v4090, %v4086
        %v5275 = vpack.c.b16 %v4091, %v4087
        %v5276 = vpack.c.b16 %v4092, %v4088
        %v5277 = vpack.c.b16 %v4093, %v4089
        %v5278 = vpack.c.b16 %v4098, %v4094
        %v5279 = vpack.c.b16 %v4099, %v4095
        %v5280 = vpack.c.b16 %v4100, %v4096
        %v5281 = vpack.c.b16 %v4101, %v4097
        %v5282 = vpack.c.b16 %v4106, %v4102
        %v5283 = vpack.c.b16 %v4107, %v4103
        %v5284 = vpack.c.b16 %v4108, %v4104
        %v5285 = vpack.c.b16 %v4109, %v4105
        %v5286 = vpack.c.b16 %v4114, %v4110
        %v5287 = vpack.c.b16 %v4115, %v4111
        %v5288 = vpack.c.b16 %v4116, %v4112
        %v5289 = vpack.c.b16 %v4117, %v4113
        %v5290 = vpack.c.b16 %v4122, %v4118
        %v5291 = vpack.c.b16 %v4123, %v4119
        %v5292 = vpack.c.b16 %v4124, %v4120
        %v5293 = vpack.c.b16 %v4125, %v4121
        %v5294 = vpack.c.b16 %v4130, %v4126
        %v5295 = vpack.c.b16 %v4131, %v4127
        %v5296 = vpack.c.b16 %v4132, %v4128
        %v5297 = vpack.c.b16 %v4133, %v4129
        %v5298 = vpack.c.b16 %v4138, %v4134
        %v5299 = vpack.c.b16 %v4139, %v4135
        %v5300 = vpack.c.b16 %v4140, %v4136
        %v5301 = vpack.c.b16 %v4141, %v4137
        %v5302 = vpack.c.b16 %v4146, %v4142
        %v5303 = vpack.c.b16 %v4147, %v4143
        %v5304 = vpack.c.b16 %v4148, %v4144
        %v5305 = vpack.c.b16 %v4149, %v4145
        %v5306 = vpack.c.b16 %v4154, %v4150
        %v5307 = vpack.c.b16 %v4155, %v4151
        %v5308 = vpack.c.b16 %v4156, %v4152
        %v5309 = vpack.c.b16 %v4157, %v4153
        %v5310 = vpack.c.b16 %v4162, %v4158
        %v5311 = vpack.c.b16 %v4163, %v4159
        %v5312 = vpack.c.b16 %v4164, %v4160
        %v5313 = vpack.c.b16 %v4165, %v4161
        %v5314 = vpack.c.b16 %v4170, %v4166
        %v5315 = vpack.c.b16 %v4171, %v4167
        %v5316 = vpack.c.b16 %v4172, %v4168
        %v5317 = vpack.c.b16 %v4173, %v4169
        %v5318 = vpack.c.b16 %v4178, %v4174
        %v5319 = vpack.c.b16 %v4179, %v4175
        %v5320 = vpack.c.b16 %v4180, %v4176
        %v5321 = vpack.c.b16 %v4181, %v4177
        %v5322 = vpack.c.b16 %v4186, %v4182
        %v5323 = vpack.c.b16 %v4187, %v4183
        %v5324 = vpack.c.b16 %v4188, %v4184
        %v5325 = vpack.c.b16 %v4189, %v4185
        %v5326 = vpack.c.b16 %v4194, %v4190
        %v5327 = vpack.c.b16 %v4195, %v4191
        %v5328 = vpack.c.b16 %v4196, %v4192
        %v5329 = vpack.c.b16 %v4197, %v4193
        %v5330 = vpack.c.b16 %v4202, %v4198
        %v5331 = vpack.c.b16 %v4203, %v4199
        %v5332 = vpack.c.b16 %v4204, %v4200
        %v5333 = vpack.c.b16 %v4205, %v4201
        %v5334 = vpack.c.b16 %v4210, %v4206
        %v5335 = vpack.c.b16 %v4211, %v4207
        %v5336 = vpack.c.b16 %v4212, %v4208
        %v5337 = vpack.c.b16 %v4213, %v4209
        %v5338 = vpack.c.b16 %v4218, %v4214
        %v5339 = vpack.c.b16 %v4219, %v4215
        %v5340 = vpack.c.b16 %v4220, %v4216
        %v5341 = vpack.c.b16 %v4221, %v4217
        %v5342 = vpack.c.b16 %v4226, %v4222
        %v5343 = vpack.c.b16 %v4227, %v4223
        %v5344 = vpack.c.b16 %v4228, %v4224
        %v5345 = vpack.c.b16 %v4229, %v4225
        %v5346 = vpack.c.b16 %v4234, %v4230
        %v5347 = vpack.c.b16 %v4235, %v4231
        %v5348 = vpack.c.b16 %v4236, %v4232
        %v5349 = vpack.c.b16 %v4237, %v4233
        %v5350 = vpack.c.b16 %v4242, %v4238
        %v5351 = vpack.c.b16 %v4243, %v4239
        %v5352 = vpack.c.b16 %v4244, %v4240
        %v5353 = vpack.c.b16 %v4245, %v4241
        %v5354 = vpack.c.b16 %v4250, %v4246
        %v5355 = vpack.c.b16 %v4251, %v4247
        %v5356 = vpack.c.b16 %v4252, %v4248
        %v5357 = vpack.c.b16 %v4253, %v4249
        %v5358 = vpack.c.b16 %v4258, %v4254
        %v5359 = vpack.c.b16 %v4259, %v4255
        %v5360 = vpack.c.b16 %v4260, %v4256
        %v5361 = vpack.c.b16 %v4261, %v4257
        %v5362 = vpack.c.b16 %v4266, %v4262
        %v5363 = vpack.c.b16 %v4267, %v4263
        %v5364 = vpack.c.b16 %v4268, %v4264
        %v5365 = vpack.c.b16 %v4269, %v4265
        %v5366 = vpack.c.b16 %v4274, %v4270
        %v5367 = vpack.c.b16 %v4275, %v4271
        %v5368 = vpack.c.b16 %v4276, %v4272
        %v5369 = vpack.c.b16 %v4277, %v4273
        %v5370 = vpack.c.b16 %v4282, %v4278
        %v5371 = vpack.c.b16 %v4283, %v4279
        %v5372 = vpack.c.b16 %v4284, %v4280
        %v5373 = vpack.c.b16 %v4285, %v4281
        %v5374 = vpack.c.b16 %v4290, %v4286
        %v5375 = vpack.c.b16 %v4291, %v4287
        %v5376 = vpack.c.b16 %v4292, %v4288
        %v5377 = vpack.c.b16 %v4293, %v4289
        %v5378 = vpack.c.b16 %v4298, %v4294
        %v5379 = vpack.c.b16 %v4299, %v4295
        %v5380 = vpack.c.b16 %v4300, %v4296
        %v5381 = vpack.c.b16 %v4301, %v4297
        %v5382 = vpack.c.b16 %v4306, %v4302
        %v5383 = vpack.c.b16 %v4307, %v4303
        %v5384 = vpack.c.b16 %v4308, %v4304
        %v5385 = vpack.c.b16 %v4309, %v4305
        %v5386 = vpack.c.b16 %v4314, %v4310
        %v5387 = vpack.c.b16 %v4315, %v4311
        %v5388 = vpack.c.b16 %v4316, %v4312
        %v5389 = vpack.c.b16 %v4317, %v4313
        %v5390 = vpack.c.b16 %v4322, %v4318
        %v5391 = vpack.c.b16 %v4323, %v4319
        %v5392 = vpack.c.b16 %v4324, %v4320
        %v5393 = vpack.c.b16 %v4325, %v4321
        %v5394 = vpack.c.b16 %v4330, %v4326
        %v5395 = vpack.c.b16 %v4331, %v4327
        %v5396 = vpack.c.b16 %v4332, %v4328
        %v5397 = vpack.c.b16 %v4333, %v4329
        %v5398 = vpack.c.b16 %v4338, %v4334
        %v5399 = vpack.c.b16 %v4339, %v4335
        %v5400 = vpack.c.b16 %v4340, %v4336
        %v5401 = vpack.c.b16 %v4341, %v4337
        %v5402 = vpack.c.b16 %v4346, %v4342
        %v5403 = vpack.c.b16 %v4347, %v4343
        %v5404 = vpack.c.b16 %v4348, %v4344
        %v5405 = vpack.c.b16 %v4349, %v4345
        %v5406 = vpack.c.b16 %v4354, %v4350
        %v5407 = vpack.c.b16 %v4355, %v4351
        %v5408 = vpack.c.b16 %v4356, %v4352
        %v5409 = vpack.c.b16 %v4357, %v4353
        %v5410 = vpack.c.b16 %v4362, %v4358
        %v5411 = vpack.c.b16 %v4363, %v4359
        %v5412 = vpack.c.b16 %v4364, %v4360
        %v5413 = vpack.c.b16 %v4365, %v4361
        %v5414 = vpack.c.b16 %v4370, %v4366
        %v5415 = vpack.c.b16 %v4371, %v4367
        %v5416 = vpack.c.b16 %v4372, %v4368
        %v5417 = vpack.c.b16 %v4373, %v4369
        %v5418 = vpack.c.b16 %v4378, %v4374
        %v5419 = vpack.c.b16 %v4379, %v4375
        %v5420 = vpack.c.b16 %v4380, %v4376
        %v5421 = vpack.c.b16 %v4381, %v4377
        %v5422 = vpack.c.b16 %v4386, %v4382
        %v5423 = vpack.c.b16 %v4387, %v4383
        %v5424 = vpack.c.b16 %v4388, %v4384
        %v5425 = vpack.c.b16 %v4389, %v4385
        %v5426 = vpack.c.b16 %v4394, %v4390
        %v5427 = vpack.c.b16 %v4395, %v4391
        %v5428 = vpack.c.b16 %v4396, %v4392
        %v5429 = vpack.c.b16 %v4397, %v4393
        %v5430 = vpack.c.b16 %v4402, %v4398
        %v5431 = vpack.c.b16 %v4403, %v4399
        %v5432 = vpack.c.b16 %v4404, %v4400
        %v5433 = vpack.c.b16 %v4405, %v4401
        %v5434 = vpack.c.b16 %v4410, %v4406
        %v5435 = vpack.c.b16 %v4411, %v4407
        %v5436 = vpack.c.b16 %v4412, %v4408
        %v5437 = vpack.c.b16 %v4413, %v4409
        %6462 = vmatprep.subr.bf16.mxu0 %v4443
        %6463 = vmatpush1.bf16.msra.mxu0 %v4442
        %6464 = vmatprep.subr.bf16.mxu0 %v4439
        %6465 = vmatpush1.bf16.msra.mxu0 %v4438
        %6466 = vmatprep.subr.bf16.mxu0 %v4435
        %6467 = vmatpush1.bf16.msra.mxu0 %v4434
        %6468 = vmatprep.subr.bf16.mxu0 %v4431
        %6469 = vmatpush1.bf16.msra.mxu0 %v4430
        %6470 = vmatprep.subr.bf16.mxu0 %v4427
        %6471 = vmatpush1.bf16.msra.mxu0 %v4426
        %6472 = vmatprep.subr.bf16.mxu0 %v4423
        %6473 = vmatpush1.bf16.msra.mxu0 %v4422
        %6474 = vmatprep.subr.bf16.mxu0 %v4419
        %6475 = vmatpush1.bf16.msra.mxu0 %v4418
        %6476 = vmatprep.subr.bf16.mxu0 %v4415
        %6477 = vmatpush1.bf16.msra.mxu0 %v4414
        %6478 = vmatprep.subr.bf16.mxu0 %v4475
        %6479 = vmatpush2.bf16.msra.mxu0 %v4474
        %6480 = vmatprep.subr.bf16.mxu0 %v4471
        %6481 = vmatpush2.bf16.msra.mxu0 %v4470
        %6482 = vmatprep.subr.bf16.mxu0 %v4467
        %6483 = vmatpush2.bf16.msra.mxu0 %v4466
        %6484 = vmatprep.subr.bf16.mxu0 %v4463
        %6485 = vmatpush2.bf16.msra.mxu0 %v4462
        %6486 = vmatprep.subr.bf16.mxu0 %v4459
        %6487 = vmatpush2.bf16.msra.mxu0 %v4458
        %6488 = vmatprep.subr.bf16.mxu0 %v4455
        %6489 = vmatpush2.bf16.msra.mxu0 %v4454
        %6490 = vmatprep.subr.bf16.mxu0 %v4451
        %6491 = vmatpush2.bf16.msra.mxu0 %v4450
        %6492 = vmatprep.subr.bf16.mxu0 %v4447
        %6493 = vmatpush2.bf16.msra.mxu0 %v4446
        %6494 = vmatprep.mubr.bf16.mxu0 %v265
        %6495 = vmatmul.mubr.bf16.gmra.mxu0 %v264
        %v6496 = vpop.f32.mrf.mxu0
        %v6497 = vadd.f32 %v1325, %v6496
        %v6498 = vpop.f32.mrf.mxu0
        %v6499 = vadd.f32 %v1329, %v6498
        %v6500 = vpop.f32.mrf.mxu0
        %v6501 = vpop.f32.mrf.mxu0
        %6502 = vdwg.mxu0
        %6503 = vmatprep.subr.bf16.mxu0 %v4507
        %6504 = vmatpush1.bf16.msra.mxu0 %v4506
        %6505 = vmatprep.subr.bf16.mxu0 %v4503
        %6506 = vmatpush1.bf16.msra.mxu0 %v4502
        %6507 = vmatprep.subr.bf16.mxu0 %v4499
        %6508 = vmatpush1.bf16.msra.mxu0 %v4498
        %6509 = vmatprep.subr.bf16.mxu0 %v4495
        %6510 = vmatpush1.bf16.msra.mxu0 %v4494
        %6511 = vmatprep.subr.bf16.mxu0 %v4491
        %6512 = vmatpush1.bf16.msra.mxu0 %v4490
        %6513 = vmatprep.subr.bf16.mxu0 %v4487
        %6514 = vmatpush1.bf16.msra.mxu0 %v4486
        %6515 = vmatprep.subr.bf16.mxu0 %v4483
        %6516 = vmatpush1.bf16.msra.mxu0 %v4482
        %6517 = vmatprep.subr.bf16.mxu0 %v4479
        %6518 = vmatpush1.bf16.msra.mxu0 %v4478
        %6519 = vmatprep.subr.bf16.mxu0 %v4539
        %6520 = vmatpush2.bf16.msra.mxu0 %v4538
        %6521 = vmatprep.subr.bf16.mxu0 %v4535
        %6522 = vmatpush2.bf16.msra.mxu0 %v4534
        %6523 = vmatprep.subr.bf16.mxu0 %v4531
        %6524 = vmatpush2.bf16.msra.mxu0 %v4530
        %6525 = vmatprep.subr.bf16.mxu0 %v4527
        %6526 = vmatpush2.bf16.msra.mxu0 %v4526
        %6527 = vmatprep.subr.bf16.mxu0 %v4523
        %6528 = vmatpush2.bf16.msra.mxu0 %v4522
        %6529 = vmatprep.subr.bf16.mxu0 %v4519
        %6530 = vmatpush2.bf16.msra.mxu0 %v4518
        %6531 = vmatprep.subr.bf16.mxu0 %v4515
        %6532 = vmatpush2.bf16.msra.mxu0 %v4514
        %6533 = vmatprep.subr.bf16.mxu0 %v4511
        %6534 = vmatpush2.bf16.msra.mxu0 %v4510
        %6535 = vmatprep.mubr.bf16.mxu0 %v267
        %6536 = vmatmul.mubr.bf16.gmra.mxu0 %v266
        %v6537 = vpop.f32.mrf.mxu0
        %v6538 = vadd.f32 %v6497, %v6537
        %v6539 = vpop.f32.mrf.mxu0
        %v6540 = vadd.f32 %v6499, %v6539
        %v6541 = vpop.f32.mrf.mxu0
        %v6542 = vpop.f32.mrf.mxu0
        %6543 = vdwg.mxu0
        %6544 = vmatprep.subr.bf16.mxu0 %v4571
        %6545 = vmatpush1.bf16.msra.mxu0 %v4570
        %6546 = vmatprep.subr.bf16.mxu0 %v4567
        %6547 = vmatpush1.bf16.msra.mxu0 %v4566
        %6548 = vmatprep.subr.bf16.mxu0 %v4563
        %6549 = vmatpush1.bf16.msra.mxu0 %v4562
        %6550 = vmatprep.subr.bf16.mxu0 %v4559
        %6551 = vmatpush1.bf16.msra.mxu0 %v4558
        %6552 = vmatprep.subr.bf16.mxu0 %v4555
        %6553 = vmatpush1.bf16.msra.mxu0 %v4554
        %6554 = vmatprep.subr.bf16.mxu0 %v4551
        %6555 = vmatpush1.bf16.msra.mxu0 %v4550
        %6556 = vmatprep.subr.bf16.mxu0 %v4547
        %6557 = vmatpush1.bf16.msra.mxu0 %v4546
        %6558 = vmatprep.subr.bf16.mxu0 %v4543
        %6559 = vmatpush1.bf16.msra.mxu0 %v4542
        %6560 = vmatprep.subr.bf16.mxu0 %v4603
        %6561 = vmatpush2.bf16.msra.mxu0 %v4602
        %6562 = vmatprep.subr.bf16.mxu0 %v4599
        %6563 = vmatpush2.bf16.msra.mxu0 %v4598
        %6564 = vmatprep.subr.bf16.mxu0 %v4595
        %6565 = vmatpush2.bf16.msra.mxu0 %v4594
        %6566 = vmatprep.subr.bf16.mxu0 %v4591
        %6567 = vmatpush2.bf16.msra.mxu0 %v4590
        %6568 = vmatprep.subr.bf16.mxu0 %v4587
        %6569 = vmatpush2.bf16.msra.mxu0 %v4586
        %6570 = vmatprep.subr.bf16.mxu0 %v4583
        %6571 = vmatpush2.bf16.msra.mxu0 %v4582
        %6572 = vmatprep.subr.bf16.mxu0 %v4579
        %6573 = vmatpush2.bf16.msra.mxu0 %v4578
        %6574 = vmatprep.subr.bf16.mxu0 %v4575
        %6575 = vmatpush2.bf16.msra.mxu0 %v4574
        %6576 = vmatprep.mubr.bf16.mxu0 %v269
        %6577 = vmatmul.mubr.bf16.gmra.mxu0 %v268
        %v6578 = vpop.f32.mrf.mxu0
        %v6579 = vadd.f32 %v6538, %v6578
        %v6580 = vpop.f32.mrf.mxu0
        %v6581 = vadd.f32 %v6540, %v6580
        %v6582 = vpop.f32.mrf.mxu0
        %v6583 = vpop.f32.mrf.mxu0
        %6584 = vdwg.mxu0
        %6585 = vmatprep.subr.bf16.mxu0 %v4635
        %6586 = vmatpush1.bf16.msra.mxu0 %v4634
        %6587 = vmatprep.subr.bf16.mxu0 %v4631
        %6588 = vmatpush1.bf16.msra.mxu0 %v4630
        %6589 = vmatprep.subr.bf16.mxu0 %v4627
        %6590 = vmatpush1.bf16.msra.mxu0 %v4626
        %6591 = vmatprep.subr.bf16.mxu0 %v4623
        %6592 = vmatpush1.bf16.msra.mxu0 %v4622
        %6593 = vmatprep.subr.bf16.mxu0 %v4619
        %6594 = vmatpush1.bf16.msra.mxu0 %v4618
        %6595 = vmatprep.subr.bf16.mxu0 %v4615
        %6596 = vmatpush1.bf16.msra.mxu0 %v4614
        %6597 = vmatprep.subr.bf16.mxu0 %v4611
        %6598 = vmatpush1.bf16.msra.mxu0 %v4610
        %6599 = vmatprep.subr.bf16.mxu0 %v4607
        %6600 = vmatpush1.bf16.msra.mxu0 %v4606
        %6601 = vmatprep.subr.bf16.mxu0 %v4667
        %6602 = vmatpush2.bf16.msra.mxu0 %v4666
        %6603 = vmatprep.subr.bf16.mxu0 %v4663
        %6604 = vmatpush2.bf16.msra.mxu0 %v4662
        %6605 = vmatprep.subr.bf16.mxu0 %v4659
        %6606 = vmatpush2.bf16.msra.mxu0 %v4658
        %6607 = vmatprep.subr.bf16.mxu0 %v4655
        %6608 = vmatpush2.bf16.msra.mxu0 %v4654
        %6609 = vmatprep.subr.bf16.mxu0 %v4651
        %6610 = vmatpush2.bf16.msra.mxu0 %v4650
        %6611 = vmatprep.subr.bf16.mxu0 %v4647
        %6612 = vmatpush2.bf16.msra.mxu0 %v4646
        %6613 = vmatprep.subr.bf16.mxu0 %v4643
        %6614 = vmatpush2.bf16.msra.mxu0 %v4642
        %6615 = vmatprep.subr.bf16.mxu0 %v4639
        %6616 = vmatpush2.bf16.msra.mxu0 %v4638
        %6617 = vmatprep.mubr.bf16.mxu0 %v271
        %6618 = vmatmul.mubr.bf16.gmra.mxu0 %v270
        %v6619 = vpop.f32.mrf.mxu0
        %v6620 = vadd.f32 %v6579, %v6619
        %v6621 = vpop.f32.mrf.mxu0
        %v6622 = vadd.f32 %v6581, %v6621
        %v6623 = vpop.f32.mrf.mxu0
        %v6624 = vpop.f32.mrf.mxu0
        %6625 = vdwg.mxu0
        %6626 = vmatprep.subr.bf16.mxu0 %v4699
        %6627 = vmatpush1.bf16.msra.mxu0 %v4698
        %6628 = vmatprep.subr.bf16.mxu0 %v4695
        %6629 = vmatpush1.bf16.msra.mxu0 %v4694
        %6630 = vmatprep.subr.bf16.mxu0 %v4691
        %6631 = vmatpush1.bf16.msra.mxu0 %v4690
        %6632 = vmatprep.subr.bf16.mxu0 %v4687
        %6633 = vmatpush1.bf16.msra.mxu0 %v4686
        %6634 = vmatprep.subr.bf16.mxu0 %v4683
        %6635 = vmatpush1.bf16.msra.mxu0 %v4682
        %6636 = vmatprep.subr.bf16.mxu0 %v4679
        %6637 = vmatpush1.bf16.msra.mxu0 %v4678
        %6638 = vmatprep.subr.bf16.mxu0 %v4675
        %6639 = vmatpush1.bf16.msra.mxu0 %v4674
        %6640 = vmatprep.subr.bf16.mxu0 %v4671
        %6641 = vmatpush1.bf16.msra.mxu0 %v4670
        %6642 = vmatprep.subr.bf16.mxu0 %v4731
        %6643 = vmatpush2.bf16.msra.mxu0 %v4730
        %6644 = vmatprep.subr.bf16.mxu0 %v4727
        %6645 = vmatpush2.bf16.msra.mxu0 %v4726
        %6646 = vmatprep.subr.bf16.mxu0 %v4723
        %6647 = vmatpush2.bf16.msra.mxu0 %v4722
        %6648 = vmatprep.subr.bf16.mxu0 %v4719
        %6649 = vmatpush2.bf16.msra.mxu0 %v4718
        %6650 = vmatprep.subr.bf16.mxu0 %v4715
        %6651 = vmatpush2.bf16.msra.mxu0 %v4714
        %6652 = vmatprep.subr.bf16.mxu0 %v4711
        %6653 = vmatpush2.bf16.msra.mxu0 %v4710
        %6654 = vmatprep.subr.bf16.mxu0 %v4707
        %6655 = vmatpush2.bf16.msra.mxu0 %v4706
        %6656 = vmatprep.subr.bf16.mxu0 %v4703
        %6657 = vmatpush2.bf16.msra.mxu0 %v4702
        %6658 = vmatprep.mubr.bf16.mxu0 %v273
        %6659 = vmatmul.mubr.bf16.gmra.mxu0 %v272
        %v6660 = vpop.f32.mrf.mxu0
        %v6661 = vadd.f32 %v6620, %v6660
        %v6662 = vpop.f32.mrf.mxu0
        %v6663 = vadd.f32 %v6622, %v6662
        %v6664 = vpop.f32.mrf.mxu0
        %v6665 = vpop.f32.mrf.mxu0
        %6666 = vdwg.mxu0
        %6667 = vmatprep.subr.bf16.mxu0 %v4763
        %6668 = vmatpush1.bf16.msra.mxu0 %v4762
        %6669 = vmatprep.subr.bf16.mxu0 %v4759
        %6670 = vmatpush1.bf16.msra.mxu0 %v4758
        %6671 = vmatprep.subr.bf16.mxu0 %v4755
        %6672 = vmatpush1.bf16.msra.mxu0 %v4754
        %6673 = vmatprep.subr.bf16.mxu0 %v4751
        %6674 = vmatpush1.bf16.msra.mxu0 %v4750
        %6675 = vmatprep.subr.bf16.mxu0 %v4747
        %6676 = vmatpush1.bf16.msra.mxu0 %v4746
        %6677 = vmatprep.subr.bf16.mxu0 %v4743
        %6678 = vmatpush1.bf16.msra.mxu0 %v4742
        %6679 = vmatprep.subr.bf16.mxu0 %v4739
        %6680 = vmatpush1.bf16.msra.mxu0 %v4738
        %6681 = vmatprep.subr.bf16.mxu0 %v4735
        %6682 = vmatpush1.bf16.msra.mxu0 %v4734
        %6683 = vmatprep.subr.bf16.mxu0 %v4795
        %6684 = vmatpush2.bf16.msra.mxu0 %v4794
        %6685 = vmatprep.subr.bf16.mxu0 %v4791
        %6686 = vmatpush2.bf16.msra.mxu0 %v4790
        %6687 = vmatprep.subr.bf16.mxu0 %v4787
        %6688 = vmatpush2.bf16.msra.mxu0 %v4786
        %6689 = vmatprep.subr.bf16.mxu0 %v4783
        %6690 = vmatpush2.bf16.msra.mxu0 %v4782
        %6691 = vmatprep.subr.bf16.mxu0 %v4779
        %6692 = vmatpush2.bf16.msra.mxu0 %v4778
        %6693 = vmatprep.subr.bf16.mxu0 %v4775
        %6694 = vmatpush2.bf16.msra.mxu0 %v4774
        %6695 = vmatprep.subr.bf16.mxu0 %v4771
        %6696 = vmatpush2.bf16.msra.mxu0 %v4770
        %6697 = vmatprep.subr.bf16.mxu0 %v4767
        %6698 = vmatpush2.bf16.msra.mxu0 %v4766
        %6699 = vmatprep.mubr.bf16.mxu0 %v275
        %6700 = vmatmul.mubr.bf16.gmra.mxu0 %v274
        %v6701 = vpop.f32.mrf.mxu0
        %v6702 = vadd.f32 %v6661, %v6701
        %v6703 = vpop.f32.mrf.mxu0
        %v6704 = vadd.f32 %v6663, %v6703
        %v6705 = vpop.f32.mrf.mxu0
        %v6706 = vpop.f32.mrf.mxu0
        %6707 = vdwg.mxu0
        %6708 = vmatprep.subr.bf16.mxu0 %v4827
        %6709 = vmatpush1.bf16.msra.mxu0 %v4826
        %6710 = vmatprep.subr.bf16.mxu0 %v4823
        %6711 = vmatpush1.bf16.msra.mxu0 %v4822
        %6712 = vmatprep.subr.bf16.mxu0 %v4819
        %6713 = vmatpush1.bf16.msra.mxu0 %v4818
        %6714 = vmatprep.subr.bf16.mxu0 %v4815
        %6715 = vmatpush1.bf16.msra.mxu0 %v4814
        %6716 = vmatprep.subr.bf16.mxu0 %v4811
        %6717 = vmatpush1.bf16.msra.mxu0 %v4810
        %6718 = vmatprep.subr.bf16.mxu0 %v4807
        %6719 = vmatpush1.bf16.msra.mxu0 %v4806
        %6720 = vmatprep.subr.bf16.mxu0 %v4803
        %6721 = vmatpush1.bf16.msra.mxu0 %v4802
        %6722 = vmatprep.subr.bf16.mxu0 %v4799
        %6723 = vmatpush1.bf16.msra.mxu0 %v4798
        %6724 = vmatprep.subr.bf16.mxu0 %v4859
        %6725 = vmatpush2.bf16.msra.mxu0 %v4858
        %6726 = vmatprep.subr.bf16.mxu0 %v4855
        %6727 = vmatpush2.bf16.msra.mxu0 %v4854
        %6728 = vmatprep.subr.bf16.mxu0 %v4851
        %6729 = vmatpush2.bf16.msra.mxu0 %v4850
        %6730 = vmatprep.subr.bf16.mxu0 %v4847
        %6731 = vmatpush2.bf16.msra.mxu0 %v4846
        %6732 = vmatprep.subr.bf16.mxu0 %v4843
        %6733 = vmatpush2.bf16.msra.mxu0 %v4842
        %6734 = vmatprep.subr.bf16.mxu0 %v4839
        %6735 = vmatpush2.bf16.msra.mxu0 %v4838
        %6736 = vmatprep.subr.bf16.mxu0 %v4835
        %6737 = vmatpush2.bf16.msra.mxu0 %v4834
        %6738 = vmatprep.subr.bf16.mxu0 %v4831
        %6739 = vmatpush2.bf16.msra.mxu0 %v4830
        %6740 = vmatprep.mubr.bf16.mxu0 %v277
        %6741 = vmatmul.mubr.bf16.gmra.mxu0 %v276
        %v6742 = vpop.f32.mrf.mxu0
        %v6743 = vadd.f32 %v6702, %v6742
        %v6744 = vpop.f32.mrf.mxu0
        %v6745 = vadd.f32 %v6704, %v6744
        %v6746 = vpop.f32.mrf.mxu0
        %v6747 = vpop.f32.mrf.mxu0
        %6748 = vdwg.mxu0
        %6749 = vmatprep.subr.bf16.mxu0 %v4891
        %6750 = vmatpush1.bf16.msra.mxu0 %v4890
        %6751 = vmatprep.subr.bf16.mxu0 %v4887
        %6752 = vmatpush1.bf16.msra.mxu0 %v4886
        %6753 = vmatprep.subr.bf16.mxu0 %v4883
        %6754 = vmatpush1.bf16.msra.mxu0 %v4882
        %6755 = vmatprep.subr.bf16.mxu0 %v4879
        %6756 = vmatpush1.bf16.msra.mxu0 %v4878
        %6757 = vmatprep.subr.bf16.mxu0 %v4875
        %6758 = vmatpush1.bf16.msra.mxu0 %v4874
        %6759 = vmatprep.subr.bf16.mxu0 %v4871
        %6760 = vmatpush1.bf16.msra.mxu0 %v4870
        %6761 = vmatprep.subr.bf16.mxu0 %v4867
        %6762 = vmatpush1.bf16.msra.mxu0 %v4866
        %6763 = vmatprep.subr.bf16.mxu0 %v4863
        %6764 = vmatpush1.bf16.msra.mxu0 %v4862
        %6765 = vmatprep.subr.bf16.mxu0 %v4923
        %6766 = vmatpush2.bf16.msra.mxu0 %v4922
        %6767 = vmatprep.subr.bf16.mxu0 %v4919
        %6768 = vmatpush2.bf16.msra.mxu0 %v4918
        %6769 = vmatprep.subr.bf16.mxu0 %v4915
        %6770 = vmatpush2.bf16.msra.mxu0 %v4914
        %6771 = vmatprep.subr.bf16.mxu0 %v4911
        %6772 = vmatpush2.bf16.msra.mxu0 %v4910
        %6773 = vmatprep.subr.bf16.mxu0 %v4907
        %6774 = vmatpush2.bf16.msra.mxu0 %v4906
        %6775 = vmatprep.subr.bf16.mxu0 %v4903
        %6776 = vmatpush2.bf16.msra.mxu0 %v4902
        %6777 = vmatprep.subr.bf16.mxu0 %v4899
        %6778 = vmatpush2.bf16.msra.mxu0 %v4898
        %6779 = vmatprep.subr.bf16.mxu0 %v4895
        %6780 = vmatpush2.bf16.msra.mxu0 %v4894
        %6781 = vmatprep.mubr.bf16.mxu0 %v279
        %6782 = vmatmul.mubr.bf16.gmra.mxu0 %v278
        %v6783 = vpop.f32.mrf.mxu0
        %v6784 = vadd.f32 %v6743, %v6783
        %v6785 = vpop.f32.mrf.mxu0
        %v6786 = vadd.f32 %v6745, %v6785
        %v6787 = vpop.f32.mrf.mxu0
        %v6788 = vpop.f32.mrf.mxu0
        %6789 = vdwg.mxu0
        %6790 = vmatprep.subr.bf16.mxu0 %v4955
        %6791 = vmatpush1.bf16.msra.mxu0 %v4954
        %6792 = vmatprep.subr.bf16.mxu0 %v4951
        %6793 = vmatpush1.bf16.msra.mxu0 %v4950
        %6794 = vmatprep.subr.bf16.mxu0 %v4947
        %6795 = vmatpush1.bf16.msra.mxu0 %v4946
        %6796 = vmatprep.subr.bf16.mxu0 %v4943
        %6797 = vmatpush1.bf16.msra.mxu0 %v4942
        %6798 = vmatprep.subr.bf16.mxu0 %v4939
        %6799 = vmatpush1.bf16.msra.mxu0 %v4938
        %6800 = vmatprep.subr.bf16.mxu0 %v4935
        %6801 = vmatpush1.bf16.msra.mxu0 %v4934
        %6802 = vmatprep.subr.bf16.mxu0 %v4931
        %6803 = vmatpush1.bf16.msra.mxu0 %v4930
        %6804 = vmatprep.subr.bf16.mxu0 %v4927
        %6805 = vmatpush1.bf16.msra.mxu0 %v4926
        %6806 = vmatprep.subr.bf16.mxu0 %v4987
        %6807 = vmatpush2.bf16.msra.mxu0 %v4986
        %6808 = vmatprep.subr.bf16.mxu0 %v4983
        %6809 = vmatpush2.bf16.msra.mxu0 %v4982
        %6810 = vmatprep.subr.bf16.mxu0 %v4979
        %6811 = vmatpush2.bf16.msra.mxu0 %v4978
        %6812 = vmatprep.subr.bf16.mxu0 %v4975
        %6813 = vmatpush2.bf16.msra.mxu0 %v4974
        %6814 = vmatprep.subr.bf16.mxu0 %v4971
        %6815 = vmatpush2.bf16.msra.mxu0 %v4970
        %6816 = vmatprep.subr.bf16.mxu0 %v4967
        %6817 = vmatpush2.bf16.msra.mxu0 %v4966
        %6818 = vmatprep.subr.bf16.mxu0 %v4963
        %6819 = vmatpush2.bf16.msra.mxu0 %v4962
        %6820 = vmatprep.subr.bf16.mxu0 %v4959
        %6821 = vmatpush2.bf16.msra.mxu0 %v4958
        %6822 = vmatprep.mubr.bf16.mxu0 %v281
        %6823 = vmatmul.mubr.bf16.gmra.mxu0 %v280
        %v6824 = vpop.f32.mrf.mxu0
        %v6825 = vadd.f32 %v6784, %v6824
        %v6826 = vpop.f32.mrf.mxu0
        %v6827 = vadd.f32 %v6786, %v6826
        %v6828 = vpop.f32.mrf.mxu0
        %v6829 = vpop.f32.mrf.mxu0
        %6830 = vdwg.mxu0
        %6831 = vmatprep.subr.bf16.mxu0 %v5019
        %6832 = vmatpush1.bf16.msra.mxu0 %v5018
        %6833 = vmatprep.subr.bf16.mxu0 %v5015
        %6834 = vmatpush1.bf16.msra.mxu0 %v5014
        %6835 = vmatprep.subr.bf16.mxu0 %v5011
        %6836 = vmatpush1.bf16.msra.mxu0 %v5010
        %6837 = vmatprep.subr.bf16.mxu0 %v5007
        %6838 = vmatpush1.bf16.msra.mxu0 %v5006
        %6839 = vmatprep.subr.bf16.mxu0 %v5003
        %6840 = vmatpush1.bf16.msra.mxu0 %v5002
        %6841 = vmatprep.subr.bf16.mxu0 %v4999
        %6842 = vmatpush1.bf16.msra.mxu0 %v4998
        %6843 = vmatprep.subr.bf16.mxu0 %v4995
        %6844 = vmatpush1.bf16.msra.mxu0 %v4994
        %6845 = vmatprep.subr.bf16.mxu0 %v4991
        %6846 = vmatpush1.bf16.msra.mxu0 %v4990
        %6847 = vmatprep.subr.bf16.mxu0 %v5051
        %6848 = vmatpush2.bf16.msra.mxu0 %v5050
        %6849 = vmatprep.subr.bf16.mxu0 %v5047
        %6850 = vmatpush2.bf16.msra.mxu0 %v5046
        %6851 = vmatprep.subr.bf16.mxu0 %v5043
        %6852 = vmatpush2.bf16.msra.mxu0 %v5042
        %6853 = vmatprep.subr.bf16.mxu0 %v5039
        %6854 = vmatpush2.bf16.msra.mxu0 %v5038
        %6855 = vmatprep.subr.bf16.mxu0 %v5035
        %6856 = vmatpush2.bf16.msra.mxu0 %v5034
        %6857 = vmatprep.subr.bf16.mxu0 %v5031
        %6858 = vmatpush2.bf16.msra.mxu0 %v5030
        %6859 = vmatprep.subr.bf16.mxu0 %v5027
        %6860 = vmatpush2.bf16.msra.mxu0 %v5026
        %6861 = vmatprep.subr.bf16.mxu0 %v5023
        %6862 = vmatpush2.bf16.msra.mxu0 %v5022
        %6863 = vmatprep.mubr.bf16.mxu0 %v283
        %6864 = vmatmul.mubr.bf16.gmra.mxu0 %v282
        %v6865 = vpop.f32.mrf.mxu0
        %v6866 = vadd.f32 %v6825, %v6865
        %v6867 = vpop.f32.mrf.mxu0
        %v6868 = vadd.f32 %v6827, %v6867
        %v6869 = vpop.f32.mrf.mxu0
        %v6870 = vpop.f32.mrf.mxu0
        %6871 = vdwg.mxu0
        %6872 = vmatprep.subr.bf16.mxu0 %v5083
        %6873 = vmatpush1.bf16.msra.mxu0 %v5082
        %6874 = vmatprep.subr.bf16.mxu0 %v5079
        %6875 = vmatpush1.bf16.msra.mxu0 %v5078
        %6876 = vmatprep.subr.bf16.mxu0 %v5075
        %6877 = vmatpush1.bf16.msra.mxu0 %v5074
        %6878 = vmatprep.subr.bf16.mxu0 %v5071
        %6879 = vmatpush1.bf16.msra.mxu0 %v5070
        %6880 = vmatprep.subr.bf16.mxu0 %v5067
        %6881 = vmatpush1.bf16.msra.mxu0 %v5066
        %6882 = vmatprep.subr.bf16.mxu0 %v5063
        %6883 = vmatpush1.bf16.msra.mxu0 %v5062
        %6884 = vmatprep.subr.bf16.mxu0 %v5059
        %6885 = vmatpush1.bf16.msra.mxu0 %v5058
        %6886 = vmatprep.subr.bf16.mxu0 %v5055
        %6887 = vmatpush1.bf16.msra.mxu0 %v5054
        %6888 = vmatprep.subr.bf16.mxu0 %v5115
        %6889 = vmatpush2.bf16.msra.mxu0 %v5114
        %6890 = vmatprep.subr.bf16.mxu0 %v5111
        %6891 = vmatpush2.bf16.msra.mxu0 %v5110
        %6892 = vmatprep.subr.bf16.mxu0 %v5107
        %6893 = vmatpush2.bf16.msra.mxu0 %v5106
        %6894 = vmatprep.subr.bf16.mxu0 %v5103
        %6895 = vmatpush2.bf16.msra.mxu0 %v5102
        %6896 = vmatprep.subr.bf16.mxu0 %v5099
        %6897 = vmatpush2.bf16.msra.mxu0 %v5098
        %6898 = vmatprep.subr.bf16.mxu0 %v5095
        %6899 = vmatpush2.bf16.msra.mxu0 %v5094
        %6900 = vmatprep.subr.bf16.mxu0 %v5091
        %6901 = vmatpush2.bf16.msra.mxu0 %v5090
        %6902 = vmatprep.subr.bf16.mxu0 %v5087
        %6903 = vmatpush2.bf16.msra.mxu0 %v5086
        %6904 = vmatprep.mubr.bf16.mxu0 %v285
        %6905 = vmatmul.mubr.bf16.gmra.mxu0 %v284
        %v6906 = vpop.f32.mrf.mxu0
        %v6907 = vadd.f32 %v6866, %v6906
        %v6908 = vpop.f32.mrf.mxu0
        %v6909 = vadd.f32 %v6868, %v6908
        %v6910 = vpop.f32.mrf.mxu0
        %v6911 = vpop.f32.mrf.mxu0
        %6912 = vdwg.mxu0
        %6913 = vmatprep.subr.bf16.mxu0 %v5147
        %6914 = vmatpush1.bf16.msra.mxu0 %v5146
        %6915 = vmatprep.subr.bf16.mxu0 %v5143
        %6916 = vmatpush1.bf16.msra.mxu0 %v5142
        %6917 = vmatprep.subr.bf16.mxu0 %v5139
        %6918 = vmatpush1.bf16.msra.mxu0 %v5138
        %6919 = vmatprep.subr.bf16.mxu0 %v5135
        %6920 = vmatpush1.bf16.msra.mxu0 %v5134
        %6921 = vmatprep.subr.bf16.mxu0 %v5131
        %6922 = vmatpush1.bf16.msra.mxu0 %v5130
        %6923 = vmatprep.subr.bf16.mxu0 %v5127
        %6924 = vmatpush1.bf16.msra.mxu0 %v5126
        %6925 = vmatprep.subr.bf16.mxu0 %v5123
        %6926 = vmatpush1.bf16.msra.mxu0 %v5122
        %6927 = vmatprep.subr.bf16.mxu0 %v5119
        %6928 = vmatpush1.bf16.msra.mxu0 %v5118
        %6929 = vmatprep.subr.bf16.mxu0 %v5179
        %6930 = vmatpush2.bf16.msra.mxu0 %v5178
        %6931 = vmatprep.subr.bf16.mxu0 %v5175
        %6932 = vmatpush2.bf16.msra.mxu0 %v5174
        %6933 = vmatprep.subr.bf16.mxu0 %v5171
        %6934 = vmatpush2.bf16.msra.mxu0 %v5170
        %6935 = vmatprep.subr.bf16.mxu0 %v5167
        %6936 = vmatpush2.bf16.msra.mxu0 %v5166
        %6937 = vmatprep.subr.bf16.mxu0 %v5163
        %6938 = vmatpush2.bf16.msra.mxu0 %v5162
        %6939 = vmatprep.subr.bf16.mxu0 %v5159
        %6940 = vmatpush2.bf16.msra.mxu0 %v5158
        %6941 = vmatprep.subr.bf16.mxu0 %v5155
        %6942 = vmatpush2.bf16.msra.mxu0 %v5154
        %6943 = vmatprep.subr.bf16.mxu0 %v5151
        %6944 = vmatpush2.bf16.msra.mxu0 %v5150
        %6945 = vmatprep.mubr.bf16.mxu0 %v287
        %6946 = vmatmul.mubr.bf16.gmra.mxu0 %v286
        %v6947 = vpop.f32.mrf.mxu0
        %v6948 = vadd.f32 %v6907, %v6947
        %v6949 = vpop.f32.mrf.mxu0
        %v6950 = vadd.f32 %v6909, %v6949
        %v6951 = vpop.f32.mrf.mxu0
        %v6952 = vpop.f32.mrf.mxu0
        %6953 = vdwg.mxu0
        %6954 = vmatprep.subr.bf16.mxu0 %v5211
        %6955 = vmatpush1.bf16.msra.mxu0 %v5210
        %6956 = vmatprep.subr.bf16.mxu0 %v5207
        %6957 = vmatpush1.bf16.msra.mxu0 %v5206
        %6958 = vmatprep.subr.bf16.mxu0 %v5203
        %6959 = vmatpush1.bf16.msra.mxu0 %v5202
        %6960 = vmatprep.subr.bf16.mxu0 %v5199
        %6961 = vmatpush1.bf16.msra.mxu0 %v5198
        %6962 = vmatprep.subr.bf16.mxu0 %v5195
        %6963 = vmatpush1.bf16.msra.mxu0 %v5194
        %6964 = vmatprep.subr.bf16.mxu0 %v5191
        %6965 = vmatpush1.bf16.msra.mxu0 %v5190
        %6966 = vmatprep.subr.bf16.mxu0 %v5187
        %6967 = vmatpush1.bf16.msra.mxu0 %v5186
        %6968 = vmatprep.subr.bf16.mxu0 %v5183
        %6969 = vmatpush1.bf16.msra.mxu0 %v5182
        %6970 = vmatprep.subr.bf16.mxu0 %v5243
        %6971 = vmatpush2.bf16.msra.mxu0 %v5242
        %6972 = vmatprep.subr.bf16.mxu0 %v5239
        %6973 = vmatpush2.bf16.msra.mxu0 %v5238
        %6974 = vmatprep.subr.bf16.mxu0 %v5235
        %6975 = vmatpush2.bf16.msra.mxu0 %v5234
        %6976 = vmatprep.subr.bf16.mxu0 %v5231
        %6977 = vmatpush2.bf16.msra.mxu0 %v5230
        %6978 = vmatprep.subr.bf16.mxu0 %v5227
        %6979 = vmatpush2.bf16.msra.mxu0 %v5226
        %6980 = vmatprep.subr.bf16.mxu0 %v5223
        %6981 = vmatpush2.bf16.msra.mxu0 %v5222
        %6982 = vmatprep.subr.bf16.mxu0 %v5219
        %6983 = vmatpush2.bf16.msra.mxu0 %v5218
        %6984 = vmatprep.subr.bf16.mxu0 %v5215
        %6985 = vmatpush2.bf16.msra.mxu0 %v5214
        %6986 = vmatprep.mubr.bf16.mxu0 %v289
        %6987 = vmatmul.mubr.bf16.gmra.mxu0 %v288
        %v6988 = vpop.f32.mrf.mxu0
        %v6989 = vadd.f32 %v6948, %v6988
        %v6990 = vpop.f32.mrf.mxu0
        %v6991 = vadd.f32 %v6950, %v6990
        %v6992 = vpop.f32.mrf.mxu0
        %v6993 = vpop.f32.mrf.mxu0
        %6994 = vdwg.mxu0
        %6995 = vmatprep.subr.bf16.mxu0 %v5275
        %6996 = vmatpush1.bf16.msra.mxu0 %v5274
        %6997 = vmatprep.subr.bf16.mxu0 %v5271
        %6998 = vmatpush1.bf16.msra.mxu0 %v5270
        %6999 = vmatprep.subr.bf16.mxu0 %v5267
        %7000 = vmatpush1.bf16.msra.mxu0 %v5266
        %7001 = vmatprep.subr.bf16.mxu0 %v5263
        %7002 = vmatpush1.bf16.msra.mxu0 %v5262
        %7003 = vmatprep.subr.bf16.mxu0 %v5259
        %7004 = vmatpush1.bf16.msra.mxu0 %v5258
        %7005 = vmatprep.subr.bf16.mxu0 %v5255
        %7006 = vmatpush1.bf16.msra.mxu0 %v5254
        %7007 = vmatprep.subr.bf16.mxu0 %v5251
        %7008 = vmatpush1.bf16.msra.mxu0 %v5250
        %7009 = vmatprep.subr.bf16.mxu0 %v5247
        %7010 = vmatpush1.bf16.msra.mxu0 %v5246
        %7011 = vmatprep.subr.bf16.mxu0 %v5307
        %7012 = vmatpush2.bf16.msra.mxu0 %v5306
        %7013 = vmatprep.subr.bf16.mxu0 %v5303
        %7014 = vmatpush2.bf16.msra.mxu0 %v5302
        %7015 = vmatprep.subr.bf16.mxu0 %v5299
        %7016 = vmatpush2.bf16.msra.mxu0 %v5298
        %7017 = vmatprep.subr.bf16.mxu0 %v5295
        %7018 = vmatpush2.bf16.msra.mxu0 %v5294
        %7019 = vmatprep.subr.bf16.mxu0 %v5291
        %7020 = vmatpush2.bf16.msra.mxu0 %v5290
        %7021 = vmatprep.subr.bf16.mxu0 %v5287
        %7022 = vmatpush2.bf16.msra.mxu0 %v5286
        %7023 = vmatprep.subr.bf16.mxu0 %v5283
        %7024 = vmatpush2.bf16.msra.mxu0 %v5282
        %7025 = vmatprep.subr.bf16.mxu0 %v5279
        %7026 = vmatpush2.bf16.msra.mxu0 %v5278
        %7027 = vmatprep.mubr.bf16.mxu0 %v291
        %7028 = vmatmul.mubr.bf16.gmra.mxu0 %v290
        %v7029 = vpop.f32.mrf.mxu0
        %v7030 = vadd.f32 %v6989, %v7029
        %v7031 = vpop.f32.mrf.mxu0
        %v7032 = vadd.f32 %v6991, %v7031
        %v7033 = vpop.f32.mrf.mxu0
        %v7034 = vpop.f32.mrf.mxu0
        %7035 = vdwg.mxu0
        %7036 = vmatprep.subr.bf16.mxu0 %v5339
        %7037 = vmatpush1.bf16.msra.mxu0 %v5338
        %7038 = vmatprep.subr.bf16.mxu0 %v5335
        %7039 = vmatpush1.bf16.msra.mxu0 %v5334
        %7040 = vmatprep.subr.bf16.mxu0 %v5331
        %7041 = vmatpush1.bf16.msra.mxu0 %v5330
        %7042 = vmatprep.subr.bf16.mxu0 %v5327
        %7043 = vmatpush1.bf16.msra.mxu0 %v5326
        %7044 = vmatprep.subr.bf16.mxu0 %v5323
        %7045 = vmatpush1.bf16.msra.mxu0 %v5322
        %7046 = vmatprep.subr.bf16.mxu0 %v5319
        %7047 = vmatpush1.bf16.msra.mxu0 %v5318
        %7048 = vmatprep.subr.bf16.mxu0 %v5315
        %7049 = vmatpush1.bf16.msra.mxu0 %v5314
        %7050 = vmatprep.subr.bf16.mxu0 %v5311
        %7051 = vmatpush1.bf16.msra.mxu0 %v5310
        %7052 = vmatprep.subr.bf16.mxu0 %v5371
        %7053 = vmatpush2.bf16.msra.mxu0 %v5370
        %7054 = vmatprep.subr.bf16.mxu0 %v5367
        %7055 = vmatpush2.bf16.msra.mxu0 %v5366
        %7056 = vmatprep.subr.bf16.mxu0 %v5363
        %7057 = vmatpush2.bf16.msra.mxu0 %v5362
        %7058 = vmatprep.subr.bf16.mxu0 %v5359
        %7059 = vmatpush2.bf16.msra.mxu0 %v5358
        %7060 = vmatprep.subr.bf16.mxu0 %v5355
        %7061 = vmatpush2.bf16.msra.mxu0 %v5354
        %7062 = vmatprep.subr.bf16.mxu0 %v5351
        %7063 = vmatpush2.bf16.msra.mxu0 %v5350
        %7064 = vmatprep.subr.bf16.mxu0 %v5347
        %7065 = vmatpush2.bf16.msra.mxu0 %v5346
        %7066 = vmatprep.subr.bf16.mxu0 %v5343
        %7067 = vmatpush2.bf16.msra.mxu0 %v5342
        %7068 = vmatprep.mubr.bf16.mxu0 %v293
        %7069 = vmatmul.mubr.bf16.gmra.mxu0 %v292
        %v7070 = vpop.f32.mrf.mxu0
        %v7071 = vadd.f32 %v7030, %v7070
        %v7072 = vpop.f32.mrf.mxu0
        %v7073 = vadd.f32 %v7032, %v7072
        %v7074 = vpop.f32.mrf.mxu0
        %v7075 = vpop.f32.mrf.mxu0
        %7076 = vdwg.mxu0
        %7077 = vmatprep.subr.bf16.mxu0 %v5403
        %7078 = vmatpush1.bf16.msra.mxu0 %v5402
        %7079 = vmatprep.subr.bf16.mxu0 %v5399
        %7080 = vmatpush1.bf16.msra.mxu0 %v5398
        %7081 = vmatprep.subr.bf16.mxu0 %v5395
        %7082 = vmatpush1.bf16.msra.mxu0 %v5394
        %7083 = vmatprep.subr.bf16.mxu0 %v5391
        %7084 = vmatpush1.bf16.msra.mxu0 %v5390
        %7085 = vmatprep.subr.bf16.mxu0 %v5387
        %7086 = vmatpush1.bf16.msra.mxu0 %v5386
        %7087 = vmatprep.subr.bf16.mxu0 %v5383
        %7088 = vmatpush1.bf16.msra.mxu0 %v5382
        %7089 = vmatprep.subr.bf16.mxu0 %v5379
        %7090 = vmatpush1.bf16.msra.mxu0 %v5378
        %7091 = vmatprep.subr.bf16.mxu0 %v5375
        %7092 = vmatpush1.bf16.msra.mxu0 %v5374
        %7093 = vmatprep.subr.bf16.mxu0 %v5435
        %7094 = vmatpush2.bf16.msra.mxu0 %v5434
        %7095 = vmatprep.subr.bf16.mxu0 %v5431
        %7096 = vmatpush2.bf16.msra.mxu0 %v5430
        %7097 = vmatprep.subr.bf16.mxu0 %v5427
        %7098 = vmatpush2.bf16.msra.mxu0 %v5426
        %7099 = vmatprep.subr.bf16.mxu0 %v5423
        %7100 = vmatpush2.bf16.msra.mxu0 %v5422
        %7101 = vmatprep.subr.bf16.mxu0 %v5419
        %7102 = vmatpush2.bf16.msra.mxu0 %v5418
        %7103 = vmatprep.subr.bf16.mxu0 %v5415
        %7104 = vmatpush2.bf16.msra.mxu0 %v5414
        %7105 = vmatprep.subr.bf16.mxu0 %v5411
        %7106 = vmatpush2.bf16.msra.mxu0 %v5410
        %7107 = vmatprep.subr.bf16.mxu0 %v5407
        %7108 = vmatpush2.bf16.msra.mxu0 %v5406
        %7109 = vmatprep.mubr.bf16.mxu0 %v295
        %7110 = vmatmul.mubr.bf16.gmra.mxu0 %v294
        %v7111 = vpop.f32.mrf.mxu0
        %v7112 = vadd.f32 %v7071, %v7111
        %v7113 = vpop.f32.mrf.mxu0
        %v7114 = vadd.f32 %v7073, %v7113
        %v7115 = vpop.f32.mrf.mxu0
        %v7116 = vpop.f32.mrf.mxu0
        %7117 = vdwg.mxu0
        %7118 = vmatprep.subr.bf16.mxu0 %v4445
        %7119 = vmatpush1.bf16.msra.mxu0 %v4444
        %7120 = vmatprep.subr.bf16.mxu0 %v4441
        %7121 = vmatpush1.bf16.msra.mxu0 %v4440
        %7122 = vmatprep.subr.bf16.mxu0 %v4437
        %7123 = vmatpush1.bf16.msra.mxu0 %v4436
        %7124 = vmatprep.subr.bf16.mxu0 %v4433
        %7125 = vmatpush1.bf16.msra.mxu0 %v4432
        %7126 = vmatprep.subr.bf16.mxu0 %v4429
        %7127 = vmatpush1.bf16.msra.mxu0 %v4428
        %7128 = vmatprep.subr.bf16.mxu0 %v4425
        %7129 = vmatpush1.bf16.msra.mxu0 %v4424
        %7130 = vmatprep.subr.bf16.mxu0 %v4421
        %7131 = vmatpush1.bf16.msra.mxu0 %v4420
        %7132 = vmatprep.subr.bf16.mxu0 %v4417
        %7133 = vmatpush1.bf16.msra.mxu0 %v4416
        %7134 = vmatprep.subr.bf16.mxu0 %v4477
        %7135 = vmatpush2.bf16.msra.mxu0 %v4476
        %7136 = vmatprep.subr.bf16.mxu0 %v4473
        %7137 = vmatpush2.bf16.msra.mxu0 %v4472
        %7138 = vmatprep.subr.bf16.mxu0 %v4469
        %7139 = vmatpush2.bf16.msra.mxu0 %v4468
        %7140 = vmatprep.subr.bf16.mxu0 %v4465
        %7141 = vmatpush2.bf16.msra.mxu0 %v4464
        %7142 = vmatprep.subr.bf16.mxu0 %v4461
        %7143 = vmatpush2.bf16.msra.mxu0 %v4460
        %7144 = vmatprep.subr.bf16.mxu0 %v4457
        %7145 = vmatpush2.bf16.msra.mxu0 %v4456
        %7146 = vmatprep.subr.bf16.mxu0 %v4453
        %7147 = vmatpush2.bf16.msra.mxu0 %v4452
        %7148 = vmatprep.subr.bf16.mxu0 %v4449
        %7149 = vmatpush2.bf16.msra.mxu0 %v4448
        %7150 = vmatprep.mubr.bf16.mxu0 %v265
        %7151 = vmatmul.mubr.bf16.gmra.mxu0 %v264
        %v7152 = vpop.f32.mrf.mxu0
        %v7153 = vadd.f32 %v1333, %v7152
        %v7154 = vpop.f32.mrf.mxu0
        %v7155 = vadd.f32 %v1337, %v7154
        %v7156 = vpop.f32.mrf.mxu0
        %v7157 = vpop.f32.mrf.mxu0
        %7158 = vdwg.mxu0
        %7159 = vmatprep.subr.bf16.mxu0 %v4509
        %7160 = vmatpush1.bf16.msra.mxu0 %v4508
        %7161 = vmatprep.subr.bf16.mxu0 %v4505
        %7162 = vmatpush1.bf16.msra.mxu0 %v4504
        %7163 = vmatprep.subr.bf16.mxu0 %v4501
        %7164 = vmatpush1.bf16.msra.mxu0 %v4500
        %7165 = vmatprep.subr.bf16.mxu0 %v4497
        %7166 = vmatpush1.bf16.msra.mxu0 %v4496
        %7167 = vmatprep.subr.bf16.mxu0 %v4493
        %7168 = vmatpush1.bf16.msra.mxu0 %v4492
        %7169 = vmatprep.subr.bf16.mxu0 %v4489
        %7170 = vmatpush1.bf16.msra.mxu0 %v4488
        %7171 = vmatprep.subr.bf16.mxu0 %v4485
        %7172 = vmatpush1.bf16.msra.mxu0 %v4484
        %7173 = vmatprep.subr.bf16.mxu0 %v4481
        %7174 = vmatpush1.bf16.msra.mxu0 %v4480
        %7175 = vmatprep.subr.bf16.mxu0 %v4541
        %7176 = vmatpush2.bf16.msra.mxu0 %v4540
        %7177 = vmatprep.subr.bf16.mxu0 %v4537
        %7178 = vmatpush2.bf16.msra.mxu0 %v4536
        %7179 = vmatprep.subr.bf16.mxu0 %v4533
        %7180 = vmatpush2.bf16.msra.mxu0 %v4532
        %7181 = vmatprep.subr.bf16.mxu0 %v4529
        %7182 = vmatpush2.bf16.msra.mxu0 %v4528
        %7183 = vmatprep.subr.bf16.mxu0 %v4525
        %7184 = vmatpush2.bf16.msra.mxu0 %v4524
        %7185 = vmatprep.subr.bf16.mxu0 %v4521
        %7186 = vmatpush2.bf16.msra.mxu0 %v4520
        %7187 = vmatprep.subr.bf16.mxu0 %v4517
        %7188 = vmatpush2.bf16.msra.mxu0 %v4516
        %7189 = vmatprep.subr.bf16.mxu0 %v4513
        %7190 = vmatpush2.bf16.msra.mxu0 %v4512
        %7191 = vmatprep.mubr.bf16.mxu0 %v267
        %7192 = vmatmul.mubr.bf16.gmra.mxu0 %v266
        %v7193 = vpop.f32.mrf.mxu0
        %v7194 = vadd.f32 %v7153, %v7193
        %v7195 = vpop.f32.mrf.mxu0
        %v7196 = vadd.f32 %v7155, %v7195
        %v7197 = vpop.f32.mrf.mxu0
        %v7198 = vpop.f32.mrf.mxu0
        %7199 = vdwg.mxu0
        %7200 = vmatprep.subr.bf16.mxu0 %v4573
        %7201 = vmatpush1.bf16.msra.mxu0 %v4572
        %7202 = vmatprep.subr.bf16.mxu0 %v4569
        %7203 = vmatpush1.bf16.msra.mxu0 %v4568
        %7204 = vmatprep.subr.bf16.mxu0 %v4565
        %7205 = vmatpush1.bf16.msra.mxu0 %v4564
        %7206 = vmatprep.subr.bf16.mxu0 %v4561
        %7207 = vmatpush1.bf16.msra.mxu0 %v4560
        %7208 = vmatprep.subr.bf16.mxu0 %v4557
        %7209 = vmatpush1.bf16.msra.mxu0 %v4556
        %7210 = vmatprep.subr.bf16.mxu0 %v4553
        %7211 = vmatpush1.bf16.msra.mxu0 %v4552
        %7212 = vmatprep.subr.bf16.mxu0 %v4549
        %7213 = vmatpush1.bf16.msra.mxu0 %v4548
        %7214 = vmatprep.subr.bf16.mxu0 %v4545
        %7215 = vmatpush1.bf16.msra.mxu0 %v4544
        %7216 = vmatprep.subr.bf16.mxu0 %v4605
        %7217 = vmatpush2.bf16.msra.mxu0 %v4604
        %7218 = vmatprep.subr.bf16.mxu0 %v4601
        %7219 = vmatpush2.bf16.msra.mxu0 %v4600
        %7220 = vmatprep.subr.bf16.mxu0 %v4597
        %7221 = vmatpush2.bf16.msra.mxu0 %v4596
        %7222 = vmatprep.subr.bf16.mxu0 %v4593
        %7223 = vmatpush2.bf16.msra.mxu0 %v4592
        %7224 = vmatprep.subr.bf16.mxu0 %v4589
        %7225 = vmatpush2.bf16.msra.mxu0 %v4588
        %7226 = vmatprep.subr.bf16.mxu0 %v4585
        %7227 = vmatpush2.bf16.msra.mxu0 %v4584
        %7228 = vmatprep.subr.bf16.mxu0 %v4581
        %7229 = vmatpush2.bf16.msra.mxu0 %v4580
        %7230 = vmatprep.subr.bf16.mxu0 %v4577
        %7231 = vmatpush2.bf16.msra.mxu0 %v4576
        %7232 = vmatprep.mubr.bf16.mxu0 %v269
        %7233 = vmatmul.mubr.bf16.gmra.mxu0 %v268
        %v7234 = vpop.f32.mrf.mxu0
        %v7235 = vadd.f32 %v7194, %v7234
        %v7236 = vpop.f32.mrf.mxu0
        %v7237 = vadd.f32 %v7196, %v7236
        %v7238 = vpop.f32.mrf.mxu0
        %v7239 = vpop.f32.mrf.mxu0
        %7240 = vdwg.mxu0
        %7241 = vmatprep.subr.bf16.mxu0 %v4637
        %7242 = vmatpush1.bf16.msra.mxu0 %v4636
        %7243 = vmatprep.subr.bf16.mxu0 %v4633
        %7244 = vmatpush1.bf16.msra.mxu0 %v4632
        %7245 = vmatprep.subr.bf16.mxu0 %v4629
        %7246 = vmatpush1.bf16.msra.mxu0 %v4628
        %7247 = vmatprep.subr.bf16.mxu0 %v4625
        %7248 = vmatpush1.bf16.msra.mxu0 %v4624
        %7249 = vmatprep.subr.bf16.mxu0 %v4621
        %7250 = vmatpush1.bf16.msra.mxu0 %v4620
        %7251 = vmatprep.subr.bf16.mxu0 %v4617
        %7252 = vmatpush1.bf16.msra.mxu0 %v4616
        %7253 = vmatprep.subr.bf16.mxu0 %v4613
        %7254 = vmatpush1.bf16.msra.mxu0 %v4612
        %7255 = vmatprep.subr.bf16.mxu0 %v4609
        %7256 = vmatpush1.bf16.msra.mxu0 %v4608
        %7257 = vmatprep.subr.bf16.mxu0 %v4669
        %7258 = vmatpush2.bf16.msra.mxu0 %v4668
        %7259 = vmatprep.subr.bf16.mxu0 %v4665
        %7260 = vmatpush2.bf16.msra.mxu0 %v4664
        %7261 = vmatprep.subr.bf16.mxu0 %v4661
        %7262 = vmatpush2.bf16.msra.mxu0 %v4660
        %7263 = vmatprep.subr.bf16.mxu0 %v4657
        %7264 = vmatpush2.bf16.msra.mxu0 %v4656
        %7265 = vmatprep.subr.bf16.mxu0 %v4653
        %7266 = vmatpush2.bf16.msra.mxu0 %v4652
        %7267 = vmatprep.subr.bf16.mxu0 %v4649
        %7268 = vmatpush2.bf16.msra.mxu0 %v4648
        %7269 = vmatprep.subr.bf16.mxu0 %v4645
        %7270 = vmatpush2.bf16.msra.mxu0 %v4644
        %7271 = vmatprep.subr.bf16.mxu0 %v4641
        %7272 = vmatpush2.bf16.msra.mxu0 %v4640
        %7273 = vmatprep.mubr.bf16.mxu0 %v271
        %7274 = vmatmul.mubr.bf16.gmra.mxu0 %v270
        %v7275 = vpop.f32.mrf.mxu0
        %v7276 = vadd.f32 %v7235, %v7275
        %v7277 = vpop.f32.mrf.mxu0
        %v7278 = vadd.f32 %v7237, %v7277
        %v7279 = vpop.f32.mrf.mxu0
        %v7280 = vpop.f32.mrf.mxu0
        %7281 = vdwg.mxu0
        %7282 = vmatprep.subr.bf16.mxu0 %v4701
        %7283 = vmatpush1.bf16.msra.mxu0 %v4700
        %7284 = vmatprep.subr.bf16.mxu0 %v4697
        %7285 = vmatpush1.bf16.msra.mxu0 %v4696
        %7286 = vmatprep.subr.bf16.mxu0 %v4693
        %7287 = vmatpush1.bf16.msra.mxu0 %v4692
        %7288 = vmatprep.subr.bf16.mxu0 %v4689
        %7289 = vmatpush1.bf16.msra.mxu0 %v4688
        %7290 = vmatprep.subr.bf16.mxu0 %v4685
        %7291 = vmatpush1.bf16.msra.mxu0 %v4684
        %7292 = vmatprep.subr.bf16.mxu0 %v4681
        %7293 = vmatpush1.bf16.msra.mxu0 %v4680
        %7294 = vmatprep.subr.bf16.mxu0 %v4677
        %7295 = vmatpush1.bf16.msra.mxu0 %v4676
        %7296 = vmatprep.subr.bf16.mxu0 %v4673
        %7297 = vmatpush1.bf16.msra.mxu0 %v4672
        %7298 = vmatprep.subr.bf16.mxu0 %v4733
        %7299 = vmatpush2.bf16.msra.mxu0 %v4732
        %7300 = vmatprep.subr.bf16.mxu0 %v4729
        %7301 = vmatpush2.bf16.msra.mxu0 %v4728
        %7302 = vmatprep.subr.bf16.mxu0 %v4725
        %7303 = vmatpush2.bf16.msra.mxu0 %v4724
        %7304 = vmatprep.subr.bf16.mxu0 %v4721
        %7305 = vmatpush2.bf16.msra.mxu0 %v4720
        %7306 = vmatprep.subr.bf16.mxu0 %v4717
        %7307 = vmatpush2.bf16.msra.mxu0 %v4716
        %7308 = vmatprep.subr.bf16.mxu0 %v4713
        %7309 = vmatpush2.bf16.msra.mxu0 %v4712
        %7310 = vmatprep.subr.bf16.mxu0 %v4709
        %7311 = vmatpush2.bf16.msra.mxu0 %v4708
        %7312 = vmatprep.subr.bf16.mxu0 %v4705
        %7313 = vmatpush2.bf16.msra.mxu0 %v4704
        %7314 = vmatprep.mubr.bf16.mxu0 %v273
        %7315 = vmatmul.mubr.bf16.gmra.mxu0 %v272
        %v7316 = vpop.f32.mrf.mxu0
        %v7317 = vadd.f32 %v7276, %v7316
        %v7318 = vpop.f32.mrf.mxu0
        %v7319 = vadd.f32 %v7278, %v7318
        %v7320 = vpop.f32.mrf.mxu0
        %v7321 = vpop.f32.mrf.mxu0
        %7322 = vdwg.mxu0
        %7323 = vmatprep.subr.bf16.mxu0 %v4765
        %7324 = vmatpush1.bf16.msra.mxu0 %v4764
        %7325 = vmatprep.subr.bf16.mxu0 %v4761
        %7326 = vmatpush1.bf16.msra.mxu0 %v4760
        %7327 = vmatprep.subr.bf16.mxu0 %v4757
        %7328 = vmatpush1.bf16.msra.mxu0 %v4756
        %7329 = vmatprep.subr.bf16.mxu0 %v4753
        %7330 = vmatpush1.bf16.msra.mxu0 %v4752
        %7331 = vmatprep.subr.bf16.mxu0 %v4749
        %7332 = vmatpush1.bf16.msra.mxu0 %v4748
        %7333 = vmatprep.subr.bf16.mxu0 %v4745
        %7334 = vmatpush1.bf16.msra.mxu0 %v4744
        %7335 = vmatprep.subr.bf16.mxu0 %v4741
        %7336 = vmatpush1.bf16.msra.mxu0 %v4740
        %7337 = vmatprep.subr.bf16.mxu0 %v4737
        %7338 = vmatpush1.bf16.msra.mxu0 %v4736
        %7339 = vmatprep.subr.bf16.mxu0 %v4797
        %7340 = vmatpush2.bf16.msra.mxu0 %v4796
        %7341 = vmatprep.subr.bf16.mxu0 %v4793
        %7342 = vmatpush2.bf16.msra.mxu0 %v4792
        %7343 = vmatprep.subr.bf16.mxu0 %v4789
        %7344 = vmatpush2.bf16.msra.mxu0 %v4788
        %7345 = vmatprep.subr.bf16.mxu0 %v4785
        %7346 = vmatpush2.bf16.msra.mxu0 %v4784
        %7347 = vmatprep.subr.bf16.mxu0 %v4781
        %7348 = vmatpush2.bf16.msra.mxu0 %v4780
        %7349 = vmatprep.subr.bf16.mxu0 %v4777
        %7350 = vmatpush2.bf16.msra.mxu0 %v4776
        %7351 = vmatprep.subr.bf16.mxu0 %v4773
        %7352 = vmatpush2.bf16.msra.mxu0 %v4772
        %7353 = vmatprep.subr.bf16.mxu0 %v4769
        %7354 = vmatpush2.bf16.msra.mxu0 %v4768
        %7355 = vmatprep.mubr.bf16.mxu0 %v275
        %7356 = vmatmul.mubr.bf16.gmra.mxu0 %v274
        %v7357 = vpop.f32.mrf.mxu0
        %v7358 = vadd.f32 %v7317, %v7357
        %v7359 = vpop.f32.mrf.mxu0
        %v7360 = vadd.f32 %v7319, %v7359
        %v7361 = vpop.f32.mrf.mxu0
        %v7362 = vpop.f32.mrf.mxu0
        %7363 = vdwg.mxu0
        %7364 = vmatprep.subr.bf16.mxu0 %v4829
        %7365 = vmatpush1.bf16.msra.mxu0 %v4828
        %7366 = vmatprep.subr.bf16.mxu0 %v4825
        %7367 = vmatpush1.bf16.msra.mxu0 %v4824
        %7368 = vmatprep.subr.bf16.mxu0 %v4821
        %7369 = vmatpush1.bf16.msra.mxu0 %v4820
        %7370 = vmatprep.subr.bf16.mxu0 %v4817
        %7371 = vmatpush1.bf16.msra.mxu0 %v4816
        %7372 = vmatprep.subr.bf16.mxu0 %v4813
        %7373 = vmatpush1.bf16.msra.mxu0 %v4812
        %7374 = vmatprep.subr.bf16.mxu0 %v4809
        %7375 = vmatpush1.bf16.msra.mxu0 %v4808
        %7376 = vmatprep.subr.bf16.mxu0 %v4805
        %7377 = vmatpush1.bf16.msra.mxu0 %v4804
        %7378 = vmatprep.subr.bf16.mxu0 %v4801
        %7379 = vmatpush1.bf16.msra.mxu0 %v4800
        %7380 = vmatprep.subr.bf16.mxu0 %v4861
        %7381 = vmatpush2.bf16.msra.mxu0 %v4860
        %7382 = vmatprep.subr.bf16.mxu0 %v4857
        %7383 = vmatpush2.bf16.msra.mxu0 %v4856
        %7384 = vmatprep.subr.bf16.mxu0 %v4853
        %7385 = vmatpush2.bf16.msra.mxu0 %v4852
        %7386 = vmatprep.subr.bf16.mxu0 %v4849
        %7387 = vmatpush2.bf16.msra.mxu0 %v4848
        %7388 = vmatprep.subr.bf16.mxu0 %v4845
        %7389 = vmatpush2.bf16.msra.mxu0 %v4844
        %7390 = vmatprep.subr.bf16.mxu0 %v4841
        %7391 = vmatpush2.bf16.msra.mxu0 %v4840
        %7392 = vmatprep.subr.bf16.mxu0 %v4837
        %7393 = vmatpush2.bf16.msra.mxu0 %v4836
        %7394 = vmatprep.subr.bf16.mxu0 %v4833
        %7395 = vmatpush2.bf16.msra.mxu0 %v4832
        %7396 = vmatprep.mubr.bf16.mxu0 %v277
        %7397 = vmatmul.mubr.bf16.gmra.mxu0 %v276
        %v7398 = vpop.f32.mrf.mxu0
        %v7399 = vadd.f32 %v7358, %v7398
        %v7400 = vpop.f32.mrf.mxu0
        %v7401 = vadd.f32 %v7360, %v7400
        %v7402 = vpop.f32.mrf.mxu0
        %v7403 = vpop.f32.mrf.mxu0
        %7404 = vdwg.mxu0
        %7405 = vmatprep.subr.bf16.mxu0 %v4893
        %7406 = vmatpush1.bf16.msra.mxu0 %v4892
        %7407 = vmatprep.subr.bf16.mxu0 %v4889
        %7408 = vmatpush1.bf16.msra.mxu0 %v4888
        %7409 = vmatprep.subr.bf16.mxu0 %v4885
        %7410 = vmatpush1.bf16.msra.mxu0 %v4884
        %7411 = vmatprep.subr.bf16.mxu0 %v4881
        %7412 = vmatpush1.bf16.msra.mxu0 %v4880
        %7413 = vmatprep.subr.bf16.mxu0 %v4877
        %7414 = vmatpush1.bf16.msra.mxu0 %v4876
        %7415 = vmatprep.subr.bf16.mxu0 %v4873
        %7416 = vmatpush1.bf16.msra.mxu0 %v4872
        %7417 = vmatprep.subr.bf16.mxu0 %v4869
        %7418 = vmatpush1.bf16.msra.mxu0 %v4868
        %7419 = vmatprep.subr.bf16.mxu0 %v4865
        %7420 = vmatpush1.bf16.msra.mxu0 %v4864
        %7421 = vmatprep.subr.bf16.mxu0 %v4925
        %7422 = vmatpush2.bf16.msra.mxu0 %v4924
        %7423 = vmatprep.subr.bf16.mxu0 %v4921
        %7424 = vmatpush2.bf16.msra.mxu0 %v4920
        %7425 = vmatprep.subr.bf16.mxu0 %v4917
        %7426 = vmatpush2.bf16.msra.mxu0 %v4916
        %7427 = vmatprep.subr.bf16.mxu0 %v4913
        %7428 = vmatpush2.bf16.msra.mxu0 %v4912
        %7429 = vmatprep.subr.bf16.mxu0 %v4909
        %7430 = vmatpush2.bf16.msra.mxu0 %v4908
        %7431 = vmatprep.subr.bf16.mxu0 %v4905
        %7432 = vmatpush2.bf16.msra.mxu0 %v4904
        %7433 = vmatprep.subr.bf16.mxu0 %v4901
        %7434 = vmatpush2.bf16.msra.mxu0 %v4900
        %7435 = vmatprep.subr.bf16.mxu0 %v4897
        %7436 = vmatpush2.bf16.msra.mxu0 %v4896
        %7437 = vmatprep.mubr.bf16.mxu0 %v279
        %7438 = vmatmul.mubr.bf16.gmra.mxu0 %v278
        %v7439 = vpop.f32.mrf.mxu0
        %v7440 = vadd.f32 %v7399, %v7439
        %v7441 = vpop.f32.mrf.mxu0
        %v7442 = vadd.f32 %v7401, %v7441
        %v7443 = vpop.f32.mrf.mxu0
        %v7444 = vpop.f32.mrf.mxu0
        %7445 = vdwg.mxu0
        %7446 = vmatprep.subr.bf16.mxu0 %v4957
        %7447 = vmatpush1.bf16.msra.mxu0 %v4956
        %7448 = vmatprep.subr.bf16.mxu0 %v4953
        %7449 = vmatpush1.bf16.msra.mxu0 %v4952
        %7450 = vmatprep.subr.bf16.mxu0 %v4949
        %7451 = vmatpush1.bf16.msra.mxu0 %v4948
        %7452 = vmatprep.subr.bf16.mxu0 %v4945
        %7453 = vmatpush1.bf16.msra.mxu0 %v4944
        %7454 = vmatprep.subr.bf16.mxu0 %v4941
        %7455 = vmatpush1.bf16.msra.mxu0 %v4940
        %7456 = vmatprep.subr.bf16.mxu0 %v4937
        %7457 = vmatpush1.bf16.msra.mxu0 %v4936
        %7458 = vmatprep.subr.bf16.mxu0 %v4933
        %7459 = vmatpush1.bf16.msra.mxu0 %v4932
        %7460 = vmatprep.subr.bf16.mxu0 %v4929
        %7461 = vmatpush1.bf16.msra.mxu0 %v4928
        %7462 = vmatprep.subr.bf16.mxu0 %v4989
        %7463 = vmatpush2.bf16.msra.mxu0 %v4988
        %7464 = vmatprep.subr.bf16.mxu0 %v4985
        %7465 = vmatpush2.bf16.msra.mxu0 %v4984
        %7466 = vmatprep.subr.bf16.mxu0 %v4981
        %7467 = vmatpush2.bf16.msra.mxu0 %v4980
        %7468 = vmatprep.subr.bf16.mxu0 %v4977
        %7469 = vmatpush2.bf16.msra.mxu0 %v4976
        %7470 = vmatprep.subr.bf16.mxu0 %v4973
        %7471 = vmatpush2.bf16.msra.mxu0 %v4972
        %7472 = vmatprep.subr.bf16.mxu0 %v4969
        %7473 = vmatpush2.bf16.msra.mxu0 %v4968
        %7474 = vmatprep.subr.bf16.mxu0 %v4965
        %7475 = vmatpush2.bf16.msra.mxu0 %v4964
        %7476 = vmatprep.subr.bf16.mxu0 %v4961
        %7477 = vmatpush2.bf16.msra.mxu0 %v4960
        %7478 = vmatprep.mubr.bf16.mxu0 %v281
        %7479 = vmatmul.mubr.bf16.gmra.mxu0 %v280
        %v7480 = vpop.f32.mrf.mxu0
        %v7481 = vadd.f32 %v7440, %v7480
        %v7482 = vpop.f32.mrf.mxu0
        %v7483 = vadd.f32 %v7442, %v7482
        %v7484 = vpop.f32.mrf.mxu0
        %v7485 = vpop.f32.mrf.mxu0
        %7486 = vdwg.mxu0
        %7487 = vmatprep.subr.bf16.mxu0 %v5021
        %7488 = vmatpush1.bf16.msra.mxu0 %v5020
        %7489 = vmatprep.subr.bf16.mxu0 %v5017
        %7490 = vmatpush1.bf16.msra.mxu0 %v5016
        %7491 = vmatprep.subr.bf16.mxu0 %v5013
        %7492 = vmatpush1.bf16.msra.mxu0 %v5012
        %7493 = vmatprep.subr.bf16.mxu0 %v5009
        %7494 = vmatpush1.bf16.msra.mxu0 %v5008
        %7495 = vmatprep.subr.bf16.mxu0 %v5005
        %7496 = vmatpush1.bf16.msra.mxu0 %v5004
        %7497 = vmatprep.subr.bf16.mxu0 %v5001
        %7498 = vmatpush1.bf16.msra.mxu0 %v5000
        %7499 = vmatprep.subr.bf16.mxu0 %v4997
        %7500 = vmatpush1.bf16.msra.mxu0 %v4996
        %7501 = vmatprep.subr.bf16.mxu0 %v4993
        %7502 = vmatpush1.bf16.msra.mxu0 %v4992
        %7503 = vmatprep.subr.bf16.mxu0 %v5053
        %7504 = vmatpush2.bf16.msra.mxu0 %v5052
        %7505 = vmatprep.subr.bf16.mxu0 %v5049
        %7506 = vmatpush2.bf16.msra.mxu0 %v5048
        %7507 = vmatprep.subr.bf16.mxu0 %v5045
        %7508 = vmatpush2.bf16.msra.mxu0 %v5044
        %7509 = vmatprep.subr.bf16.mxu0 %v5041
        %7510 = vmatpush2.bf16.msra.mxu0 %v5040
        %7511 = vmatprep.subr.bf16.mxu0 %v5037
        %7512 = vmatpush2.bf16.msra.mxu0 %v5036
        %7513 = vmatprep.subr.bf16.mxu0 %v5033
        %7514 = vmatpush2.bf16.msra.mxu0 %v5032
        %7515 = vmatprep.subr.bf16.mxu0 %v5029
        %7516 = vmatpush2.bf16.msra.mxu0 %v5028
        %7517 = vmatprep.subr.bf16.mxu0 %v5025
        %7518 = vmatpush2.bf16.msra.mxu0 %v5024
        %7519 = vmatprep.mubr.bf16.mxu0 %v283
        %7520 = vmatmul.mubr.bf16.gmra.mxu0 %v282
        %v7521 = vpop.f32.mrf.mxu0
        %v7522 = vadd.f32 %v7481, %v7521
        %v7523 = vpop.f32.mrf.mxu0
        %v7524 = vadd.f32 %v7483, %v7523
        %v7525 = vpop.f32.mrf.mxu0
        %v7526 = vpop.f32.mrf.mxu0
        %7527 = vdwg.mxu0
        %7528 = vmatprep.subr.bf16.mxu0 %v5085
        %7529 = vmatpush1.bf16.msra.mxu0 %v5084
        %7530 = vmatprep.subr.bf16.mxu0 %v5081
        %7531 = vmatpush1.bf16.msra.mxu0 %v5080
        %7532 = vmatprep.subr.bf16.mxu0 %v5077
        %7533 = vmatpush1.bf16.msra.mxu0 %v5076
        %7534 = vmatprep.subr.bf16.mxu0 %v5073
        %7535 = vmatpush1.bf16.msra.mxu0 %v5072
        %7536 = vmatprep.subr.bf16.mxu0 %v5069
        %7537 = vmatpush1.bf16.msra.mxu0 %v5068
        %7538 = vmatprep.subr.bf16.mxu0 %v5065
        %7539 = vmatpush1.bf16.msra.mxu0 %v5064
        %7540 = vmatprep.subr.bf16.mxu0 %v5061
        %7541 = vmatpush1.bf16.msra.mxu0 %v5060
        %7542 = vmatprep.subr.bf16.mxu0 %v5057
        %7543 = vmatpush1.bf16.msra.mxu0 %v5056
        %7544 = vmatprep.subr.bf16.mxu0 %v5117
        %7545 = vmatpush2.bf16.msra.mxu0 %v5116
        %7546 = vmatprep.subr.bf16.mxu0 %v5113
        %7547 = vmatpush2.bf16.msra.mxu0 %v5112
        %7548 = vmatprep.subr.bf16.mxu0 %v5109
        %7549 = vmatpush2.bf16.msra.mxu0 %v5108
        %7550 = vmatprep.subr.bf16.mxu0 %v5105
        %7551 = vmatpush2.bf16.msra.mxu0 %v5104
        %7552 = vmatprep.subr.bf16.mxu0 %v5101
        %7553 = vmatpush2.bf16.msra.mxu0 %v5100
        %7554 = vmatprep.subr.bf16.mxu0 %v5097
        %7555 = vmatpush2.bf16.msra.mxu0 %v5096
        %7556 = vmatprep.subr.bf16.mxu0 %v5093
        %7557 = vmatpush2.bf16.msra.mxu0 %v5092
        %7558 = vmatprep.subr.bf16.mxu0 %v5089
        %7559 = vmatpush2.bf16.msra.mxu0 %v5088
        %7560 = vmatprep.mubr.bf16.mxu0 %v285
        %7561 = vmatmul.mubr.bf16.gmra.mxu0 %v284
        %v7562 = vpop.f32.mrf.mxu0
        %v7563 = vadd.f32 %v7522, %v7562
        %v7564 = vpop.f32.mrf.mxu0
        %v7565 = vadd.f32 %v7524, %v7564
        %v7566 = vpop.f32.mrf.mxu0
        %v7567 = vpop.f32.mrf.mxu0
        %7568 = vdwg.mxu0
        %7569 = vmatprep.subr.bf16.mxu0 %v5149
        %7570 = vmatpush1.bf16.msra.mxu0 %v5148
        %7571 = vmatprep.subr.bf16.mxu0 %v5145
        %7572 = vmatpush1.bf16.msra.mxu0 %v5144
        %7573 = vmatprep.subr.bf16.mxu0 %v5141
        %7574 = vmatpush1.bf16.msra.mxu0 %v5140
        %7575 = vmatprep.subr.bf16.mxu0 %v5137
        %7576 = vmatpush1.bf16.msra.mxu0 %v5136
        %7577 = vmatprep.subr.bf16.mxu0 %v5133
        %7578 = vmatpush1.bf16.msra.mxu0 %v5132
        %7579 = vmatprep.subr.bf16.mxu0 %v5129
        %7580 = vmatpush1.bf16.msra.mxu0 %v5128
        %7581 = vmatprep.subr.bf16.mxu0 %v5125
        %7582 = vmatpush1.bf16.msra.mxu0 %v5124
        %7583 = vmatprep.subr.bf16.mxu0 %v5121
        %7584 = vmatpush1.bf16.msra.mxu0 %v5120
        %7585 = vmatprep.subr.bf16.mxu0 %v5181
        %7586 = vmatpush2.bf16.msra.mxu0 %v5180
        %7587 = vmatprep.subr.bf16.mxu0 %v5177
        %7588 = vmatpush2.bf16.msra.mxu0 %v5176
        %7589 = vmatprep.subr.bf16.mxu0 %v5173
        %7590 = vmatpush2.bf16.msra.mxu0 %v5172
        %7591 = vmatprep.subr.bf16.mxu0 %v5169
        %7592 = vmatpush2.bf16.msra.mxu0 %v5168
        %7593 = vmatprep.subr.bf16.mxu0 %v5165
        %7594 = vmatpush2.bf16.msra.mxu0 %v5164
        %7595 = vmatprep.subr.bf16.mxu0 %v5161
        %7596 = vmatpush2.bf16.msra.mxu0 %v5160
        %7597 = vmatprep.subr.bf16.mxu0 %v5157
        %7598 = vmatpush2.bf16.msra.mxu0 %v5156
        %7599 = vmatprep.subr.bf16.mxu0 %v5153
        %7600 = vmatpush2.bf16.msra.mxu0 %v5152
        %7601 = vmatprep.mubr.bf16.mxu0 %v287
        %7602 = vmatmul.mubr.bf16.gmra.mxu0 %v286
        %v7603 = vpop.f32.mrf.mxu0
        %v7604 = vadd.f32 %v7563, %v7603
        %v7605 = vpop.f32.mrf.mxu0
        %v7606 = vadd.f32 %v7565, %v7605
        %v7607 = vpop.f32.mrf.mxu0
        %v7608 = vpop.f32.mrf.mxu0
        %7609 = vdwg.mxu0
        %7610 = vmatprep.subr.bf16.mxu0 %v5213
        %7611 = vmatpush1.bf16.msra.mxu0 %v5212
        %7612 = vmatprep.subr.bf16.mxu0 %v5209
        %7613 = vmatpush1.bf16.msra.mxu0 %v5208
        %7614 = vmatprep.subr.bf16.mxu0 %v5205
        %7615 = vmatpush1.bf16.msra.mxu0 %v5204
        %7616 = vmatprep.subr.bf16.mxu0 %v5201
        %7617 = vmatpush1.bf16.msra.mxu0 %v5200
        %7618 = vmatprep.subr.bf16.mxu0 %v5197
        %7619 = vmatpush1.bf16.msra.mxu0 %v5196
        %7620 = vmatprep.subr.bf16.mxu0 %v5193
        %7621 = vmatpush1.bf16.msra.mxu0 %v5192
        %7622 = vmatprep.subr.bf16.mxu0 %v5189
        %7623 = vmatpush1.bf16.msra.mxu0 %v5188
        %7624 = vmatprep.subr.bf16.mxu0 %v5185
        %7625 = vmatpush1.bf16.msra.mxu0 %v5184
        %7626 = vmatprep.subr.bf16.mxu0 %v5245
        %7627 = vmatpush2.bf16.msra.mxu0 %v5244
        %7628 = vmatprep.subr.bf16.mxu0 %v5241
        %7629 = vmatpush2.bf16.msra.mxu0 %v5240
        %7630 = vmatprep.subr.bf16.mxu0 %v5237
        %7631 = vmatpush2.bf16.msra.mxu0 %v5236
        %7632 = vmatprep.subr.bf16.mxu0 %v5233
        %7633 = vmatpush2.bf16.msra.mxu0 %v5232
        %7634 = vmatprep.subr.bf16.mxu0 %v5229
        %7635 = vmatpush2.bf16.msra.mxu0 %v5228
        %7636 = vmatprep.subr.bf16.mxu0 %v5225
        %7637 = vmatpush2.bf16.msra.mxu0 %v5224
        %7638 = vmatprep.subr.bf16.mxu0 %v5221
        %7639 = vmatpush2.bf16.msra.mxu0 %v5220
        %7640 = vmatprep.subr.bf16.mxu0 %v5217
        %7641 = vmatpush2.bf16.msra.mxu0 %v5216
        %7642 = vmatprep.mubr.bf16.mxu0 %v289
        %7643 = vmatmul.mubr.bf16.gmra.mxu0 %v288
        %v7644 = vpop.f32.mrf.mxu0
        %v7645 = vadd.f32 %v7604, %v7644
        %v7646 = vpop.f32.mrf.mxu0
        %v7647 = vadd.f32 %v7606, %v7646
        %v7648 = vpop.f32.mrf.mxu0
        %v7649 = vpop.f32.mrf.mxu0
        %7650 = vdwg.mxu0
        %7651 = vmatprep.subr.bf16.mxu0 %v5277
        %7652 = vmatpush1.bf16.msra.mxu0 %v5276
        %7653 = vmatprep.subr.bf16.mxu0 %v5273
        %7654 = vmatpush1.bf16.msra.mxu0 %v5272
        %7655 = vmatprep.subr.bf16.mxu0 %v5269
        %7656 = vmatpush1.bf16.msra.mxu0 %v5268
        %7657 = vmatprep.subr.bf16.mxu0 %v5265
        %7658 = vmatpush1.bf16.msra.mxu0 %v5264
        %7659 = vmatprep.subr.bf16.mxu0 %v5261
        %7660 = vmatpush1.bf16.msra.mxu0 %v5260
        %7661 = vmatprep.subr.bf16.mxu0 %v5257
        %7662 = vmatpush1.bf16.msra.mxu0 %v5256
        %7663 = vmatprep.subr.bf16.mxu0 %v5253
        %7664 = vmatpush1.bf16.msra.mxu0 %v5252
        %7665 = vmatprep.subr.bf16.mxu0 %v5249
        %7666 = vmatpush1.bf16.msra.mxu0 %v5248
        %7667 = vmatprep.subr.bf16.mxu0 %v5309
        %7668 = vmatpush2.bf16.msra.mxu0 %v5308
        %7669 = vmatprep.subr.bf16.mxu0 %v5305
        %7670 = vmatpush2.bf16.msra.mxu0 %v5304
        %7671 = vmatprep.subr.bf16.mxu0 %v5301
        %7672 = vmatpush2.bf16.msra.mxu0 %v5300
        %7673 = vmatprep.subr.bf16.mxu0 %v5297
        %7674 = vmatpush2.bf16.msra.mxu0 %v5296
        %7675 = vmatprep.subr.bf16.mxu0 %v5293
        %7676 = vmatpush2.bf16.msra.mxu0 %v5292
        %7677 = vmatprep.subr.bf16.mxu0 %v5289
        %7678 = vmatpush2.bf16.msra.mxu0 %v5288
        %7679 = vmatprep.subr.bf16.mxu0 %v5285
        %7680 = vmatpush2.bf16.msra.mxu0 %v5284
        %7681 = vmatprep.subr.bf16.mxu0 %v5281
        %7682 = vmatpush2.bf16.msra.mxu0 %v5280
        %7683 = vmatprep.mubr.bf16.mxu0 %v291
        %7684 = vmatmul.mubr.bf16.gmra.mxu0 %v290
        %v7685 = vpop.f32.mrf.mxu0
        %v7686 = vadd.f32 %v7645, %v7685
        %v7687 = vpop.f32.mrf.mxu0
        %v7688 = vadd.f32 %v7647, %v7687
        %v7689 = vpop.f32.mrf.mxu0
        %v7690 = vpop.f32.mrf.mxu0
        %7691 = vdwg.mxu0
        %7692 = vmatprep.subr.bf16.mxu0 %v5341
        %7693 = vmatpush1.bf16.msra.mxu0 %v5340
        %7694 = vmatprep.subr.bf16.mxu0 %v5337
        %7695 = vmatpush1.bf16.msra.mxu0 %v5336
        %7696 = vmatprep.subr.bf16.mxu0 %v5333
        %7697 = vmatpush1.bf16.msra.mxu0 %v5332
        %7698 = vmatprep.subr.bf16.mxu0 %v5329
        %7699 = vmatpush1.bf16.msra.mxu0 %v5328
        %7700 = vmatprep.subr.bf16.mxu0 %v5325
        %7701 = vmatpush1.bf16.msra.mxu0 %v5324
        %7702 = vmatprep.subr.bf16.mxu0 %v5321
        %7703 = vmatpush1.bf16.msra.mxu0 %v5320
        %7704 = vmatprep.subr.bf16.mxu0 %v5317
        %7705 = vmatpush1.bf16.msra.mxu0 %v5316
        %7706 = vmatprep.subr.bf16.mxu0 %v5313
        %7707 = vmatpush1.bf16.msra.mxu0 %v5312
        %7708 = vmatprep.subr.bf16.mxu0 %v5373
        %7709 = vmatpush2.bf16.msra.mxu0 %v5372
        %7710 = vmatprep.subr.bf16.mxu0 %v5369
        %7711 = vmatpush2.bf16.msra.mxu0 %v5368
        %7712 = vmatprep.subr.bf16.mxu0 %v5365
        %7713 = vmatpush2.bf16.msra.mxu0 %v5364
        %7714 = vmatprep.subr.bf16.mxu0 %v5361
        %7715 = vmatpush2.bf16.msra.mxu0 %v5360
        %7716 = vmatprep.subr.bf16.mxu0 %v5357
        %7717 = vmatpush2.bf16.msra.mxu0 %v5356
        %7718 = vmatprep.subr.bf16.mxu0 %v5353
        %7719 = vmatpush2.bf16.msra.mxu0 %v5352
        %7720 = vmatprep.subr.bf16.mxu0 %v5349
        %7721 = vmatpush2.bf16.msra.mxu0 %v5348
        %7722 = vmatprep.subr.bf16.mxu0 %v5345
        %7723 = vmatpush2.bf16.msra.mxu0 %v5344
        %7724 = vmatprep.mubr.bf16.mxu0 %v293
        %7725 = vmatmul.mubr.bf16.gmra.mxu0 %v292
        %v7726 = vpop.f32.mrf.mxu0
        %v7727 = vadd.f32 %v7686, %v7726
        %v7728 = vpop.f32.mrf.mxu0
        %v7729 = vadd.f32 %v7688, %v7728
        %v7730 = vpop.f32.mrf.mxu0
        %v7731 = vpop.f32.mrf.mxu0
        %7732 = vdwg.mxu0
        %7733 = vmatprep.subr.bf16.mxu0 %v5405
        %7734 = vmatpush1.bf16.msra.mxu0 %v5404
        %7735 = vmatprep.subr.bf16.mxu0 %v5401
        %7736 = vmatpush1.bf16.msra.mxu0 %v5400
        %7737 = vmatprep.subr.bf16.mxu0 %v5397
        %7738 = vmatpush1.bf16.msra.mxu0 %v5396
        %7739 = vmatprep.subr.bf16.mxu0 %v5393
        %7740 = vmatpush1.bf16.msra.mxu0 %v5392
        %7741 = vmatprep.subr.bf16.mxu0 %v5389
        %7742 = vmatpush1.bf16.msra.mxu0 %v5388
        %7743 = vmatprep.subr.bf16.mxu0 %v5385
        %7744 = vmatpush1.bf16.msra.mxu0 %v5384
        %7745 = vmatprep.subr.bf16.mxu0 %v5381
        %7746 = vmatpush1.bf16.msra.mxu0 %v5380
        %7747 = vmatprep.subr.bf16.mxu0 %v5377
        %7748 = vmatpush1.bf16.msra.mxu0 %v5376
        %7749 = vmatprep.subr.bf16.mxu0 %v5437
        %7750 = vmatpush2.bf16.msra.mxu0 %v5436
        %7751 = vmatprep.subr.bf16.mxu0 %v5433
        %7752 = vmatpush2.bf16.msra.mxu0 %v5432
        %7753 = vmatprep.subr.bf16.mxu0 %v5429
        %7754 = vmatpush2.bf16.msra.mxu0 %v5428
        %7755 = vmatprep.subr.bf16.mxu0 %v5425
        %7756 = vmatpush2.bf16.msra.mxu0 %v5424
        %7757 = vmatprep.subr.bf16.mxu0 %v5421
        %7758 = vmatpush2.bf16.msra.mxu0 %v5420
        %7759 = vmatprep.subr.bf16.mxu0 %v5417
        %7760 = vmatpush2.bf16.msra.mxu0 %v5416
        %7761 = vmatprep.subr.bf16.mxu0 %v5413
        %7762 = vmatpush2.bf16.msra.mxu0 %v5412
        %7763 = vmatprep.subr.bf16.mxu0 %v5409
        %7764 = vmatpush2.bf16.msra.mxu0 %v5408
        %7765 = vmatprep.mubr.bf16.mxu0 %v295
        %7766 = vmatmul.mubr.bf16.gmra.mxu0 %v294
        %v7767 = vpop.f32.mrf.mxu0
        %v7768 = vadd.f32 %v7727, %v7767
        %v7769 = vpop.f32.mrf.mxu0
        %v7770 = vadd.f32 %v7729, %v7769
        %v7771 = vpop.f32.mrf.mxu0
        %v7772 = vpop.f32.mrf.mxu0
        %7773 = vdwg.mxu0
        %v7774 = vmax.f32 %v7112, 0.0
        %v7775 = vmax.f32 %v7114, 0.0
        %v7776 = vmax.f32 %v7768, 0.0
        %v7777 = vmax.f32 %v7770, 0.0
        %7778 = vst [vmem:[%s230] sm:$0xff] %v7774
        %7779 = vst [vmem:[%s230 + $0x8] sm:$0xff] %v7775
        %7780 = vst [vmem:[%s230 + $0x10] sm:$0xff] %v7776
        %7781 = vst [vmem:[%s230 + $0x18] sm:$0xff] %v7777
        %s7782 = smul.u32 4, %s20
        %p7783 = scmp.lt.s32.totalorder %s7782, 7
        %s7784 = scalar_select %p7783, %s7782, 7
        %s7785 = smul.addr %s7784, 8
        %s7786 = scalar_lea.vmem %s3, %s7785
        // Predicated region
        $region41: #{vae_forward.4} parent=31 // pred_check
          %p7787 = pneg %p111
        $region42: #{vae_forward.4} parent=31 // pred_check_branch
          %7789 = sbr.rel (%p7787) target = $region44
        $region43: #{vae_forward.4} parent=31 // pred_region
          %s7790 = smul.u32 4, %s20
        $region44: #{vae_forward.4} parent=31 // pred_fallthru
          _
      $region32: #{vae_forward.4} parent=5 // pred_fallthru
        _
      %p7791 = scmp.le.s32.totalorder 2, %s15
      // Predicated region
      $region45: #{vae_forward.4} parent=5 // pred_check
        %p7792 = pneg %p7791
      $region46: #{vae_forward.4} parent=5 // pred_check_branch
        %7794 = sbr.rel (%p7792) target = $region48
      $region47: #{vae_forward.4} parent=5 // pred_region
        %s7795 = ssub.s32 %s15, 2
        // Predicated region
        $region49: #{vae_forward.4} parent=47 // pred_check
          %p7796 = pneg %p117
        $region50: #{vae_forward.4} parent=47 // pred_check_branch
          %7798 = sbr.rel (%p7796) target = $region52
        $region51: #{vae_forward.4} parent=47 // pred_region
          %s7799 = smul.u32 4, %s21
          %p7800 = scmp.lt.s32.totalorder %s7799, 7
          %s7801 = scalar_select %p7800, %s7799, 7
          %s7802 = smul.addr %s7801, 8
          %s7803 = scalar_lea.vmem %s3, %s7802
        $region52: #{vae_forward.4} parent=47 // pred_fallthru
          _
      $region48: #{vae_forward.4} parent=5 // pred_fallthru
        _
    $region6: #{vae_forward.4} parent=1 // loop_footer
      %s19 = sadd.s32 1, %s15
    $region7: #{vae_forward.4} parent=1 // loop_footer_branch
      %14 = sbr.rel target = $region3
    $region8: #{vae_forward.4} parent=1 // loop_exit
      _
    %7804 = vsyncpa [#allocation3], 1
    %s7805 = scalar_lea.sflag [#allocation3], 1
    %7806 = vsyncpa %s7805, 1
    %7807 = vsyncpa [#allocation5], 1
    %s7808 = scalar_lea.sflag [#allocation5], 1
    %7809 = vsyncpa %s7808, 1

</llo_original>
